<compile_context>
chip_gen: v7x
topology: tpu7x:2x2x1
jax: 0.10.0
libtpu: 0.0.40
codegen_flags: <defaults>
</compile_context>

<pallas_src>
import functools

import jax
import jax.numpy as jnp
from jax.experimental import pallas as pl
from jax.experimental.pallas import tpu as pltpu

BN_EPS = 1e-3           # nn.BatchNorm1d(..., eps=0.001)
LEAKY_SLOPE = 0.01      # nn.LeakyReLU() default negative_slope
H1, H2, OUT_DIM = 512, 1024, 1


def _default_vmem_limit_bytes():
    """~3/4 of physical VMEM, capped at 96 MiB (v5e/v6e: 96 MiB; v7x: 48 MiB of 64 MiB)."""
    try:
        cap = pltpu.get_tpu_info().vmem_capacity_bytes
        return int(min(96 * 1024 * 1024, (cap * 3) // 4))
    except Exception:
        return 48 * 1024 * 1024


_VMEM_LIMIT_BYTES = _default_vmem_limit_bytes()


def _round_up(v, m):
    return ((v + m - 1) // m) * m


def _leaky_relu(h):
    # max(h, slope*h) == LeakyReLU(h) exactly for 0 < slope < 1 (one vmul + one vmax).
    return jnp.maximum(h, LEAKY_SLOPE * h)


def _mask_rows(vals, tile_idx, n_rows, block_rows):
    """Zero rows past the true batch size (only needed when the last tile is partial)."""
    if n_rows % block_rows == 0:
        return vals
    row = tile_idx * block_rows + jax.lax.broadcasted_iota(
        jnp.int32, (block_rows, 1), 0)
    return jnp.where(row < n_rows, vals, 0.0)


def _write_stats(stats_ref, vals, tile_idx, n_rows, block_rows):
    """Per-tile partial BN stats: stats_ref block is (1, 2, H) = [sum; sum-of-squares]."""
    vm = _mask_rows(vals, tile_idx, n_rows, block_rows)
    s = jnp.sum(vm, axis=0, keepdims=True)            # (1, H) f32
    ss = jnp.sum(vm * vm, axis=0, keepdims=True)      # (1, H) f32
    stats_ref[0:1, 0:1, :] = s[None]
    stats_ref[0:1, 1:2, :] = ss[None]


def _linear1(x_ref, w1_ref, b1_ref):
    # bf16 operands on the MXU; f32 accumulation + f32 bias add.
    return jnp.dot(x_ref[...].astype(jnp.bfloat16), w1_ref[...],
                   preferred_element_type=jnp.float32) + b1_ref[...]


def _bn_act(a, aff_ref):
    # Folded whole-batch BatchNorm (per-feature scale/shift) + LeakyReLU, all in f32.
    return _leaky_relu(a * aff_ref[0:1, :] + aff_ref[1:2, :])


# ----------------------------- kernels -----------------------------

def _stage1_kernel(x_ref, w1_ref, b1_ref, st1_ref, *, n_rows, block_rows):
    """a1 = x @ W1 + b1; emit only per-tile (sum, sumsq) partials for BN1."""
    a1 = _linear1(x_ref, w1_ref, b1_ref)
    _write_stats(st1_ref, a1, pl.program_id(0), n_rows, block_rows)


def _stage2_kernel(x_ref, w1_ref, b1_ref, aff1_ref, w2_ref, b2_ref, st2_ref, *,
                   n_rows, block_rows):
    """Recompute a1, apply BN1+LeakyReLU, a2 = h1 @ W2 + b2; emit BN2 stat partials."""
    h1 = _bn_act(_linear1(x_ref, w1_ref, b1_ref), aff1_ref)
    # TODO(synk): nn.Dropout(0.5) is stochastic; applied as inference-mode identity here.
    a2 = jnp.dot(h1.astype(jnp.bfloat16), w2_ref[...],
                 preferred_element_type=jnp.float32) + b2_ref[...]
    _write_stats(st2_ref, a2, pl.program_id(0), n_rows, block_rows)


def _stage3_kernel(x_ref, w1_ref, b1_ref, aff1_ref, w2_ref, b2_ref, aff2_ref,
                   w3_ref, b3_ref, o_ref):
    """Recompute the whole head and produce the (tb, 1) logits tile (no stats needed)."""
    h1 = _bn_act(_linear1(x_ref, w1_ref, b1_ref), aff1_ref)
    a2 = jnp.dot(h1.astype(jnp.bfloat16), w2_ref[...],
                 preferred_element_type=jnp.float32) + b2_ref[...]
    h2 = _bn_act(a2, aff2_ref)
    # (second Dropout(0.5) also treated as inference-mode identity)
    # Final Linear(1024 -> 1): VPU multiply + lane reduce (1-column MXU matmul wastes lanes).
    o = jnp.sum(h2 * w3_ref[...], axis=-1, keepdims=True) + b3_ref[...]
    o_ref[...] = o.astype(o_ref.dtype)


# --------------------------- pallas_call wrappers ---------------------------

def _call_stage1(x, kp, tb):
    n, e = x.shape
    nt = pl.cdiv(n, tb)
    kern = functools.partial(_stage1_kernel, n_rows=n, block_rows=tb)
    return pl.pallas_call(
        kern,
        grid=(nt,),
        in_specs=[
            pl.BlockSpec((tb, e), lambda i: (i, 0)),       # x tile (pipelined)
            pl.BlockSpec((e, H1), lambda i: (0, 0)),       # W1 (bf16) resident
            pl.BlockSpec((1, H1), lambda i: (0, 0)),       # b1 row resident
        ],
        out_specs=pl.BlockSpec((1, 2, H1), lambda i: (i, 0, 0)),  # per-tile stat partials
        out_shape=jax.ShapeDtypeStruct((nt, 2, H1), jnp.float32),
        compiler_params=pltpu.CompilerParams(
            dimension_semantics=("parallel",),
            vmem_limit_bytes=_VMEM_LIMIT_BYTES),
    )(x, kp["w1"], kp["b1"])


def _call_stage2(x, kp, aff1, tb):
    n, e = x.shape
    nt = pl.cdiv(n, tb)
    kern = functools.partial(_stage2_kernel, n_rows=n, block_rows=tb)
    return pl.pallas_call(
        kern,
        grid=(nt,),
        in_specs=[
            pl.BlockSpec((tb, e), lambda i: (i, 0)),
            pl.BlockSpec((e, H1), lambda i: (0, 0)),       # W1 (bf16) resident
            pl.BlockSpec((1, H1), lambda i: (0, 0)),       # b1
            pl.BlockSpec((2, H1), lambda i: (0, 0)),       # packed BN1 (scale, shift)
            pl.BlockSpec((H1, H2), lambda i: (0, 0)),      # W2 (bf16) resident
            pl.BlockSpec((1, H2), lambda i: (0, 0)),       # b2
        ],
        out_specs=pl.BlockSpec((1, 2, H2), lambda i: (i, 0, 0)),
        out_shape=jax.ShapeDtypeStruct((nt, 2, H2), jnp.float32),
        compiler_params=pltpu.CompilerParams(
            dimension_semantics=("parallel",),
            vmem_limit_bytes=_VMEM_LIMIT_BYTES),
    )(x, kp["w1"], kp["b1"], aff1, kp["w2"], kp["b2"])


def _call_stage3(x, kp, aff1, aff2, tb):
    n, e = x.shape
    return pl.pallas_call(
        _stage3_kernel,
        grid=(pl.cdiv(n, tb),),
        in_specs=[
            pl.BlockSpec((tb, e), lambda i: (i, 0)),
            pl.BlockSpec((e, H1), lambda i: (0, 0)),
            pl.BlockSpec((1, H1), lambda i: (0, 0)),
            pl.BlockSpec((2, H1), lambda i: (0, 0)),
            pl.BlockSpec((H1, H2), lambda i: (0, 0)),
            pl.BlockSpec((1, H2), lambda i: (0, 0)),
            pl.BlockSpec((2, H2), lambda i: (0, 0)),       # packed BN2 (scale, shift)
            pl.BlockSpec((1, H2), lambda i: (0, 0)),       # w3 as a (1, 1024) f32 row
            pl.BlockSpec((1, 1), lambda i: (0, 0)),        # b3
        ],
        out_specs=pl.BlockSpec((tb, OUT_DIM), lambda i: (i, 0)),
        out_shape=jax.ShapeDtypeStruct((n, OUT_DIM), jnp.float32),
        compiler_params=pltpu.CompilerParams(
            dimension_semantics=("parallel",),
            vmem_limit_bytes=_VMEM_LIMIT_BYTES),
    )(x, kp["w1"], kp["b1"], aff1, kp["w2"], kp["b2"], aff2, kp["w3"], kp["b3"])


def _bn_scale_shift(partials, gamma, beta, n):
    """Reduce (num_tiles, 2, H) partials and fold whole-batch training-mode BN (biased
    variance) + (gamma, beta) into a per-feature (scale, shift): bn(x) = x * scale + shift."""
    red = jnp.sum(partials, axis=0)                      # (2, H): [sum; sumsq]
    mean = red[0] / n
    var = jnp.maximum(red[1] / n - mean * mean, 0.0)     # single-pass stats; clamp cancellation
    scale = gamma * jax.lax.rsqrt(var + BN_EPS)
    shift = beta - mean * scale
    return jnp.stack([scale, shift], axis=0)             # (2, H) f32


@functools.partial(jax.jit, static_argnames=("block_rows",))
def adda_discriminator_forward(x, kp, *, block_rows=1024):
    """x: (N, emb_dim) float32.  kp: kernel-layout params from prepare_kernel_params()."""
    n = x.shape[0]
    tb = _round_up(min(block_rows, _round_up(n, 16)), 16)   # multiple of 16 (bf16 packing)

    st1 = _call_stage1(x, kp, tb)
    aff1 = _bn_scale_shift(st1, kp["g1"], kp["be1"], n)
    st2 = _call_stage2(x, kp, aff1, tb)
    aff2 = _bn_scale_shift(st2, kp["g2"], kp["be2"], n)
    return _call_stage3(x, kp, aff1, aff2, tb)


# --------------------------- parameters & reference ---------------------------

def init_torch_params(key, emb_dim):
    """Synthetic parameters with PyTorch layouts: Linear weight (out,in), bias (out,);
    BatchNorm1d weight=gamma, bias=beta per feature."""
    ks = jax.random.split(key, 10)

    def lin(kw, kb, fan_out, fan_in, scale=0.05):
        return (scale * jax.random.normal(kw, (fan_out, fan_in), jnp.float32),
                scale * jax.random.normal(kb, (fan_out,), jnp.float32))

    w1, b1 = lin(ks[0], ks[1], H1, emb_dim)
    w2, b2 = lin(ks[2], ks[3], H2, H1)
    w3, b3 = lin(ks[4], ks[5], OUT_DIM, H2)
    return {
        "w1": w1, "b1": b1, "w2": w2, "b2": b2, "w3": w3, "b3": b3,
        "g1": 1.0 + 0.1 * jax.random.normal(ks[6], (H1,), jnp.float32),
        "be1": 0.1 * jax.random.normal(ks[7], (H1,), jnp.float32),
        "g2": 1.0 + 0.1 * jax.random.normal(ks[8], (H2,), jnp.float32),
        "be2": 0.1 * jax.random.normal(ks[9], (H2,), jnp.float32),
    }


def prepare_kernel_params(p):
    """One-time layout prep (OUTSIDE the jitted hot path): transpose the big Linear weights to
    (in, out) and cast them to bf16 for the MXU; biases / BN affine stay f32; w3 becomes a
    (1, 1024) f32 row for the VPU reduce."""
    row = lambda v: jnp.asarray(v, jnp.float32).reshape(1, -1)
    return {
        "w1": jnp.asarray(p["w1"]).T.astype(jnp.bfloat16), "b1": row(p["b1"]),
        "w2": jnp.asarray(p["w2"]).T.astype(jnp.bfloat16), "b2": row(p["b2"]),
        "w3": row(p["w3"]), "b3": row(p["b3"]),
        "g1": jnp.asarray(p["g1"], jnp.float32), "be1": jnp.asarray(p["be1"], jnp.float32),
        "g2": jnp.asarray(p["g2"], jnp.float32), "be2": jnp.asarray(p["be2"], jnp.float32),
    }


def adda_discriminator_reference(x, p):
    """Pure-JAX f32 reference mirroring the PyTorch training-mode forward (dropout=identity)."""
    def bn(h, g, b):
        mean = jnp.mean(h, axis=0, keepdims=True)
        var = jnp.mean((h - mean) ** 2, axis=0, keepdims=True)   # biased variance
        return (h - mean) / jnp.sqrt(var + BN_EPS) * g + b

    def lrelu(h):
        return jnp.where(h >= 0, h, LEAKY_SLOPE * h)

    h = x @ p["w1"].T + p["b1"]
    h = lrelu(bn(h, p["g1"], p["be1"]))
    h = h @ p["w2"].T + p["b2"]
    h = lrelu(bn(h, p["g2"], p["be2"]))
    return h @ p["w3"].T + p["b3"]


if __name__ == "__main__":
    key = jax.random.PRNGKey(0)
    k_x, k_p = jax.random.split(key)

    batch, emb_dim = 200, 128                 # small demo; hidden sizes fixed by the module
    x = jax.random.normal(k_x, (batch, emb_dim), jnp.float32)
    torch_params = init_torch_params(k_p, emb_dim)
    kparams = prepare_kernel_params(torch_params)   # done once, outside the jitted forward

    ref = adda_discriminator_reference(x, torch_params)

    # block_rows=64 -> 4 batch tiles (last partial) to exercise the tiled, partial-stats BN
    # path; the default (block_rows=1024 -> single tile here) exercises the production path.
    out_tiled = jax.block_until_ready(adda_discriminator_forward(x, kparams, block_rows=64))
    out_default = jax.block_until_ready(adda_discriminator_forward(x, kparams))

    assert out_tiled.shape == (batch, OUT_DIM)
    # bf16 MXU operands dominate the numerical gap vs the pure-f32 reference.
    assert jnp.allclose(out_tiled, ref, atol=5e-2, rtol=5e-2), "mismatch vs reference (tiled)"
    assert jnp.allclose(out_default, ref, atol=5e-2, rtol=5e-2), "mismatch vs reference (default)"
    assert jnp.allclose(out_tiled, out_default, atol=2e-3, rtol=2e-3), "tiling changed results"

    print("KERNEL_OK")
</pallas_src>

<mosaic_0001>
module attributes {stable_mosaic.version = 11 : i64} {
  func.func @_stage1_kernel(%arg0: i32, %arg1: memref<64x128xf32, #tpu.memory_space<vmem>>, %arg2: memref<128x512xbf16, #tpu.memory_space<vmem>>, %arg3: memref<1x512xf32, #tpu.memory_space<vmem>>, %arg4: memref<1x2x512xf32, #tpu.memory_space<vmem>>) attributes {dimension_semantics = [#tpu.dimension_semantics<parallel>], iteration_bounds = array<i64: 4>, scalar_prefetch = 0 : i64, scratch_operands = 0 : i64, tpu.core_type = #tpu.core_type<tc>, window_params = [{transform_indices = @transform_0, window_bounds = array<i64: 64, 128>}, {pipeline_mode = #tpu.pipeline_mode<synchronous>, transform_indices = @transform_1, window_bounds = array<i64: 128, 512>}, {pipeline_mode = #tpu.pipeline_mode<synchronous>, transform_indices = @transform_2, window_bounds = array<i64: 1, 512>}, {transform_indices = @transform_3, window_bounds = array<i64: 1, 2, 512>}]} {
    %c0 = arith.constant 0 : index
    %c0_0 = arith.constant 0 : index
    %0 = vector.load %arg1[%c0, %c0_0] : memref<64x128xf32, #tpu.memory_space<vmem>>, vector<64x128xf32>
    %1 = arith.truncf %0 : vector<64x128xf32> to vector<64x128xbf16>
    %c0_1 = arith.constant 0 : index
    %c0_2 = arith.constant 0 : index
    %2 = vector.load %arg2[%c0_1, %c0_2] : memref<128x512xbf16, #tpu.memory_space<vmem>>, vector<128x512xbf16>
    %cst = arith.constant dense<0.000000e+00> : vector<64x512xf32>
    %3 = tpu.matmul %1, %2, %cst {dimension_numbers = #tpu.dot_dimension_numbers<[1], [0], [0], [1], [0, 0, 1, 1], [], []>} : vector<64x128xbf16>, vector<128x512xbf16>, vector<64x512xf32> -> vector<64x512xf32>
    %c0_3 = arith.constant 0 : index
    %c0_4 = arith.constant 0 : index
    %4 = vector.load %arg3[%c0_3, %c0_4] : memref<1x512xf32, #tpu.memory_space<vmem>>, vector<1x512xf32>
    %5 = vector.broadcast %4 : vector<1x512xf32> to vector<64x512xf32>
    %6 = arith.addf %3, %5 : vector<64x512xf32>
    %c64_i32 = arith.constant 64 : i32
    %7 = arith.muli %arg0, %c64_i32 : i32
    %8 = tpu.iota {dimensions = array<i32: 0>} : vector<64x1xi32>
    %9 = vector.broadcast %7 : i32 to vector<64x1xi32>
    %10 = arith.addi %9, %8 : vector<64x1xi32>
    %c200_i32 = arith.constant 200 : i32
    %11 = vector.broadcast %c200_i32 : i32 to vector<64x1xi32>
    %12 = arith.cmpi slt, %10, %11 : vector<64x1xi32>
    %cst_5 = arith.constant 0.000000e+00 : f32
    %13 = vector.shape_cast %12 : vector<64x1xi1> to vector<64x1xi1>
    %14 = vector.broadcast %13 : vector<64x1xi1> to vector<64x512xi1>
    %15 = vector.broadcast %cst_5 : f32 to vector<64x512xf32>
    %16 = arith.select %14, %6, %15 : vector<64x512xi1>, vector<64x512xf32>
    %cst_6 = arith.constant dense<0.000000e+00> : vector<512xf32>
    %17 = vector.multi_reduction <add>, %16, %cst_6 [0] : vector<64x512xf32> to vector<512xf32>
    %18 = vector.shape_cast %17 : vector<512xf32> to vector<1x512xf32>
    %19 = arith.mulf %16, %16 : vector<64x512xf32>
    %cst_7 = arith.constant dense<0.000000e+00> : vector<512xf32>
    %20 = vector.multi_reduction <add>, %19, %cst_7 [0] : vector<64x512xf32> to vector<512xf32>
    %21 = vector.shape_cast %20 : vector<512xf32> to vector<1x512xf32>
    %22 = vector.shape_cast %18 : vector<1x512xf32> to vector<1x1x512xf32>
    %c0_8 = arith.constant 0 : index
    %c0_9 = arith.constant 0 : index
    %c0_10 = arith.constant 0 : index
    %23 = vector.load %arg4[%c0_8, %c0_9, %c0_10] : memref<1x2x512xf32, #tpu.memory_space<vmem>>, vector<1x1x512xf32>
    tpu.vector_store %arg4[%c0_8, %c0_9, %c0_10], %22 {strides = array<i32>} : memref<1x2x512xf32, #tpu.memory_space<vmem>>, vector<1x1x512xf32>,
    %24 = vector.shape_cast %21 : vector<1x512xf32> to vector<1x1x512xf32>
    %c0_11 = arith.constant 0 : index
    %c1 = arith.constant 1 : index
    %c0_12 = arith.constant 0 : index
    %25 = vector.load %arg4[%c0_11, %c1, %c0_12] : memref<1x2x512xf32, #tpu.memory_space<vmem>>, vector<1x1x512xf32>
    tpu.vector_store %arg4[%c0_11, %c1, %c0_12], %24 {strides = array<i32>} : memref<1x2x512xf32, #tpu.memory_space<vmem>>, vector<1x1x512xf32>,
    return
  }
  func.func @transform_0(%arg0: i32) -> (i32, i32) {
    %c0_i32 = arith.constant 0 : i32
    %c0_i32_0 = arith.constant 0 : i32
    return %arg0, %c0_i32 : i32, i32
  }
  func.func @transform_1(%arg0: i32) -> (i32, i32) {
    %c0_i32 = arith.constant 0 : i32
    %c0_i32_0 = arith.constant 0 : i32
    %c0_i32_1 = arith.constant 0 : i32
    return %c0_i32, %c0_i32_0 : i32, i32
  }
  func.func @transform_2(%arg0: i32) -> (i32, i32) {
    %c0_i32 = arith.constant 0 : i32
    %c0_i32_0 = arith.constant 0 : i32
    %c0_i32_1 = arith.constant 0 : i32
    return %c0_i32, %c0_i32_0 : i32, i32
  }
  func.func @transform_3(%arg0: i32) -> (i32, i32, i32) {
    %c0_i32 = arith.constant 0 : i32
    %c0_i32_0 = arith.constant 0 : i32
    %c0_i32_1 = arith.constant 0 : i32
    return %arg0, %c0_i32, %c0_i32_0 : i32, i32, i32
  }
}

module attributes {stable_mosaic.version = 11 : i64} {
  func.func @_stage2_kernel(%arg0: i32, %arg1: memref<64x128xf32, #tpu.memory_space<vmem>>, %arg2: memref<128x512xbf16, #tpu.memory_space<vmem>>, %arg3: memref<1x512xf32, #tpu.memory_space<vmem>>, %arg4: memref<2x512xf32, #tpu.memory_space<vmem>>, %arg5: memref<512x1024xbf16, #tpu.memory_space<vmem>>, %arg6: memref<1x1024xf32, #tpu.memory_space<vmem>>, %arg7: memref<1x2x1024xf32, #tpu.memory_space<vmem>>) attributes {dimension_semantics = [#tpu.dimension_semantics<parallel>], iteration_bounds = array<i64: 4>, scalar_prefetch = 0 : i64, scratch_operands = 0 : i64, tpu.core_type = #tpu.core_type<tc>, window_params = [{transform_indices = @transform_0, window_bounds = array<i64: 64, 128>}, {pipeline_mode = #tpu.pipeline_mode<synchronous>, transform_indices = @transform_1, window_bounds = array<i64: 128, 512>}, {pipeline_mode = #tpu.pipeline_mode<synchronous>, transform_indices = @transform_2, window_bounds = array<i64: 1, 512>}, {pipeline_mode = #tpu.pipeline_mode<synchronous>, transform_indices = @transform_3, window_bounds = array<i64: 2, 512>}, {pipeline_mode = #tpu.pipeline_mode<synchronous>, transform_indices = @transform_4, window_bounds = array<i64: 512, 1024>}, {pipeline_mode = #tpu.pipeline_mode<synchronous>, transform_indices = @transform_5, window_bounds = array<i64: 1, 1024>}, {transform_indices = @transform_6, window_bounds = array<i64: 1, 2, 1024>}]} {
    %c0 = arith.constant 0 : index
    %c0_0 = arith.constant 0 : index
    %0 = vector.load %arg1[%c0, %c0_0] : memref<64x128xf32, #tpu.memory_space<vmem>>, vector<64x128xf32>
    %1 = arith.truncf %0 : vector<64x128xf32> to vector<64x128xbf16>
    %c0_1 = arith.constant 0 : index
    %c0_2 = arith.constant 0 : index
    %2 = vector.load %arg2[%c0_1, %c0_2] : memref<128x512xbf16, #tpu.memory_space<vmem>>, vector<128x512xbf16>
    %cst = arith.constant dense<0.000000e+00> : vector<64x512xf32>
    %3 = tpu.matmul %1, %2, %cst {dimension_numbers = #tpu.dot_dimension_numbers<[1], [0], [0], [1], [0, 0, 1, 1], [], []>} : vector<64x128xbf16>, vector<128x512xbf16>, vector<64x512xf32> -> vector<64x512xf32>
    %c0_3 = arith.constant 0 : index
    %c0_4 = arith.constant 0 : index
    %4 = vector.load %arg3[%c0_3, %c0_4] : memref<1x512xf32, #tpu.memory_space<vmem>>, vector<1x512xf32>
    %5 = vector.broadcast %4 : vector<1x512xf32> to vector<64x512xf32>
    %6 = arith.addf %3, %5 : vector<64x512xf32>
    %c0_5 = arith.constant 0 : index
    %c0_6 = arith.constant 0 : index
    %7 = vector.load %arg4[%c0_5, %c0_6] : memref<2x512xf32, #tpu.memory_space<vmem>>, vector<1x512xf32>
    %8 = vector.broadcast %7 : vector<1x512xf32> to vector<64x512xf32>
    %9 = arith.mulf %6, %8 : vector<64x512xf32>
    %c1 = arith.constant 1 : index
    %c0_7 = arith.constant 0 : index
    %10 = vector.load %arg4[%c1, %c0_7] : memref<2x512xf32, #tpu.memory_space<vmem>>, vector<1x512xf32>
    %11 = vector.broadcast %10 : vector<1x512xf32> to vector<64x512xf32>
    %12 = arith.addf %9, %11 : vector<64x512xf32>
    %cst_8 = arith.constant 0.00999999977 : f32
    %13 = vector.broadcast %cst_8 : f32 to vector<64x512xf32>
    %14 = arith.mulf %13, %12 : vector<64x512xf32>
    %15 = arith.maximumf %12, %14 : vector<64x512xf32>
    %16 = arith.truncf %15 : vector<64x512xf32> to vector<64x512xbf16>
    %c0_9 = arith.constant 0 : index
    %c0_10 = arith.constant 0 : index
    %17 = vector.load %arg5[%c0_9, %c0_10] : memref<512x1024xbf16, #tpu.memory_space<vmem>>, vector<512x1024xbf16>
    %cst_11 = arith.constant dense<0.000000e+00> : vector<64x1024xf32>
    %18 = tpu.matmul %16, %17, %cst_11 {dimension_numbers = #tpu.dot_dimension_numbers<[1], [0], [0], [1], [0, 0, 1, 1], [], []>} : vector<64x512xbf16>, vector<512x1024xbf16>, vector<64x1024xf32> -> vector<64x1024xf32>
    %c0_12 = arith.constant 0 : index
    %c0_13 = arith.constant 0 : index
    %19 = vector.load %arg6[%c0_12, %c0_13] : memref<1x1024xf32, #tpu.memory_space<vmem>>, vector<1x1024xf32>
    %20 = vector.broadcast %19 : vector<1x1024xf32> to vector<64x1024xf32>
    %21 = arith.addf %18, %20 : vector<64x1024xf32>
    %c64_i32 = arith.constant 64 : i32
    %22 = arith.muli %arg0, %c64_i32 : i32
    %23 = tpu.iota {dimensions = array<i32: 0>} : vector<64x1xi32>
    %24 = vector.broadcast %22 : i32 to vector<64x1xi32>
    %25 = arith.addi %24, %23 : vector<64x1xi32>
    %c200_i32 = arith.constant 200 : i32
    %26 = vector.broadcast %c200_i32 : i32 to vector<64x1xi32>
    %27 = arith.cmpi slt, %25, %26 : vector<64x1xi32>
    %cst_14 = arith.constant 0.000000e+00 : f32
    %28 = vector.shape_cast %27 : vector<64x1xi1> to vector<64x1xi1>
    %29 = vector.broadcast %28 : vector<64x1xi1> to vector<64x1024xi1>
    %30 = vector.broadcast %cst_14 : f32 to vector<64x1024xf32>
    %31 = arith.select %29, %21, %30 : vector<64x1024xi1>, vector<64x1024xf32>
    %cst_15 = arith.constant dense<0.000000e+00> : vector<1024xf32>
    %32 = vector.multi_reduction <add>, %31, %cst_15 [0] : vector<64x1024xf32> to vector<1024xf32>
    %33 = vector.shape_cast %32 : vector<1024xf32> to vector<1x1024xf32>
    %34 = arith.mulf %31, %31 : vector<64x1024xf32>
    %cst_16 = arith.constant dense<0.000000e+00> : vector<1024xf32>
    %35 = vector.multi_reduction <add>, %34, %cst_16 [0] : vector<64x1024xf32> to vector<1024xf32>
    %36 = vector.shape_cast %35 : vector<1024xf32> to vector<1x1024xf32>
    %37 = vector.shape_cast %33 : vector<1x1024xf32> to vector<1x1x1024xf32>
    %c0_17 = arith.constant 0 : index
    %c0_18 = arith.constant 0 : index
    %c0_19 = arith.constant 0 : index
    %38 = vector.load %arg7[%c0_17, %c0_18, %c0_19] : memref<1x2x1024xf32, #tpu.memory_space<vmem>>, vector<1x1x1024xf32>
    tpu.vector_store %arg7[%c0_17, %c0_18, %c0_19], %37 {strides = array<i32>} : memref<1x2x1024xf32, #tpu.memory_space<vmem>>, vector<1x1x1024xf32>,
    %39 = vector.shape_cast %36 : vector<1x1024xf32> to vector<1x1x1024xf32>
    %c0_20 = arith.constant 0 : index
    %c1_21 = arith.constant 1 : index
    %c0_22 = arith.constant 0 : index
    %40 = vector.load %arg7[%c0_20, %c1_21, %c0_22] : memref<1x2x1024xf32, #tpu.memory_space<vmem>>, vector<1x1x1024xf32>
    tpu.vector_store %arg7[%c0_20, %c1_21, %c0_22], %39 {strides = array<i32>} : memref<1x2x1024xf32, #tpu.memory_space<vmem>>, vector<1x1x1024xf32>,
    return
  }
  func.func @transform_0(%arg0: i32) -> (i32, i32) {
    %c0_i32 = arith.constant 0 : i32
    %c0_i32_0 = arith.constant 0 : i32
    return %arg0, %c0_i32 : i32, i32
  }
  func.func @transform_1(%arg0: i32) -> (i32, i32) {
    %c0_i32 = arith.constant 0 : i32
    %c0_i32_0 = arith.constant 0 : i32
    %c0_i32_1 = arith.constant 0 : i32
    return %c0_i32, %c0_i32_0 : i32, i32
  }
  func.func @transform_2(%arg0: i32) -> (i32, i32) {
    %c0_i32 = arith.constant 0 : i32
    %c0_i32_0 = arith.constant 0 : i32
    %c0_i32_1 = arith.constant 0 : i32
    return %c0_i32, %c0_i32_0 : i32, i32
  }
  func.func @transform_3(%arg0: i32) -> (i32, i32) {
    %c0_i32 = arith.constant 0 : i32
    %c0_i32_0 = arith.constant 0 : i32
    %c0_i32_1 = arith.constant 0 : i32
    return %c0_i32, %c0_i32_0 : i32, i32
  }
  func.func @transform_4(%arg0: i32) -> (i32, i32) {
    %c0_i32 = arith.constant 0 : i32
    %c0_i32_0 = arith.constant 0 : i32
    %c0_i32_1 = arith.constant 0 : i32
    return %c0_i32, %c0_i32_0 : i32, i32
  }
  func.func @transform_5(%arg0: i32) -> (i32, i32) {
    %c0_i32 = arith.constant 0 : i32
    %c0_i32_0 = arith.constant 0 : i32
    %c0_i32_1 = arith.constant 0 : i32
    return %c0_i32, %c0_i32_0 : i32, i32
  }
  func.func @transform_6(%arg0: i32) -> (i32, i32, i32) {
    %c0_i32 = arith.constant 0 : i32
    %c0_i32_0 = arith.constant 0 : i32
    %c0_i32_1 = arith.constant 0 : i32
    return %arg0, %c0_i32, %c0_i32_0 : i32, i32, i32
  }
}

module attributes {stable_mosaic.version = 11 : i64} {
  func.func @_stage3_kernel(%arg0: i32, %arg1: memref<64x128xf32, #tpu.memory_space<vmem>>, %arg2: memref<128x512xbf16, #tpu.memory_space<vmem>>, %arg3: memref<1x512xf32, #tpu.memory_space<vmem>>, %arg4: memref<2x512xf32, #tpu.memory_space<vmem>>, %arg5: memref<512x1024xbf16, #tpu.memory_space<vmem>>, %arg6: memref<1x1024xf32, #tpu.memory_space<vmem>>, %arg7: memref<2x1024xf32, #tpu.memory_space<vmem>>, %arg8: memref<1x1024xf32, #tpu.memory_space<vmem>>, %arg9: memref<1x1xf32, #tpu.memory_space<vmem>>, %arg10: memref<64x1xf32, #tpu.memory_space<vmem>>) attributes {dimension_semantics = [#tpu.dimension_semantics<parallel>], iteration_bounds = array<i64: 4>, scalar_prefetch = 0 : i64, scratch_operands = 0 : i64, tpu.core_type = #tpu.core_type<tc>, window_params = [{transform_indices = @transform_0, window_bounds = array<i64: 64, 128>}, {pipeline_mode = #tpu.pipeline_mode<synchronous>, transform_indices = @transform_1, window_bounds = array<i64: 128, 512>}, {pipeline_mode = #tpu.pipeline_mode<synchronous>, transform_indices = @transform_2, window_bounds = array<i64: 1, 512>}, {pipeline_mode = #tpu.pipeline_mode<synchronous>, transform_indices = @transform_3, window_bounds = array<i64: 2, 512>}, {pipeline_mode = #tpu.pipeline_mode<synchronous>, transform_indices = @transform_4, window_bounds = array<i64: 512, 1024>}, {pipeline_mode = #tpu.pipeline_mode<synchronous>, transform_indices = @transform_5, window_bounds = array<i64: 1, 1024>}, {pipeline_mode = #tpu.pipeline_mode<synchronous>, transform_indices = @transform_6, window_bounds = array<i64: 2, 1024>}, {pipeline_mode = #tpu.pipeline_mode<synchronous>, transform_indices = @transform_7, window_bounds = array<i64: 1, 1024>}, {pipeline_mode = #tpu.pipeline_mode<synchronous>, transform_indices = @transform_8, window_bounds = array<i64: 1, 1>}, {transform_indices = @transform_9, window_bounds = array<i64: 64, 1>}]} {
    %c0 = arith.constant 0 : index
    %c0_0 = arith.constant 0 : index
    %0 = vector.load %arg1[%c0, %c0_0] : memref<64x128xf32, #tpu.memory_space<vmem>>, vector<64x128xf32>
    %1 = arith.truncf %0 : vector<64x128xf32> to vector<64x128xbf16>
    %c0_1 = arith.constant 0 : index
    %c0_2 = arith.constant 0 : index
    %2 = vector.load %arg2[%c0_1, %c0_2] : memref<128x512xbf16, #tpu.memory_space<vmem>>, vector<128x512xbf16>
    %cst = arith.constant dense<0.000000e+00> : vector<64x512xf32>
    %3 = tpu.matmul %1, %2, %cst {dimension_numbers = #tpu.dot_dimension_numbers<[1], [0], [0], [1], [0, 0, 1, 1], [], []>} : vector<64x128xbf16>, vector<128x512xbf16>, vector<64x512xf32> -> vector<64x512xf32>
    %c0_3 = arith.constant 0 : index
    %c0_4 = arith.constant 0 : index
    %4 = vector.load %arg3[%c0_3, %c0_4] : memref<1x512xf32, #tpu.memory_space<vmem>>, vector<1x512xf32>
    %5 = vector.broadcast %4 : vector<1x512xf32> to vector<64x512xf32>
    %6 = arith.addf %3, %5 : vector<64x512xf32>
    %c0_5 = arith.constant 0 : index
    %c0_6 = arith.constant 0 : index
    %7 = vector.load %arg4[%c0_5, %c0_6] : memref<2x512xf32, #tpu.memory_space<vmem>>, vector<1x512xf32>
    %8 = vector.broadcast %7 : vector<1x512xf32> to vector<64x512xf32>
    %9 = arith.mulf %6, %8 : vector<64x512xf32>
    %c1 = arith.constant 1 : index
    %c0_7 = arith.constant 0 : index
    %10 = vector.load %arg4[%c1, %c0_7] : memref<2x512xf32, #tpu.memory_space<vmem>>, vector<1x512xf32>
    %11 = vector.broadcast %10 : vector<1x512xf32> to vector<64x512xf32>
    %12 = arith.addf %9, %11 : vector<64x512xf32>
    %cst_8 = arith.constant 0.00999999977 : f32
    %13 = vector.broadcast %cst_8 : f32 to vector<64x512xf32>
    %14 = arith.mulf %13, %12 : vector<64x512xf32>
    %15 = arith.maximumf %12, %14 : vector<64x512xf32>
    %16 = arith.truncf %15 : vector<64x512xf32> to vector<64x512xbf16>
    %c0_9 = arith.constant 0 : index
    %c0_10 = arith.constant 0 : index
    %17 = vector.load %arg5[%c0_9, %c0_10] : memref<512x1024xbf16, #tpu.memory_space<vmem>>, vector<512x1024xbf16>
    %cst_11 = arith.constant dense<0.000000e+00> : vector<64x1024xf32>
    %18 = tpu.matmul %16, %17, %cst_11 {dimension_numbers = #tpu.dot_dimension_numbers<[1], [0], [0], [1], [0, 0, 1, 1], [], []>} : vector<64x512xbf16>, vector<512x1024xbf16>, vector<64x1024xf32> -> vector<64x1024xf32>
    %c0_12 = arith.constant 0 : index
    %c0_13 = arith.constant 0 : index
    %19 = vector.load %arg6[%c0_12, %c0_13] : memref<1x1024xf32, #tpu.memory_space<vmem>>, vector<1x1024xf32>
    %20 = vector.broadcast %19 : vector<1x1024xf32> to vector<64x1024xf32>
    %21 = arith.addf %18, %20 : vector<64x1024xf32>
    %c0_14 = arith.constant 0 : index
    %c0_15 = arith.constant 0 : index
    %22 = vector.load %arg7[%c0_14, %c0_15] : memref<2x1024xf32, #tpu.memory_space<vmem>>, vector<1x1024xf32>
    %23 = vector.broadcast %22 : vector<1x1024xf32> to vector<64x1024xf32>
    %24 = arith.mulf %21, %23 : vector<64x1024xf32>
    %c1_16 = arith.constant 1 : index
    %c0_17 = arith.constant 0 : index
    %25 = vector.load %arg7[%c1_16, %c0_17] : memref<2x1024xf32, #tpu.memory_space<vmem>>, vector<1x1024xf32>
    %26 = vector.broadcast %25 : vector<1x1024xf32> to vector<64x1024xf32>
    %27 = arith.addf %24, %26 : vector<64x1024xf32>
    %cst_18 = arith.constant 0.00999999977 : f32
    %28 = vector.broadcast %cst_18 : f32 to vector<64x1024xf32>
    %29 = arith.mulf %28, %27 : vector<64x1024xf32>
    %30 = arith.maximumf %27, %29 : vector<64x1024xf32>
    %c0_19 = arith.constant 0 : index
    %c0_20 = arith.constant 0 : index
    %31 = vector.load %arg8[%c0_19, %c0_20] : memref<1x1024xf32, #tpu.memory_space<vmem>>, vector<1x1024xf32>
    %32 = vector.broadcast %31 : vector<1x1024xf32> to vector<64x1024xf32>
    %33 = arith.mulf %30, %32 : vector<64x1024xf32>
    %cst_21 = arith.constant dense<0.000000e+00> : vector<64xf32>
    %34 = vector.multi_reduction <add>, %33, %cst_21 [1] : vector<64x1024xf32> to vector<64xf32>
    %35 = vector.shape_cast %34 : vector<64xf32> to vector<64x1xf32>
    %c0_22 = arith.constant 0 : index
    %c0_23 = arith.constant 0 : index
    %36 = vector.load %arg9[%c0_22, %c0_23] : memref<1x1xf32, #tpu.memory_space<vmem>>, vector<1x1xf32>
    %37 = vector.broadcast %36 : vector<1x1xf32> to vector<64x1xf32>
    %38 = arith.addf %35, %37 : vector<64x1xf32>
    %c0_24 = arith.constant 0 : index
    %c0_25 = arith.constant 0 : index
    %39 = vector.load %arg10[%c0_24, %c0_25] : memref<64x1xf32, #tpu.memory_space<vmem>>, vector<64x1xf32>
    tpu.vector_store %arg10[%c0_24, %c0_25], %38 {strides = array<i32>} : memref<64x1xf32, #tpu.memory_space<vmem>>, vector<64x1xf32>,
    return
  }
  func.func @transform_0(%arg0: i32) -> (i32, i32) {
    %c0_i32 = arith.constant 0 : i32
    %c0_i32_0 = arith.constant 0 : i32
    return %arg0, %c0_i32 : i32, i32
  }
  func.func @transform_1(%arg0: i32) -> (i32, i32) {
    %c0_i32 = arith.constant 0 : i32
    %c0_i32_0 = arith.constant 0 : i32
    %c0_i32_1 = arith.constant 0 : i32
    return %c0_i32, %c0_i32_0 : i32, i32
  }
  func.func @transform_2(%arg0: i32) -> (i32, i32) {
    %c0_i32 = arith.constant 0 : i32
    %c0_i32_0 = arith.constant 0 : i32
    %c0_i32_1 = arith.constant 0 : i32
    return %c0_i32, %c0_i32_0 : i32, i32
  }
  func.func @transform_3(%arg0: i32) -> (i32, i32) {
    %c0_i32 = arith.constant 0 : i32
    %c0_i32_0 = arith.constant 0 : i32
    %c0_i32_1 = arith.constant 0 : i32
    return %c0_i32, %c0_i32_0 : i32, i32
  }
  func.func @transform_4(%arg0: i32) -> (i32, i32) {
    %c0_i32 = arith.constant 0 : i32
    %c0_i32_0 = arith.constant 0 : i32
    %c0_i32_1 = arith.constant 0 : i32
    return %c0_i32, %c0_i32_0 : i32, i32
  }
  func.func @transform_5(%arg0: i32) -> (i32, i32) {
    %c0_i32 = arith.constant 0 : i32
    %c0_i32_0 = arith.constant 0 : i32
    %c0_i32_1 = arith.constant 0 : i32
    return %c0_i32, %c0_i32_0 : i32, i32
  }
  func.func @transform_6(%arg0: i32) -> (i32, i32) {
    %c0_i32 = arith.constant 0 : i32
    %c0_i32_0 = arith.constant 0 : i32
    %c0_i32_1 = arith.constant 0 : i32
    return %c0_i32, %c0_i32_0 : i32, i32
  }
  func.func @transform_7(%arg0: i32) -> (i32, i32) {
    %c0_i32 = arith.constant 0 : i32
    %c0_i32_0 = arith.constant 0 : i32
    %c0_i32_1 = arith.constant 0 : i32
    return %c0_i32, %c0_i32_0 : i32, i32
  }
  func.func @transform_8(%arg0: i32) -> (i32, i32) {
    %c0_i32 = arith.constant 0 : i32
    %c0_i32_0 = arith.constant 0 : i32
    %c0_i32_1 = arith.constant 0 : i32
    return %c0_i32, %c0_i32_0 : i32, i32
  }
  func.func @transform_9(%arg0: i32) -> (i32, i32) {
    %c0_i32 = arith.constant 0 : i32
    %c0_i32_0 = arith.constant 0 : i32
    return %arg0, %c0_i32 : i32, i32
  }
}

</mosaic_0001>

<llo_original>
// kernel: adda_discriminator_forward.3
$region0: #{adda_discriminator_forward.3}
  #allocation0 [shape = 'u32[]', space=smem, size = 0x4, offset = 0x4, fixed_abs, tag = 'smem constant byte address 0x4 - core index']
  #allocation1 [shape = 'u32[144,128]{1,0:T(1,128)}', space=vmem, size = 0x12000, scoped, tag = 'internal scratch']
  %s0 = inlined_call_operand.hbm [shape: f32[200,128], index: 0, kind: input, shape index: {}]
  %s1 = inlined_call_operand.hbm [shape: bf16[128,512], index: 1, kind: input, shape index: {}]
  %s2 = inlined_call_operand.vmem [shape: f32[1,512], index: 2, kind: input, shape index: {}]
  %s3 = inlined_call_operand.vmem [shape: f32[4,2,512], index: 3, kind: output, shape index: {}]
  %s4 = sld [smem:[#allocation0]]
  $region53: #{adda_discriminator_forward.3} parent=0
    _
  %s6 = ssub.s32 1, %s4
  %s7 = scalar_select 0, %s6, %s4
  $region1: #{adda_discriminator_forward.3} parent=0
    #allocation2 [shape = 'u8[65536]{0}', space=vmem, size = 0x10000, scoped, tag = 'input window, operand 0']
    #allocation3 [shape = 's32[2]{0}', space=sflag, size = 0x8, scoped, tag = 'scoped memory for adda_discriminator_forward.3']
    #allocation4 [shape = 'u8[131072]{0}', space=vmem, size = 0x20000, scoped, tag = 'input window, operand 1, single buffered']
    #allocation5 [shape = 's32[1]{0}', space=sflag, size = 0x4, scoped, tag = 'scoped memory for adda_discriminator_forward.3']
    %8 = vsyncpa [#allocation3], 0
    %s9 = scalar_lea.sflag [#allocation3], 1
    %10 = vsyncpa %s9, 0
    %11 = vsyncpa [#allocation5], 0
    loop: start=0, step=1, limit=6
    $region2: #{adda_discriminator_forward.3} parent=1 // loop_pre_header
      _
    $region3: #{adda_discriminator_forward.3} parent=1 // loop_header
      %s13 = sphi 0, %s17
      %p14 = scmp.ge.s32.totalorder %s13, 6
      %s23 = sphi 0, %s25
      %s26 = sphi 0, %s23
      %s27 = sphi 0, %s26
      %s43 = sphi 0, %s27
      %s47 = sphi 0, %s47
      %s49 = sphi 0, %s47
      %s50 = sphi 0, %s49
      %s64 = sphi 0, %s50
      %s68 = sphi 0, %s68
      %s70 = sphi 0, %s68
      %s71 = sphi 0, %s70
      %s85 = sphi 0, %s71
      %s91 = sphi 0, %s93
      %s94 = sphi 0, %s91
      %s95 = sphi 0, %s94
      %s111 = sphi 0, %s95
    $region4: #{adda_discriminator_forward.3} parent=1 // loop_header_branch
      %16 = sbr.rel (%p14) target = $region8
    $region5: #{adda_discriminator_forward.3} parent=1 // loop_body
      %s18 = ssub.s32 %s13, 1
      %s19 = ssub.s32 %s13, 2
      %s20 = sadd.s32 %s13, 1
      %s21 = ssub.s32 %s13, %s20
      %p22 = scmp.eq.s32.totalorder %s21, 0
      %s24 = sadd.s32 %s23, 1
      %s25 = scalar_select %p22, %s23, %s24
      %p28 = pneg %p22
      %p29 = scmp.eq.s32.totalorder %s13, 3
      %p30 = por %p28, %p29
      %p31 = scmp.ne.s32.totalorder %s23, %s26
      %p32 = scmp.eq.s32.totalorder %s13, 0
      %p33 = por %p31, %p32
      %p34 = scmp.ne.s32.totalorder %s23, %s26
      %p35 = scmp.eq.s32.totalorder %s18, 3
      %p36 = por %p34, %p35
      %p37 = scmp.ne.s32.totalorder %s26, %s27
      %p38 = scmp.eq.s32.totalorder %s18, 0
      %p39 = por %p37, %p38
      %p40 = scmp.ne.s32.totalorder %s26, %s27
      %p41 = scmp.eq.s32.totalorder %s19, 3
      %p42 = por %p40, %p41
      %p44 = scmp.ne.s32.totalorder %s27, %s43
      %p45 = scmp.eq.s32.totalorder %s19, 0
      %p46 = por %p44, %p45
      %s48 = sadd.s32 %s47, 1
      %p51 = scmp.eq.s32.totalorder %s13, 3
      %p52 = scmp.ne.s32.totalorder %s47, %s49
      %p53 = scmp.eq.s32.totalorder %s13, 0
      %p54 = por %p52, %p53
      %p55 = scmp.ne.s32.totalorder %s47, %s49
      %p56 = scmp.eq.s32.totalorder %s18, 3
      %p57 = por %p55, %p56
      %p58 = scmp.ne.s32.totalorder %s49, %s50
      %p59 = scmp.eq.s32.totalorder %s18, 0
      %p60 = por %p58, %p59
      %p61 = scmp.ne.s32.totalorder %s49, %s50
      %p62 = scmp.eq.s32.totalorder %s19, 3
      %p63 = por %p61, %p62
      %p65 = scmp.ne.s32.totalorder %s50, %s64
      %p66 = scmp.eq.s32.totalorder %s19, 0
      %p67 = por %p65, %p66
      %s69 = sadd.s32 %s68, 1
      %p72 = scmp.eq.s32.totalorder %s13, 3
      %p73 = scmp.ne.s32.totalorder %s68, %s70
      %p74 = scmp.eq.s32.totalorder %s13, 0
      %p75 = por %p73, %p74
      %p76 = scmp.ne.s32.totalorder %s68, %s70
      %p77 = scmp.eq.s32.totalorder %s18, 3
      %p78 = por %p76, %p77
      %p79 = scmp.ne.s32.totalorder %s70, %s71
      %p80 = scmp.eq.s32.totalorder %s18, 0
      %p81 = por %p79, %p80
      %p82 = scmp.ne.s32.totalorder %s70, %s71
      %p83 = scmp.eq.s32.totalorder %s19, 3
      %p84 = por %p82, %p83
      %p86 = scmp.ne.s32.totalorder %s71, %s85
      %p87 = scmp.eq.s32.totalorder %s19, 0
      %p88 = por %p86, %p87
      %s89 = ssub.s32 %s13, %s20
      %p90 = scmp.eq.s32.totalorder %s89, 0
      %s92 = sadd.s32 %s91, 1
      %s93 = scalar_select %p90, %s91, %s92
      %p96 = pneg %p90
      %p97 = scmp.eq.s32.totalorder %s13, 3
      %p98 = por %p96, %p97
      %p99 = scmp.ne.s32.totalorder %s91, %s94
      %p100 = scmp.eq.s32.totalorder %s13, 0
      %p101 = por %p99, %p100
      %p102 = scmp.ne.s32.totalorder %s91, %s94
      %p103 = scmp.eq.s32.totalorder %s18, 3
      %p104 = por %p102, %p103
      %p105 = scmp.ne.s32.totalorder %s94, %s95
      %p106 = scmp.eq.s32.totalorder %s18, 0
      %p107 = por %p105, %p106
      %p108 = scmp.ne.s32.totalorder %s94, %s95
      %p109 = scmp.eq.s32.totalorder %s19, 3
      %p110 = por %p108, %p109
      %p112 = scmp.ne.s32.totalorder %s95, %s111
      %p113 = scmp.eq.s32.totalorder %s19, 0
      %p114 = por %p112, %p113
      %p115 = scmp.le.s32.totalorder 1, %s13
      %p116 = scmp.lt.s32.totalorder %s13, 5
      %p117 = pnand %p115, %p116
      %p118 = pneg %p117
      // Predicated region
      $region9: #{adda_discriminator_forward.3} parent=5 // pred_check
        _
      $region10: #{adda_discriminator_forward.3} parent=5 // pred_check_branch
        %120 = sbr.rel (%p117) target = $region12
      $region11: #{adda_discriminator_forward.3} parent=5 // pred_region
        %s121 = ssub.s32 %s13, 1
        // Predicated region
        $region13: #{adda_discriminator_forward.3} parent=11 // pred_check
          %p122 = pneg %p60
        $region14: #{adda_discriminator_forward.3} parent=11 // pred_check_branch
          %124 = sbr.rel (%p122) target = $region16
        $region15: #{adda_discriminator_forward.3} parent=11 // pred_region
          %s126 = ssub.s32 4096, 4096
          %127 = vsyncadd [#allocation5], %s126
          %s128 = sshll.u32 [#allocation4], 4
          %s129 = int_to_ptr.vmem [resolvable:$true] %s128
          %134 = dma.hbm_to_vmem [thread:$0]  %s1, 4096, %s129, [#allocation5], 256, 256, 16
        $region16: #{adda_discriminator_forward.3} parent=11 // pred_fallthru
          _
        // Predicated region
        $region17: #{adda_discriminator_forward.3} parent=11 // pred_check
          %p135 = pneg %p81
        $region18: #{adda_discriminator_forward.3} parent=11 // pred_check_branch
          %137 = sbr.rel (%p135) target = $region20
        $region19: #{adda_discriminator_forward.3} parent=11 // pred_region
          _
        $region20: #{adda_discriminator_forward.3} parent=11 // pred_fallthru
          _
      $region12: #{adda_discriminator_forward.3} parent=5 // pred_fallthru
        _
      %p138 = scmp.lt.s32.totalorder %s13, 4
      // Predicated region
      $region21: #{adda_discriminator_forward.3} parent=5 // pred_check
        %p139 = pneg %p138
      $region22: #{adda_discriminator_forward.3} parent=5 // pred_check_branch
        %141 = sbr.rel (%p139) target = $region24
      $region23: #{adda_discriminator_forward.3} parent=5 // pred_region
        // Predicated region
        $region25: #{adda_discriminator_forward.3} parent=23 // pred_check
          %p142 = pneg %p33
        $region26: #{adda_discriminator_forward.3} parent=23 // pred_check_branch
          %144 = sbr.rel (%p142) target = $region28
        $region27: #{adda_discriminator_forward.3} parent=23 // pred_region
          %s145 = sand.u32 %s23, 1
          %s146 = scalar_lea.sflag [#allocation3], %s145
          %s147 = sand.u32 %s23, 1
          %s148 = smul.addr %s147, 64
          %s149 = scalar_lea.vmem [#allocation2], %s148
          %s150 = smul.u32 8, %s13
          %s151 = ssub.s32 25, %s150
          %p152 = scmp.lt.s32.totalorder %s151, 8
          %s153 = scalar_select %p152, %s151, 8
          %s154 = smul.u32 128, %s153
          %s156 = ssub.s32 1024, %s154
          %157 = vsyncadd %s146, %s156
          %p158 = scmp.ne.s32.totalorder 0, %s154
          %s159 = smul.addr %s150, 128
          %s160 = scalar_lea.hbm %s0, %s159
          %s161 = smul.u32 8, %s153
          %s162 = sshll.u32 %s149, 4
          %s163 = int_to_ptr.vmem [resolvable:$true] %s162
          %s164 = sshll.u32 %s161, 4
          %168 = dma.hbm_to_vmem [thread:$0]  (%p158), %s160, %s164, %s163, %s146, 128, 128, 8
        $region28: #{adda_discriminator_forward.3} parent=23 // pred_fallthru
          _
      $region24: #{adda_discriminator_forward.3} parent=5 // pred_fallthru
        _
      %p169 = scmp.le.s32.totalorder 1, %s13
      %p170 = scmp.lt.s32.totalorder %s13, 5
      %p171 = pnand %p169, %p170
      %p172 = pneg %p171
      // Predicated region
      $region29: #{adda_discriminator_forward.3} parent=5 // pred_check
        _
      $region30: #{adda_discriminator_forward.3} parent=5 // pred_check_branch
        %174 = sbr.rel (%p171) target = $region32
      $region31: #{adda_discriminator_forward.3} parent=5 // pred_region
        %s175 = ssub.s32 %s13, 1
        %s176 = sand.u32 %s26, 1
        %s177 = scalar_lea.sflag [#allocation3], %s176
        %s178 = sand.u32 %s26, 1
        %s179 = smul.addr %s178, 64
        %s180 = scalar_lea.vmem [#allocation2], %s179
        // Predicated region
        $region33: #{adda_discriminator_forward.3} parent=31 // pred_check
          %p181 = pneg %p39
        $region34: #{adda_discriminator_forward.3} parent=31 // pred_check_branch
          %183 = sbr.rel (%p181) target = $region36
        $region35: #{adda_discriminator_forward.3} parent=31 // pred_region
          %184 = dma.done %s177, 1024
        $region36: #{adda_discriminator_forward.3} parent=31 // pred_fallthru
          _
        // Predicated region
        $region37: #{adda_discriminator_forward.3} parent=31 // pred_check
          %p185 = pneg %p60
        $region38: #{adda_discriminator_forward.3} parent=31 // pred_check_branch
          %187 = sbr.rel (%p185) target = $region40
        $region39: #{adda_discriminator_forward.3} parent=31 // pred_region
          %188 = dma.done [#allocation5], 4096
        $region40: #{adda_discriminator_forward.3} parent=31 // pred_fallthru
          _
        %s189 = sand.u32 %s26, 1
        %s190 = scalar_lea.sflag [#allocation3], %s189
        %s191 = sand.u32 %s26, 1
        %s192 = smul.addr %s191, 64
        %s193 = scalar_lea.vmem [#allocation2], %s192
        %p194 = pneg %p39
        %p195 = pneg %p36
        %p196 = pneg %p60
        %p197 = pneg %p57
        %p198 = pneg %p81
        %p199 = pneg %p78
        %p200 = pneg %p107
        %p201 = pneg %p104
        %p202 = scmp.lt.s32.totalorder %s18, 3
        %s203 = scalar_select %p202, %s18, 3
        %s204 = smul.addr %s203, 4
        %s205 = smul.addr %s204, 2
        %s206 = scalar_lea.vmem %s3, %s205
        %s207 = smul.u32 8, %s18
        %s208 = ssub.s32 25, %s207
        %p209 = scmp.lt.s32.totalorder %s208, 8
        %s210 = scalar_select %p209, %s208, 8
        %s211 = smul.u32 128, %s210
        %p212 = scmp.lt.s32.totalorder %s18, 3
        %s213 = scalar_select %p212, %s18, 3
        %s214 = smul.addr %s213, 4
        %s215 = smul.addr %s214, 2
        %s216 = scalar_lea.vmem %s3, %s215
        %v218 = vld [vmem:[%s180] sm:$0xff]
        %v219 = vld [vmem:[%s180 + $0x8] sm:$0xff]
        %v220 = vld [vmem:[%s180 + $0x10] sm:$0xff]
        %v221 = vld [vmem:[%s180 + $0x18] sm:$0xff]
        %v222 = vld [vmem:[%s180 + $0x20] sm:$0xff]
        %v223 = vld [vmem:[%s180 + $0x28] sm:$0xff]
        %v224 = vld [vmem:[%s180 + $0x30] sm:$0xff]
        %v225 = vld [vmem:[%s180 + $0x38] sm:$0xff]
        %v226 = vpack.c.bf16 %v219, %v218
        %v227 = vpack.c.bf16 %v221, %v220
        %v228 = vpack.c.bf16 %v223, %v222
        %v229 = vpack.c.bf16 %v225, %v224
        %v230 = vld [vmem:[#allocation4] sm:$0xff]
        %v231 = vld [vmem:[#allocation4 + $0x8] sm:$0xff]
        %v232 = vld [vmem:[#allocation4 + $0x10] sm:$0xff]
        %v233 = vld [vmem:[#allocation4 + $0x18] sm:$0xff]
        %v234 = vld [vmem:[#allocation4 + $0x20] sm:$0xff]
        %v235 = vld [vmem:[#allocation4 + $0x28] sm:$0xff]
        %v236 = vld [vmem:[#allocation4 + $0x30] sm:$0xff]
        %v237 = vld [vmem:[#allocation4 + $0x38] sm:$0xff]
        %v238 = vld [vmem:[#allocation4 + $0x40] sm:$0xff]
        %v239 = vld [vmem:[#allocation4 + $0x48] sm:$0xff]
        %v240 = vld [vmem:[#allocation4 + $0x50] sm:$0xff]
        %v241 = vld [vmem:[#allocation4 + $0x58] sm:$0xff]
        %v242 = vld [vmem:[#allocation4 + $0x60] sm:$0xff]
        %v243 = vld [vmem:[#allocation4 + $0x68] sm:$0xff]
        %v244 = vld [vmem:[#allocation4 + $0x70] sm:$0xff]
        %v245 = vld [vmem:[#allocation4 + $0x78] sm:$0xff]
        %v246 = vld [vmem:[#allocation4 + $0x80] sm:$0xff]
        %v247 = vld [vmem:[#allocation4 + $0x88] sm:$0xff]
        %v248 = vld [vmem:[#allocation4 + $0x90] sm:$0xff]
        %v249 = vld [vmem:[#allocation4 + $0x98] sm:$0xff]
        %v250 = vld [vmem:[#allocation4 + $0xa0] sm:$0xff]
        %v251 = vld [vmem:[#allocation4 + $0xa8] sm:$0xff]
        %v252 = vld [vmem:[#allocation4 + $0xb0] sm:$0xff]
        %v253 = vld [vmem:[#allocation4 + $0xb8] sm:$0xff]
        %v254 = vld [vmem:[#allocation4 + $0xc0] sm:$0xff]
        %v255 = vld [vmem:[#allocation4 + $0xc8] sm:$0xff]
        %v256 = vld [vmem:[#allocation4 + $0xd0] sm:$0xff]
        %v257 = vld [vmem:[#allocation4 + $0xd8] sm:$0xff]
        %v258 = vld [vmem:[#allocation4 + $0xe0] sm:$0xff]
        %v259 = vld [vmem:[#allocation4 + $0xe8] sm:$0xff]
        %v260 = vld [vmem:[#allocation4 + $0xf0] sm:$0xff]
        %v261 = vld [vmem:[#allocation4 + $0xf8] sm:$0xff]
        %v262 = vld [vmem:[%s2] sm:$0xf]
        %v264 = vlaneseq
        %v265 = vshrl.u32 %v264, 7
        %v266 = vsub.s32 0, %v265
        %v267 = vrot.slane %v262, %v266
        %v268 = vlaneseq
        %v269 = vshrl.u32 %v268, 7
        %v270 = vsub.s32 1, %v269
        %v271 = vrot.slane %v262, %v270
        %v272 = vlaneseq
        %v273 = vshrl.u32 %v272, 7
        %v274 = vsub.s32 2, %v273
        %v275 = vrot.slane %v262, %v274
        %v276 = vlaneseq
        %v277 = vshrl.u32 %v276, 7
        %v278 = vsub.s32 3, %v277
        %v279 = vrot.slane %v262, %v278
        %v316 = vunpack.c.l.b16 %v230
        %v317 = vunpack.c.h.b16 %v230
        %v318 = vunpack.c.l.b16 %v231
        %v319 = vunpack.c.h.b16 %v231
        %v320 = vunpack.c.l.b16 %v232
        %v321 = vunpack.c.h.b16 %v232
        %v322 = vunpack.c.l.b16 %v233
        %v323 = vunpack.c.h.b16 %v233
        %v324 = vunpack.c.l.b16 %v234
        %v325 = vunpack.c.h.b16 %v234
        %v326 = vunpack.c.l.b16 %v235
        %v327 = vunpack.c.h.b16 %v235
        %v328 = vunpack.c.l.b16 %v236
        %v329 = vunpack.c.h.b16 %v236
        %v330 = vunpack.c.l.b16 %v237
        %v331 = vunpack.c.h.b16 %v237
        %v332 = vunpack.c.l.b16 %v238
        %v333 = vunpack.c.h.b16 %v238
        %v334 = vunpack.c.l.b16 %v239
        %v335 = vunpack.c.h.b16 %v239
        %v336 = vunpack.c.l.b16 %v240
        %v337 = vunpack.c.h.b16 %v240
        %v338 = vunpack.c.l.b16 %v241
        %v339 = vunpack.c.h.b16 %v241
        %v340 = vunpack.c.l.b16 %v242
        %v341 = vunpack.c.h.b16 %v242
        %v342 = vunpack.c.l.b16 %v243
        %v343 = vunpack.c.h.b16 %v243
        %v344 = vunpack.c.l.b16 %v244
        %v345 = vunpack.c.h.b16 %v244
        %v346 = vunpack.c.l.b16 %v245
        %v347 = vunpack.c.h.b16 %v245
        %v348 = vunpack.c.l.b16 %v246
        %v349 = vunpack.c.h.b16 %v246
        %v350 = vunpack.c.l.b16 %v247
        %v351 = vunpack.c.h.b16 %v247
        %v352 = vunpack.c.l.b16 %v248
        %v353 = vunpack.c.h.b16 %v248
        %v354 = vunpack.c.l.b16 %v249
        %v355 = vunpack.c.h.b16 %v249
        %v356 = vunpack.c.l.b16 %v250
        %v357 = vunpack.c.h.b16 %v250
        %v358 = vunpack.c.l.b16 %v251
        %v359 = vunpack.c.h.b16 %v251
        %v360 = vunpack.c.l.b16 %v252
        %v361 = vunpack.c.h.b16 %v252
        %v362 = vunpack.c.l.b16 %v253
        %v363 = vunpack.c.h.b16 %v253
        %v364 = vunpack.c.l.b16 %v254
        %v365 = vunpack.c.h.b16 %v254
        %v366 = vunpack.c.l.b16 %v255
        %v367 = vunpack.c.h.b16 %v255
        %v368 = vunpack.c.l.b16 %v256
        %v369 = vunpack.c.h.b16 %v256
        %v370 = vunpack.c.l.b16 %v257
        %v371 = vunpack.c.h.b16 %v257
        %v372 = vunpack.c.l.b16 %v258
        %v373 = vunpack.c.h.b16 %v258
        %v374 = vunpack.c.l.b16 %v259
        %v375 = vunpack.c.h.b16 %v259
        %v376 = vunpack.c.l.b16 %v260
        %v377 = vunpack.c.h.b16 %v260
        %v378 = vunpack.c.l.b16 %v261
        %v379 = vunpack.c.h.b16 %v261
        %v380 = vpack.c.b16 %v320, %v316
        %v381 = vpack.c.b16 %v321, %v317
        %v382 = vpack.c.b16 %v322, %v318
        %v383 = vpack.c.b16 %v323, %v319
        %v384 = vpack.c.b16 %v328, %v324
        %v385 = vpack.c.b16 %v329, %v325
        %v386 = vpack.c.b16 %v330, %v326
        %v387 = vpack.c.b16 %v331, %v327
        %v388 = vpack.c.b16 %v336, %v332
        %v389 = vpack.c.b16 %v337, %v333
        %v390 = vpack.c.b16 %v338, %v334
        %v391 = vpack.c.b16 %v339, %v335
        %v392 = vpack.c.b16 %v344, %v340
        %v393 = vpack.c.b16 %v345, %v341
        %v394 = vpack.c.b16 %v346, %v342
        %v395 = vpack.c.b16 %v347, %v343
        %v396 = vpack.c.b16 %v352, %v348
        %v397 = vpack.c.b16 %v353, %v349
        %v398 = vpack.c.b16 %v354, %v350
        %v399 = vpack.c.b16 %v355, %v351
        %v400 = vpack.c.b16 %v360, %v356
        %v401 = vpack.c.b16 %v361, %v357
        %v402 = vpack.c.b16 %v362, %v358
        %v403 = vpack.c.b16 %v363, %v359
        %v404 = vpack.c.b16 %v368, %v364
        %v405 = vpack.c.b16 %v369, %v365
        %v406 = vpack.c.b16 %v370, %v366
        %v407 = vpack.c.b16 %v371, %v367
        %v408 = vpack.c.b16 %v376, %v372
        %v409 = vpack.c.b16 %v377, %v373
        %v410 = vpack.c.b16 %v378, %v374
        %v411 = vpack.c.b16 %v379, %v375
        %444 = vmatprep.subr.bf16.mxu0 %v381
        %445 = vmatpush1.bf16.msra.mxu0 %v380
        %446 = vmatprep.subr.bf16.mxu0 %v385
        %447 = vmatpush1.bf16.msra.mxu0 %v384
        %448 = vmatprep.subr.bf16.mxu0 %v389
        %449 = vmatpush1.bf16.msra.mxu0 %v388
        %450 = vmatprep.subr.bf16.mxu0 %v393
        %451 = vmatpush1.bf16.msra.mxu0 %v392
        %452 = vmatprep.subr.bf16.mxu0 %v397
        %453 = vmatpush1.bf16.msra.mxu0 %v396
        %454 = vmatprep.subr.bf16.mxu0 %v401
        %455 = vmatpush1.bf16.msra.mxu0 %v400
        %456 = vmatprep.subr.bf16.mxu0 %v405
        %457 = vmatpush1.bf16.msra.mxu0 %v404
        %458 = vmatprep.subr.bf16.mxu0 %v409
        %459 = vmatpush1.bf16.msra.mxu0 %v408
        %460 = vmatprep.subr.bf16.mxu0 0
        %461 = vmatpush1.bf16.msra.mxu0 0
        %462 = vmatprep.subr.bf16.mxu0 0
        %463 = vmatpush1.bf16.msra.mxu0 0
        %464 = vmatprep.subr.bf16.mxu0 0
        %465 = vmatpush1.bf16.msra.mxu0 0
        %466 = vmatprep.subr.bf16.mxu0 0
        %467 = vmatpush1.bf16.msra.mxu0 0
        %468 = vmatprep.subr.bf16.mxu0 0
        %469 = vmatpush1.bf16.msra.mxu0 0
        %470 = vmatprep.subr.bf16.mxu0 0
        %471 = vmatpush1.bf16.msra.mxu0 0
        %472 = vmatprep.subr.bf16.mxu0 0
        %473 = vmatpush1.bf16.msra.mxu0 0
        %474 = vmatprep.subr.bf16.mxu0 0
        %475 = vmatpush1.bf16.msra.mxu0 0
        %476 = vmatprep.mubr.bf16.mxu0 0
        %477 = vmatmul.mubr.bf16.gmra.mrb[0].mxu0 %v226
        %v478 = vpop.f32.mrb[0].mxu0
        %v479 = vadd.f32 %v267, %v478
        %v480 = vpop.f32.mrb[0].mxu0
        %v481 = vadd.f32 %v271, %v480
        %v482 = vpop.f32.mrb[0].mxu0
        %v483 = vadd.f32 %v267, %v482
        %v484 = vpop.f32.mrb[0].mxu0
        %v485 = vadd.f32 %v271, %v484
        %486 = vmatprep.mubr.bf16.mxu0 0
        %487 = vmatmul.mubr.bf16.gmra.mrb[0].mxu0 %v227
        %v488 = vpop.f32.mrb[0].mxu0
        %v489 = vadd.f32 %v267, %v488
        %v490 = vpop.f32.mrb[0].mxu0
        %v491 = vadd.f32 %v271, %v490
        %v492 = vpop.f32.mrb[0].mxu0
        %v493 = vadd.f32 %v267, %v492
        %v494 = vpop.f32.mrb[0].mxu0
        %v495 = vadd.f32 %v271, %v494
        %496 = vmatprep.mubr.bf16.mxu0 0
        %497 = vmatmul.mubr.bf16.gmra.mrb[0].mxu0 %v228
        %v498 = vpop.f32.mrb[0].mxu0
        %v499 = vadd.f32 %v267, %v498
        %v500 = vpop.f32.mrb[0].mxu0
        %v501 = vadd.f32 %v271, %v500
        %v502 = vpop.f32.mrb[0].mxu0
        %v503 = vadd.f32 %v267, %v502
        %v504 = vpop.f32.mrb[0].mxu0
        %v505 = vadd.f32 %v271, %v504
        %506 = vmatprep.mubr.bf16.mxu0 0
        %507 = vmatmul.mubr.bf16.gmra.mrb[0].mxu0 %v229
        %v508 = vpop.f32.mrb[0].mxu0
        %v509 = vadd.f32 %v267, %v508
        %v510 = vpop.f32.mrb[0].mxu0
        %v511 = vadd.f32 %v271, %v510
        %v512 = vpop.f32.mrb[0].mxu0
        %v513 = vadd.f32 %v267, %v512
        %v514 = vpop.f32.mrb[0].mxu0
        %v515 = vadd.f32 %v271, %v514
        %516 = vdwg.mxu0
        %517 = vmatprep.subr.bf16.mxu0 %v383
        %518 = vmatpush1.bf16.msra.mxu0 %v382
        %519 = vmatprep.subr.bf16.mxu0 %v387
        %520 = vmatpush1.bf16.msra.mxu0 %v386
        %521 = vmatprep.subr.bf16.mxu0 %v391
        %522 = vmatpush1.bf16.msra.mxu0 %v390
        %523 = vmatprep.subr.bf16.mxu0 %v395
        %524 = vmatpush1.bf16.msra.mxu0 %v394
        %525 = vmatprep.subr.bf16.mxu0 %v399
        %526 = vmatpush1.bf16.msra.mxu0 %v398
        %527 = vmatprep.subr.bf16.mxu0 %v403
        %528 = vmatpush1.bf16.msra.mxu0 %v402
        %529 = vmatprep.subr.bf16.mxu0 %v407
        %530 = vmatpush1.bf16.msra.mxu0 %v406
        %531 = vmatprep.subr.bf16.mxu0 %v411
        %532 = vmatpush1.bf16.msra.mxu0 %v410
        %533 = vmatprep.subr.bf16.mxu0 0
        %534 = vmatpush1.bf16.msra.mxu0 0
        %535 = vmatprep.subr.bf16.mxu0 0
        %536 = vmatpush1.bf16.msra.mxu0 0
        %537 = vmatprep.subr.bf16.mxu0 0
        %538 = vmatpush1.bf16.msra.mxu0 0
        %539 = vmatprep.subr.bf16.mxu0 0
        %540 = vmatpush1.bf16.msra.mxu0 0
        %541 = vmatprep.subr.bf16.mxu0 0
        %542 = vmatpush1.bf16.msra.mxu0 0
        %543 = vmatprep.subr.bf16.mxu0 0
        %544 = vmatpush1.bf16.msra.mxu0 0
        %545 = vmatprep.subr.bf16.mxu0 0
        %546 = vmatpush1.bf16.msra.mxu0 0
        %547 = vmatprep.subr.bf16.mxu0 0
        %548 = vmatpush1.bf16.msra.mxu0 0
        %549 = vmatprep.mubr.bf16.mxu0 0
        %550 = vmatmul.mubr.bf16.gmra.mrb[0].mxu0 %v226
        %v551 = vpop.f32.mrb[0].mxu0
        %v552 = vadd.f32 %v275, %v551
        %v553 = vpop.f32.mrb[0].mxu0
        %v554 = vadd.f32 %v279, %v553
        %v555 = vpop.f32.mrb[0].mxu0
        %v556 = vadd.f32 %v275, %v555
        %v557 = vpop.f32.mrb[0].mxu0
        %v558 = vadd.f32 %v279, %v557
        %559 = vmatprep.mubr.bf16.mxu0 0
        %560 = vmatmul.mubr.bf16.gmra.mrb[0].mxu0 %v227
        %v561 = vpop.f32.mrb[0].mxu0
        %v562 = vadd.f32 %v275, %v561
        %v563 = vpop.f32.mrb[0].mxu0
        %v564 = vadd.f32 %v279, %v563
        %v565 = vpop.f32.mrb[0].mxu0
        %v566 = vadd.f32 %v275, %v565
        %v567 = vpop.f32.mrb[0].mxu0
        %v568 = vadd.f32 %v279, %v567
        %569 = vmatprep.mubr.bf16.mxu0 0
        %570 = vmatmul.mubr.bf16.gmra.mrb[0].mxu0 %v228
        %v571 = vpop.f32.mrb[0].mxu0
        %v572 = vadd.f32 %v275, %v571
        %v573 = vpop.f32.mrb[0].mxu0
        %v574 = vadd.f32 %v279, %v573
        %v575 = vpop.f32.mrb[0].mxu0
        %v576 = vadd.f32 %v275, %v575
        %v577 = vpop.f32.mrb[0].mxu0
        %v578 = vadd.f32 %v279, %v577
        %579 = vmatprep.mubr.bf16.mxu0 0
        %580 = vmatmul.mubr.bf16.gmra.mrb[0].mxu0 %v229
        %v581 = vpop.f32.mrb[0].mxu0
        %v582 = vadd.f32 %v275, %v581
        %v583 = vpop.f32.mrb[0].mxu0
        %v584 = vadd.f32 %v279, %v583
        %v585 = vpop.f32.mrb[0].mxu0
        %v586 = vadd.f32 %v275, %v585
        %v587 = vpop.f32.mrb[0].mxu0
        %v588 = vadd.f32 %v279, %v587
        %589 = vdwg.mxu0
        %s590 = smul.u32 %s18, 64
        %v591 = vlaneseq
        %v592 = vshrl.u32 %v591, 7
        %v593 = vadd.s32 %v592, 8
        %v594 = vadd.s32 %v592, 16
        %v595 = vadd.s32 %v592, 24
        %v596 = vadd.s32 %v592, 32
        %v597 = vadd.s32 %v592, 40
        %v598 = vadd.s32 %v592, 48
        %v599 = vadd.s32 %v592, 56
        %v600 = vstv %s590
        %v601 = vadd.s32 %v600, %v592
        %v602 = vadd.s32 %v600, %v593
        %v603 = vadd.s32 %v600, %v594
        %v604 = vadd.s32 %v600, %v595
        %v605 = vadd.s32 %v600, %v596
        %v606 = vadd.s32 %v600, %v597
        %v607 = vadd.s32 %v600, %v598
        %v608 = vadd.s32 %v600, %v599
        %vm609 = vcmp.lt.s32.totalorder %v601, 200
        %vm610 = vcmp.lt.s32.totalorder %v602, 200
        %vm611 = vcmp.lt.s32.totalorder %v603, 200
        %vm612 = vcmp.lt.s32.totalorder %v604, 200
        %vm613 = vcmp.lt.s32.totalorder %v605, 200
        %vm614 = vcmp.lt.s32.totalorder %v606, 200
        %vm615 = vcmp.lt.s32.totalorder %v607, 200
        %vm616 = vcmp.lt.s32.totalorder %v608, 200
        %v617 = vsel %vm609, 1, 0
        %v618 = vsel %vm610, 1, 0
        %v619 = vsel %vm611, 1, 0
        %v620 = vsel %vm612, 1, 0
        %v621 = vsel %vm613, 1, 0
        %v622 = vsel %vm614, 1, 0
        %v623 = vsel %vm615, 1, 0
        %v624 = vsel %vm616, 1, 0
        %vm625 = vcmp.eq.s32.totalorder %v617, 1
        %vm626 = vcmp.eq.s32.totalorder %v618, 1
        %vm627 = vcmp.eq.s32.totalorder %v619, 1
        %vm628 = vcmp.eq.s32.totalorder %v620, 1
        %vm629 = vcmp.eq.s32.totalorder %v621, 1
        %vm630 = vcmp.eq.s32.totalorder %v622, 1
        %vm631 = vcmp.eq.s32.totalorder %v623, 1
        %vm632 = vcmp.eq.s32.totalorder %v624, 1
        %v633 = vsel %vm625, %v479, 0.0
        %v634 = vsel %vm625, %v481, 0.0
        %v635 = vsel %vm625, %v552, 0.0
        %v636 = vsel %vm625, %v554, 0.0
        %v637 = vsel %vm626, %v483, 0.0
        %v638 = vsel %vm626, %v485, 0.0
        %v639 = vsel %vm626, %v556, 0.0
        %v640 = vsel %vm626, %v558, 0.0
        %v641 = vsel %vm627, %v489, 0.0
        %v642 = vsel %vm627, %v491, 0.0
        %v643 = vsel %vm627, %v562, 0.0
        %v644 = vsel %vm627, %v564, 0.0
        %v645 = vsel %vm628, %v493, 0.0
        %v646 = vsel %vm628, %v495, 0.0
        %v647 = vsel %vm628, %v566, 0.0
        %v648 = vsel %vm628, %v568, 0.0
        %v649 = vsel %vm629, %v499, 0.0
        %v650 = vsel %vm629, %v501, 0.0
        %v651 = vsel %vm629, %v572, 0.0
        %v652 = vsel %vm629, %v574, 0.0
        %v653 = vsel %vm630, %v503, 0.0
        %v654 = vsel %vm630, %v505, 0.0
        %v655 = vsel %vm630, %v576, 0.0
        %v656 = vsel %vm630, %v578, 0.0
        %v657 = vsel %vm631, %v509, 0.0
        %v658 = vsel %vm631, %v511, 0.0
        %v659 = vsel %vm631, %v582, 0.0
        %v660 = vsel %vm631, %v584, 0.0
        %v661 = vsel %vm632, %v513, 0.0
        %v662 = vsel %vm632, %v515, 0.0
        %v663 = vsel %vm632, %v586, 0.0
        %v664 = vsel %vm632, %v588, 0.0
        %v665 = vadd.f32 %v633, %v637
        %v666 = vadd.f32 %v665, %v641
        %v667 = vadd.f32 %v666, %v645
        %v668 = vadd.f32 %v667, %v649
        %v669 = vadd.f32 %v668, %v653
        %v670 = vadd.f32 %v669, %v657
        %v671 = vadd.f32 %v670, %v661
        %v672 = vrot.slane %v671, 4
        %v673 = vadd.f32 %v671, %v672
        %v674 = vrot.slane %v673, 2
        %v675 = vadd.f32 %v673, %v674
        %v676 = vrot.slane %v675, 1
        %v677 = vadd.f32 %v675, %v676
        %v678 = vadd.f32 %v634, %v638
        %v679 = vadd.f32 %v678, %v642
        %v680 = vadd.f32 %v679, %v646
        %v681 = vadd.f32 %v680, %v650
        %v682 = vadd.f32 %v681, %v654
        %v683 = vadd.f32 %v682, %v658
        %v684 = vadd.f32 %v683, %v662
        %v685 = vrot.slane %v684, 4
        %v686 = vadd.f32 %v684, %v685
        %v687 = vrot.slane %v686, 2
        %v688 = vadd.f32 %v686, %v687
        %v689 = vrot.slane %v688, 1
        %v690 = vadd.f32 %v688, %v689
        %v691 = vadd.f32 %v635, %v639
        %v692 = vadd.f32 %v691, %v643
        %v693 = vadd.f32 %v692, %v647
        %v694 = vadd.f32 %v693, %v651
        %v695 = vadd.f32 %v694, %v655
        %v696 = vadd.f32 %v695, %v659
        %v697 = vadd.f32 %v696, %v663
        %v698 = vrot.slane %v697, 4
        %v699 = vadd.f32 %v697, %v698
        %v700 = vrot.slane %v699, 2
        %v701 = vadd.f32 %v699, %v700
        %v702 = vrot.slane %v701, 1
        %v703 = vadd.f32 %v701, %v702
        %v704 = vadd.f32 %v636, %v640
        %v705 = vadd.f32 %v704, %v644
        %v706 = vadd.f32 %v705, %v648
        %v707 = vadd.f32 %v706, %v652
        %v708 = vadd.f32 %v707, %v656
        %v709 = vadd.f32 %v708, %v660
        %v710 = vadd.f32 %v709, %v664
        %v711 = vrot.slane %v710, 4
        %v712 = vadd.f32 %v710, %v711
        %v713 = vrot.slane %v712, 2
        %v714 = vadd.f32 %v712, %v713
        %v715 = vrot.slane %v714, 1
        %v716 = vadd.f32 %v714, %v715
        %v717 = vmul.f32 %v633, %v633
        %v718 = vmul.f32 %v634, %v634
        %v719 = vmul.f32 %v635, %v635
        %v720 = vmul.f32 %v636, %v636
        %v721 = vmul.f32 %v637, %v637
        %v722 = vmul.f32 %v638, %v638
        %v723 = vmul.f32 %v639, %v639
        %v724 = vmul.f32 %v640, %v640
        %v725 = vmul.f32 %v641, %v641
        %v726 = vmul.f32 %v642, %v642
        %v727 = vmul.f32 %v643, %v643
        %v728 = vmul.f32 %v644, %v644
        %v729 = vmul.f32 %v645, %v645
        %v730 = vmul.f32 %v646, %v646
        %v731 = vmul.f32 %v647, %v647
        %v732 = vmul.f32 %v648, %v648
        %v733 = vmul.f32 %v649, %v649
        %v734 = vmul.f32 %v650, %v650
        %v735 = vmul.f32 %v651, %v651
        %v736 = vmul.f32 %v652, %v652
        %v737 = vmul.f32 %v653, %v653
        %v738 = vmul.f32 %v654, %v654
        %v739 = vmul.f32 %v655, %v655
        %v740 = vmul.f32 %v656, %v656
        %v741 = vmul.f32 %v657, %v657
        %v742 = vmul.f32 %v658, %v658
        %v743 = vmul.f32 %v659, %v659
        %v744 = vmul.f32 %v660, %v660
        %v745 = vmul.f32 %v661, %v661
        %v746 = vmul.f32 %v662, %v662
        %v747 = vmul.f32 %v663, %v663
        %v748 = vmul.f32 %v664, %v664
        %v749 = vadd.f32 %v717, %v721
        %v750 = vadd.f32 %v749, %v725
        %v751 = vadd.f32 %v750, %v729
        %v752 = vadd.f32 %v751, %v733
        %v753 = vadd.f32 %v752, %v737
        %v754 = vadd.f32 %v753, %v741
        %v755 = vadd.f32 %v754, %v745
        %v756 = vrot.slane %v755, 4
        %v757 = vadd.f32 %v755, %v756
        %v758 = vrot.slane %v757, 2
        %v759 = vadd.f32 %v757, %v758
        %v760 = vrot.slane %v759, 1
        %v761 = vadd.f32 %v759, %v760
        %v762 = vadd.f32 %v718, %v722
        %v763 = vadd.f32 %v762, %v726
        %v764 = vadd.f32 %v763, %v730
        %v765 = vadd.f32 %v764, %v734
        %v766 = vadd.f32 %v765, %v738
        %v767 = vadd.f32 %v766, %v742
        %v768 = vadd.f32 %v767, %v746
        %v769 = vrot.slane %v768, 4
        %v770 = vadd.f32 %v768, %v769
        %v771 = vrot.slane %v770, 2
        %v772 = vadd.f32 %v770, %v771
        %v773 = vrot.slane %v772, 1
        %v774 = vadd.f32 %v772, %v773
        %v775 = vadd.f32 %v719, %v723
        %v776 = vadd.f32 %v775, %v727
        %v777 = vadd.f32 %v776, %v731
        %v778 = vadd.f32 %v777, %v735
        %v779 = vadd.f32 %v778, %v739
        %v780 = vadd.f32 %v779, %v743
        %v781 = vadd.f32 %v780, %v747
        %v782 = vrot.slane %v781, 4
        %v783 = vadd.f32 %v781, %v782
        %v784 = vrot.slane %v783, 2
        %v785 = vadd.f32 %v783, %v784
        %v786 = vrot.slane %v785, 1
        %v787 = vadd.f32 %v785, %v786
        %v788 = vadd.f32 %v720, %v724
        %v789 = vadd.f32 %v788, %v728
        %v790 = vadd.f32 %v789, %v732
        %v791 = vadd.f32 %v790, %v736
        %v792 = vadd.f32 %v791, %v740
        %v793 = vadd.f32 %v792, %v744
        %v794 = vadd.f32 %v793, %v748
        %v795 = vrot.slane %v794, 4
        %v796 = vadd.f32 %v794, %v795
        %v797 = vrot.slane %v796, 2
        %v798 = vadd.f32 %v796, %v797
        %v799 = vrot.slane %v798, 1
        %v800 = vadd.f32 %v798, %v799
        %v805 = vcombine.low %v677, %v690
        %v806 = vcombine.low %v703, %v716
        %v808 = vunpack.c.l.s4 1966171168
        %v809 = vunpack.c.0.s8 %v808
        %v810 = vlaneseq
        %v811 = vshrl.u32 %v810, 7
        %v812 = vsub.s32 %v809, %v811
        %v813 = vrot.slane %v805, %v812
        %v815 = vunpack.c.l.s4 1966171168
        %v816 = vunpack.c.0.s8 %v815
        %v817 = vlaneseq
        %v818 = vshrl.u32 %v817, 7
        %v819 = vsub.s32 %v816, %v818
        %v820 = vrot.slane %v806, %v819
        %v821 = vcombine.low %v813, %v820
        %v823 = vunpack.c.l.s4 1966171168
        %v824 = vunpack.c.0.s8 %v823
        %v825 = vlaneseq
        %v826 = vshrl.u32 %v825, 7
        %v827 = vsub.s32 %v824, %v826
        %v828 = vrot.slane %v821, %v827
        %v830 = vlaneseq
        %vm831 = vcmp.ge.s32.totalorder %v830, 0
        %vm832 = vcmp.lt.s32.totalorder %v830, 512
        %vm833 = vmand %vm831, %vm832
        %834 = vst.msk [vmem:[%s216] ss:$2 sm:$0xf] %vm833, %v828
        %v839 = vcombine.low %v761, %v774
        %v840 = vcombine.low %v787, %v800
        %v842 = vunpack.c.l.s4 1966171168
        %v843 = vunpack.c.0.s8 %v842
        %v844 = vlaneseq
        %v845 = vshrl.u32 %v844, 7
        %v846 = vsub.s32 %v843, %v845
        %v847 = vrot.slane %v839, %v846
        %v849 = vunpack.c.l.s4 1966171168
        %v850 = vunpack.c.0.s8 %v849
        %v851 = vlaneseq
        %v852 = vshrl.u32 %v851, 7
        %v853 = vsub.s32 %v850, %v852
        %v854 = vrot.slane %v840, %v853
        %v855 = vcombine.low %v847, %v854
        %v857 = vunpack.c.l.s4 1966171168
        %v858 = vunpack.c.0.s8 %v857
        %v859 = vlaneseq
        %v860 = vshrl.u32 %v859, 7
        %v861 = vsub.s32 %v858, %v860
        %v862 = vrot.slane %v855, %v861
        %s864 = scalar_lea.vmem %s216, 1
        %865 = vst.msk [vmem:[%s864] ss:$2 sm:$0xf] %vm833, %v862
        %p866 = scmp.lt.s32.totalorder %s18, 3
        %s867 = scalar_select %p866, %s18, 3
        %s868 = smul.addr %s867, 4
        %s869 = smul.addr %s868, 2
        %s870 = scalar_lea.vmem %s3, %s869
        // Predicated region
        $region41: #{adda_discriminator_forward.3} parent=31 // pred_check
          %p871 = pneg %p104
        $region42: #{adda_discriminator_forward.3} parent=31 // pred_check_branch
          %873 = sbr.rel (%p871) target = $region44
        $region43: #{adda_discriminator_forward.3} parent=31 // pred_region
          _
        $region44: #{adda_discriminator_forward.3} parent=31 // pred_fallthru
          _
      $region32: #{adda_discriminator_forward.3} parent=5 // pred_fallthru
        _
      %p874 = scmp.le.s32.totalorder 2, %s13
      // Predicated region
      $region45: #{adda_discriminator_forward.3} parent=5 // pred_check
        %p875 = pneg %p874
      $region46: #{adda_discriminator_forward.3} parent=5 // pred_check_branch
        %877 = sbr.rel (%p875) target = $region48
      $region47: #{adda_discriminator_forward.3} parent=5 // pred_region
        %s878 = ssub.s32 %s13, 2
        // Predicated region
        $region49: #{adda_discriminator_forward.3} parent=47 // pred_check
          %p879 = pneg %p110
        $region50: #{adda_discriminator_forward.3} parent=47 // pred_check_branch
          %881 = sbr.rel (%p879) target = $region52
        $region51: #{adda_discriminator_forward.3} parent=47 // pred_region
          %p882 = scmp.lt.s32.totalorder %s19, 3
          %s883 = scalar_select %p882, %s19, 3
          %s884 = smul.addr %s883, 4
          %s885 = smul.addr %s884, 2
          %s886 = scalar_lea.vmem %s3, %s885
        $region52: #{adda_discriminator_forward.3} parent=47 // pred_fallthru
          _
      $region48: #{adda_discriminator_forward.3} parent=5 // pred_fallthru
        _
    $region6: #{adda_discriminator_forward.3} parent=1 // loop_footer
      %s17 = sadd.s32 1, %s13
    $region7: #{adda_discriminator_forward.3} parent=1 // loop_footer_branch
      %12 = sbr.rel target = $region3
    $region8: #{adda_discriminator_forward.3} parent=1 // loop_exit
      _
    %887 = vsyncpa [#allocation3], 1
    %s888 = scalar_lea.sflag [#allocation3], 1
    %889 = vsyncpa %s888, 1
    %890 = vsyncpa [#allocation5], 1

// kernel: adda_discriminator_forward.5
$region0: #{adda_discriminator_forward.5}
  #allocation0 [shape = 'u32[]', space=smem, size = 0x4, offset = 0x4, fixed_abs, tag = 'smem constant byte address 0x4 - core index']
  #allocation1 [shape = 'u32[144,128]{1,0:T(1,128)}', space=vmem, size = 0x12000, scoped, tag = 'internal scratch']
  #allocation2 [shape = 'f32[1,1]{1,0:T(1,128)S(1)}', space=vmem, size = 0x200, scoped, tag = 'scoped memory for adda_discriminator_forward.5']
  %s0 = inlined_call_operand.vmem [shape: f32[200,128], index: 0, kind: input, shape index: {}]
  %s1 = inlined_call_operand.vmem [shape: bf16[128,512], index: 1, kind: input, shape index: {}]
  %s2 = inlined_call_operand.vmem [shape: f32[1,512], index: 2, kind: input, shape index: {}]
  %s3 = inlined_call_operand.vmem [shape: f32[2,512], index: 3, kind: input, shape index: {}]
  %s4 = inlined_call_operand.vmem [shape: bf16[512,1024], index: 4, kind: input, shape index: {}]
  %s5 = inlined_call_operand.vmem [shape: f32[1,1024], index: 5, kind: input, shape index: {}]
  %s6 = inlined_call_operand.vmem [shape: f32[2,1024], index: 6, kind: input, shape index: {}]
  %s7 = inlined_call_operand.vmem [shape: f32[1,1024], index: 7, kind: input, shape index: {}]
  %s8 = inlined_call_operand.<no memory space> [shape: f32[1,1], index: 8, kind: input, shape index: {}]
  %s9 = inlined_call_operand.vmem [shape: f32[200,1], index: 9, kind: output, shape index: {}]
  %s10 = sld [smem:[#allocation0]]
  $region117: #{adda_discriminator_forward.5} parent=0
    _
  %s12 = ssub.s32 1, %s10
  %s13 = scalar_select 0, %s12, %s10
  %v14 = vstv %s8
  %15 = vst [vmem:[#allocation2] sm:$0x1] %v14
  $region1: #{adda_discriminator_forward.5} parent=0
    #allocation3 [shape = 'u8[65536]{0}', space=vmem, size = 0x10000, scoped, tag = 'output window, operand 0']
    loop: start=0, step=1, limit=6
    $region2: #{adda_discriminator_forward.5} parent=1 // loop_pre_header
      _
    $region3: #{adda_discriminator_forward.5} parent=1 // loop_header
      %s17 = sphi 0, %s21
      %p18 = scmp.ge.s32.totalorder %s17, 6
      %s27 = sphi 0, %s29
      %s30 = sphi 0, %s27
      %s31 = sphi 0, %s30
      %s47 = sphi 0, %s31
      %s51 = sphi 0, %s51
      %s53 = sphi 0, %s51
      %s54 = sphi 0, %s53
      %s68 = sphi 0, %s54
      %s72 = sphi 0, %s72
      %s74 = sphi 0, %s72
      %s75 = sphi 0, %s74
      %s89 = sphi 0, %s75
      %s93 = sphi 0, %s93
      %s95 = sphi 0, %s93
      %s96 = sphi 0, %s95
      %s110 = sphi 0, %s96
      %s114 = sphi 0, %s114
      %s116 = sphi 0, %s114
      %s117 = sphi 0, %s116
      %s131 = sphi 0, %s117
      %s135 = sphi 0, %s135
      %s137 = sphi 0, %s135
      %s138 = sphi 0, %s137
      %s152 = sphi 0, %s138
      %s156 = sphi 0, %s156
      %s158 = sphi 0, %s156
      %s159 = sphi 0, %s158
      %s173 = sphi 0, %s159
      %s177 = sphi 0, %s177
      %s179 = sphi 0, %s177
      %s180 = sphi 0, %s179
      %s194 = sphi 0, %s180
      %s198 = sphi 0, %s198
      %s200 = sphi 0, %s198
      %s201 = sphi 0, %s200
      %s215 = sphi 0, %s201
      %s221 = sphi 0, %s223
      %s224 = sphi 0, %s221
      %s225 = sphi 0, %s224
      %s241 = sphi 0, %s225
    $region4: #{adda_discriminator_forward.5} parent=1 // loop_header_branch
      %20 = sbr.rel (%p18) target = $region8
    $region5: #{adda_discriminator_forward.5} parent=1 // loop_body
      %s22 = ssub.s32 %s17, 1
      %s23 = ssub.s32 %s17, 2
      %s24 = sadd.s32 %s17, 1
      %s25 = ssub.s32 %s17, %s24
      %p26 = scmp.eq.s32.totalorder %s25, 0
      %s28 = sadd.s32 %s27, 1
      %s29 = scalar_select %p26, %s27, %s28
      %p32 = pneg %p26
      %p33 = scmp.eq.s32.totalorder %s17, 3
      %p34 = por %p32, %p33
      %p35 = scmp.ne.s32.totalorder %s27, %s30
      %p36 = scmp.eq.s32.totalorder %s17, 0
      %p37 = por %p35, %p36
      %p38 = scmp.ne.s32.totalorder %s27, %s30
      %p39 = scmp.eq.s32.totalorder %s22, 3
      %p40 = por %p38, %p39
      %p41 = scmp.ne.s32.totalorder %s30, %s31
      %p42 = scmp.eq.s32.totalorder %s22, 0
      %p43 = por %p41, %p42
      %p44 = scmp.ne.s32.totalorder %s30, %s31
      %p45 = scmp.eq.s32.totalorder %s23, 3
      %p46 = por %p44, %p45
      %p48 = scmp.ne.s32.totalorder %s31, %s47
      %p49 = scmp.eq.s32.totalorder %s23, 0
      %p50 = por %p48, %p49
      %s52 = sadd.s32 %s51, 1
      %p55 = scmp.eq.s32.totalorder %s17, 3
      %p56 = scmp.ne.s32.totalorder %s51, %s53
      %p57 = scmp.eq.s32.totalorder %s17, 0
      %p58 = por %p56, %p57
      %p59 = scmp.ne.s32.totalorder %s51, %s53
      %p60 = scmp.eq.s32.totalorder %s22, 3
      %p61 = por %p59, %p60
      %p62 = scmp.ne.s32.totalorder %s53, %s54
      %p63 = scmp.eq.s32.totalorder %s22, 0
      %p64 = por %p62, %p63
      %p65 = scmp.ne.s32.totalorder %s53, %s54
      %p66 = scmp.eq.s32.totalorder %s23, 3
      %p67 = por %p65, %p66
      %p69 = scmp.ne.s32.totalorder %s54, %s68
      %p70 = scmp.eq.s32.totalorder %s23, 0
      %p71 = por %p69, %p70
      %s73 = sadd.s32 %s72, 1
      %p76 = scmp.eq.s32.totalorder %s17, 3
      %p77 = scmp.ne.s32.totalorder %s72, %s74
      %p78 = scmp.eq.s32.totalorder %s17, 0
      %p79 = por %p77, %p78
      %p80 = scmp.ne.s32.totalorder %s72, %s74
      %p81 = scmp.eq.s32.totalorder %s22, 3
      %p82 = por %p80, %p81
      %p83 = scmp.ne.s32.totalorder %s74, %s75
      %p84 = scmp.eq.s32.totalorder %s22, 0
      %p85 = por %p83, %p84
      %p86 = scmp.ne.s32.totalorder %s74, %s75
      %p87 = scmp.eq.s32.totalorder %s23, 3
      %p88 = por %p86, %p87
      %p90 = scmp.ne.s32.totalorder %s75, %s89
      %p91 = scmp.eq.s32.totalorder %s23, 0
      %p92 = por %p90, %p91
      %s94 = sadd.s32 %s93, 1
      %p97 = scmp.eq.s32.totalorder %s17, 3
      %p98 = scmp.ne.s32.totalorder %s93, %s95
      %p99 = scmp.eq.s32.totalorder %s17, 0
      %p100 = por %p98, %p99
      %p101 = scmp.ne.s32.totalorder %s93, %s95
      %p102 = scmp.eq.s32.totalorder %s22, 3
      %p103 = por %p101, %p102
      %p104 = scmp.ne.s32.totalorder %s95, %s96
      %p105 = scmp.eq.s32.totalorder %s22, 0
      %p106 = por %p104, %p105
      %p107 = scmp.ne.s32.totalorder %s95, %s96
      %p108 = scmp.eq.s32.totalorder %s23, 3
      %p109 = por %p107, %p108
      %p111 = scmp.ne.s32.totalorder %s96, %s110
      %p112 = scmp.eq.s32.totalorder %s23, 0
      %p113 = por %p111, %p112
      %s115 = sadd.s32 %s114, 1
      %p118 = scmp.eq.s32.totalorder %s17, 3
      %p119 = scmp.ne.s32.totalorder %s114, %s116
      %p120 = scmp.eq.s32.totalorder %s17, 0
      %p121 = por %p119, %p120
      %p122 = scmp.ne.s32.totalorder %s114, %s116
      %p123 = scmp.eq.s32.totalorder %s22, 3
      %p124 = por %p122, %p123
      %p125 = scmp.ne.s32.totalorder %s116, %s117
      %p126 = scmp.eq.s32.totalorder %s22, 0
      %p127 = por %p125, %p126
      %p128 = scmp.ne.s32.totalorder %s116, %s117
      %p129 = scmp.eq.s32.totalorder %s23, 3
      %p130 = por %p128, %p129
      %p132 = scmp.ne.s32.totalorder %s117, %s131
      %p133 = scmp.eq.s32.totalorder %s23, 0
      %p134 = por %p132, %p133
      %s136 = sadd.s32 %s135, 1
      %p139 = scmp.eq.s32.totalorder %s17, 3
      %p140 = scmp.ne.s32.totalorder %s135, %s137
      %p141 = scmp.eq.s32.totalorder %s17, 0
      %p142 = por %p140, %p141
      %p143 = scmp.ne.s32.totalorder %s135, %s137
      %p144 = scmp.eq.s32.totalorder %s22, 3
      %p145 = por %p143, %p144
      %p146 = scmp.ne.s32.totalorder %s137, %s138
      %p147 = scmp.eq.s32.totalorder %s22, 0
      %p148 = por %p146, %p147
      %p149 = scmp.ne.s32.totalorder %s137, %s138
      %p150 = scmp.eq.s32.totalorder %s23, 3
      %p151 = por %p149, %p150
      %p153 = scmp.ne.s32.totalorder %s138, %s152
      %p154 = scmp.eq.s32.totalorder %s23, 0
      %p155 = por %p153, %p154
      %s157 = sadd.s32 %s156, 1
      %p160 = scmp.eq.s32.totalorder %s17, 3
      %p161 = scmp.ne.s32.totalorder %s156, %s158
      %p162 = scmp.eq.s32.totalorder %s17, 0
      %p163 = por %p161, %p162
      %p164 = scmp.ne.s32.totalorder %s156, %s158
      %p165 = scmp.eq.s32.totalorder %s22, 3
      %p166 = por %p164, %p165
      %p167 = scmp.ne.s32.totalorder %s158, %s159
      %p168 = scmp.eq.s32.totalorder %s22, 0
      %p169 = por %p167, %p168
      %p170 = scmp.ne.s32.totalorder %s158, %s159
      %p171 = scmp.eq.s32.totalorder %s23, 3
      %p172 = por %p170, %p171
      %p174 = scmp.ne.s32.totalorder %s159, %s173
      %p175 = scmp.eq.s32.totalorder %s23, 0
      %p176 = por %p174, %p175
      %s178 = sadd.s32 %s177, 1
      %p181 = scmp.eq.s32.totalorder %s17, 3
      %p182 = scmp.ne.s32.totalorder %s177, %s179
      %p183 = scmp.eq.s32.totalorder %s17, 0
      %p184 = por %p182, %p183
      %p185 = scmp.ne.s32.totalorder %s177, %s179
      %p186 = scmp.eq.s32.totalorder %s22, 3
      %p187 = por %p185, %p186
      %p188 = scmp.ne.s32.totalorder %s179, %s180
      %p189 = scmp.eq.s32.totalorder %s22, 0
      %p190 = por %p188, %p189
      %p191 = scmp.ne.s32.totalorder %s179, %s180
      %p192 = scmp.eq.s32.totalorder %s23, 3
      %p193 = por %p191, %p192
      %p195 = scmp.ne.s32.totalorder %s180, %s194
      %p196 = scmp.eq.s32.totalorder %s23, 0
      %p197 = por %p195, %p196
      %s199 = sadd.s32 %s198, 1
      %p202 = scmp.eq.s32.totalorder %s17, 3
      %p203 = scmp.ne.s32.totalorder %s198, %s200
      %p204 = scmp.eq.s32.totalorder %s17, 0
      %p205 = por %p203, %p204
      %p206 = scmp.ne.s32.totalorder %s198, %s200
      %p207 = scmp.eq.s32.totalorder %s22, 3
      %p208 = por %p206, %p207
      %p209 = scmp.ne.s32.totalorder %s200, %s201
      %p210 = scmp.eq.s32.totalorder %s22, 0
      %p211 = por %p209, %p210
      %p212 = scmp.ne.s32.totalorder %s200, %s201
      %p213 = scmp.eq.s32.totalorder %s23, 3
      %p214 = por %p212, %p213
      %p216 = scmp.ne.s32.totalorder %s201, %s215
      %p217 = scmp.eq.s32.totalorder %s23, 0
      %p218 = por %p216, %p217
      %s219 = ssub.s32 %s17, %s24
      %p220 = scmp.eq.s32.totalorder %s219, 0
      %s222 = sadd.s32 %s221, 1
      %s223 = scalar_select %p220, %s221, %s222
      %p226 = pneg %p220
      %p227 = scmp.eq.s32.totalorder %s17, 3
      %p228 = por %p226, %p227
      %p229 = scmp.ne.s32.totalorder %s221, %s224
      %p230 = scmp.eq.s32.totalorder %s17, 0
      %p231 = por %p229, %p230
      %p232 = scmp.ne.s32.totalorder %s221, %s224
      %p233 = scmp.eq.s32.totalorder %s22, 3
      %p234 = por %p232, %p233
      %p235 = scmp.ne.s32.totalorder %s224, %s225
      %p236 = scmp.eq.s32.totalorder %s22, 0
      %p237 = por %p235, %p236
      %p238 = scmp.ne.s32.totalorder %s224, %s225
      %p239 = scmp.eq.s32.totalorder %s23, 3
      %p240 = por %p238, %p239
      %p242 = scmp.ne.s32.totalorder %s225, %s241
      %p243 = scmp.eq.s32.totalorder %s23, 0
      %p244 = por %p242, %p243
      %p245 = scmp.le.s32.totalorder 1, %s17
      %p246 = scmp.lt.s32.totalorder %s17, 5
      %p247 = pnand %p245, %p246
      %p248 = pneg %p247
      // Predicated region
      $region9: #{adda_discriminator_forward.5} parent=5 // pred_check
        _
      $region10: #{adda_discriminator_forward.5} parent=5 // pred_check_branch
        %250 = sbr.rel (%p247) target = $region12
      $region11: #{adda_discriminator_forward.5} parent=5 // pred_region
        %s251 = ssub.s32 %s17, 1
        // Predicated region
        $region13: #{adda_discriminator_forward.5} parent=11 // pred_check
          %p252 = pneg %p64
        $region14: #{adda_discriminator_forward.5} parent=11 // pred_check_branch
          %254 = sbr.rel (%p252) target = $region16
        $region15: #{adda_discriminator_forward.5} parent=11 // pred_region
          _
        $region16: #{adda_discriminator_forward.5} parent=11 // pred_fallthru
          _
        // Predicated region
        $region17: #{adda_discriminator_forward.5} parent=11 // pred_check
          %p255 = pneg %p85
        $region18: #{adda_discriminator_forward.5} parent=11 // pred_check_branch
          %257 = sbr.rel (%p255) target = $region20
        $region19: #{adda_discriminator_forward.5} parent=11 // pred_region
          _
        $region20: #{adda_discriminator_forward.5} parent=11 // pred_fallthru
          _
        // Predicated region
        $region21: #{adda_discriminator_forward.5} parent=11 // pred_check
          %p258 = pneg %p106
        $region22: #{adda_discriminator_forward.5} parent=11 // pred_check_branch
          %260 = sbr.rel (%p258) target = $region24
        $region23: #{adda_discriminator_forward.5} parent=11 // pred_region
          _
        $region24: #{adda_discriminator_forward.5} parent=11 // pred_fallthru
          _
        // Predicated region
        $region25: #{adda_discriminator_forward.5} parent=11 // pred_check
          %p261 = pneg %p127
        $region26: #{adda_discriminator_forward.5} parent=11 // pred_check_branch
          %263 = sbr.rel (%p261) target = $region28
        $region27: #{adda_discriminator_forward.5} parent=11 // pred_region
          _
        $region28: #{adda_discriminator_forward.5} parent=11 // pred_fallthru
          _
        // Predicated region
        $region29: #{adda_discriminator_forward.5} parent=11 // pred_check
          %p264 = pneg %p148
        $region30: #{adda_discriminator_forward.5} parent=11 // pred_check_branch
          %266 = sbr.rel (%p264) target = $region32
        $region31: #{adda_discriminator_forward.5} parent=11 // pred_region
          _
        $region32: #{adda_discriminator_forward.5} parent=11 // pred_fallthru
          _
        // Predicated region
        $region33: #{adda_discriminator_forward.5} parent=11 // pred_check
          %p267 = pneg %p169
        $region34: #{adda_discriminator_forward.5} parent=11 // pred_check_branch
          %269 = sbr.rel (%p267) target = $region36
        $region35: #{adda_discriminator_forward.5} parent=11 // pred_region
          _
        $region36: #{adda_discriminator_forward.5} parent=11 // pred_fallthru
          _
        // Predicated region
        $region37: #{adda_discriminator_forward.5} parent=11 // pred_check
          %p270 = pneg %p190
        $region38: #{adda_discriminator_forward.5} parent=11 // pred_check_branch
          %272 = sbr.rel (%p270) target = $region40
        $region39: #{adda_discriminator_forward.5} parent=11 // pred_region
          _
        $region40: #{adda_discriminator_forward.5} parent=11 // pred_fallthru
          _
        // Predicated region
        $region41: #{adda_discriminator_forward.5} parent=11 // pred_check
          %p273 = pneg %p211
        $region42: #{adda_discriminator_forward.5} parent=11 // pred_check_branch
          %275 = sbr.rel (%p273) target = $region44
        $region43: #{adda_discriminator_forward.5} parent=11 // pred_region
          _
        $region44: #{adda_discriminator_forward.5} parent=11 // pred_fallthru
          _
      $region12: #{adda_discriminator_forward.5} parent=5 // pred_fallthru
        _
      %p276 = scmp.lt.s32.totalorder %s17, 4
      // Predicated region
      $region45: #{adda_discriminator_forward.5} parent=5 // pred_check
        %p277 = pneg %p276
      $region46: #{adda_discriminator_forward.5} parent=5 // pred_check_branch
        %279 = sbr.rel (%p277) target = $region48
      $region47: #{adda_discriminator_forward.5} parent=5 // pred_region
        // Predicated region
        $region49: #{adda_discriminator_forward.5} parent=47 // pred_check
          %p280 = pneg %p37
        $region50: #{adda_discriminator_forward.5} parent=47 // pred_check_branch
          %282 = sbr.rel (%p280) target = $region52
        $region51: #{adda_discriminator_forward.5} parent=47 // pred_region
          %s283 = smul.u32 8, %s17
          %s284 = ssub.s32 25, %s283
          %p285 = scmp.lt.s32.totalorder %s284, 8
          %s286 = scalar_select %p285, %s284, 8
          %s287 = smul.u32 128, %s286
          %p288 = scmp.lt.s32.totalorder %s283, 24
          %s289 = scalar_select %p288, %s283, 24
          %s290 = smul.addr %s289, 8
          %s291 = scalar_lea.vmem %s0, %s290
          %s292 = smul.u32 8, %s17
          %s293 = ssub.s32 25, %s292
          %p294 = scmp.lt.s32.totalorder %s293, 8
          %s295 = scalar_select %p294, %s293, 8
          %s296 = smul.u32 128, %s295
        $region52: #{adda_discriminator_forward.5} parent=47 // pred_fallthru
          _
      $region48: #{adda_discriminator_forward.5} parent=5 // pred_fallthru
        _
      %p297 = scmp.le.s32.totalorder 1, %s17
      %p298 = scmp.lt.s32.totalorder %s17, 5
      %p299 = pnand %p297, %p298
      %p300 = pneg %p299
      // Predicated region
      $region53: #{adda_discriminator_forward.5} parent=5 // pred_check
        _
      $region54: #{adda_discriminator_forward.5} parent=5 // pred_check_branch
        %302 = sbr.rel (%p299) target = $region56
      $region55: #{adda_discriminator_forward.5} parent=5 // pred_region
        %s303 = ssub.s32 %s17, 1
        %s304 = smul.u32 8, %s22
        %s305 = ssub.s32 25, %s304
        %p306 = scmp.lt.s32.totalorder %s305, 8
        %s307 = scalar_select %p306, %s305, 8
        %s308 = smul.u32 128, %s307
        %p309 = scmp.lt.s32.totalorder %s304, 24
        %s310 = scalar_select %p309, %s304, 24
        %s311 = smul.addr %s310, 8
        %s312 = scalar_lea.vmem %s0, %s311
        %p313 = pneg %p43
        %p314 = pneg %p40
        %p315 = pneg %p64
        %p316 = pneg %p61
        %p317 = pneg %p85
        %p318 = pneg %p82
        %p319 = pneg %p106
        %p320 = pneg %p103
        %p321 = pneg %p127
        %p322 = pneg %p124
        %p323 = pneg %p148
        %p324 = pneg %p145
        %p325 = pneg %p169
        %p326 = pneg %p166
        %p327 = pneg %p190
        %p328 = pneg %p187
        %p329 = pneg %p211
        %p330 = pneg %p208
        %p331 = pneg %p237
        %p332 = pneg %p234
        %s333 = sand.u32 %s224, 1
        %s334 = sand.u32 %s224, 1
        %s335 = smul.addr %s334, 64
        %s336 = scalar_lea.vmem [#allocation3], %s335
        %s337 = smul.u32 8, %s22
        %s338 = ssub.s32 25, %s337
        %p339 = scmp.lt.s32.totalorder %s338, 8
        %s340 = scalar_select %p339, %s338, 8
        %s341 = smul.u32 128, %s340
        %p342 = scmp.lt.s32.totalorder %s337, 24
        %s343 = scalar_select %p342, %s337, 24
        %s344 = smul.addr %s343, 8
        %s345 = scalar_lea.vmem %s0, %s344
        %s346 = smul.u32 8, %s22
        %s347 = ssub.s32 25, %s346
        %p348 = scmp.lt.s32.totalorder %s347, 8
        %s349 = scalar_select %p348, %s347, 8
        %s350 = smul.u32 128, %s349
        %s351 = smul.u32 8, %s22
        %s352 = ssub.s32 25, %s351
        %p353 = scmp.lt.s32.totalorder %s352, 8
        %s354 = scalar_select %p353, %s352, 8
        %s355 = smul.u32 128, %s354
        %v357 = vld [vmem:[%s345] sm:$0xff]
        %v358 = vld [vmem:[%s345 + $0x8] sm:$0xff]
        %v359 = vld [vmem:[%s345 + $0x10] sm:$0xff]
        %v360 = vld [vmem:[%s345 + $0x18] sm:$0xff]
        %v361 = vld [vmem:[%s345 + $0x20] sm:$0xff]
        %v362 = vld [vmem:[%s345 + $0x28] sm:$0xff]
        %v363 = vld [vmem:[%s345 + $0x30] sm:$0xff]
        %v364 = vld [vmem:[%s345 + $0x38] sm:$0xff]
        %v365 = vpack.c.bf16 %v358, %v357
        %v366 = vpack.c.bf16 %v360, %v359
        %v367 = vpack.c.bf16 %v362, %v361
        %v368 = vpack.c.bf16 %v364, %v363
        %v369 = vld [vmem:[%s1] sm:$0xff]
        %v370 = vld [vmem:[%s1 + $0x8] sm:$0xff]
        %v371 = vld [vmem:[%s1 + $0x10] sm:$0xff]
        %v372 = vld [vmem:[%s1 + $0x18] sm:$0xff]
        %v373 = vld [vmem:[%s1 + $0x20] sm:$0xff]
        %v374 = vld [vmem:[%s1 + $0x28] sm:$0xff]
        %v375 = vld [vmem:[%s1 + $0x30] sm:$0xff]
        %v376 = vld [vmem:[%s1 + $0x38] sm:$0xff]
        %v377 = vld [vmem:[%s1 + $0x40] sm:$0xff]
        %v378 = vld [vmem:[%s1 + $0x48] sm:$0xff]
        %v379 = vld [vmem:[%s1 + $0x50] sm:$0xff]
        %v380 = vld [vmem:[%s1 + $0x58] sm:$0xff]
        %v381 = vld [vmem:[%s1 + $0x60] sm:$0xff]
        %v382 = vld [vmem:[%s1 + $0x68] sm:$0xff]
        %v383 = vld [vmem:[%s1 + $0x70] sm:$0xff]
        %v384 = vld [vmem:[%s1 + $0x78] sm:$0xff]
        %v385 = vld [vmem:[%s1 + $0x80] sm:$0xff]
        %v386 = vld [vmem:[%s1 + $0x88] sm:$0xff]
        %v387 = vld [vmem:[%s1 + $0x90] sm:$0xff]
        %v388 = vld [vmem:[%s1 + $0x98] sm:$0xff]
        %v389 = vld [vmem:[%s1 + $0xa0] sm:$0xff]
        %v390 = vld [vmem:[%s1 + $0xa8] sm:$0xff]
        %v391 = vld [vmem:[%s1 + $0xb0] sm:$0xff]
        %v392 = vld [vmem:[%s1 + $0xb8] sm:$0xff]
        %v393 = vld [vmem:[%s1 + $0xc0] sm:$0xff]
        %v394 = vld [vmem:[%s1 + $0xc8] sm:$0xff]
        %v395 = vld [vmem:[%s1 + $0xd0] sm:$0xff]
        %v396 = vld [vmem:[%s1 + $0xd8] sm:$0xff]
        %v397 = vld [vmem:[%s1 + $0xe0] sm:$0xff]
        %v398 = vld [vmem:[%s1 + $0xe8] sm:$0xff]
        %v399 = vld [vmem:[%s1 + $0xf0] sm:$0xff]
        %v400 = vld [vmem:[%s1 + $0xf8] sm:$0xff]
        %v401 = vld [vmem:[%s2] sm:$0xf]
        %v403 = vlaneseq
        %v404 = vshrl.u32 %v403, 7
        %v405 = vsub.s32 0, %v404
        %v406 = vrot.slane %v401, %v405
        %v407 = vlaneseq
        %v408 = vshrl.u32 %v407, 7
        %v409 = vsub.s32 1, %v408
        %v410 = vrot.slane %v401, %v409
        %v411 = vlaneseq
        %v412 = vshrl.u32 %v411, 7
        %v413 = vsub.s32 2, %v412
        %v414 = vrot.slane %v401, %v413
        %v415 = vlaneseq
        %v416 = vshrl.u32 %v415, 7
        %v417 = vsub.s32 3, %v416
        %v418 = vrot.slane %v401, %v417
        %v455 = vunpack.c.l.b16 %v369
        %v456 = vunpack.c.h.b16 %v369
        %v457 = vunpack.c.l.b16 %v370
        %v458 = vunpack.c.h.b16 %v370
        %v459 = vunpack.c.l.b16 %v371
        %v460 = vunpack.c.h.b16 %v371
        %v461 = vunpack.c.l.b16 %v372
        %v462 = vunpack.c.h.b16 %v372
        %v463 = vunpack.c.l.b16 %v373
        %v464 = vunpack.c.h.b16 %v373
        %v465 = vunpack.c.l.b16 %v374
        %v466 = vunpack.c.h.b16 %v374
        %v467 = vunpack.c.l.b16 %v375
        %v468 = vunpack.c.h.b16 %v375
        %v469 = vunpack.c.l.b16 %v376
        %v470 = vunpack.c.h.b16 %v376
        %v471 = vunpack.c.l.b16 %v377
        %v472 = vunpack.c.h.b16 %v377
        %v473 = vunpack.c.l.b16 %v378
        %v474 = vunpack.c.h.b16 %v378
        %v475 = vunpack.c.l.b16 %v379
        %v476 = vunpack.c.h.b16 %v379
        %v477 = vunpack.c.l.b16 %v380
        %v478 = vunpack.c.h.b16 %v380
        %v479 = vunpack.c.l.b16 %v381
        %v480 = vunpack.c.h.b16 %v381
        %v481 = vunpack.c.l.b16 %v382
        %v482 = vunpack.c.h.b16 %v382
        %v483 = vunpack.c.l.b16 %v383
        %v484 = vunpack.c.h.b16 %v383
        %v485 = vunpack.c.l.b16 %v384
        %v486 = vunpack.c.h.b16 %v384
        %v487 = vunpack.c.l.b16 %v385
        %v488 = vunpack.c.h.b16 %v385
        %v489 = vunpack.c.l.b16 %v386
        %v490 = vunpack.c.h.b16 %v386
        %v491 = vunpack.c.l.b16 %v387
        %v492 = vunpack.c.h.b16 %v387
        %v493 = vunpack.c.l.b16 %v388
        %v494 = vunpack.c.h.b16 %v388
        %v495 = vunpack.c.l.b16 %v389
        %v496 = vunpack.c.h.b16 %v389
        %v497 = vunpack.c.l.b16 %v390
        %v498 = vunpack.c.h.b16 %v390
        %v499 = vunpack.c.l.b16 %v391
        %v500 = vunpack.c.h.b16 %v391
        %v501 = vunpack.c.l.b16 %v392
        %v502 = vunpack.c.h.b16 %v392
        %v503 = vunpack.c.l.b16 %v393
        %v504 = vunpack.c.h.b16 %v393
        %v505 = vunpack.c.l.b16 %v394
        %v506 = vunpack.c.h.b16 %v394
        %v507 = vunpack.c.l.b16 %v395
        %v508 = vunpack.c.h.b16 %v395
        %v509 = vunpack.c.l.b16 %v396
        %v510 = vunpack.c.h.b16 %v396
        %v511 = vunpack.c.l.b16 %v397
        %v512 = vunpack.c.h.b16 %v397
        %v513 = vunpack.c.l.b16 %v398
        %v514 = vunpack.c.h.b16 %v398
        %v515 = vunpack.c.l.b16 %v399
        %v516 = vunpack.c.h.b16 %v399
        %v517 = vunpack.c.l.b16 %v400
        %v518 = vunpack.c.h.b16 %v400
        %v519 = vpack.c.b16 %v459, %v455
        %v520 = vpack.c.b16 %v460, %v456
        %v521 = vpack.c.b16 %v461, %v457
        %v522 = vpack.c.b16 %v462, %v458
        %v523 = vpack.c.b16 %v467, %v463
        %v524 = vpack.c.b16 %v468, %v464
        %v525 = vpack.c.b16 %v469, %v465
        %v526 = vpack.c.b16 %v470, %v466
        %v527 = vpack.c.b16 %v475, %v471
        %v528 = vpack.c.b16 %v476, %v472
        %v529 = vpack.c.b16 %v477, %v473
        %v530 = vpack.c.b16 %v478, %v474
        %v531 = vpack.c.b16 %v483, %v479
        %v532 = vpack.c.b16 %v484, %v480
        %v533 = vpack.c.b16 %v485, %v481
        %v534 = vpack.c.b16 %v486, %v482
        %v535 = vpack.c.b16 %v491, %v487
        %v536 = vpack.c.b16 %v492, %v488
        %v537 = vpack.c.b16 %v493, %v489
        %v538 = vpack.c.b16 %v494, %v490
        %v539 = vpack.c.b16 %v499, %v495
        %v540 = vpack.c.b16 %v500, %v496
        %v541 = vpack.c.b16 %v501, %v497
        %v542 = vpack.c.b16 %v502, %v498
        %v543 = vpack.c.b16 %v507, %v503
        %v544 = vpack.c.b16 %v508, %v504
        %v545 = vpack.c.b16 %v509, %v505
        %v546 = vpack.c.b16 %v510, %v506
        %v547 = vpack.c.b16 %v515, %v511
        %v548 = vpack.c.b16 %v516, %v512
        %v549 = vpack.c.b16 %v517, %v513
        %v550 = vpack.c.b16 %v518, %v514
        %583 = vmatprep.subr.bf16.mxu0 %v520
        %584 = vmatpush1.bf16.msra.mxu0 %v519
        %585 = vmatprep.subr.bf16.mxu0 %v524
        %586 = vmatpush1.bf16.msra.mxu0 %v523
        %587 = vmatprep.subr.bf16.mxu0 %v528
        %588 = vmatpush1.bf16.msra.mxu0 %v527
        %589 = vmatprep.subr.bf16.mxu0 %v532
        %590 = vmatpush1.bf16.msra.mxu0 %v531
        %591 = vmatprep.subr.bf16.mxu0 %v536
        %592 = vmatpush1.bf16.msra.mxu0 %v535
        %593 = vmatprep.subr.bf16.mxu0 %v540
        %594 = vmatpush1.bf16.msra.mxu0 %v539
        %595 = vmatprep.subr.bf16.mxu0 %v544
        %596 = vmatpush1.bf16.msra.mxu0 %v543
        %597 = vmatprep.subr.bf16.mxu0 %v548
        %598 = vmatpush1.bf16.msra.mxu0 %v547
        %599 = vmatprep.subr.bf16.mxu0 0
        %600 = vmatpush1.bf16.msra.mxu0 0
        %601 = vmatprep.subr.bf16.mxu0 0
        %602 = vmatpush1.bf16.msra.mxu0 0
        %603 = vmatprep.subr.bf16.mxu0 0
        %604 = vmatpush1.bf16.msra.mxu0 0
        %605 = vmatprep.subr.bf16.mxu0 0
        %606 = vmatpush1.bf16.msra.mxu0 0
        %607 = vmatprep.subr.bf16.mxu0 0
        %608 = vmatpush1.bf16.msra.mxu0 0
        %609 = vmatprep.subr.bf16.mxu0 0
        %610 = vmatpush1.bf16.msra.mxu0 0
        %611 = vmatprep.subr.bf16.mxu0 0
        %612 = vmatpush1.bf16.msra.mxu0 0
        %613 = vmatprep.subr.bf16.mxu0 0
        %614 = vmatpush1.bf16.msra.mxu0 0
        %615 = vmatprep.mubr.bf16.mxu0 0
        %616 = vmatmul.mubr.bf16.gmra.mrb[0].mxu0 %v365
        %v617 = vpop.f32.mrb[0].mxu0
        %v618 = vadd.f32 %v406, %v617
        %v619 = vpop.f32.mrb[0].mxu0
        %v620 = vadd.f32 %v410, %v619
        %v621 = vpop.f32.mrb[0].mxu0
        %v622 = vadd.f32 %v406, %v621
        %v623 = vpop.f32.mrb[0].mxu0
        %v624 = vadd.f32 %v410, %v623
        %625 = vmatprep.mubr.bf16.mxu0 0
        %626 = vmatmul.mubr.bf16.gmra.mrb[0].mxu0 %v366
        %v627 = vpop.f32.mrb[0].mxu0
        %v628 = vadd.f32 %v406, %v627
        %v629 = vpop.f32.mrb[0].mxu0
        %v630 = vadd.f32 %v410, %v629
        %v631 = vpop.f32.mrb[0].mxu0
        %v632 = vadd.f32 %v406, %v631
        %v633 = vpop.f32.mrb[0].mxu0
        %v634 = vadd.f32 %v410, %v633
        %635 = vmatprep.mubr.bf16.mxu0 0
        %636 = vmatmul.mubr.bf16.gmra.mrb[0].mxu0 %v367
        %v637 = vpop.f32.mrb[0].mxu0
        %v638 = vadd.f32 %v406, %v637
        %v639 = vpop.f32.mrb[0].mxu0
        %v640 = vadd.f32 %v410, %v639
        %v641 = vpop.f32.mrb[0].mxu0
        %v642 = vadd.f32 %v406, %v641
        %v643 = vpop.f32.mrb[0].mxu0
        %v644 = vadd.f32 %v410, %v643
        %645 = vmatprep.mubr.bf16.mxu0 0
        %646 = vmatmul.mubr.bf16.gmra.mrb[0].mxu0 %v368
        %v647 = vpop.f32.mrb[0].mxu0
        %v648 = vadd.f32 %v406, %v647
        %v649 = vpop.f32.mrb[0].mxu0
        %v650 = vadd.f32 %v410, %v649
        %v651 = vpop.f32.mrb[0].mxu0
        %v652 = vadd.f32 %v406, %v651
        %v653 = vpop.f32.mrb[0].mxu0
        %v654 = vadd.f32 %v410, %v653
        %655 = vdwg.mxu0
        %656 = vmatprep.subr.bf16.mxu0 %v522
        %657 = vmatpush1.bf16.msra.mxu0 %v521
        %658 = vmatprep.subr.bf16.mxu0 %v526
        %659 = vmatpush1.bf16.msra.mxu0 %v525
        %660 = vmatprep.subr.bf16.mxu0 %v530
        %661 = vmatpush1.bf16.msra.mxu0 %v529
        %662 = vmatprep.subr.bf16.mxu0 %v534
        %663 = vmatpush1.bf16.msra.mxu0 %v533
        %664 = vmatprep.subr.bf16.mxu0 %v538
        %665 = vmatpush1.bf16.msra.mxu0 %v537
        %666 = vmatprep.subr.bf16.mxu0 %v542
        %667 = vmatpush1.bf16.msra.mxu0 %v541
        %668 = vmatprep.subr.bf16.mxu0 %v546
        %669 = vmatpush1.bf16.msra.mxu0 %v545
        %670 = vmatprep.subr.bf16.mxu0 %v550
        %671 = vmatpush1.bf16.msra.mxu0 %v549
        %672 = vmatprep.subr.bf16.mxu0 0
        %673 = vmatpush1.bf16.msra.mxu0 0
        %674 = vmatprep.subr.bf16.mxu0 0
        %675 = vmatpush1.bf16.msra.mxu0 0
        %676 = vmatprep.subr.bf16.mxu0 0
        %677 = vmatpush1.bf16.msra.mxu0 0
        %678 = vmatprep.subr.bf16.mxu0 0
        %679 = vmatpush1.bf16.msra.mxu0 0
        %680 = vmatprep.subr.bf16.mxu0 0
        %681 = vmatpush1.bf16.msra.mxu0 0
        %682 = vmatprep.subr.bf16.mxu0 0
        %683 = vmatpush1.bf16.msra.mxu0 0
        %684 = vmatprep.subr.bf16.mxu0 0
        %685 = vmatpush1.bf16.msra.mxu0 0
        %686 = vmatprep.subr.bf16.mxu0 0
        %687 = vmatpush1.bf16.msra.mxu0 0
        %688 = vmatprep.mubr.bf16.mxu0 0
        %689 = vmatmul.mubr.bf16.gmra.mrb[0].mxu0 %v365
        %v690 = vpop.f32.mrb[0].mxu0
        %v691 = vadd.f32 %v414, %v690
        %v692 = vpop.f32.mrb[0].mxu0
        %v693 = vadd.f32 %v418, %v692
        %v694 = vpop.f32.mrb[0].mxu0
        %v695 = vadd.f32 %v414, %v694
        %v696 = vpop.f32.mrb[0].mxu0
        %v697 = vadd.f32 %v418, %v696
        %698 = vmatprep.mubr.bf16.mxu0 0
        %699 = vmatmul.mubr.bf16.gmra.mrb[0].mxu0 %v366
        %v700 = vpop.f32.mrb[0].mxu0
        %v701 = vadd.f32 %v414, %v700
        %v702 = vpop.f32.mrb[0].mxu0
        %v703 = vadd.f32 %v418, %v702
        %v704 = vpop.f32.mrb[0].mxu0
        %v705 = vadd.f32 %v414, %v704
        %v706 = vpop.f32.mrb[0].mxu0
        %v707 = vadd.f32 %v418, %v706
        %708 = vmatprep.mubr.bf16.mxu0 0
        %709 = vmatmul.mubr.bf16.gmra.mrb[0].mxu0 %v367
        %v710 = vpop.f32.mrb[0].mxu0
        %v711 = vadd.f32 %v414, %v710
        %v712 = vpop.f32.mrb[0].mxu0
        %v713 = vadd.f32 %v418, %v712
        %v714 = vpop.f32.mrb[0].mxu0
        %v715 = vadd.f32 %v414, %v714
        %v716 = vpop.f32.mrb[0].mxu0
        %v717 = vadd.f32 %v418, %v716
        %718 = vmatprep.mubr.bf16.mxu0 0
        %719 = vmatmul.mubr.bf16.gmra.mrb[0].mxu0 %v368
        %v720 = vpop.f32.mrb[0].mxu0
        %v721 = vadd.f32 %v414, %v720
        %v722 = vpop.f32.mrb[0].mxu0
        %v723 = vadd.f32 %v418, %v722
        %v724 = vpop.f32.mrb[0].mxu0
        %v725 = vadd.f32 %v414, %v724
        %v726 = vpop.f32.mrb[0].mxu0
        %v727 = vadd.f32 %v418, %v726
        %728 = vdwg.mxu0
        %v729 = vld [vmem:[%s3] ss:$2 sm:$0xf]
        %v731 = vlaneseq
        %v732 = vshrl.u32 %v731, 7
        %v733 = vsub.s32 0, %v732
        %v734 = vrot.slane %v729, %v733
        %v735 = vlaneseq
        %v736 = vshrl.u32 %v735, 7
        %v737 = vsub.s32 1, %v736
        %v738 = vrot.slane %v729, %v737
        %v739 = vlaneseq
        %v740 = vshrl.u32 %v739, 7
        %v741 = vsub.s32 2, %v740
        %v742 = vrot.slane %v729, %v741
        %v743 = vlaneseq
        %v744 = vshrl.u32 %v743, 7
        %v745 = vsub.s32 3, %v744
        %v746 = vrot.slane %v729, %v745
        %v751 = vmul.f32 %v618, %v734
        %v752 = vmul.f32 %v620, %v738
        %v753 = vmul.f32 %v691, %v742
        %v754 = vmul.f32 %v693, %v746
        %v755 = vmul.f32 %v622, %v734
        %v756 = vmul.f32 %v624, %v738
        %v757 = vmul.f32 %v695, %v742
        %v758 = vmul.f32 %v697, %v746
        %v759 = vmul.f32 %v628, %v734
        %v760 = vmul.f32 %v630, %v738
        %v761 = vmul.f32 %v701, %v742
        %v762 = vmul.f32 %v703, %v746
        %v763 = vmul.f32 %v632, %v734
        %v764 = vmul.f32 %v634, %v738
        %v765 = vmul.f32 %v705, %v742
        %v766 = vmul.f32 %v707, %v746
        %v767 = vmul.f32 %v638, %v734
        %v768 = vmul.f32 %v640, %v738
        %v769 = vmul.f32 %v711, %v742
        %v770 = vmul.f32 %v713, %v746
        %v771 = vmul.f32 %v642, %v734
        %v772 = vmul.f32 %v644, %v738
        %v773 = vmul.f32 %v715, %v742
        %v774 = vmul.f32 %v717, %v746
        %v775 = vmul.f32 %v648, %v734
        %v776 = vmul.f32 %v650, %v738
        %v777 = vmul.f32 %v721, %v742
        %v778 = vmul.f32 %v723, %v746
        %v779 = vmul.f32 %v652, %v734
        %v780 = vmul.f32 %v654, %v738
        %v781 = vmul.f32 %v725, %v742
        %v782 = vmul.f32 %v727, %v746
        %s783 = scalar_lea.vmem %s3, 1
        %v784 = vld [vmem:[%s783] ss:$2 sm:$0xf]
        %v786 = vlaneseq
        %v787 = vshrl.u32 %v786, 7
        %v788 = vsub.s32 0, %v787
        %v789 = vrot.slane %v784, %v788
        %v790 = vlaneseq
        %v791 = vshrl.u32 %v790, 7
        %v792 = vsub.s32 1, %v791
        %v793 = vrot.slane %v784, %v792
        %v794 = vlaneseq
        %v795 = vshrl.u32 %v794, 7
        %v796 = vsub.s32 2, %v795
        %v797 = vrot.slane %v784, %v796
        %v798 = vlaneseq
        %v799 = vshrl.u32 %v798, 7
        %v800 = vsub.s32 3, %v799
        %v801 = vrot.slane %v784, %v800
        %v806 = vadd.f32 %v751, %v789
        %v807 = vadd.f32 %v752, %v793
        %v808 = vadd.f32 %v753, %v797
        %v809 = vadd.f32 %v754, %v801
        %v810 = vadd.f32 %v755, %v789
        %v811 = vadd.f32 %v756, %v793
        %v812 = vadd.f32 %v757, %v797
        %v813 = vadd.f32 %v758, %v801
        %v814 = vadd.f32 %v759, %v789
        %v815 = vadd.f32 %v760, %v793
        %v816 = vadd.f32 %v761, %v797
        %v817 = vadd.f32 %v762, %v801
        %v818 = vadd.f32 %v763, %v789
        %v819 = vadd.f32 %v764, %v793
        %v820 = vadd.f32 %v765, %v797
        %v821 = vadd.f32 %v766, %v801
        %v822 = vadd.f32 %v767, %v789
        %v823 = vadd.f32 %v768, %v793
        %v824 = vadd.f32 %v769, %v797
        %v825 = vadd.f32 %v770, %v801
        %v826 = vadd.f32 %v771, %v789
        %v827 = vadd.f32 %v772, %v793
        %v828 = vadd.f32 %v773, %v797
        %v829 = vadd.f32 %v774, %v801
        %v830 = vadd.f32 %v775, %v789
        %v831 = vadd.f32 %v776, %v793
        %v832 = vadd.f32 %v777, %v797
        %v833 = vadd.f32 %v778, %v801
        %v834 = vadd.f32 %v779, %v789
        %v835 = vadd.f32 %v780, %v793
        %v836 = vadd.f32 %v781, %v797
        %v837 = vadd.f32 %v782, %v801
        %v838 = vmul.f32 %v806, 0.01
        %v839 = vmul.f32 %v807, 0.01
        %v840 = vmul.f32 %v808, 0.01
        %v841 = vmul.f32 %v809, 0.01
        %v842 = vmul.f32 %v810, 0.01
        %v843 = vmul.f32 %v811, 0.01
        %v844 = vmul.f32 %v812, 0.01
        %v845 = vmul.f32 %v813, 0.01
        %v846 = vmul.f32 %v814, 0.01
        %v847 = vmul.f32 %v815, 0.01
        %v848 = vmul.f32 %v816, 0.01
        %v849 = vmul.f32 %v817, 0.01
        %v850 = vmul.f32 %v818, 0.01
        %v851 = vmul.f32 %v819, 0.01
        %v852 = vmul.f32 %v820, 0.01
        %v853 = vmul.f32 %v821, 0.01
        %v854 = vmul.f32 %v822, 0.01
        %v855 = vmul.f32 %v823, 0.01
        %v856 = vmul.f32 %v824, 0.01
        %v857 = vmul.f32 %v825, 0.01
        %v858 = vmul.f32 %v826, 0.01
        %v859 = vmul.f32 %v827, 0.01
        %v860 = vmul.f32 %v828, 0.01
        %v861 = vmul.f32 %v829, 0.01
        %v862 = vmul.f32 %v830, 0.01
        %v863 = vmul.f32 %v831, 0.01
        %v864 = vmul.f32 %v832, 0.01
        %v865 = vmul.f32 %v833, 0.01
        %v866 = vmul.f32 %v834, 0.01
        %v867 = vmul.f32 %v835, 0.01
        %v868 = vmul.f32 %v836, 0.01
        %v869 = vmul.f32 %v837, 0.01
        %v870 = vmax.f32 %v806, %v838
        %v871 = vmax.f32 %v807, %v839
        %v872 = vmax.f32 %v808, %v840
        %v873 = vmax.f32 %v809, %v841
        %v874 = vmax.f32 %v810, %v842
        %v875 = vmax.f32 %v811, %v843
        %v876 = vmax.f32 %v812, %v844
        %v877 = vmax.f32 %v813, %v845
        %v878 = vmax.f32 %v814, %v846
        %v879 = vmax.f32 %v815, %v847
        %v880 = vmax.f32 %v816, %v848
        %v881 = vmax.f32 %v817, %v849
        %v882 = vmax.f32 %v818, %v850
        %v883 = vmax.f32 %v819, %v851
        %v884 = vmax.f32 %v820, %v852
        %v885 = vmax.f32 %v821, %v853
        %v886 = vmax.f32 %v822, %v854
        %v887 = vmax.f32 %v823, %v855
        %v888 = vmax.f32 %v824, %v856
        %v889 = vmax.f32 %v825, %v857
        %v890 = vmax.f32 %v826, %v858
        %v891 = vmax.f32 %v827, %v859
        %v892 = vmax.f32 %v828, %v860
        %v893 = vmax.f32 %v829, %v861
        %v894 = vmax.f32 %v830, %v862
        %v895 = vmax.f32 %v831, %v863
        %v896 = vmax.f32 %v832, %v864
        %v897 = vmax.f32 %v833, %v865
        %v898 = vmax.f32 %v834, %v866
        %v899 = vmax.f32 %v835, %v867
        %v900 = vmax.f32 %v836, %v868
        %v901 = vmax.f32 %v837, %v869
        %v902 = vpack.c.bf16 %v874, %v870
        %v903 = vpack.c.bf16 %v875, %v871
        %v904 = vpack.c.bf16 %v876, %v872
        %v905 = vpack.c.bf16 %v877, %v873
        %v906 = vpack.c.bf16 %v882, %v878
        %v907 = vpack.c.bf16 %v883, %v879
        %v908 = vpack.c.bf16 %v884, %v880
        %v909 = vpack.c.bf16 %v885, %v881
        %v910 = vpack.c.bf16 %v890, %v886
        %v911 = vpack.c.bf16 %v891, %v887
        %v912 = vpack.c.bf16 %v892, %v888
        %v913 = vpack.c.bf16 %v893, %v889
        %v914 = vpack.c.bf16 %v898, %v894
        %v915 = vpack.c.bf16 %v899, %v895
        %v916 = vpack.c.bf16 %v900, %v896
        %v917 = vpack.c.bf16 %v901, %v897
        %v918 = vld [vmem:[%s4] sm:$0xff]
        %v919 = vld [vmem:[%s4 + $0x8] sm:$0xff]
        %v920 = vld [vmem:[%s4 + $0x10] sm:$0xff]
        %v921 = vld [vmem:[%s4 + $0x18] sm:$0xff]
        %v922 = vld [vmem:[%s4 + $0x20] sm:$0xff]
        %v923 = vld [vmem:[%s4 + $0x28] sm:$0xff]
        %v924 = vld [vmem:[%s4 + $0x30] sm:$0xff]
        %v925 = vld [vmem:[%s4 + $0x38] sm:$0xff]
        %v926 = vld [vmem:[%s4 + $0x40] sm:$0xff]
        %v927 = vld [vmem:[%s4 + $0x48] sm:$0xff]
        %v928 = vld [vmem:[%s4 + $0x50] sm:$0xff]
        %v929 = vld [vmem:[%s4 + $0x58] sm:$0xff]
        %v930 = vld [vmem:[%s4 + $0x60] sm:$0xff]
        %v931 = vld [vmem:[%s4 + $0x68] sm:$0xff]
        %v932 = vld [vmem:[%s4 + $0x70] sm:$0xff]
        %v933 = vld [vmem:[%s4 + $0x78] sm:$0xff]
        %v934 = vld [vmem:[%s4 + $0x80] sm:$0xff]
        %v935 = vld [vmem:[%s4 + $0x88] sm:$0xff]
        %v936 = vld [vmem:[%s4 + $0x90] sm:$0xff]
        %v937 = vld [vmem:[%s4 + $0x98] sm:$0xff]
        %v938 = vld [vmem:[%s4 + $0xa0] sm:$0xff]
        %v939 = vld [vmem:[%s4 + $0xa8] sm:$0xff]
        %v940 = vld [vmem:[%s4 + $0xb0] sm:$0xff]
        %v941 = vld [vmem:[%s4 + $0xb8] sm:$0xff]
        %v942 = vld [vmem:[%s4 + $0xc0] sm:$0xff]
        %v943 = vld [vmem:[%s4 + $0xc8] sm:$0xff]
        %v944 = vld [vmem:[%s4 + $0xd0] sm:$0xff]
        %v945 = vld [vmem:[%s4 + $0xd8] sm:$0xff]
        %v946 = vld [vmem:[%s4 + $0xe0] sm:$0xff]
        %v947 = vld [vmem:[%s4 + $0xe8] sm:$0xff]
        %v948 = vld [vmem:[%s4 + $0xf0] sm:$0xff]
        %v949 = vld [vmem:[%s4 + $0xf8] sm:$0xff]
        %v950 = vld [vmem:[%s4 + $0x100] sm:$0xff]
        %v951 = vld [vmem:[%s4 + $0x108] sm:$0xff]
        %v952 = vld [vmem:[%s4 + $0x110] sm:$0xff]
        %v953 = vld [vmem:[%s4 + $0x118] sm:$0xff]
        %v954 = vld [vmem:[%s4 + $0x120] sm:$0xff]
        %v955 = vld [vmem:[%s4 + $0x128] sm:$0xff]
        %v956 = vld [vmem:[%s4 + $0x130] sm:$0xff]
        %v957 = vld [vmem:[%s4 + $0x138] sm:$0xff]
        %v958 = vld [vmem:[%s4 + $0x140] sm:$0xff]
        %v959 = vld [vmem:[%s4 + $0x148] sm:$0xff]
        %v960 = vld [vmem:[%s4 + $0x150] sm:$0xff]
        %v961 = vld [vmem:[%s4 + $0x158] sm:$0xff]
        %v962 = vld [vmem:[%s4 + $0x160] sm:$0xff]
        %v963 = vld [vmem:[%s4 + $0x168] sm:$0xff]
        %v964 = vld [vmem:[%s4 + $0x170] sm:$0xff]
        %v965 = vld [vmem:[%s4 + $0x178] sm:$0xff]
        %v966 = vld [vmem:[%s4 + $0x180] sm:$0xff]
        %v967 = vld [vmem:[%s4 + $0x188] sm:$0xff]
        %v968 = vld [vmem:[%s4 + $0x190] sm:$0xff]
        %v969 = vld [vmem:[%s4 + $0x198] sm:$0xff]
        %v970 = vld [vmem:[%s4 + $0x1a0] sm:$0xff]
        %v971 = vld [vmem:[%s4 + $0x1a8] sm:$0xff]
        %v972 = vld [vmem:[%s4 + $0x1b0] sm:$0xff]
        %v973 = vld [vmem:[%s4 + $0x1b8] sm:$0xff]
        %v974 = vld [vmem:[%s4 + $0x1c0] sm:$0xff]
        %v975 = vld [vmem:[%s4 + $0x1c8] sm:$0xff]
        %v976 = vld [vmem:[%s4 + $0x1d0] sm:$0xff]
        %v977 = vld [vmem:[%s4 + $0x1d8] sm:$0xff]
        %v978 = vld [vmem:[%s4 + $0x1e0] sm:$0xff]
        %v979 = vld [vmem:[%s4 + $0x1e8] sm:$0xff]
        %v980 = vld [vmem:[%s4 + $0x1f0] sm:$0xff]
        %v981 = vld [vmem:[%s4 + $0x1f8] sm:$0xff]
        %v982 = vld [vmem:[%s4 + $0x200] sm:$0xff]
        %v983 = vld [vmem:[%s4 + $0x208] sm:$0xff]
        %v984 = vld [vmem:[%s4 + $0x210] sm:$0xff]
        %v985 = vld [vmem:[%s4 + $0x218] sm:$0xff]
        %v986 = vld [vmem:[%s4 + $0x220] sm:$0xff]
        %v987 = vld [vmem:[%s4 + $0x228] sm:$0xff]
        %v988 = vld [vmem:[%s4 + $0x230] sm:$0xff]
        %v989 = vld [vmem:[%s4 + $0x238] sm:$0xff]
        %v990 = vld [vmem:[%s4 + $0x240] sm:$0xff]
        %v991 = vld [vmem:[%s4 + $0x248] sm:$0xff]
        %v992 = vld [vmem:[%s4 + $0x250] sm:$0xff]
        %v993 = vld [vmem:[%s4 + $0x258] sm:$0xff]
        %v994 = vld [vmem:[%s4 + $0x260] sm:$0xff]
        %v995 = vld [vmem:[%s4 + $0x268] sm:$0xff]
        %v996 = vld [vmem:[%s4 + $0x270] sm:$0xff]
        %v997 = vld [vmem:[%s4 + $0x278] sm:$0xff]
        %v998 = vld [vmem:[%s4 + $0x280] sm:$0xff]
        %v999 = vld [vmem:[%s4 + $0x288] sm:$0xff]
        %v1000 = vld [vmem:[%s4 + $0x290] sm:$0xff]
        %v1001 = vld [vmem:[%s4 + $0x298] sm:$0xff]
        %v1002 = vld [vmem:[%s4 + $0x2a0] sm:$0xff]
        %v1003 = vld [vmem:[%s4 + $0x2a8] sm:$0xff]
        %v1004 = vld [vmem:[%s4 + $0x2b0] sm:$0xff]
        %v1005 = vld [vmem:[%s4 + $0x2b8] sm:$0xff]
        %v1006 = vld [vmem:[%s4 + $0x2c0] sm:$0xff]
        %v1007 = vld [vmem:[%s4 + $0x2c8] sm:$0xff]
        %v1008 = vld [vmem:[%s4 + $0x2d0] sm:$0xff]
        %v1009 = vld [vmem:[%s4 + $0x2d8] sm:$0xff]
        %v1010 = vld [vmem:[%s4 + $0x2e0] sm:$0xff]
        %v1011 = vld [vmem:[%s4 + $0x2e8] sm:$0xff]
        %v1012 = vld [vmem:[%s4 + $0x2f0] sm:$0xff]
        %v1013 = vld [vmem:[%s4 + $0x2f8] sm:$0xff]
        %v1014 = vld [vmem:[%s4 + $0x300] sm:$0xff]
        %v1015 = vld [vmem:[%s4 + $0x308] sm:$0xff]
        %v1016 = vld [vmem:[%s4 + $0x310] sm:$0xff]
        %v1017 = vld [vmem:[%s4 + $0x318] sm:$0xff]
        %v1018 = vld [vmem:[%s4 + $0x320] sm:$0xff]
        %v1019 = vld [vmem:[%s4 + $0x328] sm:$0xff]
        %v1020 = vld [vmem:[%s4 + $0x330] sm:$0xff]
        %v1021 = vld [vmem:[%s4 + $0x338] sm:$0xff]
        %v1022 = vld [vmem:[%s4 + $0x340] sm:$0xff]
        %v1023 = vld [vmem:[%s4 + $0x348] sm:$0xff]
        %v1024 = vld [vmem:[%s4 + $0x350] sm:$0xff]
        %v1025 = vld [vmem:[%s4 + $0x358] sm:$0xff]
        %v1026 = vld [vmem:[%s4 + $0x360] sm:$0xff]
        %v1027 = vld [vmem:[%s4 + $0x368] sm:$0xff]
        %v1028 = vld [vmem:[%s4 + $0x370] sm:$0xff]
        %v1029 = vld [vmem:[%s4 + $0x378] sm:$0xff]
        %v1030 = vld [vmem:[%s4 + $0x380] sm:$0xff]
        %v1031 = vld [vmem:[%s4 + $0x388] sm:$0xff]
        %v1032 = vld [vmem:[%s4 + $0x390] sm:$0xff]
        %v1033 = vld [vmem:[%s4 + $0x398] sm:$0xff]
        %v1034 = vld [vmem:[%s4 + $0x3a0] sm:$0xff]
        %v1035 = vld [vmem:[%s4 + $0x3a8] sm:$0xff]
        %v1036 = vld [vmem:[%s4 + $0x3b0] sm:$0xff]
        %v1037 = vld [vmem:[%s4 + $0x3b8] sm:$0xff]
        %v1038 = vld [vmem:[%s4 + $0x3c0] sm:$0xff]
        %v1039 = vld [vmem:[%s4 + $0x3c8] sm:$0xff]
        %v1040 = vld [vmem:[%s4 + $0x3d0] sm:$0xff]
        %v1041 = vld [vmem:[%s4 + $0x3d8] sm:$0xff]
        %v1042 = vld [vmem:[%s4 + $0x3e0] sm:$0xff]
        %v1043 = vld [vmem:[%s4 + $0x3e8] sm:$0xff]
        %v1044 = vld [vmem:[%s4 + $0x3f0] sm:$0xff]
        %v1045 = vld [vmem:[%s4 + $0x3f8] sm:$0xff]
        %v1046 = vld [vmem:[%s4 + $0x400] sm:$0xff]
        %v1047 = vld [vmem:[%s4 + $0x408] sm:$0xff]
        %v1048 = vld [vmem:[%s4 + $0x410] sm:$0xff]
        %v1049 = vld [vmem:[%s4 + $0x418] sm:$0xff]
        %v1050 = vld [vmem:[%s4 + $0x420] sm:$0xff]
        %v1051 = vld [vmem:[%s4 + $0x428] sm:$0xff]
        %v1052 = vld [vmem:[%s4 + $0x430] sm:$0xff]
        %v1053 = vld [vmem:[%s4 + $0x438] sm:$0xff]
        %v1054 = vld [vmem:[%s4 + $0x440] sm:$0xff]
        %v1055 = vld [vmem:[%s4 + $0x448] sm:$0xff]
        %v1056 = vld [vmem:[%s4 + $0x450] sm:$0xff]
        %v1057 = vld [vmem:[%s4 + $0x458] sm:$0xff]
        %v1058 = vld [vmem:[%s4 + $0x460] sm:$0xff]
        %v1059 = vld [vmem:[%s4 + $0x468] sm:$0xff]
        %v1060 = vld [vmem:[%s4 + $0x470] sm:$0xff]
        %v1061 = vld [vmem:[%s4 + $0x478] sm:$0xff]
        %v1062 = vld [vmem:[%s4 + $0x480] sm:$0xff]
        %v1063 = vld [vmem:[%s4 + $0x488] sm:$0xff]
        %v1064 = vld [vmem:[%s4 + $0x490] sm:$0xff]
        %v1065 = vld [vmem:[%s4 + $0x498] sm:$0xff]
        %v1066 = vld [vmem:[%s4 + $0x4a0] sm:$0xff]
        %v1067 = vld [vmem:[%s4 + $0x4a8] sm:$0xff]
        %v1068 = vld [vmem:[%s4 + $0x4b0] sm:$0xff]
        %v1069 = vld [vmem:[%s4 + $0x4b8] sm:$0xff]
        %v1070 = vld [vmem:[%s4 + $0x4c0] sm:$0xff]
        %v1071 = vld [vmem:[%s4 + $0x4c8] sm:$0xff]
        %v1072 = vld [vmem:[%s4 + $0x4d0] sm:$0xff]
        %v1073 = vld [vmem:[%s4 + $0x4d8] sm:$0xff]
        %v1074 = vld [vmem:[%s4 + $0x4e0] sm:$0xff]
        %v1075 = vld [vmem:[%s4 + $0x4e8] sm:$0xff]
        %v1076 = vld [vmem:[%s4 + $0x4f0] sm:$0xff]
        %v1077 = vld [vmem:[%s4 + $0x4f8] sm:$0xff]
        %v1078 = vld [vmem:[%s4 + $0x500] sm:$0xff]
        %v1079 = vld [vmem:[%s4 + $0x508] sm:$0xff]
        %v1080 = vld [vmem:[%s4 + $0x510] sm:$0xff]
        %v1081 = vld [vmem:[%s4 + $0x518] sm:$0xff]
        %v1082 = vld [vmem:[%s4 + $0x520] sm:$0xff]
        %v1083 = vld [vmem:[%s4 + $0x528] sm:$0xff]
        %v1084 = vld [vmem:[%s4 + $0x530] sm:$0xff]
        %v1085 = vld [vmem:[%s4 + $0x538] sm:$0xff]
        %v1086 = vld [vmem:[%s4 + $0x540] sm:$0xff]
        %v1087 = vld [vmem:[%s4 + $0x548] sm:$0xff]
        %v1088 = vld [vmem:[%s4 + $0x550] sm:$0xff]
        %v1089 = vld [vmem:[%s4 + $0x558] sm:$0xff]
        %v1090 = vld [vmem:[%s4 + $0x560] sm:$0xff]
        %v1091 = vld [vmem:[%s4 + $0x568] sm:$0xff]
        %v1092 = vld [vmem:[%s4 + $0x570] sm:$0xff]
        %v1093 = vld [vmem:[%s4 + $0x578] sm:$0xff]
        %v1094 = vld [vmem:[%s4 + $0x580] sm:$0xff]
        %v1095 = vld [vmem:[%s4 + $0x588] sm:$0xff]
        %v1096 = vld [vmem:[%s4 + $0x590] sm:$0xff]
        %v1097 = vld [vmem:[%s4 + $0x598] sm:$0xff]
        %v1098 = vld [vmem:[%s4 + $0x5a0] sm:$0xff]
        %v1099 = vld [vmem:[%s4 + $0x5a8] sm:$0xff]
        %v1100 = vld [vmem:[%s4 + $0x5b0] sm:$0xff]
        %v1101 = vld [vmem:[%s4 + $0x5b8] sm:$0xff]
        %v1102 = vld [vmem:[%s4 + $0x5c0] sm:$0xff]
        %v1103 = vld [vmem:[%s4 + $0x5c8] sm:$0xff]
        %v1104 = vld [vmem:[%s4 + $0x5d0] sm:$0xff]
        %v1105 = vld [vmem:[%s4 + $0x5d8] sm:$0xff]
        %v1106 = vld [vmem:[%s4 + $0x5e0] sm:$0xff]
        %v1107 = vld [vmem:[%s4 + $0x5e8] sm:$0xff]
        %v1108 = vld [vmem:[%s4 + $0x5f0] sm:$0xff]
        %v1109 = vld [vmem:[%s4 + $0x5f8] sm:$0xff]
        %v1110 = vld [vmem:[%s4 + $0x600] sm:$0xff]
        %v1111 = vld [vmem:[%s4 + $0x608] sm:$0xff]
        %v1112 = vld [vmem:[%s4 + $0x610] sm:$0xff]
        %v1113 = vld [vmem:[%s4 + $0x618] sm:$0xff]
        %v1114 = vld [vmem:[%s4 + $0x620] sm:$0xff]
        %v1115 = vld [vmem:[%s4 + $0x628] sm:$0xff]
        %v1116 = vld [vmem:[%s4 + $0x630] sm:$0xff]
        %v1117 = vld [vmem:[%s4 + $0x638] sm:$0xff]
        %v1118 = vld [vmem:[%s4 + $0x640] sm:$0xff]
        %v1119 = vld [vmem:[%s4 + $0x648] sm:$0xff]
        %v1120 = vld [vmem:[%s4 + $0x650] sm:$0xff]
        %v1121 = vld [vmem:[%s4 + $0x658] sm:$0xff]
        %v1122 = vld [vmem:[%s4 + $0x660] sm:$0xff]
        %v1123 = vld [vmem:[%s4 + $0x668] sm:$0xff]
        %v1124 = vld [vmem:[%s4 + $0x670] sm:$0xff]
        %v1125 = vld [vmem:[%s4 + $0x678] sm:$0xff]
        %v1126 = vld [vmem:[%s4 + $0x680] sm:$0xff]
        %v1127 = vld [vmem:[%s4 + $0x688] sm:$0xff]
        %v1128 = vld [vmem:[%s4 + $0x690] sm:$0xff]
        %v1129 = vld [vmem:[%s4 + $0x698] sm:$0xff]
        %v1130 = vld [vmem:[%s4 + $0x6a0] sm:$0xff]
        %v1131 = vld [vmem:[%s4 + $0x6a8] sm:$0xff]
        %v1132 = vld [vmem:[%s4 + $0x6b0] sm:$0xff]
        %v1133 = vld [vmem:[%s4 + $0x6b8] sm:$0xff]
        %v1134 = vld [vmem:[%s4 + $0x6c0] sm:$0xff]
        %v1135 = vld [vmem:[%s4 + $0x6c8] sm:$0xff]
        %v1136 = vld [vmem:[%s4 + $0x6d0] sm:$0xff]
        %v1137 = vld [vmem:[%s4 + $0x6d8] sm:$0xff]
        %v1138 = vld [vmem:[%s4 + $0x6e0] sm:$0xff]
        %v1139 = vld [vmem:[%s4 + $0x6e8] sm:$0xff]
        %v1140 = vld [vmem:[%s4 + $0x6f0] sm:$0xff]
        %v1141 = vld [vmem:[%s4 + $0x6f8] sm:$0xff]
        %v1142 = vld [vmem:[%s4 + $0x700] sm:$0xff]
        %v1143 = vld [vmem:[%s4 + $0x708] sm:$0xff]
        %v1144 = vld [vmem:[%s4 + $0x710] sm:$0xff]
        %v1145 = vld [vmem:[%s4 + $0x718] sm:$0xff]
        %v1146 = vld [vmem:[%s4 + $0x720] sm:$0xff]
        %v1147 = vld [vmem:[%s4 + $0x728] sm:$0xff]
        %v1148 = vld [vmem:[%s4 + $0x730] sm:$0xff]
        %v1149 = vld [vmem:[%s4 + $0x738] sm:$0xff]
        %v1150 = vld [vmem:[%s4 + $0x740] sm:$0xff]
        %v1151 = vld [vmem:[%s4 + $0x748] sm:$0xff]
        %v1152 = vld [vmem:[%s4 + $0x750] sm:$0xff]
        %v1153 = vld [vmem:[%s4 + $0x758] sm:$0xff]
        %v1154 = vld [vmem:[%s4 + $0x760] sm:$0xff]
        %v1155 = vld [vmem:[%s4 + $0x768] sm:$0xff]
        %v1156 = vld [vmem:[%s4 + $0x770] sm:$0xff]
        %v1157 = vld [vmem:[%s4 + $0x778] sm:$0xff]
        %v1158 = vld [vmem:[%s4 + $0x780] sm:$0xff]
        %v1159 = vld [vmem:[%s4 + $0x788] sm:$0xff]
        %v1160 = vld [vmem:[%s4 + $0x790] sm:$0xff]
        %v1161 = vld [vmem:[%s4 + $0x798] sm:$0xff]
        %v1162 = vld [vmem:[%s4 + $0x7a0] sm:$0xff]
        %v1163 = vld [vmem:[%s4 + $0x7a8] sm:$0xff]
        %v1164 = vld [vmem:[%s4 + $0x7b0] sm:$0xff]
        %v1165 = vld [vmem:[%s4 + $0x7b8] sm:$0xff]
        %v1166 = vld [vmem:[%s4 + $0x7c0] sm:$0xff]
        %v1167 = vld [vmem:[%s4 + $0x7c8] sm:$0xff]
        %v1168 = vld [vmem:[%s4 + $0x7d0] sm:$0xff]
        %v1169 = vld [vmem:[%s4 + $0x7d8] sm:$0xff]
        %v1170 = vld [vmem:[%s4 + $0x7e0] sm:$0xff]
        %v1171 = vld [vmem:[%s4 + $0x7e8] sm:$0xff]
        %v1172 = vld [vmem:[%s4 + $0x7f0] sm:$0xff]
        %v1173 = vld [vmem:[%s4 + $0x7f8] sm:$0xff]
        %v1174 = vld [vmem:[%s5] sm:$0xff]
        %v1176 = vlaneseq
        %v1177 = vshrl.u32 %v1176, 7
        %v1178 = vsub.s32 0, %v1177
        %v1179 = vrot.slane %v1174, %v1178
        %v1180 = vlaneseq
        %v1181 = vshrl.u32 %v1180, 7
        %v1182 = vsub.s32 1, %v1181
        %v1183 = vrot.slane %v1174, %v1182
        %v1184 = vlaneseq
        %v1185 = vshrl.u32 %v1184, 7
        %v1186 = vsub.s32 2, %v1185
        %v1187 = vrot.slane %v1174, %v1186
        %v1188 = vlaneseq
        %v1189 = vshrl.u32 %v1188, 7
        %v1190 = vsub.s32 3, %v1189
        %v1191 = vrot.slane %v1174, %v1190
        %v1192 = vlaneseq
        %v1193 = vshrl.u32 %v1192, 7
        %v1194 = vsub.s32 4, %v1193
        %v1195 = vrot.slane %v1174, %v1194
        %v1196 = vlaneseq
        %v1197 = vshrl.u32 %v1196, 7
        %v1198 = vsub.s32 5, %v1197
        %v1199 = vrot.slane %v1174, %v1198
        %v1200 = vlaneseq
        %v1201 = vshrl.u32 %v1200, 7
        %v1202 = vsub.s32 6, %v1201
        %v1203 = vrot.slane %v1174, %v1202
        %v1204 = vlaneseq
        %v1205 = vshrl.u32 %v1204, 7
        %v1206 = vsub.s32 7, %v1205
        %v1207 = vrot.slane %v1174, %v1206
        %v1472 = vunpack.c.l.b16 %v918
        %v1473 = vunpack.c.h.b16 %v918
        %v1474 = vunpack.c.l.b16 %v919
        %v1475 = vunpack.c.h.b16 %v919
        %v1476 = vunpack.c.l.b16 %v920
        %v1477 = vunpack.c.h.b16 %v920
        %v1478 = vunpack.c.l.b16 %v921
        %v1479 = vunpack.c.h.b16 %v921
        %v1480 = vunpack.c.l.b16 %v922
        %v1481 = vunpack.c.h.b16 %v922
        %v1482 = vunpack.c.l.b16 %v923
        %v1483 = vunpack.c.h.b16 %v923
        %v1484 = vunpack.c.l.b16 %v924
        %v1485 = vunpack.c.h.b16 %v924
        %v1486 = vunpack.c.l.b16 %v925
        %v1487 = vunpack.c.h.b16 %v925
        %v1488 = vunpack.c.l.b16 %v926
        %v1489 = vunpack.c.h.b16 %v926
        %v1490 = vunpack.c.l.b16 %v927
        %v1491 = vunpack.c.h.b16 %v927
        %v1492 = vunpack.c.l.b16 %v928
        %v1493 = vunpack.c.h.b16 %v928
        %v1494 = vunpack.c.l.b16 %v929
        %v1495 = vunpack.c.h.b16 %v929
        %v1496 = vunpack.c.l.b16 %v930
        %v1497 = vunpack.c.h.b16 %v930
        %v1498 = vunpack.c.l.b16 %v931
        %v1499 = vunpack.c.h.b16 %v931
        %v1500 = vunpack.c.l.b16 %v932
        %v1501 = vunpack.c.h.b16 %v932
        %v1502 = vunpack.c.l.b16 %v933
        %v1503 = vunpack.c.h.b16 %v933
        %v1504 = vunpack.c.l.b16 %v934
        %v1505 = vunpack.c.h.b16 %v934
        %v1506 = vunpack.c.l.b16 %v935
        %v1507 = vunpack.c.h.b16 %v935
        %v1508 = vunpack.c.l.b16 %v936
        %v1509 = vunpack.c.h.b16 %v936
        %v1510 = vunpack.c.l.b16 %v937
        %v1511 = vunpack.c.h.b16 %v937
        %v1512 = vunpack.c.l.b16 %v938
        %v1513 = vunpack.c.h.b16 %v938
        %v1514 = vunpack.c.l.b16 %v939
        %v1515 = vunpack.c.h.b16 %v939
        %v1516 = vunpack.c.l.b16 %v940
        %v1517 = vunpack.c.h.b16 %v940
        %v1518 = vunpack.c.l.b16 %v941
        %v1519 = vunpack.c.h.b16 %v941
        %v1520 = vunpack.c.l.b16 %v942
        %v1521 = vunpack.c.h.b16 %v942
        %v1522 = vunpack.c.l.b16 %v943
        %v1523 = vunpack.c.h.b16 %v943
        %v1524 = vunpack.c.l.b16 %v944
        %v1525 = vunpack.c.h.b16 %v944
        %v1526 = vunpack.c.l.b16 %v945
        %v1527 = vunpack.c.h.b16 %v945
        %v1528 = vunpack.c.l.b16 %v946
        %v1529 = vunpack.c.h.b16 %v946
        %v1530 = vunpack.c.l.b16 %v947
        %v1531 = vunpack.c.h.b16 %v947
        %v1532 = vunpack.c.l.b16 %v948
        %v1533 = vunpack.c.h.b16 %v948
        %v1534 = vunpack.c.l.b16 %v949
        %v1535 = vunpack.c.h.b16 %v949
        %v1536 = vunpack.c.l.b16 %v950
        %v1537 = vunpack.c.h.b16 %v950
        %v1538 = vunpack.c.l.b16 %v951
        %v1539 = vunpack.c.h.b16 %v951
        %v1540 = vunpack.c.l.b16 %v952
        %v1541 = vunpack.c.h.b16 %v952
        %v1542 = vunpack.c.l.b16 %v953
        %v1543 = vunpack.c.h.b16 %v953
        %v1544 = vunpack.c.l.b16 %v954
        %v1545 = vunpack.c.h.b16 %v954
        %v1546 = vunpack.c.l.b16 %v955
        %v1547 = vunpack.c.h.b16 %v955
        %v1548 = vunpack.c.l.b16 %v956
        %v1549 = vunpack.c.h.b16 %v956
        %v1550 = vunpack.c.l.b16 %v957
        %v1551 = vunpack.c.h.b16 %v957
        %v1552 = vunpack.c.l.b16 %v958
        %v1553 = vunpack.c.h.b16 %v958
        %v1554 = vunpack.c.l.b16 %v959
        %v1555 = vunpack.c.h.b16 %v959
        %v1556 = vunpack.c.l.b16 %v960
        %v1557 = vunpack.c.h.b16 %v960
        %v1558 = vunpack.c.l.b16 %v961
        %v1559 = vunpack.c.h.b16 %v961
        %v1560 = vunpack.c.l.b16 %v962
        %v1561 = vunpack.c.h.b16 %v962
        %v1562 = vunpack.c.l.b16 %v963
        %v1563 = vunpack.c.h.b16 %v963
        %v1564 = vunpack.c.l.b16 %v964
        %v1565 = vunpack.c.h.b16 %v964
        %v1566 = vunpack.c.l.b16 %v965
        %v1567 = vunpack.c.h.b16 %v965
        %v1568 = vunpack.c.l.b16 %v966
        %v1569 = vunpack.c.h.b16 %v966
        %v1570 = vunpack.c.l.b16 %v967
        %v1571 = vunpack.c.h.b16 %v967
        %v1572 = vunpack.c.l.b16 %v968
        %v1573 = vunpack.c.h.b16 %v968
        %v1574 = vunpack.c.l.b16 %v969
        %v1575 = vunpack.c.h.b16 %v969
        %v1576 = vunpack.c.l.b16 %v970
        %v1577 = vunpack.c.h.b16 %v970
        %v1578 = vunpack.c.l.b16 %v971
        %v1579 = vunpack.c.h.b16 %v971
        %v1580 = vunpack.c.l.b16 %v972
        %v1581 = vunpack.c.h.b16 %v972
        %v1582 = vunpack.c.l.b16 %v973
        %v1583 = vunpack.c.h.b16 %v973
        %v1584 = vunpack.c.l.b16 %v974
        %v1585 = vunpack.c.h.b16 %v974
        %v1586 = vunpack.c.l.b16 %v975
        %v1587 = vunpack.c.h.b16 %v975
        %v1588 = vunpack.c.l.b16 %v976
        %v1589 = vunpack.c.h.b16 %v976
        %v1590 = vunpack.c.l.b16 %v977
        %v1591 = vunpack.c.h.b16 %v977
        %v1592 = vunpack.c.l.b16 %v978
        %v1593 = vunpack.c.h.b16 %v978
        %v1594 = vunpack.c.l.b16 %v979
        %v1595 = vunpack.c.h.b16 %v979
        %v1596 = vunpack.c.l.b16 %v980
        %v1597 = vunpack.c.h.b16 %v980
        %v1598 = vunpack.c.l.b16 %v981
        %v1599 = vunpack.c.h.b16 %v981
        %v1600 = vunpack.c.l.b16 %v982
        %v1601 = vunpack.c.h.b16 %v982
        %v1602 = vunpack.c.l.b16 %v983
        %v1603 = vunpack.c.h.b16 %v983
        %v1604 = vunpack.c.l.b16 %v984
        %v1605 = vunpack.c.h.b16 %v984
        %v1606 = vunpack.c.l.b16 %v985
        %v1607 = vunpack.c.h.b16 %v985
        %v1608 = vunpack.c.l.b16 %v986
        %v1609 = vunpack.c.h.b16 %v986
        %v1610 = vunpack.c.l.b16 %v987
        %v1611 = vunpack.c.h.b16 %v987
        %v1612 = vunpack.c.l.b16 %v988
        %v1613 = vunpack.c.h.b16 %v988
        %v1614 = vunpack.c.l.b16 %v989
        %v1615 = vunpack.c.h.b16 %v989
        %v1616 = vunpack.c.l.b16 %v990
        %v1617 = vunpack.c.h.b16 %v990
        %v1618 = vunpack.c.l.b16 %v991
        %v1619 = vunpack.c.h.b16 %v991
        %v1620 = vunpack.c.l.b16 %v992
        %v1621 = vunpack.c.h.b16 %v992
        %v1622 = vunpack.c.l.b16 %v993
        %v1623 = vunpack.c.h.b16 %v993
        %v1624 = vunpack.c.l.b16 %v994
        %v1625 = vunpack.c.h.b16 %v994
        %v1626 = vunpack.c.l.b16 %v995
        %v1627 = vunpack.c.h.b16 %v995
        %v1628 = vunpack.c.l.b16 %v996
        %v1629 = vunpack.c.h.b16 %v996
        %v1630 = vunpack.c.l.b16 %v997
        %v1631 = vunpack.c.h.b16 %v997
        %v1632 = vunpack.c.l.b16 %v998
        %v1633 = vunpack.c.h.b16 %v998
        %v1634 = vunpack.c.l.b16 %v999
        %v1635 = vunpack.c.h.b16 %v999
        %v1636 = vunpack.c.l.b16 %v1000
        %v1637 = vunpack.c.h.b16 %v1000
        %v1638 = vunpack.c.l.b16 %v1001
        %v1639 = vunpack.c.h.b16 %v1001
        %v1640 = vunpack.c.l.b16 %v1002
        %v1641 = vunpack.c.h.b16 %v1002
        %v1642 = vunpack.c.l.b16 %v1003
        %v1643 = vunpack.c.h.b16 %v1003
        %v1644 = vunpack.c.l.b16 %v1004
        %v1645 = vunpack.c.h.b16 %v1004
        %v1646 = vunpack.c.l.b16 %v1005
        %v1647 = vunpack.c.h.b16 %v1005
        %v1648 = vunpack.c.l.b16 %v1006
        %v1649 = vunpack.c.h.b16 %v1006
        %v1650 = vunpack.c.l.b16 %v1007
        %v1651 = vunpack.c.h.b16 %v1007
        %v1652 = vunpack.c.l.b16 %v1008
        %v1653 = vunpack.c.h.b16 %v1008
        %v1654 = vunpack.c.l.b16 %v1009
        %v1655 = vunpack.c.h.b16 %v1009
        %v1656 = vunpack.c.l.b16 %v1010
        %v1657 = vunpack.c.h.b16 %v1010
        %v1658 = vunpack.c.l.b16 %v1011
        %v1659 = vunpack.c.h.b16 %v1011
        %v1660 = vunpack.c.l.b16 %v1012
        %v1661 = vunpack.c.h.b16 %v1012
        %v1662 = vunpack.c.l.b16 %v1013
        %v1663 = vunpack.c.h.b16 %v1013
        %v1664 = vunpack.c.l.b16 %v1014
        %v1665 = vunpack.c.h.b16 %v1014
        %v1666 = vunpack.c.l.b16 %v1015
        %v1667 = vunpack.c.h.b16 %v1015
        %v1668 = vunpack.c.l.b16 %v1016
        %v1669 = vunpack.c.h.b16 %v1016
        %v1670 = vunpack.c.l.b16 %v1017
        %v1671 = vunpack.c.h.b16 %v1017
        %v1672 = vunpack.c.l.b16 %v1018
        %v1673 = vunpack.c.h.b16 %v1018
        %v1674 = vunpack.c.l.b16 %v1019
        %v1675 = vunpack.c.h.b16 %v1019
        %v1676 = vunpack.c.l.b16 %v1020
        %v1677 = vunpack.c.h.b16 %v1020
        %v1678 = vunpack.c.l.b16 %v1021
        %v1679 = vunpack.c.h.b16 %v1021
        %v1680 = vunpack.c.l.b16 %v1022
        %v1681 = vunpack.c.h.b16 %v1022
        %v1682 = vunpack.c.l.b16 %v1023
        %v1683 = vunpack.c.h.b16 %v1023
        %v1684 = vunpack.c.l.b16 %v1024
        %v1685 = vunpack.c.h.b16 %v1024
        %v1686 = vunpack.c.l.b16 %v1025
        %v1687 = vunpack.c.h.b16 %v1025
        %v1688 = vunpack.c.l.b16 %v1026
        %v1689 = vunpack.c.h.b16 %v1026
        %v1690 = vunpack.c.l.b16 %v1027
        %v1691 = vunpack.c.h.b16 %v1027
        %v1692 = vunpack.c.l.b16 %v1028
        %v1693 = vunpack.c.h.b16 %v1028
        %v1694 = vunpack.c.l.b16 %v1029
        %v1695 = vunpack.c.h.b16 %v1029
        %v1696 = vunpack.c.l.b16 %v1030
        %v1697 = vunpack.c.h.b16 %v1030
        %v1698 = vunpack.c.l.b16 %v1031
        %v1699 = vunpack.c.h.b16 %v1031
        %v1700 = vunpack.c.l.b16 %v1032
        %v1701 = vunpack.c.h.b16 %v1032
        %v1702 = vunpack.c.l.b16 %v1033
        %v1703 = vunpack.c.h.b16 %v1033
        %v1704 = vunpack.c.l.b16 %v1034
        %v1705 = vunpack.c.h.b16 %v1034
        %v1706 = vunpack.c.l.b16 %v1035
        %v1707 = vunpack.c.h.b16 %v1035
        %v1708 = vunpack.c.l.b16 %v1036
        %v1709 = vunpack.c.h.b16 %v1036
        %v1710 = vunpack.c.l.b16 %v1037
        %v1711 = vunpack.c.h.b16 %v1037
        %v1712 = vunpack.c.l.b16 %v1038
        %v1713 = vunpack.c.h.b16 %v1038
        %v1714 = vunpack.c.l.b16 %v1039
        %v1715 = vunpack.c.h.b16 %v1039
        %v1716 = vunpack.c.l.b16 %v1040
        %v1717 = vunpack.c.h.b16 %v1040
        %v1718 = vunpack.c.l.b16 %v1041
        %v1719 = vunpack.c.h.b16 %v1041
        %v1720 = vunpack.c.l.b16 %v1042
        %v1721 = vunpack.c.h.b16 %v1042
        %v1722 = vunpack.c.l.b16 %v1043
        %v1723 = vunpack.c.h.b16 %v1043
        %v1724 = vunpack.c.l.b16 %v1044
        %v1725 = vunpack.c.h.b16 %v1044
        %v1726 = vunpack.c.l.b16 %v1045
        %v1727 = vunpack.c.h.b16 %v1045
        %v1728 = vunpack.c.l.b16 %v1046
        %v1729 = vunpack.c.h.b16 %v1046
        %v1730 = vunpack.c.l.b16 %v1047
        %v1731 = vunpack.c.h.b16 %v1047
        %v1732 = vunpack.c.l.b16 %v1048
        %v1733 = vunpack.c.h.b16 %v1048
        %v1734 = vunpack.c.l.b16 %v1049
        %v1735 = vunpack.c.h.b16 %v1049
        %v1736 = vunpack.c.l.b16 %v1050
        %v1737 = vunpack.c.h.b16 %v1050
        %v1738 = vunpack.c.l.b16 %v1051
        %v1739 = vunpack.c.h.b16 %v1051
        %v1740 = vunpack.c.l.b16 %v1052
        %v1741 = vunpack.c.h.b16 %v1052
        %v1742 = vunpack.c.l.b16 %v1053
        %v1743 = vunpack.c.h.b16 %v1053
        %v1744 = vunpack.c.l.b16 %v1054
        %v1745 = vunpack.c.h.b16 %v1054
        %v1746 = vunpack.c.l.b16 %v1055
        %v1747 = vunpack.c.h.b16 %v1055
        %v1748 = vunpack.c.l.b16 %v1056
        %v1749 = vunpack.c.h.b16 %v1056
        %v1750 = vunpack.c.l.b16 %v1057
        %v1751 = vunpack.c.h.b16 %v1057
        %v1752 = vunpack.c.l.b16 %v1058
        %v1753 = vunpack.c.h.b16 %v1058
        %v1754 = vunpack.c.l.b16 %v1059
        %v1755 = vunpack.c.h.b16 %v1059
        %v1756 = vunpack.c.l.b16 %v1060
        %v1757 = vunpack.c.h.b16 %v1060
        %v1758 = vunpack.c.l.b16 %v1061
        %v1759 = vunpack.c.h.b16 %v1061
        %v1760 = vunpack.c.l.b16 %v1062
        %v1761 = vunpack.c.h.b16 %v1062
        %v1762 = vunpack.c.l.b16 %v1063
        %v1763 = vunpack.c.h.b16 %v1063
        %v1764 = vunpack.c.l.b16 %v1064
        %v1765 = vunpack.c.h.b16 %v1064
        %v1766 = vunpack.c.l.b16 %v1065
        %v1767 = vunpack.c.h.b16 %v1065
        %v1768 = vunpack.c.l.b16 %v1066
        %v1769 = vunpack.c.h.b16 %v1066
        %v1770 = vunpack.c.l.b16 %v1067
        %v1771 = vunpack.c.h.b16 %v1067
        %v1772 = vunpack.c.l.b16 %v1068
        %v1773 = vunpack.c.h.b16 %v1068
        %v1774 = vunpack.c.l.b16 %v1069
        %v1775 = vunpack.c.h.b16 %v1069
        %v1776 = vunpack.c.l.b16 %v1070
        %v1777 = vunpack.c.h.b16 %v1070
        %v1778 = vunpack.c.l.b16 %v1071
        %v1779 = vunpack.c.h.b16 %v1071
        %v1780 = vunpack.c.l.b16 %v1072
        %v1781 = vunpack.c.h.b16 %v1072
        %v1782 = vunpack.c.l.b16 %v1073
        %v1783 = vunpack.c.h.b16 %v1073
        %v1784 = vunpack.c.l.b16 %v1074
        %v1785 = vunpack.c.h.b16 %v1074
        %v1786 = vunpack.c.l.b16 %v1075
        %v1787 = vunpack.c.h.b16 %v1075
        %v1788 = vunpack.c.l.b16 %v1076
        %v1789 = vunpack.c.h.b16 %v1076
        %v1790 = vunpack.c.l.b16 %v1077
        %v1791 = vunpack.c.h.b16 %v1077
        %v1792 = vunpack.c.l.b16 %v1078
        %v1793 = vunpack.c.h.b16 %v1078
        %v1794 = vunpack.c.l.b16 %v1079
        %v1795 = vunpack.c.h.b16 %v1079
        %v1796 = vunpack.c.l.b16 %v1080
        %v1797 = vunpack.c.h.b16 %v1080
        %v1798 = vunpack.c.l.b16 %v1081
        %v1799 = vunpack.c.h.b16 %v1081
        %v1800 = vunpack.c.l.b16 %v1082
        %v1801 = vunpack.c.h.b16 %v1082
        %v1802 = vunpack.c.l.b16 %v1083
        %v1803 = vunpack.c.h.b16 %v1083
        %v1804 = vunpack.c.l.b16 %v1084
        %v1805 = vunpack.c.h.b16 %v1084
        %v1806 = vunpack.c.l.b16 %v1085
        %v1807 = vunpack.c.h.b16 %v1085
        %v1808 = vunpack.c.l.b16 %v1086
        %v1809 = vunpack.c.h.b16 %v1086
        %v1810 = vunpack.c.l.b16 %v1087
        %v1811 = vunpack.c.h.b16 %v1087
        %v1812 = vunpack.c.l.b16 %v1088
        %v1813 = vunpack.c.h.b16 %v1088
        %v1814 = vunpack.c.l.b16 %v1089
        %v1815 = vunpack.c.h.b16 %v1089
        %v1816 = vunpack.c.l.b16 %v1090
        %v1817 = vunpack.c.h.b16 %v1090
        %v1818 = vunpack.c.l.b16 %v1091
        %v1819 = vunpack.c.h.b16 %v1091
        %v1820 = vunpack.c.l.b16 %v1092
        %v1821 = vunpack.c.h.b16 %v1092
        %v1822 = vunpack.c.l.b16 %v1093
        %v1823 = vunpack.c.h.b16 %v1093
        %v1824 = vunpack.c.l.b16 %v1094
        %v1825 = vunpack.c.h.b16 %v1094
        %v1826 = vunpack.c.l.b16 %v1095
        %v1827 = vunpack.c.h.b16 %v1095
        %v1828 = vunpack.c.l.b16 %v1096
        %v1829 = vunpack.c.h.b16 %v1096
        %v1830 = vunpack.c.l.b16 %v1097
        %v1831 = vunpack.c.h.b16 %v1097
        %v1832 = vunpack.c.l.b16 %v1098
        %v1833 = vunpack.c.h.b16 %v1098
        %v1834 = vunpack.c.l.b16 %v1099
        %v1835 = vunpack.c.h.b16 %v1099
        %v1836 = vunpack.c.l.b16 %v1100
        %v1837 = vunpack.c.h.b16 %v1100
        %v1838 = vunpack.c.l.b16 %v1101
        %v1839 = vunpack.c.h.b16 %v1101
        %v1840 = vunpack.c.l.b16 %v1102
        %v1841 = vunpack.c.h.b16 %v1102
        %v1842 = vunpack.c.l.b16 %v1103
        %v1843 = vunpack.c.h.b16 %v1103
        %v1844 = vunpack.c.l.b16 %v1104
        %v1845 = vunpack.c.h.b16 %v1104
        %v1846 = vunpack.c.l.b16 %v1105
        %v1847 = vunpack.c.h.b16 %v1105
        %v1848 = vunpack.c.l.b16 %v1106
        %v1849 = vunpack.c.h.b16 %v1106
        %v1850 = vunpack.c.l.b16 %v1107
        %v1851 = vunpack.c.h.b16 %v1107
        %v1852 = vunpack.c.l.b16 %v1108
        %v1853 = vunpack.c.h.b16 %v1108
        %v1854 = vunpack.c.l.b16 %v1109
        %v1855 = vunpack.c.h.b16 %v1109
        %v1856 = vunpack.c.l.b16 %v1110
        %v1857 = vunpack.c.h.b16 %v1110
        %v1858 = vunpack.c.l.b16 %v1111
        %v1859 = vunpack.c.h.b16 %v1111
        %v1860 = vunpack.c.l.b16 %v1112
        %v1861 = vunpack.c.h.b16 %v1112
        %v1862 = vunpack.c.l.b16 %v1113
        %v1863 = vunpack.c.h.b16 %v1113
        %v1864 = vunpack.c.l.b16 %v1114
        %v1865 = vunpack.c.h.b16 %v1114
        %v1866 = vunpack.c.l.b16 %v1115
        %v1867 = vunpack.c.h.b16 %v1115
        %v1868 = vunpack.c.l.b16 %v1116
        %v1869 = vunpack.c.h.b16 %v1116
        %v1870 = vunpack.c.l.b16 %v1117
        %v1871 = vunpack.c.h.b16 %v1117
        %v1872 = vunpack.c.l.b16 %v1118
        %v1873 = vunpack.c.h.b16 %v1118
        %v1874 = vunpack.c.l.b16 %v1119
        %v1875 = vunpack.c.h.b16 %v1119
        %v1876 = vunpack.c.l.b16 %v1120
        %v1877 = vunpack.c.h.b16 %v1120
        %v1878 = vunpack.c.l.b16 %v1121
        %v1879 = vunpack.c.h.b16 %v1121
        %v1880 = vunpack.c.l.b16 %v1122
        %v1881 = vunpack.c.h.b16 %v1122
        %v1882 = vunpack.c.l.b16 %v1123
        %v1883 = vunpack.c.h.b16 %v1123
        %v1884 = vunpack.c.l.b16 %v1124
        %v1885 = vunpack.c.h.b16 %v1124
        %v1886 = vunpack.c.l.b16 %v1125
        %v1887 = vunpack.c.h.b16 %v1125
        %v1888 = vunpack.c.l.b16 %v1126
        %v1889 = vunpack.c.h.b16 %v1126
        %v1890 = vunpack.c.l.b16 %v1127
        %v1891 = vunpack.c.h.b16 %v1127
        %v1892 = vunpack.c.l.b16 %v1128
        %v1893 = vunpack.c.h.b16 %v1128
        %v1894 = vunpack.c.l.b16 %v1129
        %v1895 = vunpack.c.h.b16 %v1129
        %v1896 = vunpack.c.l.b16 %v1130
        %v1897 = vunpack.c.h.b16 %v1130
        %v1898 = vunpack.c.l.b16 %v1131
        %v1899 = vunpack.c.h.b16 %v1131
        %v1900 = vunpack.c.l.b16 %v1132
        %v1901 = vunpack.c.h.b16 %v1132
        %v1902 = vunpack.c.l.b16 %v1133
        %v1903 = vunpack.c.h.b16 %v1133
        %v1904 = vunpack.c.l.b16 %v1134
        %v1905 = vunpack.c.h.b16 %v1134
        %v1906 = vunpack.c.l.b16 %v1135
        %v1907 = vunpack.c.h.b16 %v1135
        %v1908 = vunpack.c.l.b16 %v1136
        %v1909 = vunpack.c.h.b16 %v1136
        %v1910 = vunpack.c.l.b16 %v1137
        %v1911 = vunpack.c.h.b16 %v1137
        %v1912 = vunpack.c.l.b16 %v1138
        %v1913 = vunpack.c.h.b16 %v1138
        %v1914 = vunpack.c.l.b16 %v1139
        %v1915 = vunpack.c.h.b16 %v1139
        %v1916 = vunpack.c.l.b16 %v1140
        %v1917 = vunpack.c.h.b16 %v1140
        %v1918 = vunpack.c.l.b16 %v1141
        %v1919 = vunpack.c.h.b16 %v1141
        %v1920 = vunpack.c.l.b16 %v1142
        %v1921 = vunpack.c.h.b16 %v1142
        %v1922 = vunpack.c.l.b16 %v1143
        %v1923 = vunpack.c.h.b16 %v1143
        %v1924 = vunpack.c.l.b16 %v1144
        %v1925 = vunpack.c.h.b16 %v1144
        %v1926 = vunpack.c.l.b16 %v1145
        %v1927 = vunpack.c.h.b16 %v1145
        %v1928 = vunpack.c.l.b16 %v1146
        %v1929 = vunpack.c.h.b16 %v1146
        %v1930 = vunpack.c.l.b16 %v1147
        %v1931 = vunpack.c.h.b16 %v1147
        %v1932 = vunpack.c.l.b16 %v1148
        %v1933 = vunpack.c.h.b16 %v1148
        %v1934 = vunpack.c.l.b16 %v1149
        %v1935 = vunpack.c.h.b16 %v1149
        %v1936 = vunpack.c.l.b16 %v1150
        %v1937 = vunpack.c.h.b16 %v1150
        %v1938 = vunpack.c.l.b16 %v1151
        %v1939 = vunpack.c.h.b16 %v1151
        %v1940 = vunpack.c.l.b16 %v1152
        %v1941 = vunpack.c.h.b16 %v1152
        %v1942 = vunpack.c.l.b16 %v1153
        %v1943 = vunpack.c.h.b16 %v1153
        %v1944 = vunpack.c.l.b16 %v1154
        %v1945 = vunpack.c.h.b16 %v1154
        %v1946 = vunpack.c.l.b16 %v1155
        %v1947 = vunpack.c.h.b16 %v1155
        %v1948 = vunpack.c.l.b16 %v1156
        %v1949 = vunpack.c.h.b16 %v1156
        %v1950 = vunpack.c.l.b16 %v1157
        %v1951 = vunpack.c.h.b16 %v1157
        %v1952 = vunpack.c.l.b16 %v1158
        %v1953 = vunpack.c.h.b16 %v1158
        %v1954 = vunpack.c.l.b16 %v1159
        %v1955 = vunpack.c.h.b16 %v1159
        %v1956 = vunpack.c.l.b16 %v1160
        %v1957 = vunpack.c.h.b16 %v1160
        %v1958 = vunpack.c.l.b16 %v1161
        %v1959 = vunpack.c.h.b16 %v1161
        %v1960 = vunpack.c.l.b16 %v1162
        %v1961 = vunpack.c.h.b16 %v1162
        %v1962 = vunpack.c.l.b16 %v1163
        %v1963 = vunpack.c.h.b16 %v1163
        %v1964 = vunpack.c.l.b16 %v1164
        %v1965 = vunpack.c.h.b16 %v1164
        %v1966 = vunpack.c.l.b16 %v1165
        %v1967 = vunpack.c.h.b16 %v1165
        %v1968 = vunpack.c.l.b16 %v1166
        %v1969 = vunpack.c.h.b16 %v1166
        %v1970 = vunpack.c.l.b16 %v1167
        %v1971 = vunpack.c.h.b16 %v1167
        %v1972 = vunpack.c.l.b16 %v1168
        %v1973 = vunpack.c.h.b16 %v1168
        %v1974 = vunpack.c.l.b16 %v1169
        %v1975 = vunpack.c.h.b16 %v1169
        %v1976 = vunpack.c.l.b16 %v1170
        %v1977 = vunpack.c.h.b16 %v1170
        %v1978 = vunpack.c.l.b16 %v1171
        %v1979 = vunpack.c.h.b16 %v1171
        %v1980 = vunpack.c.l.b16 %v1172
        %v1981 = vunpack.c.h.b16 %v1172
        %v1982 = vunpack.c.l.b16 %v1173
        %v1983 = vunpack.c.h.b16 %v1173
        %v1984 = vpack.c.b16 %v1480, %v1472
        %v1985 = vpack.c.b16 %v1481, %v1473
        %v1986 = vpack.c.b16 %v1482, %v1474
        %v1987 = vpack.c.b16 %v1483, %v1475
        %v1988 = vpack.c.b16 %v1484, %v1476
        %v1989 = vpack.c.b16 %v1485, %v1477
        %v1990 = vpack.c.b16 %v1486, %v1478
        %v1991 = vpack.c.b16 %v1487, %v1479
        %v1992 = vpack.c.b16 %v1496, %v1488
        %v1993 = vpack.c.b16 %v1497, %v1489
        %v1994 = vpack.c.b16 %v1498, %v1490
        %v1995 = vpack.c.b16 %v1499, %v1491
        %v1996 = vpack.c.b16 %v1500, %v1492
        %v1997 = vpack.c.b16 %v1501, %v1493
        %v1998 = vpack.c.b16 %v1502, %v1494
        %v1999 = vpack.c.b16 %v1503, %v1495
        %v2000 = vpack.c.b16 %v1512, %v1504
        %v2001 = vpack.c.b16 %v1513, %v1505
        %v2002 = vpack.c.b16 %v1514, %v1506
        %v2003 = vpack.c.b16 %v1515, %v1507
        %v2004 = vpack.c.b16 %v1516, %v1508
        %v2005 = vpack.c.b16 %v1517, %v1509
        %v2006 = vpack.c.b16 %v1518, %v1510
        %v2007 = vpack.c.b16 %v1519, %v1511
        %v2008 = vpack.c.b16 %v1528, %v1520
        %v2009 = vpack.c.b16 %v1529, %v1521
        %v2010 = vpack.c.b16 %v1530, %v1522
        %v2011 = vpack.c.b16 %v1531, %v1523
        %v2012 = vpack.c.b16 %v1532, %v1524
        %v2013 = vpack.c.b16 %v1533, %v1525
        %v2014 = vpack.c.b16 %v1534, %v1526
        %v2015 = vpack.c.b16 %v1535, %v1527
        %v2016 = vpack.c.b16 %v1544, %v1536
        %v2017 = vpack.c.b16 %v1545, %v1537
        %v2018 = vpack.c.b16 %v1546, %v1538
        %v2019 = vpack.c.b16 %v1547, %v1539
        %v2020 = vpack.c.b16 %v1548, %v1540
        %v2021 = vpack.c.b16 %v1549, %v1541
        %v2022 = vpack.c.b16 %v1550, %v1542
        %v2023 = vpack.c.b16 %v1551, %v1543
        %v2024 = vpack.c.b16 %v1560, %v1552
        %v2025 = vpack.c.b16 %v1561, %v1553
        %v2026 = vpack.c.b16 %v1562, %v1554
        %v2027 = vpack.c.b16 %v1563, %v1555
        %v2028 = vpack.c.b16 %v1564, %v1556
        %v2029 = vpack.c.b16 %v1565, %v1557
        %v2030 = vpack.c.b16 %v1566, %v1558
        %v2031 = vpack.c.b16 %v1567, %v1559
        %v2032 = vpack.c.b16 %v1576, %v1568
        %v2033 = vpack.c.b16 %v1577, %v1569
        %v2034 = vpack.c.b16 %v1578, %v1570
        %v2035 = vpack.c.b16 %v1579, %v1571
        %v2036 = vpack.c.b16 %v1580, %v1572
        %v2037 = vpack.c.b16 %v1581, %v1573
        %v2038 = vpack.c.b16 %v1582, %v1574
        %v2039 = vpack.c.b16 %v1583, %v1575
        %v2040 = vpack.c.b16 %v1592, %v1584
        %v2041 = vpack.c.b16 %v1593, %v1585
        %v2042 = vpack.c.b16 %v1594, %v1586
        %v2043 = vpack.c.b16 %v1595, %v1587
        %v2044 = vpack.c.b16 %v1596, %v1588
        %v2045 = vpack.c.b16 %v1597, %v1589
        %v2046 = vpack.c.b16 %v1598, %v1590
        %v2047 = vpack.c.b16 %v1599, %v1591
        %v2048 = vpack.c.b16 %v1608, %v1600
        %v2049 = vpack.c.b16 %v1609, %v1601
        %v2050 = vpack.c.b16 %v1610, %v1602
        %v2051 = vpack.c.b16 %v1611, %v1603
        %v2052 = vpack.c.b16 %v1612, %v1604
        %v2053 = vpack.c.b16 %v1613, %v1605
        %v2054 = vpack.c.b16 %v1614, %v1606
        %v2055 = vpack.c.b16 %v1615, %v1607
        %v2056 = vpack.c.b16 %v1624, %v1616
        %v2057 = vpack.c.b16 %v1625, %v1617
        %v2058 = vpack.c.b16 %v1626, %v1618
        %v2059 = vpack.c.b16 %v1627, %v1619
        %v2060 = vpack.c.b16 %v1628, %v1620
        %v2061 = vpack.c.b16 %v1629, %v1621
        %v2062 = vpack.c.b16 %v1630, %v1622
        %v2063 = vpack.c.b16 %v1631, %v1623
        %v2064 = vpack.c.b16 %v1640, %v1632
        %v2065 = vpack.c.b16 %v1641, %v1633
        %v2066 = vpack.c.b16 %v1642, %v1634
        %v2067 = vpack.c.b16 %v1643, %v1635
        %v2068 = vpack.c.b16 %v1644, %v1636
        %v2069 = vpack.c.b16 %v1645, %v1637
        %v2070 = vpack.c.b16 %v1646, %v1638
        %v2071 = vpack.c.b16 %v1647, %v1639
        %v2072 = vpack.c.b16 %v1656, %v1648
        %v2073 = vpack.c.b16 %v1657, %v1649
        %v2074 = vpack.c.b16 %v1658, %v1650
        %v2075 = vpack.c.b16 %v1659, %v1651
        %v2076 = vpack.c.b16 %v1660, %v1652
        %v2077 = vpack.c.b16 %v1661, %v1653
        %v2078 = vpack.c.b16 %v1662, %v1654
        %v2079 = vpack.c.b16 %v1663, %v1655
        %v2080 = vpack.c.b16 %v1672, %v1664
        %v2081 = vpack.c.b16 %v1673, %v1665
        %v2082 = vpack.c.b16 %v1674, %v1666
        %v2083 = vpack.c.b16 %v1675, %v1667
        %v2084 = vpack.c.b16 %v1676, %v1668
        %v2085 = vpack.c.b16 %v1677, %v1669
        %v2086 = vpack.c.b16 %v1678, %v1670
        %v2087 = vpack.c.b16 %v1679, %v1671
        %v2088 = vpack.c.b16 %v1688, %v1680
        %v2089 = vpack.c.b16 %v1689, %v1681
        %v2090 = vpack.c.b16 %v1690, %v1682
        %v2091 = vpack.c.b16 %v1691, %v1683
        %v2092 = vpack.c.b16 %v1692, %v1684
        %v2093 = vpack.c.b16 %v1693, %v1685
        %v2094 = vpack.c.b16 %v1694, %v1686
        %v2095 = vpack.c.b16 %v1695, %v1687
        %v2096 = vpack.c.b16 %v1704, %v1696
        %v2097 = vpack.c.b16 %v1705, %v1697
        %v2098 = vpack.c.b16 %v1706, %v1698
        %v2099 = vpack.c.b16 %v1707, %v1699
        %v2100 = vpack.c.b16 %v1708, %v1700
        %v2101 = vpack.c.b16 %v1709, %v1701
        %v2102 = vpack.c.b16 %v1710, %v1702
        %v2103 = vpack.c.b16 %v1711, %v1703
        %v2104 = vpack.c.b16 %v1720, %v1712
        %v2105 = vpack.c.b16 %v1721, %v1713
        %v2106 = vpack.c.b16 %v1722, %v1714
        %v2107 = vpack.c.b16 %v1723, %v1715
        %v2108 = vpack.c.b16 %v1724, %v1716
        %v2109 = vpack.c.b16 %v1725, %v1717
        %v2110 = vpack.c.b16 %v1726, %v1718
        %v2111 = vpack.c.b16 %v1727, %v1719
        %v2112 = vpack.c.b16 %v1736, %v1728
        %v2113 = vpack.c.b16 %v1737, %v1729
        %v2114 = vpack.c.b16 %v1738, %v1730
        %v2115 = vpack.c.b16 %v1739, %v1731
        %v2116 = vpack.c.b16 %v1740, %v1732
        %v2117 = vpack.c.b16 %v1741, %v1733
        %v2118 = vpack.c.b16 %v1742, %v1734
        %v2119 = vpack.c.b16 %v1743, %v1735
        %v2120 = vpack.c.b16 %v1752, %v1744
        %v2121 = vpack.c.b16 %v1753, %v1745
        %v2122 = vpack.c.b16 %v1754, %v1746
        %v2123 = vpack.c.b16 %v1755, %v1747
        %v2124 = vpack.c.b16 %v1756, %v1748
        %v2125 = vpack.c.b16 %v1757, %v1749
        %v2126 = vpack.c.b16 %v1758, %v1750
        %v2127 = vpack.c.b16 %v1759, %v1751
        %v2128 = vpack.c.b16 %v1768, %v1760
        %v2129 = vpack.c.b16 %v1769, %v1761
        %v2130 = vpack.c.b16 %v1770, %v1762
        %v2131 = vpack.c.b16 %v1771, %v1763
        %v2132 = vpack.c.b16 %v1772, %v1764
        %v2133 = vpack.c.b16 %v1773, %v1765
        %v2134 = vpack.c.b16 %v1774, %v1766
        %v2135 = vpack.c.b16 %v1775, %v1767
        %v2136 = vpack.c.b16 %v1784, %v1776
        %v2137 = vpack.c.b16 %v1785, %v1777
        %v2138 = vpack.c.b16 %v1786, %v1778
        %v2139 = vpack.c.b16 %v1787, %v1779
        %v2140 = vpack.c.b16 %v1788, %v1780
        %v2141 = vpack.c.b16 %v1789, %v1781
        %v2142 = vpack.c.b16 %v1790, %v1782
        %v2143 = vpack.c.b16 %v1791, %v1783
        %v2144 = vpack.c.b16 %v1800, %v1792
        %v2145 = vpack.c.b16 %v1801, %v1793
        %v2146 = vpack.c.b16 %v1802, %v1794
        %v2147 = vpack.c.b16 %v1803, %v1795
        %v2148 = vpack.c.b16 %v1804, %v1796
        %v2149 = vpack.c.b16 %v1805, %v1797
        %v2150 = vpack.c.b16 %v1806, %v1798
        %v2151 = vpack.c.b16 %v1807, %v1799
        %v2152 = vpack.c.b16 %v1816, %v1808
        %v2153 = vpack.c.b16 %v1817, %v1809
        %v2154 = vpack.c.b16 %v1818, %v1810
        %v2155 = vpack.c.b16 %v1819, %v1811
        %v2156 = vpack.c.b16 %v1820, %v1812
        %v2157 = vpack.c.b16 %v1821, %v1813
        %v2158 = vpack.c.b16 %v1822, %v1814
        %v2159 = vpack.c.b16 %v1823, %v1815
        %v2160 = vpack.c.b16 %v1832, %v1824
        %v2161 = vpack.c.b16 %v1833, %v1825
        %v2162 = vpack.c.b16 %v1834, %v1826
        %v2163 = vpack.c.b16 %v1835, %v1827
        %v2164 = vpack.c.b16 %v1836, %v1828
        %v2165 = vpack.c.b16 %v1837, %v1829
        %v2166 = vpack.c.b16 %v1838, %v1830
        %v2167 = vpack.c.b16 %v1839, %v1831
        %v2168 = vpack.c.b16 %v1848, %v1840
        %v2169 = vpack.c.b16 %v1849, %v1841
        %v2170 = vpack.c.b16 %v1850, %v1842
        %v2171 = vpack.c.b16 %v1851, %v1843
        %v2172 = vpack.c.b16 %v1852, %v1844
        %v2173 = vpack.c.b16 %v1853, %v1845
        %v2174 = vpack.c.b16 %v1854, %v1846
        %v2175 = vpack.c.b16 %v1855, %v1847
        %v2176 = vpack.c.b16 %v1864, %v1856
        %v2177 = vpack.c.b16 %v1865, %v1857
        %v2178 = vpack.c.b16 %v1866, %v1858
        %v2179 = vpack.c.b16 %v1867, %v1859
        %v2180 = vpack.c.b16 %v1868, %v1860
        %v2181 = vpack.c.b16 %v1869, %v1861
        %v2182 = vpack.c.b16 %v1870, %v1862
        %v2183 = vpack.c.b16 %v1871, %v1863
        %v2184 = vpack.c.b16 %v1880, %v1872
        %v2185 = vpack.c.b16 %v1881, %v1873
        %v2186 = vpack.c.b16 %v1882, %v1874
        %v2187 = vpack.c.b16 %v1883, %v1875
        %v2188 = vpack.c.b16 %v1884, %v1876
        %v2189 = vpack.c.b16 %v1885, %v1877
        %v2190 = vpack.c.b16 %v1886, %v1878
        %v2191 = vpack.c.b16 %v1887, %v1879
        %v2192 = vpack.c.b16 %v1896, %v1888
        %v2193 = vpack.c.b16 %v1897, %v1889
        %v2194 = vpack.c.b16 %v1898, %v1890
        %v2195 = vpack.c.b16 %v1899, %v1891
        %v2196 = vpack.c.b16 %v1900, %v1892
        %v2197 = vpack.c.b16 %v1901, %v1893
        %v2198 = vpack.c.b16 %v1902, %v1894
        %v2199 = vpack.c.b16 %v1903, %v1895
        %v2200 = vpack.c.b16 %v1912, %v1904
        %v2201 = vpack.c.b16 %v1913, %v1905
        %v2202 = vpack.c.b16 %v1914, %v1906
        %v2203 = vpack.c.b16 %v1915, %v1907
        %v2204 = vpack.c.b16 %v1916, %v1908
        %v2205 = vpack.c.b16 %v1917, %v1909
        %v2206 = vpack.c.b16 %v1918, %v1910
        %v2207 = vpack.c.b16 %v1919, %v1911
        %v2208 = vpack.c.b16 %v1928, %v1920
        %v2209 = vpack.c.b16 %v1929, %v1921
        %v2210 = vpack.c.b16 %v1930, %v1922
        %v2211 = vpack.c.b16 %v1931, %v1923
        %v2212 = vpack.c.b16 %v1932, %v1924
        %v2213 = vpack.c.b16 %v1933, %v1925
        %v2214 = vpack.c.b16 %v1934, %v1926
        %v2215 = vpack.c.b16 %v1935, %v1927
        %v2216 = vpack.c.b16 %v1944, %v1936
        %v2217 = vpack.c.b16 %v1945, %v1937
        %v2218 = vpack.c.b16 %v1946, %v1938
        %v2219 = vpack.c.b16 %v1947, %v1939
        %v2220 = vpack.c.b16 %v1948, %v1940
        %v2221 = vpack.c.b16 %v1949, %v1941
        %v2222 = vpack.c.b16 %v1950, %v1942
        %v2223 = vpack.c.b16 %v1951, %v1943
        %v2224 = vpack.c.b16 %v1960, %v1952
        %v2225 = vpack.c.b16 %v1961, %v1953
        %v2226 = vpack.c.b16 %v1962, %v1954
        %v2227 = vpack.c.b16 %v1963, %v1955
        %v2228 = vpack.c.b16 %v1964, %v1956
        %v2229 = vpack.c.b16 %v1965, %v1957
        %v2230 = vpack.c.b16 %v1966, %v1958
        %v2231 = vpack.c.b16 %v1967, %v1959
        %v2232 = vpack.c.b16 %v1976, %v1968
        %v2233 = vpack.c.b16 %v1977, %v1969
        %v2234 = vpack.c.b16 %v1978, %v1970
        %v2235 = vpack.c.b16 %v1979, %v1971
        %v2236 = vpack.c.b16 %v1980, %v1972
        %v2237 = vpack.c.b16 %v1981, %v1973
        %v2238 = vpack.c.b16 %v1982, %v1974
        %v2239 = vpack.c.b16 %v1983, %v1975
        %2496 = vmatprep.subr.bf16.mxu0 %v1985
        %2497 = vmatpush1.bf16.msra.mxu0 %v1984
        %2498 = vmatprep.subr.bf16.mxu0 %v1993
        %2499 = vmatpush1.bf16.msra.mxu0 %v1992
        %2500 = vmatprep.subr.bf16.mxu0 %v2001
        %2501 = vmatpush1.bf16.msra.mxu0 %v2000
        %2502 = vmatprep.subr.bf16.mxu0 %v2009
        %2503 = vmatpush1.bf16.msra.mxu0 %v2008
        %2504 = vmatprep.subr.bf16.mxu0 %v2017
        %2505 = vmatpush1.bf16.msra.mxu0 %v2016
        %2506 = vmatprep.subr.bf16.mxu0 %v2025
        %2507 = vmatpush1.bf16.msra.mxu0 %v2024
        %2508 = vmatprep.subr.bf16.mxu0 %v2033
        %2509 = vmatpush1.bf16.msra.mxu0 %v2032
        %2510 = vmatprep.subr.bf16.mxu0 %v2041
        %2511 = vmatpush1.bf16.msra.mxu0 %v2040
        %2512 = vmatprep.subr.bf16.mxu0 %v2049
        %2513 = vmatpush1.bf16.msra.mxu0 %v2048
        %2514 = vmatprep.subr.bf16.mxu0 %v2057
        %2515 = vmatpush1.bf16.msra.mxu0 %v2056
        %2516 = vmatprep.subr.bf16.mxu0 %v2065
        %2517 = vmatpush1.bf16.msra.mxu0 %v2064
        %2518 = vmatprep.subr.bf16.mxu0 %v2073
        %2519 = vmatpush1.bf16.msra.mxu0 %v2072
        %2520 = vmatprep.subr.bf16.mxu0 %v2081
        %2521 = vmatpush1.bf16.msra.mxu0 %v2080
        %2522 = vmatprep.subr.bf16.mxu0 %v2089
        %2523 = vmatpush1.bf16.msra.mxu0 %v2088
        %2524 = vmatprep.subr.bf16.mxu0 %v2097
        %2525 = vmatpush1.bf16.msra.mxu0 %v2096
        %2526 = vmatprep.subr.bf16.mxu0 %v2105
        %2527 = vmatpush1.bf16.msra.mxu0 %v2104
        %2528 = vmatprep.mubr.bf16.mxu0 %v903
        %2529 = vmatmul.mubr.bf16.gmra.mrb[0].mxu0 %v902
        %v2530 = vpop.f32.mrb[0].mxu0
        %v2531 = vadd.f32 %v1179, %v2530
        %v2532 = vpop.f32.mrb[0].mxu0
        %v2533 = vadd.f32 %v1183, %v2532
        %v2534 = vpop.f32.mrb[0].mxu0
        %v2535 = vadd.f32 %v1179, %v2534
        %v2536 = vpop.f32.mrb[0].mxu0
        %v2537 = vadd.f32 %v1183, %v2536
        %2538 = vmatprep.mubr.bf16.mxu0 %v907
        %2539 = vmatmul.mubr.bf16.gmra.mrb[0].mxu0 %v906
        %v2540 = vpop.f32.mrb[0].mxu0
        %v2541 = vadd.f32 %v1179, %v2540
        %v2542 = vpop.f32.mrb[0].mxu0
        %v2543 = vadd.f32 %v1183, %v2542
        %v2544 = vpop.f32.mrb[0].mxu0
        %v2545 = vadd.f32 %v1179, %v2544
        %v2546 = vpop.f32.mrb[0].mxu0
        %v2547 = vadd.f32 %v1183, %v2546
        %2548 = vmatprep.mubr.bf16.mxu0 %v911
        %2549 = vmatmul.mubr.bf16.gmra.mrb[0].mxu0 %v910
        %v2550 = vpop.f32.mrb[0].mxu0
        %v2551 = vadd.f32 %v1179, %v2550
        %v2552 = vpop.f32.mrb[0].mxu0
        %v2553 = vadd.f32 %v1183, %v2552
        %v2554 = vpop.f32.mrb[0].mxu0
        %v2555 = vadd.f32 %v1179, %v2554
        %v2556 = vpop.f32.mrb[0].mxu0
        %v2557 = vadd.f32 %v1183, %v2556
        %2558 = vmatprep.mubr.bf16.mxu0 %v915
        %2559 = vmatmul.mubr.bf16.gmra.mrb[0].mxu0 %v914
        %v2560 = vpop.f32.mrb[0].mxu0
        %v2561 = vadd.f32 %v1179, %v2560
        %v2562 = vpop.f32.mrb[0].mxu0
        %v2563 = vadd.f32 %v1183, %v2562
        %v2564 = vpop.f32.mrb[0].mxu0
        %v2565 = vadd.f32 %v1179, %v2564
        %v2566 = vpop.f32.mrb[0].mxu0
        %v2567 = vadd.f32 %v1183, %v2566
        %2568 = vdwg.mxu0
        %2569 = vmatprep.subr.bf16.mxu0 %v2113
        %2570 = vmatpush1.bf16.msra.mxu0 %v2112
        %2571 = vmatprep.subr.bf16.mxu0 %v2121
        %2572 = vmatpush1.bf16.msra.mxu0 %v2120
        %2573 = vmatprep.subr.bf16.mxu0 %v2129
        %2574 = vmatpush1.bf16.msra.mxu0 %v2128
        %2575 = vmatprep.subr.bf16.mxu0 %v2137
        %2576 = vmatpush1.bf16.msra.mxu0 %v2136
        %2577 = vmatprep.subr.bf16.mxu0 %v2145
        %2578 = vmatpush1.bf16.msra.mxu0 %v2144
        %2579 = vmatprep.subr.bf16.mxu0 %v2153
        %2580 = vmatpush1.bf16.msra.mxu0 %v2152
        %2581 = vmatprep.subr.bf16.mxu0 %v2161
        %2582 = vmatpush1.bf16.msra.mxu0 %v2160
        %2583 = vmatprep.subr.bf16.mxu0 %v2169
        %2584 = vmatpush1.bf16.msra.mxu0 %v2168
        %2585 = vmatprep.subr.bf16.mxu0 %v2177
        %2586 = vmatpush1.bf16.msra.mxu0 %v2176
        %2587 = vmatprep.subr.bf16.mxu0 %v2185
        %2588 = vmatpush1.bf16.msra.mxu0 %v2184
        %2589 = vmatprep.subr.bf16.mxu0 %v2193
        %2590 = vmatpush1.bf16.msra.mxu0 %v2192
        %2591 = vmatprep.subr.bf16.mxu0 %v2201
        %2592 = vmatpush1.bf16.msra.mxu0 %v2200
        %2593 = vmatprep.subr.bf16.mxu0 %v2209
        %2594 = vmatpush1.bf16.msra.mxu0 %v2208
        %2595 = vmatprep.subr.bf16.mxu0 %v2217
        %2596 = vmatpush1.bf16.msra.mxu0 %v2216
        %2597 = vmatprep.subr.bf16.mxu0 %v2225
        %2598 = vmatpush1.bf16.msra.mxu0 %v2224
        %2599 = vmatprep.subr.bf16.mxu0 %v2233
        %2600 = vmatpush1.bf16.msra.mxu0 %v2232
        %2601 = vmatprep.mubr.bf16.mxu0 %v905
        %2602 = vmatmul.mubr.bf16.gmra.mrb[0].mxu0 %v904
        %v2603 = vpop.f32.mrb[0].mxu0
        %v2604 = vadd.f32 %v2531, %v2603
        %v2605 = vpop.f32.mrb[0].mxu0
        %v2606 = vadd.f32 %v2533, %v2605
        %v2607 = vpop.f32.mrb[0].mxu0
        %v2608 = vadd.f32 %v2535, %v2607
        %v2609 = vpop.f32.mrb[0].mxu0
        %v2610 = vadd.f32 %v2537, %v2609
        %2611 = vmatprep.mubr.bf16.mxu0 %v909
        %2612 = vmatmul.mubr.bf16.gmra.mrb[0].mxu0 %v908
        %v2613 = vpop.f32.mrb[0].mxu0
        %v2614 = vadd.f32 %v2541, %v2613
        %v2615 = vpop.f32.mrb[0].mxu0
        %v2616 = vadd.f32 %v2543, %v2615
        %v2617 = vpop.f32.mrb[0].mxu0
        %v2618 = vadd.f32 %v2545, %v2617
        %v2619 = vpop.f32.mrb[0].mxu0
        %v2620 = vadd.f32 %v2547, %v2619
        %2621 = vmatprep.mubr.bf16.mxu0 %v913
        %2622 = vmatmul.mubr.bf16.gmra.mrb[0].mxu0 %v912
        %v2623 = vpop.f32.mrb[0].mxu0
        %v2624 = vadd.f32 %v2551, %v2623
        %v2625 = vpop.f32.mrb[0].mxu0
        %v2626 = vadd.f32 %v2553, %v2625
        %v2627 = vpop.f32.mrb[0].mxu0
        %v2628 = vadd.f32 %v2555, %v2627
        %v2629 = vpop.f32.mrb[0].mxu0
        %v2630 = vadd.f32 %v2557, %v2629
        %2631 = vmatprep.mubr.bf16.mxu0 %v917
        %2632 = vmatmul.mubr.bf16.gmra.mrb[0].mxu0 %v916
        %v2633 = vpop.f32.mrb[0].mxu0
        %v2634 = vadd.f32 %v2561, %v2633
        %v2635 = vpop.f32.mrb[0].mxu0
        %v2636 = vadd.f32 %v2563, %v2635
        %v2637 = vpop.f32.mrb[0].mxu0
        %v2638 = vadd.f32 %v2565, %v2637
        %v2639 = vpop.f32.mrb[0].mxu0
        %v2640 = vadd.f32 %v2567, %v2639
        %2641 = vdwg.mxu0
        %2642 = vmatprep.subr.bf16.mxu0 %v1987
        %2643 = vmatpush1.bf16.msra.mxu0 %v1986
        %2644 = vmatprep.subr.bf16.mxu0 %v1995
        %2645 = vmatpush1.bf16.msra.mxu0 %v1994
        %2646 = vmatprep.subr.bf16.mxu0 %v2003
        %2647 = vmatpush1.bf16.msra.mxu0 %v2002
        %2648 = vmatprep.subr.bf16.mxu0 %v2011
        %2649 = vmatpush1.bf16.msra.mxu0 %v2010
        %2650 = vmatprep.subr.bf16.mxu0 %v2019
        %2651 = vmatpush1.bf16.msra.mxu0 %v2018
        %2652 = vmatprep.subr.bf16.mxu0 %v2027
        %2653 = vmatpush1.bf16.msra.mxu0 %v2026
        %2654 = vmatprep.subr.bf16.mxu0 %v2035
        %2655 = vmatpush1.bf16.msra.mxu0 %v2034
        %2656 = vmatprep.subr.bf16.mxu0 %v2043
        %2657 = vmatpush1.bf16.msra.mxu0 %v2042
        %2658 = vmatprep.subr.bf16.mxu0 %v2051
        %2659 = vmatpush1.bf16.msra.mxu0 %v2050
        %2660 = vmatprep.subr.bf16.mxu0 %v2059
        %2661 = vmatpush1.bf16.msra.mxu0 %v2058
        %2662 = vmatprep.subr.bf16.mxu0 %v2067
        %2663 = vmatpush1.bf16.msra.mxu0 %v2066
        %2664 = vmatprep.subr.bf16.mxu0 %v2075
        %2665 = vmatpush1.bf16.msra.mxu0 %v2074
        %2666 = vmatprep.subr.bf16.mxu0 %v2083
        %2667 = vmatpush1.bf16.msra.mxu0 %v2082
        %2668 = vmatprep.subr.bf16.mxu0 %v2091
        %2669 = vmatpush1.bf16.msra.mxu0 %v2090
        %2670 = vmatprep.subr.bf16.mxu0 %v2099
        %2671 = vmatpush1.bf16.msra.mxu0 %v2098
        %2672 = vmatprep.subr.bf16.mxu0 %v2107
        %2673 = vmatpush1.bf16.msra.mxu0 %v2106
        %2674 = vmatprep.mubr.bf16.mxu0 %v903
        %2675 = vmatmul.mubr.bf16.gmra.mrb[0].mxu0 %v902
        %v2676 = vpop.f32.mrb[0].mxu0
        %v2677 = vadd.f32 %v1187, %v2676
        %v2678 = vpop.f32.mrb[0].mxu0
        %v2679 = vadd.f32 %v1191, %v2678
        %v2680 = vpop.f32.mrb[0].mxu0
        %v2681 = vadd.f32 %v1187, %v2680
        %v2682 = vpop.f32.mrb[0].mxu0
        %v2683 = vadd.f32 %v1191, %v2682
        %2684 = vmatprep.mubr.bf16.mxu0 %v907
        %2685 = vmatmul.mubr.bf16.gmra.mrb[0].mxu0 %v906
        %v2686 = vpop.f32.mrb[0].mxu0
        %v2687 = vadd.f32 %v1187, %v2686
        %v2688 = vpop.f32.mrb[0].mxu0
        %v2689 = vadd.f32 %v1191, %v2688
        %v2690 = vpop.f32.mrb[0].mxu0
        %v2691 = vadd.f32 %v1187, %v2690
        %v2692 = vpop.f32.mrb[0].mxu0
        %v2693 = vadd.f32 %v1191, %v2692
        %2694 = vmatprep.mubr.bf16.mxu0 %v911
        %2695 = vmatmul.mubr.bf16.gmra.mrb[0].mxu0 %v910
        %v2696 = vpop.f32.mrb[0].mxu0
        %v2697 = vadd.f32 %v1187, %v2696
        %v2698 = vpop.f32.mrb[0].mxu0
        %v2699 = vadd.f32 %v1191, %v2698
        %v2700 = vpop.f32.mrb[0].mxu0
        %v2701 = vadd.f32 %v1187, %v2700
        %v2702 = vpop.f32.mrb[0].mxu0
        %v2703 = vadd.f32 %v1191, %v2702
        %2704 = vmatprep.mubr.bf16.mxu0 %v915
        %2705 = vmatmul.mubr.bf16.gmra.mrb[0].mxu0 %v914
        %v2706 = vpop.f32.mrb[0].mxu0
        %v2707 = vadd.f32 %v1187, %v2706
        %v2708 = vpop.f32.mrb[0].mxu0
        %v2709 = vadd.f32 %v1191, %v2708
        %v2710 = vpop.f32.mrb[0].mxu0
        %v2711 = vadd.f32 %v1187, %v2710
        %v2712 = vpop.f32.mrb[0].mxu0
        %v2713 = vadd.f32 %v1191, %v2712
        %2714 = vdwg.mxu0
        %2715 = vmatprep.subr.bf16.mxu0 %v2115
        %2716 = vmatpush1.bf16.msra.mxu0 %v2114
        %2717 = vmatprep.subr.bf16.mxu0 %v2123
        %2718 = vmatpush1.bf16.msra.mxu0 %v2122
        %2719 = vmatprep.subr.bf16.mxu0 %v2131
        %2720 = vmatpush1.bf16.msra.mxu0 %v2130
        %2721 = vmatprep.subr.bf16.mxu0 %v2139
        %2722 = vmatpush1.bf16.msra.mxu0 %v2138
        %2723 = vmatprep.subr.bf16.mxu0 %v2147
        %2724 = vmatpush1.bf16.msra.mxu0 %v2146
        %2725 = vmatprep.subr.bf16.mxu0 %v2155
        %2726 = vmatpush1.bf16.msra.mxu0 %v2154
        %2727 = vmatprep.subr.bf16.mxu0 %v2163
        %2728 = vmatpush1.bf16.msra.mxu0 %v2162
        %2729 = vmatprep.subr.bf16.mxu0 %v2171
        %2730 = vmatpush1.bf16.msra.mxu0 %v2170
        %2731 = vmatprep.subr.bf16.mxu0 %v2179
        %2732 = vmatpush1.bf16.msra.mxu0 %v2178
        %2733 = vmatprep.subr.bf16.mxu0 %v2187
        %2734 = vmatpush1.bf16.msra.mxu0 %v2186
        %2735 = vmatprep.subr.bf16.mxu0 %v2195
        %2736 = vmatpush1.bf16.msra.mxu0 %v2194
        %2737 = vmatprep.subr.bf16.mxu0 %v2203
        %2738 = vmatpush1.bf16.msra.mxu0 %v2202
        %2739 = vmatprep.subr.bf16.mxu0 %v2211
        %2740 = vmatpush1.bf16.msra.mxu0 %v2210
        %2741 = vmatprep.subr.bf16.mxu0 %v2219
        %2742 = vmatpush1.bf16.msra.mxu0 %v2218
        %2743 = vmatprep.subr.bf16.mxu0 %v2227
        %2744 = vmatpush1.bf16.msra.mxu0 %v2226
        %2745 = vmatprep.subr.bf16.mxu0 %v2235
        %2746 = vmatpush1.bf16.msra.mxu0 %v2234
        %2747 = vmatprep.mubr.bf16.mxu0 %v905
        %2748 = vmatmul.mubr.bf16.gmra.mrb[0].mxu0 %v904
        %v2749 = vpop.f32.mrb[0].mxu0
        %v2750 = vadd.f32 %v2677, %v2749
        %v2751 = vpop.f32.mrb[0].mxu0
        %v2752 = vadd.f32 %v2679, %v2751
        %v2753 = vpop.f32.mrb[0].mxu0
        %v2754 = vadd.f32 %v2681, %v2753
        %v2755 = vpop.f32.mrb[0].mxu0
        %v2756 = vadd.f32 %v2683, %v2755
        %2757 = vmatprep.mubr.bf16.mxu0 %v909
        %2758 = vmatmul.mubr.bf16.gmra.mrb[0].mxu0 %v908
        %v2759 = vpop.f32.mrb[0].mxu0
        %v2760 = vadd.f32 %v2687, %v2759
        %v2761 = vpop.f32.mrb[0].mxu0
        %v2762 = vadd.f32 %v2689, %v2761
        %v2763 = vpop.f32.mrb[0].mxu0
        %v2764 = vadd.f32 %v2691, %v2763
        %v2765 = vpop.f32.mrb[0].mxu0
        %v2766 = vadd.f32 %v2693, %v2765
        %2767 = vmatprep.mubr.bf16.mxu0 %v913
        %2768 = vmatmul.mubr.bf16.gmra.mrb[0].mxu0 %v912
        %v2769 = vpop.f32.mrb[0].mxu0
        %v2770 = vadd.f32 %v2697, %v2769
        %v2771 = vpop.f32.mrb[0].mxu0
        %v2772 = vadd.f32 %v2699, %v2771
        %v2773 = vpop.f32.mrb[0].mxu0
        %v2774 = vadd.f32 %v2701, %v2773
        %v2775 = vpop.f32.mrb[0].mxu0
        %v2776 = vadd.f32 %v2703, %v2775
        %2777 = vmatprep.mubr.bf16.mxu0 %v917
        %2778 = vmatmul.mubr.bf16.gmra.mrb[0].mxu0 %v916
        %v2779 = vpop.f32.mrb[0].mxu0
        %v2780 = vadd.f32 %v2707, %v2779
        %v2781 = vpop.f32.mrb[0].mxu0
        %v2782 = vadd.f32 %v2709, %v2781
        %v2783 = vpop.f32.mrb[0].mxu0
        %v2784 = vadd.f32 %v2711, %v2783
        %v2785 = vpop.f32.mrb[0].mxu0
        %v2786 = vadd.f32 %v2713, %v2785
        %2787 = vdwg.mxu0
        %2788 = vmatprep.subr.bf16.mxu0 %v1989
        %2789 = vmatpush1.bf16.msra.mxu0 %v1988
        %2790 = vmatprep.subr.bf16.mxu0 %v1997
        %2791 = vmatpush1.bf16.msra.mxu0 %v1996
        %2792 = vmatprep.subr.bf16.mxu0 %v2005
        %2793 = vmatpush1.bf16.msra.mxu0 %v2004
        %2794 = vmatprep.subr.bf16.mxu0 %v2013
        %2795 = vmatpush1.bf16.msra.mxu0 %v2012
        %2796 = vmatprep.subr.bf16.mxu0 %v2021
        %2797 = vmatpush1.bf16.msra.mxu0 %v2020
        %2798 = vmatprep.subr.bf16.mxu0 %v2029
        %2799 = vmatpush1.bf16.msra.mxu0 %v2028
        %2800 = vmatprep.subr.bf16.mxu0 %v2037
        %2801 = vmatpush1.bf16.msra.mxu0 %v2036
        %2802 = vmatprep.subr.bf16.mxu0 %v2045
        %2803 = vmatpush1.bf16.msra.mxu0 %v2044
        %2804 = vmatprep.subr.bf16.mxu0 %v2053
        %2805 = vmatpush1.bf16.msra.mxu0 %v2052
        %2806 = vmatprep.subr.bf16.mxu0 %v2061
        %2807 = vmatpush1.bf16.msra.mxu0 %v2060
        %2808 = vmatprep.subr.bf16.mxu0 %v2069
        %2809 = vmatpush1.bf16.msra.mxu0 %v2068
        %2810 = vmatprep.subr.bf16.mxu0 %v2077
        %2811 = vmatpush1.bf16.msra.mxu0 %v2076
        %2812 = vmatprep.subr.bf16.mxu0 %v2085
        %2813 = vmatpush1.bf16.msra.mxu0 %v2084
        %2814 = vmatprep.subr.bf16.mxu0 %v2093
        %2815 = vmatpush1.bf16.msra.mxu0 %v2092
        %2816 = vmatprep.subr.bf16.mxu0 %v2101
        %2817 = vmatpush1.bf16.msra.mxu0 %v2100
        %2818 = vmatprep.subr.bf16.mxu0 %v2109
        %2819 = vmatpush1.bf16.msra.mxu0 %v2108
        %2820 = vmatprep.mubr.bf16.mxu0 %v903
        %2821 = vmatmul.mubr.bf16.gmra.mrb[0].mxu0 %v902
        %v2822 = vpop.f32.mrb[0].mxu0
        %v2823 = vadd.f32 %v1195, %v2822
        %v2824 = vpop.f32.mrb[0].mxu0
        %v2825 = vadd.f32 %v1199, %v2824
        %v2826 = vpop.f32.mrb[0].mxu0
        %v2827 = vadd.f32 %v1195, %v2826
        %v2828 = vpop.f32.mrb[0].mxu0
        %v2829 = vadd.f32 %v1199, %v2828
        %2830 = vmatprep.mubr.bf16.mxu0 %v907
        %2831 = vmatmul.mubr.bf16.gmra.mrb[0].mxu0 %v906
        %v2832 = vpop.f32.mrb[0].mxu0
        %v2833 = vadd.f32 %v1195, %v2832
        %v2834 = vpop.f32.mrb[0].mxu0
        %v2835 = vadd.f32 %v1199, %v2834
        %v2836 = vpop.f32.mrb[0].mxu0
        %v2837 = vadd.f32 %v1195, %v2836
        %v2838 = vpop.f32.mrb[0].mxu0
        %v2839 = vadd.f32 %v1199, %v2838
        %2840 = vmatprep.mubr.bf16.mxu0 %v911
        %2841 = vmatmul.mubr.bf16.gmra.mrb[0].mxu0 %v910
        %v2842 = vpop.f32.mrb[0].mxu0
        %v2843 = vadd.f32 %v1195, %v2842
        %v2844 = vpop.f32.mrb[0].mxu0
        %v2845 = vadd.f32 %v1199, %v2844
        %v2846 = vpop.f32.mrb[0].mxu0
        %v2847 = vadd.f32 %v1195, %v2846
        %v2848 = vpop.f32.mrb[0].mxu0
        %v2849 = vadd.f32 %v1199, %v2848
        %2850 = vmatprep.mubr.bf16.mxu0 %v915
        %2851 = vmatmul.mubr.bf16.gmra.mrb[0].mxu0 %v914
        %v2852 = vpop.f32.mrb[0].mxu0
        %v2853 = vadd.f32 %v1195, %v2852
        %v2854 = vpop.f32.mrb[0].mxu0
        %v2855 = vadd.f32 %v1199, %v2854
        %v2856 = vpop.f32.mrb[0].mxu0
        %v2857 = vadd.f32 %v1195, %v2856
        %v2858 = vpop.f32.mrb[0].mxu0
        %v2859 = vadd.f32 %v1199, %v2858
        %2860 = vdwg.mxu0
        %2861 = vmatprep.subr.bf16.mxu0 %v2117
        %2862 = vmatpush1.bf16.msra.mxu0 %v2116
        %2863 = vmatprep.subr.bf16.mxu0 %v2125
        %2864 = vmatpush1.bf16.msra.mxu0 %v2124
        %2865 = vmatprep.subr.bf16.mxu0 %v2133
        %2866 = vmatpush1.bf16.msra.mxu0 %v2132
        %2867 = vmatprep.subr.bf16.mxu0 %v2141
        %2868 = vmatpush1.bf16.msra.mxu0 %v2140
        %2869 = vmatprep.subr.bf16.mxu0 %v2149
        %2870 = vmatpush1.bf16.msra.mxu0 %v2148
        %2871 = vmatprep.subr.bf16.mxu0 %v2157
        %2872 = vmatpush1.bf16.msra.mxu0 %v2156
        %2873 = vmatprep.subr.bf16.mxu0 %v2165
        %2874 = vmatpush1.bf16.msra.mxu0 %v2164
        %2875 = vmatprep.subr.bf16.mxu0 %v2173
        %2876 = vmatpush1.bf16.msra.mxu0 %v2172
        %2877 = vmatprep.subr.bf16.mxu0 %v2181
        %2878 = vmatpush1.bf16.msra.mxu0 %v2180
        %2879 = vmatprep.subr.bf16.mxu0 %v2189
        %2880 = vmatpush1.bf16.msra.mxu0 %v2188
        %2881 = vmatprep.subr.bf16.mxu0 %v2197
        %2882 = vmatpush1.bf16.msra.mxu0 %v2196
        %2883 = vmatprep.subr.bf16.mxu0 %v2205
        %2884 = vmatpush1.bf16.msra.mxu0 %v2204
        %2885 = vmatprep.subr.bf16.mxu0 %v2213
        %2886 = vmatpush1.bf16.msra.mxu0 %v2212
        %2887 = vmatprep.subr.bf16.mxu0 %v2221
        %2888 = vmatpush1.bf16.msra.mxu0 %v2220
        %2889 = vmatprep.subr.bf16.mxu0 %v2229
        %2890 = vmatpush1.bf16.msra.mxu0 %v2228
        %2891 = vmatprep.subr.bf16.mxu0 %v2237
        %2892 = vmatpush1.bf16.msra.mxu0 %v2236
        %2893 = vmatprep.mubr.bf16.mxu0 %v905
        %2894 = vmatmul.mubr.bf16.gmra.mrb[0].mxu0 %v904
        %v2895 = vpop.f32.mrb[0].mxu0
        %v2896 = vadd.f32 %v2823, %v2895
        %v2897 = vpop.f32.mrb[0].mxu0
        %v2898 = vadd.f32 %v2825, %v2897
        %v2899 = vpop.f32.mrb[0].mxu0
        %v2900 = vadd.f32 %v2827, %v2899
        %v2901 = vpop.f32.mrb[0].mxu0
        %v2902 = vadd.f32 %v2829, %v2901
        %2903 = vmatprep.mubr.bf16.mxu0 %v909
        %2904 = vmatmul.mubr.bf16.gmra.mrb[0].mxu0 %v908
        %v2905 = vpop.f32.mrb[0].mxu0
        %v2906 = vadd.f32 %v2833, %v2905
        %v2907 = vpop.f32.mrb[0].mxu0
        %v2908 = vadd.f32 %v2835, %v2907
        %v2909 = vpop.f32.mrb[0].mxu0
        %v2910 = vadd.f32 %v2837, %v2909
        %v2911 = vpop.f32.mrb[0].mxu0
        %v2912 = vadd.f32 %v2839, %v2911
        %2913 = vmatprep.mubr.bf16.mxu0 %v913
        %2914 = vmatmul.mubr.bf16.gmra.mrb[0].mxu0 %v912
        %v2915 = vpop.f32.mrb[0].mxu0
        %v2916 = vadd.f32 %v2843, %v2915
        %v2917 = vpop.f32.mrb[0].mxu0
        %v2918 = vadd.f32 %v2845, %v2917
        %v2919 = vpop.f32.mrb[0].mxu0
        %v2920 = vadd.f32 %v2847, %v2919
        %v2921 = vpop.f32.mrb[0].mxu0
        %v2922 = vadd.f32 %v2849, %v2921
        %2923 = vmatprep.mubr.bf16.mxu0 %v917
        %2924 = vmatmul.mubr.bf16.gmra.mrb[0].mxu0 %v916
        %v2925 = vpop.f32.mrb[0].mxu0
        %v2926 = vadd.f32 %v2853, %v2925
        %v2927 = vpop.f32.mrb[0].mxu0
        %v2928 = vadd.f32 %v2855, %v2927
        %v2929 = vpop.f32.mrb[0].mxu0
        %v2930 = vadd.f32 %v2857, %v2929
        %v2931 = vpop.f32.mrb[0].mxu0
        %v2932 = vadd.f32 %v2859, %v2931
        %2933 = vdwg.mxu0
        %2934 = vmatprep.subr.bf16.mxu0 %v1991
        %2935 = vmatpush1.bf16.msra.mxu0 %v1990
        %2936 = vmatprep.subr.bf16.mxu0 %v1999
        %2937 = vmatpush1.bf16.msra.mxu0 %v1998
        %2938 = vmatprep.subr.bf16.mxu0 %v2007
        %2939 = vmatpush1.bf16.msra.mxu0 %v2006
        %2940 = vmatprep.subr.bf16.mxu0 %v2015
        %2941 = vmatpush1.bf16.msra.mxu0 %v2014
        %2942 = vmatprep.subr.bf16.mxu0 %v2023
        %2943 = vmatpush1.bf16.msra.mxu0 %v2022
        %2944 = vmatprep.subr.bf16.mxu0 %v2031
        %2945 = vmatpush1.bf16.msra.mxu0 %v2030
        %2946 = vmatprep.subr.bf16.mxu0 %v2039
        %2947 = vmatpush1.bf16.msra.mxu0 %v2038
        %2948 = vmatprep.subr.bf16.mxu0 %v2047
        %2949 = vmatpush1.bf16.msra.mxu0 %v2046
        %2950 = vmatprep.subr.bf16.mxu0 %v2055
        %2951 = vmatpush1.bf16.msra.mxu0 %v2054
        %2952 = vmatprep.subr.bf16.mxu0 %v2063
        %2953 = vmatpush1.bf16.msra.mxu0 %v2062
        %2954 = vmatprep.subr.bf16.mxu0 %v2071
        %2955 = vmatpush1.bf16.msra.mxu0 %v2070
        %2956 = vmatprep.subr.bf16.mxu0 %v2079
        %2957 = vmatpush1.bf16.msra.mxu0 %v2078
        %2958 = vmatprep.subr.bf16.mxu0 %v2087
        %2959 = vmatpush1.bf16.msra.mxu0 %v2086
        %2960 = vmatprep.subr.bf16.mxu0 %v2095
        %2961 = vmatpush1.bf16.msra.mxu0 %v2094
        %2962 = vmatprep.subr.bf16.mxu0 %v2103
        %2963 = vmatpush1.bf16.msra.mxu0 %v2102
        %2964 = vmatprep.subr.bf16.mxu0 %v2111
        %2965 = vmatpush1.bf16.msra.mxu0 %v2110
        %2966 = vmatprep.mubr.bf16.mxu0 %v903
        %2967 = vmatmul.mubr.bf16.gmra.mrb[0].mxu0 %v902
        %v2968 = vpop.f32.mrb[0].mxu0
        %v2969 = vadd.f32 %v1203, %v2968
        %v2970 = vpop.f32.mrb[0].mxu0
        %v2971 = vadd.f32 %v1207, %v2970
        %v2972 = vpop.f32.mrb[0].mxu0
        %v2973 = vadd.f32 %v1203, %v2972
        %v2974 = vpop.f32.mrb[0].mxu0
        %v2975 = vadd.f32 %v1207, %v2974
        %2976 = vmatprep.mubr.bf16.mxu0 %v907
        %2977 = vmatmul.mubr.bf16.gmra.mrb[0].mxu0 %v906
        %v2978 = vpop.f32.mrb[0].mxu0
        %v2979 = vadd.f32 %v1203, %v2978
        %v2980 = vpop.f32.mrb[0].mxu0
        %v2981 = vadd.f32 %v1207, %v2980
        %v2982 = vpop.f32.mrb[0].mxu0
        %v2983 = vadd.f32 %v1203, %v2982
        %v2984 = vpop.f32.mrb[0].mxu0
        %v2985 = vadd.f32 %v1207, %v2984
        %2986 = vmatprep.mubr.bf16.mxu0 %v911
        %2987 = vmatmul.mubr.bf16.gmra.mrb[0].mxu0 %v910
        %v2988 = vpop.f32.mrb[0].mxu0
        %v2989 = vadd.f32 %v1203, %v2988
        %v2990 = vpop.f32.mrb[0].mxu0
        %v2991 = vadd.f32 %v1207, %v2990
        %v2992 = vpop.f32.mrb[0].mxu0
        %v2993 = vadd.f32 %v1203, %v2992
        %v2994 = vpop.f32.mrb[0].mxu0
        %v2995 = vadd.f32 %v1207, %v2994
        %2996 = vmatprep.mubr.bf16.mxu0 %v915
        %2997 = vmatmul.mubr.bf16.gmra.mrb[0].mxu0 %v914
        %v2998 = vpop.f32.mrb[0].mxu0
        %v2999 = vadd.f32 %v1203, %v2998
        %v3000 = vpop.f32.mrb[0].mxu0
        %v3001 = vadd.f32 %v1207, %v3000
        %v3002 = vpop.f32.mrb[0].mxu0
        %v3003 = vadd.f32 %v1203, %v3002
        %v3004 = vpop.f32.mrb[0].mxu0
        %v3005 = vadd.f32 %v1207, %v3004
        %3006 = vdwg.mxu0
        %3007 = vmatprep.subr.bf16.mxu0 %v2119
        %3008 = vmatpush1.bf16.msra.mxu0 %v2118
        %3009 = vmatprep.subr.bf16.mxu0 %v2127
        %3010 = vmatpush1.bf16.msra.mxu0 %v2126
        %3011 = vmatprep.subr.bf16.mxu0 %v2135
        %3012 = vmatpush1.bf16.msra.mxu0 %v2134
        %3013 = vmatprep.subr.bf16.mxu0 %v2143
        %3014 = vmatpush1.bf16.msra.mxu0 %v2142
        %3015 = vmatprep.subr.bf16.mxu0 %v2151
        %3016 = vmatpush1.bf16.msra.mxu0 %v2150
        %3017 = vmatprep.subr.bf16.mxu0 %v2159
        %3018 = vmatpush1.bf16.msra.mxu0 %v2158
        %3019 = vmatprep.subr.bf16.mxu0 %v2167
        %3020 = vmatpush1.bf16.msra.mxu0 %v2166
        %3021 = vmatprep.subr.bf16.mxu0 %v2175
        %3022 = vmatpush1.bf16.msra.mxu0 %v2174
        %3023 = vmatprep.subr.bf16.mxu0 %v2183
        %3024 = vmatpush1.bf16.msra.mxu0 %v2182
        %3025 = vmatprep.subr.bf16.mxu0 %v2191
        %3026 = vmatpush1.bf16.msra.mxu0 %v2190
        %3027 = vmatprep.subr.bf16.mxu0 %v2199
        %3028 = vmatpush1.bf16.msra.mxu0 %v2198
        %3029 = vmatprep.subr.bf16.mxu0 %v2207
        %3030 = vmatpush1.bf16.msra.mxu0 %v2206
        %3031 = vmatprep.subr.bf16.mxu0 %v2215
        %3032 = vmatpush1.bf16.msra.mxu0 %v2214
        %3033 = vmatprep.subr.bf16.mxu0 %v2223
        %3034 = vmatpush1.bf16.msra.mxu0 %v2222
        %3035 = vmatprep.subr.bf16.mxu0 %v2231
        %3036 = vmatpush1.bf16.msra.mxu0 %v2230
        %3037 = vmatprep.subr.bf16.mxu0 %v2239
        %3038 = vmatpush1.bf16.msra.mxu0 %v2238
        %3039 = vmatprep.mubr.bf16.mxu0 %v905
        %3040 = vmatmul.mubr.bf16.gmra.mrb[0].mxu0 %v904
        %v3041 = vpop.f32.mrb[0].mxu0
        %v3042 = vadd.f32 %v2969, %v3041
        %v3043 = vpop.f32.mrb[0].mxu0
        %v3044 = vadd.f32 %v2971, %v3043
        %v3045 = vpop.f32.mrb[0].mxu0
        %v3046 = vadd.f32 %v2973, %v3045
        %v3047 = vpop.f32.mrb[0].mxu0
        %v3048 = vadd.f32 %v2975, %v3047
        %3049 = vmatprep.mubr.bf16.mxu0 %v909
        %3050 = vmatmul.mubr.bf16.gmra.mrb[0].mxu0 %v908
        %v3051 = vpop.f32.mrb[0].mxu0
        %v3052 = vadd.f32 %v2979, %v3051
        %v3053 = vpop.f32.mrb[0].mxu0
        %v3054 = vadd.f32 %v2981, %v3053
        %v3055 = vpop.f32.mrb[0].mxu0
        %v3056 = vadd.f32 %v2983, %v3055
        %v3057 = vpop.f32.mrb[0].mxu0
        %v3058 = vadd.f32 %v2985, %v3057
        %3059 = vmatprep.mubr.bf16.mxu0 %v913
        %3060 = vmatmul.mubr.bf16.gmra.mrb[0].mxu0 %v912
        %v3061 = vpop.f32.mrb[0].mxu0
        %v3062 = vadd.f32 %v2989, %v3061
        %v3063 = vpop.f32.mrb[0].mxu0
        %v3064 = vadd.f32 %v2991, %v3063
        %v3065 = vpop.f32.mrb[0].mxu0
        %v3066 = vadd.f32 %v2993, %v3065
        %v3067 = vpop.f32.mrb[0].mxu0
        %v3068 = vadd.f32 %v2995, %v3067
        %3069 = vmatprep.mubr.bf16.mxu0 %v917
        %3070 = vmatmul.mubr.bf16.gmra.mrb[0].mxu0 %v916
        %v3071 = vpop.f32.mrb[0].mxu0
        %v3072 = vadd.f32 %v2999, %v3071
        %v3073 = vpop.f32.mrb[0].mxu0
        %v3074 = vadd.f32 %v3001, %v3073
        %v3075 = vpop.f32.mrb[0].mxu0
        %v3076 = vadd.f32 %v3003, %v3075
        %v3077 = vpop.f32.mrb[0].mxu0
        %v3078 = vadd.f32 %v3005, %v3077
        %3079 = vdwg.mxu0
        %v3080 = vld [vmem:[%s6] ss:$2 sm:$0xff]
        %v3082 = vlaneseq
        %v3083 = vshrl.u32 %v3082, 7
        %v3084 = vsub.s32 0, %v3083
        %v3085 = vrot.slane %v3080, %v3084
        %v3086 = vlaneseq
        %v3087 = vshrl.u32 %v3086, 7
        %v3088 = vsub.s32 1, %v3087
        %v3089 = vrot.slane %v3080, %v3088
        %v3090 = vlaneseq
        %v3091 = vshrl.u32 %v3090, 7
        %v3092 = vsub.s32 2, %v3091
        %v3093 = vrot.slane %v3080, %v3092
        %v3094 = vlaneseq
        %v3095 = vshrl.u32 %v3094, 7
        %v3096 = vsub.s32 3, %v3095
        %v3097 = vrot.slane %v3080, %v3096
        %v3098 = vlaneseq
        %v3099 = vshrl.u32 %v3098, 7
        %v3100 = vsub.s32 4, %v3099
        %v3101 = vrot.slane %v3080, %v3100
        %v3102 = vlaneseq
        %v3103 = vshrl.u32 %v3102, 7
        %v3104 = vsub.s32 5, %v3103
        %v3105 = vrot.slane %v3080, %v3104
        %v3106 = vlaneseq
        %v3107 = vshrl.u32 %v3106, 7
        %v3108 = vsub.s32 6, %v3107
        %v3109 = vrot.slane %v3080, %v3108
        %v3110 = vlaneseq
        %v3111 = vshrl.u32 %v3110, 7
        %v3112 = vsub.s32 7, %v3111
        %v3113 = vrot.slane %v3080, %v3112
        %v3122 = vmul.f32 %v2604, %v3085
        %v3123 = vmul.f32 %v2606, %v3089
        %v3124 = vmul.f32 %v2750, %v3093
        %v3125 = vmul.f32 %v2752, %v3097
        %v3126 = vmul.f32 %v2896, %v3101
        %v3127 = vmul.f32 %v2898, %v3105
        %v3128 = vmul.f32 %v3042, %v3109
        %v3129 = vmul.f32 %v3044, %v3113
        %v3130 = vmul.f32 %v2608, %v3085
        %v3131 = vmul.f32 %v2610, %v3089
        %v3132 = vmul.f32 %v2754, %v3093
        %v3133 = vmul.f32 %v2756, %v3097
        %v3134 = vmul.f32 %v2900, %v3101
        %v3135 = vmul.f32 %v2902, %v3105
        %v3136 = vmul.f32 %v3046, %v3109
        %v3137 = vmul.f32 %v3048, %v3113
        %v3138 = vmul.f32 %v2614, %v3085
        %v3139 = vmul.f32 %v2616, %v3089
        %v3140 = vmul.f32 %v2760, %v3093
        %v3141 = vmul.f32 %v2762, %v3097
        %v3142 = vmul.f32 %v2906, %v3101
        %v3143 = vmul.f32 %v2908, %v3105
        %v3144 = vmul.f32 %v3052, %v3109
        %v3145 = vmul.f32 %v3054, %v3113
        %v3146 = vmul.f32 %v2618, %v3085
        %v3147 = vmul.f32 %v2620, %v3089
        %v3148 = vmul.f32 %v2764, %v3093
        %v3149 = vmul.f32 %v2766, %v3097
        %v3150 = vmul.f32 %v2910, %v3101
        %v3151 = vmul.f32 %v2912, %v3105
        %v3152 = vmul.f32 %v3056, %v3109
        %v3153 = vmul.f32 %v3058, %v3113
        %v3154 = vmul.f32 %v2624, %v3085
        %v3155 = vmul.f32 %v2626, %v3089
        %v3156 = vmul.f32 %v2770, %v3093
        %v3157 = vmul.f32 %v2772, %v3097
        %v3158 = vmul.f32 %v2916, %v3101
        %v3159 = vmul.f32 %v2918, %v3105
        %v3160 = vmul.f32 %v3062, %v3109
        %v3161 = vmul.f32 %v3064, %v3113
        %v3162 = vmul.f32 %v2628, %v3085
        %v3163 = vmul.f32 %v2630, %v3089
        %v3164 = vmul.f32 %v2774, %v3093
        %v3165 = vmul.f32 %v2776, %v3097
        %v3166 = vmul.f32 %v2920, %v3101
        %v3167 = vmul.f32 %v2922, %v3105
        %v3168 = vmul.f32 %v3066, %v3109
        %v3169 = vmul.f32 %v3068, %v3113
        %v3170 = vmul.f32 %v2634, %v3085
        %v3171 = vmul.f32 %v2636, %v3089
        %v3172 = vmul.f32 %v2780, %v3093
        %v3173 = vmul.f32 %v2782, %v3097
        %v3174 = vmul.f32 %v2926, %v3101
        %v3175 = vmul.f32 %v2928, %v3105
        %v3176 = vmul.f32 %v3072, %v3109
        %v3177 = vmul.f32 %v3074, %v3113
        %v3178 = vmul.f32 %v2638, %v3085
        %v3179 = vmul.f32 %v2640, %v3089
        %v3180 = vmul.f32 %v2784, %v3093
        %v3181 = vmul.f32 %v2786, %v3097
        %v3182 = vmul.f32 %v2930, %v3101
        %v3183 = vmul.f32 %v2932, %v3105
        %v3184 = vmul.f32 %v3076, %v3109
        %v3185 = vmul.f32 %v3078, %v3113
        %s3186 = scalar_lea.vmem %s6, 1
        %v3187 = vld [vmem:[%s3186] ss:$2 sm:$0xff]
        %v3189 = vlaneseq
        %v3190 = vshrl.u32 %v3189, 7
        %v3191 = vsub.s32 0, %v3190
        %v3192 = vrot.slane %v3187, %v3191
        %v3193 = vlaneseq
        %v3194 = vshrl.u32 %v3193, 7
        %v3195 = vsub.s32 1, %v3194
        %v3196 = vrot.slane %v3187, %v3195
        %v3197 = vlaneseq
        %v3198 = vshrl.u32 %v3197, 7
        %v3199 = vsub.s32 2, %v3198
        %v3200 = vrot.slane %v3187, %v3199
        %v3201 = vlaneseq
        %v3202 = vshrl.u32 %v3201, 7
        %v3203 = vsub.s32 3, %v3202
        %v3204 = vrot.slane %v3187, %v3203
        %v3205 = vlaneseq
        %v3206 = vshrl.u32 %v3205, 7
        %v3207 = vsub.s32 4, %v3206
        %v3208 = vrot.slane %v3187, %v3207
        %v3209 = vlaneseq
        %v3210 = vshrl.u32 %v3209, 7
        %v3211 = vsub.s32 5, %v3210
        %v3212 = vrot.slane %v3187, %v3211
        %v3213 = vlaneseq
        %v3214 = vshrl.u32 %v3213, 7
        %v3215 = vsub.s32 6, %v3214
        %v3216 = vrot.slane %v3187, %v3215
        %v3217 = vlaneseq
        %v3218 = vshrl.u32 %v3217, 7
        %v3219 = vsub.s32 7, %v3218
        %v3220 = vrot.slane %v3187, %v3219
        %v3229 = vadd.f32 %v3122, %v3192
        %v3230 = vadd.f32 %v3123, %v3196
        %v3231 = vadd.f32 %v3124, %v3200
        %v3232 = vadd.f32 %v3125, %v3204
        %v3233 = vadd.f32 %v3126, %v3208
        %v3234 = vadd.f32 %v3127, %v3212
        %v3235 = vadd.f32 %v3128, %v3216
        %v3236 = vadd.f32 %v3129, %v3220
        %v3237 = vadd.f32 %v3130, %v3192
        %v3238 = vadd.f32 %v3131, %v3196
        %v3239 = vadd.f32 %v3132, %v3200
        %v3240 = vadd.f32 %v3133, %v3204
        %v3241 = vadd.f32 %v3134, %v3208
        %v3242 = vadd.f32 %v3135, %v3212
        %v3243 = vadd.f32 %v3136, %v3216
        %v3244 = vadd.f32 %v3137, %v3220
        %v3245 = vadd.f32 %v3138, %v3192
        %v3246 = vadd.f32 %v3139, %v3196
        %v3247 = vadd.f32 %v3140, %v3200
        %v3248 = vadd.f32 %v3141, %v3204
        %v3249 = vadd.f32 %v3142, %v3208
        %v3250 = vadd.f32 %v3143, %v3212
        %v3251 = vadd.f32 %v3144, %v3216
        %v3252 = vadd.f32 %v3145, %v3220
        %v3253 = vadd.f32 %v3146, %v3192
        %v3254 = vadd.f32 %v3147, %v3196
        %v3255 = vadd.f32 %v3148, %v3200
        %v3256 = vadd.f32 %v3149, %v3204
        %v3257 = vadd.f32 %v3150, %v3208
        %v3258 = vadd.f32 %v3151, %v3212
        %v3259 = vadd.f32 %v3152, %v3216
        %v3260 = vadd.f32 %v3153, %v3220
        %v3261 = vadd.f32 %v3154, %v3192
        %v3262 = vadd.f32 %v3155, %v3196
        %v3263 = vadd.f32 %v3156, %v3200
        %v3264 = vadd.f32 %v3157, %v3204
        %v3265 = vadd.f32 %v3158, %v3208
        %v3266 = vadd.f32 %v3159, %v3212
        %v3267 = vadd.f32 %v3160, %v3216
        %v3268 = vadd.f32 %v3161, %v3220
        %v3269 = vadd.f32 %v3162, %v3192
        %v3270 = vadd.f32 %v3163, %v3196
        %v3271 = vadd.f32 %v3164, %v3200
        %v3272 = vadd.f32 %v3165, %v3204
        %v3273 = vadd.f32 %v3166, %v3208
        %v3274 = vadd.f32 %v3167, %v3212
        %v3275 = vadd.f32 %v3168, %v3216
        %v3276 = vadd.f32 %v3169, %v3220
        %v3277 = vadd.f32 %v3170, %v3192
        %v3278 = vadd.f32 %v3171, %v3196
        %v3279 = vadd.f32 %v3172, %v3200
        %v3280 = vadd.f32 %v3173, %v3204
        %v3281 = vadd.f32 %v3174, %v3208
        %v3282 = vadd.f32 %v3175, %v3212
        %v3283 = vadd.f32 %v3176, %v3216
        %v3284 = vadd.f32 %v3177, %v3220
        %v3285 = vadd.f32 %v3178, %v3192
        %v3286 = vadd.f32 %v3179, %v3196
        %v3287 = vadd.f32 %v3180, %v3200
        %v3288 = vadd.f32 %v3181, %v3204
        %v3289 = vadd.f32 %v3182, %v3208
        %v3290 = vadd.f32 %v3183, %v3212
        %v3291 = vadd.f32 %v3184, %v3216
        %v3292 = vadd.f32 %v3185, %v3220
        %v3293 = vmul.f32 %v3229, 0.01
        %v3294 = vmul.f32 %v3230, 0.01
        %v3295 = vmul.f32 %v3231, 0.01
        %v3296 = vmul.f32 %v3232, 0.01
        %v3297 = vmul.f32 %v3233, 0.01
        %v3298 = vmul.f32 %v3234, 0.01
        %v3299 = vmul.f32 %v3235, 0.01
        %v3300 = vmul.f32 %v3236, 0.01
        %v3301 = vmul.f32 %v3237, 0.01
        %v3302 = vmul.f32 %v3238, 0.01
        %v3303 = vmul.f32 %v3239, 0.01
        %v3304 = vmul.f32 %v3240, 0.01
        %v3305 = vmul.f32 %v3241, 0.01
        %v3306 = vmul.f32 %v3242, 0.01
        %v3307 = vmul.f32 %v3243, 0.01
        %v3308 = vmul.f32 %v3244, 0.01
        %v3309 = vmul.f32 %v3245, 0.01
        %v3310 = vmul.f32 %v3246, 0.01
        %v3311 = vmul.f32 %v3247, 0.01
        %v3312 = vmul.f32 %v3248, 0.01
        %v3313 = vmul.f32 %v3249, 0.01
        %v3314 = vmul.f32 %v3250, 0.01
        %v3315 = vmul.f32 %v3251, 0.01
        %v3316 = vmul.f32 %v3252, 0.01
        %v3317 = vmul.f32 %v3253, 0.01
        %v3318 = vmul.f32 %v3254, 0.01
        %v3319 = vmul.f32 %v3255, 0.01
        %v3320 = vmul.f32 %v3256, 0.01
        %v3321 = vmul.f32 %v3257, 0.01
        %v3322 = vmul.f32 %v3258, 0.01
        %v3323 = vmul.f32 %v3259, 0.01
        %v3324 = vmul.f32 %v3260, 0.01
        %v3325 = vmul.f32 %v3261, 0.01
        %v3326 = vmul.f32 %v3262, 0.01
        %v3327 = vmul.f32 %v3263, 0.01
        %v3328 = vmul.f32 %v3264, 0.01
        %v3329 = vmul.f32 %v3265, 0.01
        %v3330 = vmul.f32 %v3266, 0.01
        %v3331 = vmul.f32 %v3267, 0.01
        %v3332 = vmul.f32 %v3268, 0.01
        %v3333 = vmul.f32 %v3269, 0.01
        %v3334 = vmul.f32 %v3270, 0.01
        %v3335 = vmul.f32 %v3271, 0.01
        %v3336 = vmul.f32 %v3272, 0.01
        %v3337 = vmul.f32 %v3273, 0.01
        %v3338 = vmul.f32 %v3274, 0.01
        %v3339 = vmul.f32 %v3275, 0.01
        %v3340 = vmul.f32 %v3276, 0.01
        %v3341 = vmul.f32 %v3277, 0.01
        %v3342 = vmul.f32 %v3278, 0.01
        %v3343 = vmul.f32 %v3279, 0.01
        %v3344 = vmul.f32 %v3280, 0.01
        %v3345 = vmul.f32 %v3281, 0.01
        %v3346 = vmul.f32 %v3282, 0.01
        %v3347 = vmul.f32 %v3283, 0.01
        %v3348 = vmul.f32 %v3284, 0.01
        %v3349 = vmul.f32 %v3285, 0.01
        %v3350 = vmul.f32 %v3286, 0.01
        %v3351 = vmul.f32 %v3287, 0.01
        %v3352 = vmul.f32 %v3288, 0.01
        %v3353 = vmul.f32 %v3289, 0.01
        %v3354 = vmul.f32 %v3290, 0.01
        %v3355 = vmul.f32 %v3291, 0.01
        %v3356 = vmul.f32 %v3292, 0.01
        %v3357 = vmax.f32 %v3229, %v3293
        %v3358 = vmax.f32 %v3230, %v3294
        %v3359 = vmax.f32 %v3231, %v3295
        %v3360 = vmax.f32 %v3232, %v3296
        %v3361 = vmax.f32 %v3233, %v3297
        %v3362 = vmax.f32 %v3234, %v3298
        %v3363 = vmax.f32 %v3235, %v3299
        %v3364 = vmax.f32 %v3236, %v3300
        %v3365 = vmax.f32 %v3237, %v3301
        %v3366 = vmax.f32 %v3238, %v3302
        %v3367 = vmax.f32 %v3239, %v3303
        %v3368 = vmax.f32 %v3240, %v3304
        %v3369 = vmax.f32 %v3241, %v3305
        %v3370 = vmax.f32 %v3242, %v3306
        %v3371 = vmax.f32 %v3243, %v3307
        %v3372 = vmax.f32 %v3244, %v3308
        %v3373 = vmax.f32 %v3245, %v3309
        %v3374 = vmax.f32 %v3246, %v3310
        %v3375 = vmax.f32 %v3247, %v3311
        %v3376 = vmax.f32 %v3248, %v3312
        %v3377 = vmax.f32 %v3249, %v3313
        %v3378 = vmax.f32 %v3250, %v3314
        %v3379 = vmax.f32 %v3251, %v3315
        %v3380 = vmax.f32 %v3252, %v3316
        %v3381 = vmax.f32 %v3253, %v3317
        %v3382 = vmax.f32 %v3254, %v3318
        %v3383 = vmax.f32 %v3255, %v3319
        %v3384 = vmax.f32 %v3256, %v3320
        %v3385 = vmax.f32 %v3257, %v3321
        %v3386 = vmax.f32 %v3258, %v3322
        %v3387 = vmax.f32 %v3259, %v3323
        %v3388 = vmax.f32 %v3260, %v3324
        %v3389 = vmax.f32 %v3261, %v3325
        %v3390 = vmax.f32 %v3262, %v3326
        %v3391 = vmax.f32 %v3263, %v3327
        %v3392 = vmax.f32 %v3264, %v3328
        %v3393 = vmax.f32 %v3265, %v3329
        %v3394 = vmax.f32 %v3266, %v3330
        %v3395 = vmax.f32 %v3267, %v3331
        %v3396 = vmax.f32 %v3268, %v3332
        %v3397 = vmax.f32 %v3269, %v3333
        %v3398 = vmax.f32 %v3270, %v3334
        %v3399 = vmax.f32 %v3271, %v3335
        %v3400 = vmax.f32 %v3272, %v3336
        %v3401 = vmax.f32 %v3273, %v3337
        %v3402 = vmax.f32 %v3274, %v3338
        %v3403 = vmax.f32 %v3275, %v3339
        %v3404 = vmax.f32 %v3276, %v3340
        %v3405 = vmax.f32 %v3277, %v3341
        %v3406 = vmax.f32 %v3278, %v3342
        %v3407 = vmax.f32 %v3279, %v3343
        %v3408 = vmax.f32 %v3280, %v3344
        %v3409 = vmax.f32 %v3281, %v3345
        %v3410 = vmax.f32 %v3282, %v3346
        %v3411 = vmax.f32 %v3283, %v3347
        %v3412 = vmax.f32 %v3284, %v3348
        %v3413 = vmax.f32 %v3285, %v3349
        %v3414 = vmax.f32 %v3286, %v3350
        %v3415 = vmax.f32 %v3287, %v3351
        %v3416 = vmax.f32 %v3288, %v3352
        %v3417 = vmax.f32 %v3289, %v3353
        %v3418 = vmax.f32 %v3290, %v3354
        %v3419 = vmax.f32 %v3291, %v3355
        %v3420 = vmax.f32 %v3292, %v3356
        %v3421 = vld [vmem:[%s7] sm:$0xff]
        %v3423 = vlaneseq
        %v3424 = vshrl.u32 %v3423, 7
        %v3425 = vsub.s32 0, %v3424
        %v3426 = vrot.slane %v3421, %v3425
        %v3427 = vlaneseq
        %v3428 = vshrl.u32 %v3427, 7
        %v3429 = vsub.s32 1, %v3428
        %v3430 = vrot.slane %v3421, %v3429
        %v3431 = vlaneseq
        %v3432 = vshrl.u32 %v3431, 7
        %v3433 = vsub.s32 2, %v3432
        %v3434 = vrot.slane %v3421, %v3433
        %v3435 = vlaneseq
        %v3436 = vshrl.u32 %v3435, 7
        %v3437 = vsub.s32 3, %v3436
        %v3438 = vrot.slane %v3421, %v3437
        %v3439 = vlaneseq
        %v3440 = vshrl.u32 %v3439, 7
        %v3441 = vsub.s32 4, %v3440
        %v3442 = vrot.slane %v3421, %v3441
        %v3443 = vlaneseq
        %v3444 = vshrl.u32 %v3443, 7
        %v3445 = vsub.s32 5, %v3444
        %v3446 = vrot.slane %v3421, %v3445
        %v3447 = vlaneseq
        %v3448 = vshrl.u32 %v3447, 7
        %v3449 = vsub.s32 6, %v3448
        %v3450 = vrot.slane %v3421, %v3449
        %v3451 = vlaneseq
        %v3452 = vshrl.u32 %v3451, 7
        %v3453 = vsub.s32 7, %v3452
        %v3454 = vrot.slane %v3421, %v3453
        %v3463 = vmul.f32 %v3357, %v3426
        %v3464 = vmul.f32 %v3358, %v3430
        %v3465 = vmul.f32 %v3359, %v3434
        %v3466 = vmul.f32 %v3360, %v3438
        %v3467 = vmul.f32 %v3361, %v3442
        %v3468 = vmul.f32 %v3362, %v3446
        %v3469 = vmul.f32 %v3363, %v3450
        %v3470 = vmul.f32 %v3364, %v3454
        %v3471 = vmul.f32 %v3365, %v3426
        %v3472 = vmul.f32 %v3366, %v3430
        %v3473 = vmul.f32 %v3367, %v3434
        %v3474 = vmul.f32 %v3368, %v3438
        %v3475 = vmul.f32 %v3369, %v3442
        %v3476 = vmul.f32 %v3370, %v3446
        %v3477 = vmul.f32 %v3371, %v3450
        %v3478 = vmul.f32 %v3372, %v3454
        %v3479 = vmul.f32 %v3373, %v3426
        %v3480 = vmul.f32 %v3374, %v3430
        %v3481 = vmul.f32 %v3375, %v3434
        %v3482 = vmul.f32 %v3376, %v3438
        %v3483 = vmul.f32 %v3377, %v3442
        %v3484 = vmul.f32 %v3378, %v3446
        %v3485 = vmul.f32 %v3379, %v3450
        %v3486 = vmul.f32 %v3380, %v3454
        %v3487 = vmul.f32 %v3381, %v3426
        %v3488 = vmul.f32 %v3382, %v3430
        %v3489 = vmul.f32 %v3383, %v3434
        %v3490 = vmul.f32 %v3384, %v3438
        %v3491 = vmul.f32 %v3385, %v3442
        %v3492 = vmul.f32 %v3386, %v3446
        %v3493 = vmul.f32 %v3387, %v3450
        %v3494 = vmul.f32 %v3388, %v3454
        %v3495 = vmul.f32 %v3389, %v3426
        %v3496 = vmul.f32 %v3390, %v3430
        %v3497 = vmul.f32 %v3391, %v3434
        %v3498 = vmul.f32 %v3392, %v3438
        %v3499 = vmul.f32 %v3393, %v3442
        %v3500 = vmul.f32 %v3394, %v3446
        %v3501 = vmul.f32 %v3395, %v3450
        %v3502 = vmul.f32 %v3396, %v3454
        %v3503 = vmul.f32 %v3397, %v3426
        %v3504 = vmul.f32 %v3398, %v3430
        %v3505 = vmul.f32 %v3399, %v3434
        %v3506 = vmul.f32 %v3400, %v3438
        %v3507 = vmul.f32 %v3401, %v3442
        %v3508 = vmul.f32 %v3402, %v3446
        %v3509 = vmul.f32 %v3403, %v3450
        %v3510 = vmul.f32 %v3404, %v3454
        %v3511 = vmul.f32 %v3405, %v3426
        %v3512 = vmul.f32 %v3406, %v3430
        %v3513 = vmul.f32 %v3407, %v3434
        %v3514 = vmul.f32 %v3408, %v3438
        %v3515 = vmul.f32 %v3409, %v3442
        %v3516 = vmul.f32 %v3410, %v3446
        %v3517 = vmul.f32 %v3411, %v3450
        %v3518 = vmul.f32 %v3412, %v3454
        %v3519 = vmul.f32 %v3413, %v3426
        %v3520 = vmul.f32 %v3414, %v3430
        %v3521 = vmul.f32 %v3415, %v3434
        %v3522 = vmul.f32 %v3416, %v3438
        %v3523 = vmul.f32 %v3417, %v3442
        %v3524 = vmul.f32 %v3418, %v3446
        %v3525 = vmul.f32 %v3419, %v3450
        %v3526 = vmul.f32 %v3420, %v3454
        %v3527 = vadd.f32 %v3463, %v3464
        %v3528 = vadd.f32 %v3527, %v3465
        %v3529 = vadd.f32 %v3528, %v3466
        %v3530 = vadd.f32 %v3529, %v3467
        %v3531 = vadd.f32 %v3530, %v3468
        %v3532 = vadd.f32 %v3531, %v3469
        %v3533 = vadd.f32 %v3532, %v3470
        %3534 = vadd.xlane.f32.xlu0 %v3533
        %v3535 = vpop.xlane.xlu0 %3534
        %v3536 = vadd.f32 %v3471, %v3472
        %v3537 = vadd.f32 %v3536, %v3473
        %v3538 = vadd.f32 %v3537, %v3474
        %v3539 = vadd.f32 %v3538, %v3475
        %v3540 = vadd.f32 %v3539, %v3476
        %v3541 = vadd.f32 %v3540, %v3477
        %v3542 = vadd.f32 %v3541, %v3478
        %3543 = vadd.xlane.f32.xlu0 %v3542
        %v3544 = vpop.xlane.xlu0 %3543
        %v3545 = vadd.f32 %v3479, %v3480
        %v3546 = vadd.f32 %v3545, %v3481
        %v3547 = vadd.f32 %v3546, %v3482
        %v3548 = vadd.f32 %v3547, %v3483
        %v3549 = vadd.f32 %v3548, %v3484
        %v3550 = vadd.f32 %v3549, %v3485
        %v3551 = vadd.f32 %v3550, %v3486
        %3552 = vadd.xlane.f32.xlu0 %v3551
        %v3553 = vpop.xlane.xlu0 %3552
        %v3554 = vadd.f32 %v3487, %v3488
        %v3555 = vadd.f32 %v3554, %v3489
        %v3556 = vadd.f32 %v3555, %v3490
        %v3557 = vadd.f32 %v3556, %v3491
        %v3558 = vadd.f32 %v3557, %v3492
        %v3559 = vadd.f32 %v3558, %v3493
        %v3560 = vadd.f32 %v3559, %v3494
        %3561 = vadd.xlane.f32.xlu0 %v3560
        %v3562 = vpop.xlane.xlu0 %3561
        %v3563 = vadd.f32 %v3495, %v3496
        %v3564 = vadd.f32 %v3563, %v3497
        %v3565 = vadd.f32 %v3564, %v3498
        %v3566 = vadd.f32 %v3565, %v3499
        %v3567 = vadd.f32 %v3566, %v3500
        %v3568 = vadd.f32 %v3567, %v3501
        %v3569 = vadd.f32 %v3568, %v3502
        %3570 = vadd.xlane.f32.xlu0 %v3569
        %v3571 = vpop.xlane.xlu0 %3570
        %v3572 = vadd.f32 %v3503, %v3504
        %v3573 = vadd.f32 %v3572, %v3505
        %v3574 = vadd.f32 %v3573, %v3506
        %v3575 = vadd.f32 %v3574, %v3507
        %v3576 = vadd.f32 %v3575, %v3508
        %v3577 = vadd.f32 %v3576, %v3509
        %v3578 = vadd.f32 %v3577, %v3510
        %3579 = vadd.xlane.f32.xlu0 %v3578
        %v3580 = vpop.xlane.xlu0 %3579
        %v3581 = vadd.f32 %v3511, %v3512
        %v3582 = vadd.f32 %v3581, %v3513
        %v3583 = vadd.f32 %v3582, %v3514
        %v3584 = vadd.f32 %v3583, %v3515
        %v3585 = vadd.f32 %v3584, %v3516
        %v3586 = vadd.f32 %v3585, %v3517
        %v3587 = vadd.f32 %v3586, %v3518
        %3588 = vadd.xlane.f32.xlu0 %v3587
        %v3589 = vpop.xlane.xlu0 %3588
        %v3590 = vadd.f32 %v3519, %v3520
        %v3591 = vadd.f32 %v3590, %v3521
        %v3592 = vadd.f32 %v3591, %v3522
        %v3593 = vadd.f32 %v3592, %v3523
        %v3594 = vadd.f32 %v3593, %v3524
        %v3595 = vadd.f32 %v3594, %v3525
        %v3596 = vadd.f32 %v3595, %v3526
        %3597 = vadd.xlane.f32.xlu0 %v3596
        %v3598 = vpop.xlane.xlu0 %3597
        %v3599 = vld [vmem:[#allocation2] sm:$0x1]
        %v3601 = vlaneseq
        %v3602 = vshrl.u32 %v3601, 7
        %v3603 = vsub.s32 0, %v3602
        %v3604 = vrot.slane %v3599, %v3603
        %v3606 = vadd.f32 %v3535, %v3604
        %v3607 = vadd.f32 %v3544, %v3604
        %v3608 = vadd.f32 %v3553, %v3604
        %v3609 = vadd.f32 %v3562, %v3604
        %v3610 = vadd.f32 %v3571, %v3604
        %v3611 = vadd.f32 %v3580, %v3604
        %v3612 = vadd.f32 %v3589, %v3604
        %v3613 = vadd.f32 %v3598, %v3604
        %vm3614 = vcmask 7168
        %3615 = vst.msk [vmem:[%s336] sm:$0xff] %vm3614, %v3606
        %3616 = vst.msk [vmem:[%s336 + $0x8] sm:$0xff] %vm3614, %v3607
        %3617 = vst.msk [vmem:[%s336 + $0x10] sm:$0xff] %vm3614, %v3608
        %3618 = vst.msk [vmem:[%s336 + $0x18] sm:$0xff] %vm3614, %v3609
        %3619 = vst.msk [vmem:[%s336 + $0x20] sm:$0xff] %vm3614, %v3610
        %3620 = vst.msk [vmem:[%s336 + $0x28] sm:$0xff] %vm3614, %v3611
        %3621 = vst.msk [vmem:[%s336 + $0x30] sm:$0xff] %vm3614, %v3612
        %3622 = vst.msk [vmem:[%s336 + $0x38] sm:$0xff] %vm3614, %v3613
        %s3623 = sand.u32 %s224, 1
        %s3624 = sand.u32 %s224, 1
        %s3625 = smul.addr %s3624, 64
        %s3626 = scalar_lea.vmem [#allocation3], %s3625
        // Predicated region
        $region57: #{adda_discriminator_forward.5} parent=55 // pred_check
          %p3627 = pneg %p234
        $region58: #{adda_discriminator_forward.5} parent=55 // pred_check_branch
          %3629 = sbr.rel (%p3627) target = $region60
        $region59: #{adda_discriminator_forward.5} parent=55 // pred_region
          %s3630 = smul.u32 8, %s22
          %s3631 = ssub.s32 25, %s3630
          %p3632 = scmp.lt.s32.totalorder %s3631, 8
          %s3633 = scalar_select %p3632, %s3631, 8
          %s3634 = smul.u32 128, %s3633
          %p3635 = scmp.ne.s32.totalorder 0, %s3634
          %s3636 = smul.addr %s3630, 8
          %s3637 = scalar_lea.vmem %s9, %s3636
          // Predicated region
          $region61: #{adda_discriminator_forward.5} parent=59 // pred_check
            %p3638 = pneg %p3635
          $region62: #{adda_discriminator_forward.5} parent=59 // pred_check_branch
            %3640 = sbr.rel (%p3638) target = $region64
          $region63: #{adda_discriminator_forward.5} parent=59 // pred_region
            // Predicated region
            $region65: #{adda_discriminator_forward.5} parent=63 // pred_check
              _
            $region66: #{adda_discriminator_forward.5} parent=63 // pred_check_branch
              %3642 = sbr.rel (0) target = $region68
            $region67: #{adda_discriminator_forward.5} parent=63 // pred_region
              // Predicated region
              $region87: #{adda_discriminator_forward.5} parent=67 // pred_check
                _
              $region88: #{adda_discriminator_forward.5} parent=67 // pred_check_branch
                %3705 = sbr.rel (0) target = $region90
              $region89: #{adda_discriminator_forward.5} parent=67 // pred_region
                %s3706 = sshrl.u32 %s3633, 3
                // While loop
                $region91: #{adda_discriminator_forward.5} parent=89 // loop_pre_header
                  _
                $region92: #{adda_discriminator_forward.5} parent=89 // loop_header
                  %s3708 = sphi 0, %s3710
                  %p3709 = scmp.ge.s32.totalorder %s3708, %s3706
                  %s3713 = sphi 0, %s3734
                  %s3714 = sphi %s3626, %s3737
                  %s3715 = sphi %s3637, %s3738
                $region93: #{adda_discriminator_forward.5} parent=89 // loop_header_branch
                  %3712 = sbr.rel (%p3709) target = $region97
                $region94: #{adda_discriminator_forward.5} parent=89 // loop_body
                  %v3716 = vld [vmem:[%s3714] sm:$0xff]
                  %3717 = vst [vmem:[%s3715] sm:$0xff] %v3716
                  %v3718 = vld [vmem:[%s3714 + $0x8] sm:$0xff]
                  %3719 = vst [vmem:[%s3715 + $0x8] sm:$0xff] %v3718
                  %v3720 = vld [vmem:[%s3714 + $0x10] sm:$0xff]
                  %3721 = vst [vmem:[%s3715 + $0x10] sm:$0xff] %v3720
                  %v3722 = vld [vmem:[%s3714 + $0x18] sm:$0xff]
                  %3723 = vst [vmem:[%s3715 + $0x18] sm:$0xff] %v3722
                  %v3724 = vld [vmem:[%s3714 + $0x20] sm:$0xff]
                  %3725 = vst [vmem:[%s3715 + $0x20] sm:$0xff] %v3724
                  %v3726 = vld [vmem:[%s3714 + $0x28] sm:$0xff]
                  %3727 = vst [vmem:[%s3715 + $0x28] sm:$0xff] %v3726
                  %v3728 = vld [vmem:[%s3714 + $0x30] sm:$0xff]
                  %3729 = vst [vmem:[%s3715 + $0x30] sm:$0xff] %v3728
                  %v3730 = vld [vmem:[%s3714 + $0x38] sm:$0xff]
                  %3731 = vst [vmem:[%s3715 + $0x38] sm:$0xff] %v3730
                  %s3732 = sadd.s32 1, %s3713
                  %p3733 = scmp.ge.s32.totalorder %s3732, %s3706
                  %s3734 = scalar_select %p3733, 0, %s3732
                  %s3735 = smul.u32 %s3734, 64
                  %s3736 = smul.u32 %s3734, 64
                  %s3737 = scalar_lea.vmem %s3626, %s3735 [#allocation3]
                  %s3738 = scalar_lea.vmem %s3637, %s3736
                $region95: #{adda_discriminator_forward.5} parent=89 // loop_footer
                  %s3710 = sadd.s32 %s3708, 1
                $region96: #{adda_discriminator_forward.5} parent=89 // loop_footer_branch
                  %3707 = sbr.rel target = $region92
                $region97: #{adda_discriminator_forward.5} parent=89 // loop_exit
                  _
                %s3739 = sshrl.u32 %s3633, 3
                %s3740 = sand.u32 %s3633, 7
                %s3741 = smul.u32 %s3739, 8
                %s3742 = smul.u32 8, %s3741
                %s3743 = scalar_lea.vmem %s3626, %s3742 [#allocation3]
                %s3744 = smul.u32 8, %s3741
                %s3745 = scalar_lea.vmem %s3637, %s3744
                // While loop
                $region98: #{adda_discriminator_forward.5} parent=89 // loop_pre_header
                  _
                $region99: #{adda_discriminator_forward.5} parent=89 // loop_header
                  %s3747 = sphi 0, %s3749
                  %p3748 = scmp.ge.s32.totalorder %s3747, %s3740
                  %s3752 = sphi 0, %s3759
                  %s3753 = sphi %s3743, %s3762
                  %s3754 = sphi %s3745, %s3763
                $region100: #{adda_discriminator_forward.5} parent=89 // loop_header_branch
                  %3751 = sbr.rel (%p3748) target = $region104
                $region101: #{adda_discriminator_forward.5} parent=89 // loop_body
                  %v3755 = vld [vmem:[%s3753] sm:$0xff]
                  %3756 = vst [vmem:[%s3754] sm:$0xff] %v3755
                  %s3757 = sadd.s32 1, %s3752
                  %p3758 = scmp.ge.s32.totalorder %s3757, %s3740
                  %s3759 = scalar_select %p3758, 0, %s3757
                  %s3760 = smul.u32 %s3759, 8
                  %s3761 = smul.u32 %s3759, 8
                  %s3762 = scalar_lea.vmem %s3743, %s3760 [#allocation3]
                  %s3763 = scalar_lea.vmem %s3745, %s3761
                $region102: #{adda_discriminator_forward.5} parent=89 // loop_footer
                  %s3749 = sadd.s32 %s3747, 1
                $region103: #{adda_discriminator_forward.5} parent=89 // loop_footer_branch
                  %3746 = sbr.rel target = $region99
                $region104: #{adda_discriminator_forward.5} parent=89 // loop_exit
                  _
              $region90: #{adda_discriminator_forward.5} parent=67 // pred_fallthru
                _
              // Predicated region
              $region105: #{adda_discriminator_forward.5} parent=67 // pred_check
                _
              $region106: #{adda_discriminator_forward.5} parent=67 // pred_check_branch
                %3765 = sbr.rel target = $region108
              $region107: #{adda_discriminator_forward.5} parent=67 // pred_region
                _
              $region108: #{adda_discriminator_forward.5} parent=67 // pred_fallthru
                _
            $region68: #{adda_discriminator_forward.5} parent=63 // pred_fallthru
              _
            // Predicated region
            $region69: #{adda_discriminator_forward.5} parent=63 // pred_check
              _
            $region70: #{adda_discriminator_forward.5} parent=63 // pred_check_branch
              %3644 = sbr.rel target = $region72
            $region71: #{adda_discriminator_forward.5} parent=63 // pred_region
              %s3646 = sshrl.u32 %s3633, 3
              // While loop
              $region73: #{adda_discriminator_forward.5} parent=71 // loop_pre_header
                _
              $region74: #{adda_discriminator_forward.5} parent=71 // loop_header
                %s3648 = sphi 0, %s3650
                %p3649 = scmp.ge.s32.totalorder %s3648, %s3646
                %s3653 = sphi 0, %s3674
                %s3654 = sphi %s3626, %s3677
                %s3655 = sphi %s3637, %s3678
              $region75: #{adda_discriminator_forward.5} parent=71 // loop_header_branch
                %3652 = sbr.rel (%p3649) target = $region79
              $region76: #{adda_discriminator_forward.5} parent=71 // loop_body
                %v3656 = vld [vmem:[%s3654] sm:$0xff]
                %3657 = vst [vmem:[%s3655] sm:$0xff] %v3656
                %v3658 = vld [vmem:[%s3654 + $0x8] sm:$0xff]
                %3659 = vst [vmem:[%s3655 + $0x8] sm:$0xff] %v3658
                %v3660 = vld [vmem:[%s3654 + $0x10] sm:$0xff]
                %3661 = vst [vmem:[%s3655 + $0x10] sm:$0xff] %v3660
                %v3662 = vld [vmem:[%s3654 + $0x18] sm:$0xff]
                %3663 = vst [vmem:[%s3655 + $0x18] sm:$0xff] %v3662
                %v3664 = vld [vmem:[%s3654 + $0x20] sm:$0xff]
                %3665 = vst [vmem:[%s3655 + $0x20] sm:$0xff] %v3664
                %v3666 = vld [vmem:[%s3654 + $0x28] sm:$0xff]
                %3667 = vst [vmem:[%s3655 + $0x28] sm:$0xff] %v3666
                %v3668 = vld [vmem:[%s3654 + $0x30] sm:$0xff]
                %3669 = vst [vmem:[%s3655 + $0x30] sm:$0xff] %v3668
                %v3670 = vld [vmem:[%s3654 + $0x38] sm:$0xff]
                %3671 = vst [vmem:[%s3655 + $0x38] sm:$0xff] %v3670
                %s3672 = sadd.s32 1, %s3653
                %p3673 = scmp.ge.s32.totalorder %s3672, %s3646
                %s3674 = scalar_select %p3673, 0, %s3672
                %s3675 = smul.u32 %s3674, 64
                %s3676 = smul.u32 %s3674, 64
                %s3677 = scalar_lea.vmem %s3626, %s3675 [#allocation3]
                %s3678 = scalar_lea.vmem %s3637, %s3676
              $region77: #{adda_discriminator_forward.5} parent=71 // loop_footer
                %s3650 = sadd.s32 %s3648, 1
              $region78: #{adda_discriminator_forward.5} parent=71 // loop_footer_branch
                %3647 = sbr.rel target = $region74
              $region79: #{adda_discriminator_forward.5} parent=71 // loop_exit
                _
              %s3679 = sshrl.u32 %s3633, 3
              %s3680 = sand.u32 %s3633, 7
              %s3681 = smul.u32 %s3679, 8
              %s3682 = smul.u32 8, %s3681
              %s3683 = scalar_lea.vmem %s3626, %s3682 [#allocation3]
              %s3684 = smul.u32 8, %s3681
              %s3685 = scalar_lea.vmem %s3637, %s3684
              // While loop
              $region80: #{adda_discriminator_forward.5} parent=71 // loop_pre_header
                _
              $region81: #{adda_discriminator_forward.5} parent=71 // loop_header
                %s3687 = sphi 0, %s3689
                %p3688 = scmp.ge.s32.totalorder %s3687, %s3680
                %s3692 = sphi 0, %s3699
                %s3693 = sphi %s3683, %s3702
                %s3694 = sphi %s3685, %s3703
              $region82: #{adda_discriminator_forward.5} parent=71 // loop_header_branch
                %3691 = sbr.rel (%p3688) target = $region86
              $region83: #{adda_discriminator_forward.5} parent=71 // loop_body
                %v3695 = vld [vmem:[%s3693] sm:$0xff]
                %3696 = vst [vmem:[%s3694] sm:$0xff] %v3695
                %s3697 = sadd.s32 1, %s3692
                %p3698 = scmp.ge.s32.totalorder %s3697, %s3680
                %s3699 = scalar_select %p3698, 0, %s3697
                %s3700 = smul.u32 %s3699, 8
                %s3701 = smul.u32 %s3699, 8
                %s3702 = scalar_lea.vmem %s3683, %s3700 [#allocation3]
                %s3703 = scalar_lea.vmem %s3685, %s3701
              $region84: #{adda_discriminator_forward.5} parent=71 // loop_footer
                %s3689 = sadd.s32 %s3687, 1
              $region85: #{adda_discriminator_forward.5} parent=71 // loop_footer_branch
                %3686 = sbr.rel target = $region81
              $region86: #{adda_discriminator_forward.5} parent=71 // loop_exit
                _
            $region72: #{adda_discriminator_forward.5} parent=63 // pred_fallthru
              _
          $region64: #{adda_discriminator_forward.5} parent=59 // pred_fallthru
            _
          %3766 = vnop
        $region60: #{adda_discriminator_forward.5} parent=55 // pred_fallthru
          _
      $region56: #{adda_discriminator_forward.5} parent=5 // pred_fallthru
        _
      %p3767 = scmp.le.s32.totalorder 2, %s17
      // Predicated region
      $region109: #{adda_discriminator_forward.5} parent=5 // pred_check
        %p3768 = pneg %p3767
      $region110: #{adda_discriminator_forward.5} parent=5 // pred_check_branch
        %3770 = sbr.rel (%p3768) target = $region112
      $region111: #{adda_discriminator_forward.5} parent=5 // pred_region
        %s3771 = ssub.s32 %s17, 2
        // Predicated region
        $region113: #{adda_discriminator_forward.5} parent=111 // pred_check
          %p3772 = pneg %p240
        $region114: #{adda_discriminator_forward.5} parent=111 // pred_check_branch
          %3774 = sbr.rel (%p3772) target = $region116
        $region115: #{adda_discriminator_forward.5} parent=111 // pred_region
          %s3775 = sand.u32 %s225, 1
          %s3776 = sand.u32 %s225, 1
          %s3777 = smul.addr %s3776, 64
          %s3778 = scalar_lea.vmem [#allocation3], %s3777
        $region116: #{adda_discriminator_forward.5} parent=111 // pred_fallthru
          _
      $region112: #{adda_discriminator_forward.5} parent=5 // pred_fallthru
        _
    $region6: #{adda_discriminator_forward.5} parent=1 // loop_footer
      %s21 = sadd.s32 1, %s17
    $region7: #{adda_discriminator_forward.5} parent=1 // loop_footer_branch
      %16 = sbr.rel target = $region3
    $region8: #{adda_discriminator_forward.5} parent=1 // loop_exit
      _

// kernel: adda_discriminator_forward.4
$region0: #{adda_discriminator_forward.4}
  #allocation0 [shape = 'u32[]', space=smem, size = 0x4, offset = 0x4, fixed_abs, tag = 'smem constant byte address 0x4 - core index']
  #allocation1 [shape = 'u32[144,128]{1,0:T(1,128)}', space=vmem, size = 0x12000, scoped, tag = 'internal scratch']
  %s0 = inlined_call_operand.hbm [shape: f32[200,128], index: 0, kind: input, shape index: {}]
  %s1 = inlined_call_operand.vmem [shape: bf16[128,512], index: 1, kind: input, shape index: {}]
  %s2 = inlined_call_operand.vmem [shape: f32[1,512], index: 2, kind: input, shape index: {}]
  %s3 = inlined_call_operand.vmem [shape: f32[2,512], index: 3, kind: input, shape index: {}]
  %s4 = inlined_call_operand.hbm [shape: bf16[512,1024], index: 4, kind: input, shape index: {}]
  %s5 = inlined_call_operand.hbm [shape: f32[1,1024], index: 5, kind: input, shape index: {}]
  %s6 = inlined_call_operand.vmem [shape: f32[4,2,1024], index: 6, kind: output, shape index: {}]
  %s7 = sld [smem:[#allocation0]]
  $region69: #{adda_discriminator_forward.4} parent=0
    _
  %s9 = ssub.s32 1, %s7
  %s10 = scalar_select 0, %s9, %s7
  $region1: #{adda_discriminator_forward.4} parent=0
    #allocation2 [shape = 'u8[65536]{0}', space=vmem, size = 0x10000, scoped, tag = 'input window, operand 0']
    #allocation3 [shape = 's32[2]{0}', space=sflag, size = 0x8, scoped, tag = 'scoped memory for adda_discriminator_forward.4']
    #allocation4 [shape = 'u8[1048576]{0}', space=vmem, size = 0x100000, scoped, tag = 'input window, operand 4, single buffered']
    #allocation5 [shape = 's32[1]{0}', space=sflag, size = 0x4, scoped, tag = 'scoped memory for adda_discriminator_forward.4']
    #allocation6 [shape = 'u8[4096]{0}', space=vmem, size = 0x1000, scoped, tag = 'input window, operand 5, single buffered']
    %11 = vsyncpa [#allocation3], 0
    %s12 = scalar_lea.sflag [#allocation3], 1
    %13 = vsyncpa %s12, 0
    %14 = vsyncpa [#allocation5], 0
    loop: start=0, step=1, limit=6
    $region2: #{adda_discriminator_forward.4} parent=1 // loop_pre_header
      _
    $region3: #{adda_discriminator_forward.4} parent=1 // loop_header
      %s16 = sphi 0, %s20
      %p17 = scmp.ge.s32.totalorder %s16, 6
      %s26 = sphi 0, %s28
      %s29 = sphi 0, %s26
      %s30 = sphi 0, %s29
      %s46 = sphi 0, %s30
      %s50 = sphi 0, %s50
      %s52 = sphi 0, %s50
      %s53 = sphi 0, %s52
      %s67 = sphi 0, %s53
      %s71 = sphi 0, %s71
      %s73 = sphi 0, %s71
      %s74 = sphi 0, %s73
      %s88 = sphi 0, %s74
      %s92 = sphi 0, %s92
      %s94 = sphi 0, %s92
      %s95 = sphi 0, %s94
      %s109 = sphi 0, %s95
      %s113 = sphi 0, %s113
      %s115 = sphi 0, %s113
      %s116 = sphi 0, %s115
      %s130 = sphi 0, %s116
      %s134 = sphi 0, %s134
      %s136 = sphi 0, %s134
      %s137 = sphi 0, %s136
      %s151 = sphi 0, %s137
      %s157 = sphi 0, %s159
      %s160 = sphi 0, %s157
      %s161 = sphi 0, %s160
      %s177 = sphi 0, %s161
    $region4: #{adda_discriminator_forward.4} parent=1 // loop_header_branch
      %19 = sbr.rel (%p17) target = $region8
    $region5: #{adda_discriminator_forward.4} parent=1 // loop_body
      %s21 = ssub.s32 %s16, 1
      %s22 = ssub.s32 %s16, 2
      %s23 = sadd.s32 %s16, 1
      %s24 = ssub.s32 %s16, %s23
      %p25 = scmp.eq.s32.totalorder %s24, 0
      %s27 = sadd.s32 %s26, 1
      %s28 = scalar_select %p25, %s26, %s27
      %p31 = pneg %p25
      %p32 = scmp.eq.s32.totalorder %s16, 3
      %p33 = por %p31, %p32
      %p34 = scmp.ne.s32.totalorder %s26, %s29
      %p35 = scmp.eq.s32.totalorder %s16, 0
      %p36 = por %p34, %p35
      %p37 = scmp.ne.s32.totalorder %s26, %s29
      %p38 = scmp.eq.s32.totalorder %s21, 3
      %p39 = por %p37, %p38
      %p40 = scmp.ne.s32.totalorder %s29, %s30
      %p41 = scmp.eq.s32.totalorder %s21, 0
      %p42 = por %p40, %p41
      %p43 = scmp.ne.s32.totalorder %s29, %s30
      %p44 = scmp.eq.s32.totalorder %s22, 3
      %p45 = por %p43, %p44
      %p47 = scmp.ne.s32.totalorder %s30, %s46
      %p48 = scmp.eq.s32.totalorder %s22, 0
      %p49 = por %p47, %p48
      %s51 = sadd.s32 %s50, 1
      %p54 = scmp.eq.s32.totalorder %s16, 3
      %p55 = scmp.ne.s32.totalorder %s50, %s52
      %p56 = scmp.eq.s32.totalorder %s16, 0
      %p57 = por %p55, %p56
      %p58 = scmp.ne.s32.totalorder %s50, %s52
      %p59 = scmp.eq.s32.totalorder %s21, 3
      %p60 = por %p58, %p59
      %p61 = scmp.ne.s32.totalorder %s52, %s53
      %p62 = scmp.eq.s32.totalorder %s21, 0
      %p63 = por %p61, %p62
      %p64 = scmp.ne.s32.totalorder %s52, %s53
      %p65 = scmp.eq.s32.totalorder %s22, 3
      %p66 = por %p64, %p65
      %p68 = scmp.ne.s32.totalorder %s53, %s67
      %p69 = scmp.eq.s32.totalorder %s22, 0
      %p70 = por %p68, %p69
      %s72 = sadd.s32 %s71, 1
      %p75 = scmp.eq.s32.totalorder %s16, 3
      %p76 = scmp.ne.s32.totalorder %s71, %s73
      %p77 = scmp.eq.s32.totalorder %s16, 0
      %p78 = por %p76, %p77
      %p79 = scmp.ne.s32.totalorder %s71, %s73
      %p80 = scmp.eq.s32.totalorder %s21, 3
      %p81 = por %p79, %p80
      %p82 = scmp.ne.s32.totalorder %s73, %s74
      %p83 = scmp.eq.s32.totalorder %s21, 0
      %p84 = por %p82, %p83
      %p85 = scmp.ne.s32.totalorder %s73, %s74
      %p86 = scmp.eq.s32.totalorder %s22, 3
      %p87 = por %p85, %p86
      %p89 = scmp.ne.s32.totalorder %s74, %s88
      %p90 = scmp.eq.s32.totalorder %s22, 0
      %p91 = por %p89, %p90
      %s93 = sadd.s32 %s92, 1
      %p96 = scmp.eq.s32.totalorder %s16, 3
      %p97 = scmp.ne.s32.totalorder %s92, %s94
      %p98 = scmp.eq.s32.totalorder %s16, 0
      %p99 = por %p97, %p98
      %p100 = scmp.ne.s32.totalorder %s92, %s94
      %p101 = scmp.eq.s32.totalorder %s21, 3
      %p102 = por %p100, %p101
      %p103 = scmp.ne.s32.totalorder %s94, %s95
      %p104 = scmp.eq.s32.totalorder %s21, 0
      %p105 = por %p103, %p104
      %p106 = scmp.ne.s32.totalorder %s94, %s95
      %p107 = scmp.eq.s32.totalorder %s22, 3
      %p108 = por %p106, %p107
      %p110 = scmp.ne.s32.totalorder %s95, %s109
      %p111 = scmp.eq.s32.totalorder %s22, 0
      %p112 = por %p110, %p111
      %s114 = sadd.s32 %s113, 1
      %p117 = scmp.eq.s32.totalorder %s16, 3
      %p118 = scmp.ne.s32.totalorder %s113, %s115
      %p119 = scmp.eq.s32.totalorder %s16, 0
      %p120 = por %p118, %p119
      %p121 = scmp.ne.s32.totalorder %s113, %s115
      %p122 = scmp.eq.s32.totalorder %s21, 3
      %p123 = por %p121, %p122
      %p124 = scmp.ne.s32.totalorder %s115, %s116
      %p125 = scmp.eq.s32.totalorder %s21, 0
      %p126 = por %p124, %p125
      %p127 = scmp.ne.s32.totalorder %s115, %s116
      %p128 = scmp.eq.s32.totalorder %s22, 3
      %p129 = por %p127, %p128
      %p131 = scmp.ne.s32.totalorder %s116, %s130
      %p132 = scmp.eq.s32.totalorder %s22, 0
      %p133 = por %p131, %p132
      %s135 = sadd.s32 %s134, 1
      %p138 = scmp.eq.s32.totalorder %s16, 3
      %p139 = scmp.ne.s32.totalorder %s134, %s136
      %p140 = scmp.eq.s32.totalorder %s16, 0
      %p141 = por %p139, %p140
      %p142 = scmp.ne.s32.totalorder %s134, %s136
      %p143 = scmp.eq.s32.totalorder %s21, 3
      %p144 = por %p142, %p143
      %p145 = scmp.ne.s32.totalorder %s136, %s137
      %p146 = scmp.eq.s32.totalorder %s21, 0
      %p147 = por %p145, %p146
      %p148 = scmp.ne.s32.totalorder %s136, %s137
      %p149 = scmp.eq.s32.totalorder %s22, 3
      %p150 = por %p148, %p149
      %p152 = scmp.ne.s32.totalorder %s137, %s151
      %p153 = scmp.eq.s32.totalorder %s22, 0
      %p154 = por %p152, %p153
      %s155 = ssub.s32 %s16, %s23
      %p156 = scmp.eq.s32.totalorder %s155, 0
      %s158 = sadd.s32 %s157, 1
      %s159 = scalar_select %p156, %s157, %s158
      %p162 = pneg %p156
      %p163 = scmp.eq.s32.totalorder %s16, 3
      %p164 = por %p162, %p163
      %p165 = scmp.ne.s32.totalorder %s157, %s160
      %p166 = scmp.eq.s32.totalorder %s16, 0
      %p167 = por %p165, %p166
      %p168 = scmp.ne.s32.totalorder %s157, %s160
      %p169 = scmp.eq.s32.totalorder %s21, 3
      %p170 = por %p168, %p169
      %p171 = scmp.ne.s32.totalorder %s160, %s161
      %p172 = scmp.eq.s32.totalorder %s21, 0
      %p173 = por %p171, %p172
      %p174 = scmp.ne.s32.totalorder %s160, %s161
      %p175 = scmp.eq.s32.totalorder %s22, 3
      %p176 = por %p174, %p175
      %p178 = scmp.ne.s32.totalorder %s161, %s177
      %p179 = scmp.eq.s32.totalorder %s22, 0
      %p180 = por %p178, %p179
      %p181 = scmp.le.s32.totalorder 1, %s16
      %p182 = scmp.lt.s32.totalorder %s16, 5
      %p183 = pnand %p181, %p182
      %p184 = pneg %p183
      // Predicated region
      $region9: #{adda_discriminator_forward.4} parent=5 // pred_check
        _
      $region10: #{adda_discriminator_forward.4} parent=5 // pred_check_branch
        %186 = sbr.rel (%p183) target = $region12
      $region11: #{adda_discriminator_forward.4} parent=5 // pred_region
        %s187 = ssub.s32 %s16, 1
        // Predicated region
        $region13: #{adda_discriminator_forward.4} parent=11 // pred_check
          %p188 = pneg %p63
        $region14: #{adda_discriminator_forward.4} parent=11 // pred_check_branch
          %190 = sbr.rel (%p188) target = $region16
        $region15: #{adda_discriminator_forward.4} parent=11 // pred_region
          _
        $region16: #{adda_discriminator_forward.4} parent=11 // pred_fallthru
          _
        // Predicated region
        $region17: #{adda_discriminator_forward.4} parent=11 // pred_check
          %p191 = pneg %p84
        $region18: #{adda_discriminator_forward.4} parent=11 // pred_check_branch
          %193 = sbr.rel (%p191) target = $region20
        $region19: #{adda_discriminator_forward.4} parent=11 // pred_region
          _
        $region20: #{adda_discriminator_forward.4} parent=11 // pred_fallthru
          _
        // Predicated region
        $region21: #{adda_discriminator_forward.4} parent=11 // pred_check
          %p194 = pneg %p105
        $region22: #{adda_discriminator_forward.4} parent=11 // pred_check_branch
          %196 = sbr.rel (%p194) target = $region24
        $region23: #{adda_discriminator_forward.4} parent=11 // pred_region
          _
        $region24: #{adda_discriminator_forward.4} parent=11 // pred_fallthru
          _
        // Predicated region
        $region25: #{adda_discriminator_forward.4} parent=11 // pred_check
          %p197 = pneg %p126
        $region26: #{adda_discriminator_forward.4} parent=11 // pred_check_branch
          %199 = sbr.rel (%p197) target = $region28
        $region27: #{adda_discriminator_forward.4} parent=11 // pred_region
          %s201 = ssub.s32 32768, 32768
          %202 = vsyncadd [#allocation5], %s201
          %s203 = sshll.u32 [#allocation4], 4
          %s204 = int_to_ptr.vmem [resolvable:$true] %s203
          %209 = dma.hbm_to_vmem [thread:$0]  %s4, 32768, %s204, [#allocation5], 512, 512, 32
        $region28: #{adda_discriminator_forward.4} parent=11 // pred_fallthru
          _
        // Predicated region
        $region29: #{adda_discriminator_forward.4} parent=11 // pred_check
          %p210 = pneg %p147
        $region30: #{adda_discriminator_forward.4} parent=11 // pred_check_branch
          %212 = sbr.rel (%p210) target = $region32
        $region31: #{adda_discriminator_forward.4} parent=11 // pred_region
          %s214 = ssub.s32 128, 128
          %215 = vsyncadd [#allocation5], %s214
          %s217 = sshll.u32 [#allocation6], 4
          %s218 = int_to_ptr.vmem [resolvable:$true] %s217
          %220 = dma.hbm_to_vmem [thread:$0]  %s5, 128, %s218, [#allocation5]
        $region32: #{adda_discriminator_forward.4} parent=11 // pred_fallthru
          _
      $region12: #{adda_discriminator_forward.4} parent=5 // pred_fallthru
        _
      %p221 = scmp.lt.s32.totalorder %s16, 4
      // Predicated region
      $region33: #{adda_discriminator_forward.4} parent=5 // pred_check
        %p222 = pneg %p221
      $region34: #{adda_discriminator_forward.4} parent=5 // pred_check_branch
        %224 = sbr.rel (%p222) target = $region36
      $region35: #{adda_discriminator_forward.4} parent=5 // pred_region
        // Predicated region
        $region37: #{adda_discriminator_forward.4} parent=35 // pred_check
          %p225 = pneg %p36
        $region38: #{adda_discriminator_forward.4} parent=35 // pred_check_branch
          %227 = sbr.rel (%p225) target = $region40
        $region39: #{adda_discriminator_forward.4} parent=35 // pred_region
          %s228 = sand.u32 %s26, 1
          %s229 = scalar_lea.sflag [#allocation3], %s228
          %s230 = sand.u32 %s26, 1
          %s231 = smul.addr %s230, 64
          %s232 = scalar_lea.vmem [#allocation2], %s231
          %s233 = smul.u32 8, %s16
          %s234 = ssub.s32 25, %s233
          %p235 = scmp.lt.s32.totalorder %s234, 8
          %s236 = scalar_select %p235, %s234, 8
          %s237 = smul.u32 128, %s236
          %s239 = ssub.s32 1024, %s237
          %240 = vsyncadd %s229, %s239
          %p241 = scmp.ne.s32.totalorder 0, %s237
          %s242 = smul.addr %s233, 128
          %s243 = scalar_lea.hbm %s0, %s242
          %s244 = smul.u32 8, %s236
          %s245 = sshll.u32 %s232, 4
          %s246 = int_to_ptr.vmem [resolvable:$true] %s245
          %s247 = sshll.u32 %s244, 4
          %251 = dma.hbm_to_vmem [thread:$0]  (%p241), %s243, %s247, %s246, %s229, 128, 128, 8
        $region40: #{adda_discriminator_forward.4} parent=35 // pred_fallthru
          _
      $region36: #{adda_discriminator_forward.4} parent=5 // pred_fallthru
        _
      %p252 = scmp.le.s32.totalorder 1, %s16
      %p253 = scmp.lt.s32.totalorder %s16, 5
      %p254 = pnand %p252, %p253
      %p255 = pneg %p254
      // Predicated region
      $region41: #{adda_discriminator_forward.4} parent=5 // pred_check
        _
      $region42: #{adda_discriminator_forward.4} parent=5 // pred_check_branch
        %257 = sbr.rel (%p254) target = $region44
      $region43: #{adda_discriminator_forward.4} parent=5 // pred_region
        %s258 = ssub.s32 %s16, 1
        %s259 = sand.u32 %s29, 1
        %s260 = scalar_lea.sflag [#allocation3], %s259
        %s261 = sand.u32 %s29, 1
        %s262 = smul.addr %s261, 64
        %s263 = scalar_lea.vmem [#allocation2], %s262
        // Predicated region
        $region45: #{adda_discriminator_forward.4} parent=43 // pred_check
          %p264 = pneg %p42
        $region46: #{adda_discriminator_forward.4} parent=43 // pred_check_branch
          %266 = sbr.rel (%p264) target = $region48
        $region47: #{adda_discriminator_forward.4} parent=43 // pred_region
          %267 = dma.done %s260, 1024
        $region48: #{adda_discriminator_forward.4} parent=43 // pred_fallthru
          _
        // Predicated region
        $region49: #{adda_discriminator_forward.4} parent=43 // pred_check
          %p268 = pneg %p126
        $region50: #{adda_discriminator_forward.4} parent=43 // pred_check_branch
          %270 = sbr.rel (%p268) target = $region52
        $region51: #{adda_discriminator_forward.4} parent=43 // pred_region
          %271 = dma.done [#allocation5], 32768
        $region52: #{adda_discriminator_forward.4} parent=43 // pred_fallthru
          _
        // Predicated region
        $region53: #{adda_discriminator_forward.4} parent=43 // pred_check
          %p272 = pneg %p147
        $region54: #{adda_discriminator_forward.4} parent=43 // pred_check_branch
          %274 = sbr.rel (%p272) target = $region56
        $region55: #{adda_discriminator_forward.4} parent=43 // pred_region
          %275 = dma.done [#allocation5], 128
        $region56: #{adda_discriminator_forward.4} parent=43 // pred_fallthru
          _
        %s276 = sand.u32 %s29, 1
        %s277 = scalar_lea.sflag [#allocation3], %s276
        %s278 = sand.u32 %s29, 1
        %s279 = smul.addr %s278, 64
        %s280 = scalar_lea.vmem [#allocation2], %s279
        %p281 = pneg %p42
        %p282 = pneg %p39
        %p283 = pneg %p63
        %p284 = pneg %p60
        %p285 = pneg %p84
        %p286 = pneg %p81
        %p287 = pneg %p105
        %p288 = pneg %p102
        %p289 = pneg %p126
        %p290 = pneg %p123
        %p291 = pneg %p147
        %p292 = pneg %p144
        %p293 = pneg %p173
        %p294 = pneg %p170
        %p295 = scmp.lt.s32.totalorder %s21, 3
        %s296 = scalar_select %p295, %s21, 3
        %s297 = smul.addr %s296, 8
        %s298 = smul.addr %s297, 2
        %s299 = scalar_lea.vmem %s6, %s298
        %s300 = smul.u32 8, %s21
        %s301 = ssub.s32 25, %s300
        %p302 = scmp.lt.s32.totalorder %s301, 8
        %s303 = scalar_select %p302, %s301, 8
        %s304 = smul.u32 128, %s303
        %p305 = scmp.lt.s32.totalorder %s21, 3
        %s306 = scalar_select %p305, %s21, 3
        %s307 = smul.addr %s306, 8
        %s308 = smul.addr %s307, 2
        %s309 = scalar_lea.vmem %s6, %s308
        %v311 = vld [vmem:[%s263] sm:$0xff]
        %v312 = vld [vmem:[%s263 + $0x8] sm:$0xff]
        %v313 = vld [vmem:[%s263 + $0x10] sm:$0xff]
        %v314 = vld [vmem:[%s263 + $0x18] sm:$0xff]
        %v315 = vld [vmem:[%s263 + $0x20] sm:$0xff]
        %v316 = vld [vmem:[%s263 + $0x28] sm:$0xff]
        %v317 = vld [vmem:[%s263 + $0x30] sm:$0xff]
        %v318 = vld [vmem:[%s263 + $0x38] sm:$0xff]
        %v319 = vpack.c.bf16 %v312, %v311
        %v320 = vpack.c.bf16 %v314, %v313
        %v321 = vpack.c.bf16 %v316, %v315
        %v322 = vpack.c.bf16 %v318, %v317
        %v323 = vld [vmem:[%s1] sm:$0xff]
        %v324 = vld [vmem:[%s1 + $0x8] sm:$0xff]
        %v325 = vld [vmem:[%s1 + $0x10] sm:$0xff]
        %v326 = vld [vmem:[%s1 + $0x18] sm:$0xff]
        %v327 = vld [vmem:[%s1 + $0x20] sm:$0xff]
        %v328 = vld [vmem:[%s1 + $0x28] sm:$0xff]
        %v329 = vld [vmem:[%s1 + $0x30] sm:$0xff]
        %v330 = vld [vmem:[%s1 + $0x38] sm:$0xff]
        %v331 = vld [vmem:[%s1 + $0x40] sm:$0xff]
        %v332 = vld [vmem:[%s1 + $0x48] sm:$0xff]
        %v333 = vld [vmem:[%s1 + $0x50] sm:$0xff]
        %v334 = vld [vmem:[%s1 + $0x58] sm:$0xff]
        %v335 = vld [vmem:[%s1 + $0x60] sm:$0xff]
        %v336 = vld [vmem:[%s1 + $0x68] sm:$0xff]
        %v337 = vld [vmem:[%s1 + $0x70] sm:$0xff]
        %v338 = vld [vmem:[%s1 + $0x78] sm:$0xff]
        %v339 = vld [vmem:[%s1 + $0x80] sm:$0xff]
        %v340 = vld [vmem:[%s1 + $0x88] sm:$0xff]
        %v341 = vld [vmem:[%s1 + $0x90] sm:$0xff]
        %v342 = vld [vmem:[%s1 + $0x98] sm:$0xff]
        %v343 = vld [vmem:[%s1 + $0xa0] sm:$0xff]
        %v344 = vld [vmem:[%s1 + $0xa8] sm:$0xff]
        %v345 = vld [vmem:[%s1 + $0xb0] sm:$0xff]
        %v346 = vld [vmem:[%s1 + $0xb8] sm:$0xff]
        %v347 = vld [vmem:[%s1 + $0xc0] sm:$0xff]
        %v348 = vld [vmem:[%s1 + $0xc8] sm:$0xff]
        %v349 = vld [vmem:[%s1 + $0xd0] sm:$0xff]
        %v350 = vld [vmem:[%s1 + $0xd8] sm:$0xff]
        %v351 = vld [vmem:[%s1 + $0xe0] sm:$0xff]
        %v352 = vld [vmem:[%s1 + $0xe8] sm:$0xff]
        %v353 = vld [vmem:[%s1 + $0xf0] sm:$0xff]
        %v354 = vld [vmem:[%s1 + $0xf8] sm:$0xff]
        %v355 = vld [vmem:[%s2] sm:$0xf]
        %v357 = vlaneseq
        %v358 = vshrl.u32 %v357, 7
        %v359 = vsub.s32 0, %v358
        %v360 = vrot.slane %v355, %v359
        %v361 = vlaneseq
        %v362 = vshrl.u32 %v361, 7
        %v363 = vsub.s32 1, %v362
        %v364 = vrot.slane %v355, %v363
        %v365 = vlaneseq
        %v366 = vshrl.u32 %v365, 7
        %v367 = vsub.s32 2, %v366
        %v368 = vrot.slane %v355, %v367
        %v369 = vlaneseq
        %v370 = vshrl.u32 %v369, 7
        %v371 = vsub.s32 3, %v370
        %v372 = vrot.slane %v355, %v371
        %v409 = vunpack.c.l.b16 %v323
        %v410 = vunpack.c.h.b16 %v323
        %v411 = vunpack.c.l.b16 %v324
        %v412 = vunpack.c.h.b16 %v324
        %v413 = vunpack.c.l.b16 %v325
        %v414 = vunpack.c.h.b16 %v325
        %v415 = vunpack.c.l.b16 %v326
        %v416 = vunpack.c.h.b16 %v326
        %v417 = vunpack.c.l.b16 %v327
        %v418 = vunpack.c.h.b16 %v327
        %v419 = vunpack.c.l.b16 %v328
        %v420 = vunpack.c.h.b16 %v328
        %v421 = vunpack.c.l.b16 %v329
        %v422 = vunpack.c.h.b16 %v329
        %v423 = vunpack.c.l.b16 %v330
        %v424 = vunpack.c.h.b16 %v330
        %v425 = vunpack.c.l.b16 %v331
        %v426 = vunpack.c.h.b16 %v331
        %v427 = vunpack.c.l.b16 %v332
        %v428 = vunpack.c.h.b16 %v332
        %v429 = vunpack.c.l.b16 %v333
        %v430 = vunpack.c.h.b16 %v333
        %v431 = vunpack.c.l.b16 %v334
        %v432 = vunpack.c.h.b16 %v334
        %v433 = vunpack.c.l.b16 %v335
        %v434 = vunpack.c.h.b16 %v335
        %v435 = vunpack.c.l.b16 %v336
        %v436 = vunpack.c.h.b16 %v336
        %v437 = vunpack.c.l.b16 %v337
        %v438 = vunpack.c.h.b16 %v337
        %v439 = vunpack.c.l.b16 %v338
        %v440 = vunpack.c.h.b16 %v338
        %v441 = vunpack.c.l.b16 %v339
        %v442 = vunpack.c.h.b16 %v339
        %v443 = vunpack.c.l.b16 %v340
        %v444 = vunpack.c.h.b16 %v340
        %v445 = vunpack.c.l.b16 %v341
        %v446 = vunpack.c.h.b16 %v341
        %v447 = vunpack.c.l.b16 %v342
        %v448 = vunpack.c.h.b16 %v342
        %v449 = vunpack.c.l.b16 %v343
        %v450 = vunpack.c.h.b16 %v343
        %v451 = vunpack.c.l.b16 %v344
        %v452 = vunpack.c.h.b16 %v344
        %v453 = vunpack.c.l.b16 %v345
        %v454 = vunpack.c.h.b16 %v345
        %v455 = vunpack.c.l.b16 %v346
        %v456 = vunpack.c.h.b16 %v346
        %v457 = vunpack.c.l.b16 %v347
        %v458 = vunpack.c.h.b16 %v347
        %v459 = vunpack.c.l.b16 %v348
        %v460 = vunpack.c.h.b16 %v348
        %v461 = vunpack.c.l.b16 %v349
        %v462 = vunpack.c.h.b16 %v349
        %v463 = vunpack.c.l.b16 %v350
        %v464 = vunpack.c.h.b16 %v350
        %v465 = vunpack.c.l.b16 %v351
        %v466 = vunpack.c.h.b16 %v351
        %v467 = vunpack.c.l.b16 %v352
        %v468 = vunpack.c.h.b16 %v352
        %v469 = vunpack.c.l.b16 %v353
        %v470 = vunpack.c.h.b16 %v353
        %v471 = vunpack.c.l.b16 %v354
        %v472 = vunpack.c.h.b16 %v354
        %v473 = vpack.c.b16 %v413, %v409
        %v474 = vpack.c.b16 %v414, %v410
        %v475 = vpack.c.b16 %v415, %v411
        %v476 = vpack.c.b16 %v416, %v412
        %v477 = vpack.c.b16 %v421, %v417
        %v478 = vpack.c.b16 %v422, %v418
        %v479 = vpack.c.b16 %v423, %v419
        %v480 = vpack.c.b16 %v424, %v420
        %v481 = vpack.c.b16 %v429, %v425
        %v482 = vpack.c.b16 %v430, %v426
        %v483 = vpack.c.b16 %v431, %v427
        %v484 = vpack.c.b16 %v432, %v428
        %v485 = vpack.c.b16 %v437, %v433
        %v486 = vpack.c.b16 %v438, %v434
        %v487 = vpack.c.b16 %v439, %v435
        %v488 = vpack.c.b16 %v440, %v436
        %v489 = vpack.c.b16 %v445, %v441
        %v490 = vpack.c.b16 %v446, %v442
        %v491 = vpack.c.b16 %v447, %v443
        %v492 = vpack.c.b16 %v448, %v444
        %v493 = vpack.c.b16 %v453, %v449
        %v494 = vpack.c.b16 %v454, %v450
        %v495 = vpack.c.b16 %v455, %v451
        %v496 = vpack.c.b16 %v456, %v452
        %v497 = vpack.c.b16 %v461, %v457
        %v498 = vpack.c.b16 %v462, %v458
        %v499 = vpack.c.b16 %v463, %v459
        %v500 = vpack.c.b16 %v464, %v460
        %v501 = vpack.c.b16 %v469, %v465
        %v502 = vpack.c.b16 %v470, %v466
        %v503 = vpack.c.b16 %v471, %v467
        %v504 = vpack.c.b16 %v472, %v468
        %537 = vmatprep.subr.bf16.mxu0 %v474
        %538 = vmatpush1.bf16.msra.mxu0 %v473
        %539 = vmatprep.subr.bf16.mxu0 %v478
        %540 = vmatpush1.bf16.msra.mxu0 %v477
        %541 = vmatprep.subr.bf16.mxu0 %v482
        %542 = vmatpush1.bf16.msra.mxu0 %v481
        %543 = vmatprep.subr.bf16.mxu0 %v486
        %544 = vmatpush1.bf16.msra.mxu0 %v485
        %545 = vmatprep.subr.bf16.mxu0 %v490
        %546 = vmatpush1.bf16.msra.mxu0 %v489
        %547 = vmatprep.subr.bf16.mxu0 %v494
        %548 = vmatpush1.bf16.msra.mxu0 %v493
        %549 = vmatprep.subr.bf16.mxu0 %v498
        %550 = vmatpush1.bf16.msra.mxu0 %v497
        %551 = vmatprep.subr.bf16.mxu0 %v502
        %552 = vmatpush1.bf16.msra.mxu0 %v501
        %553 = vmatprep.subr.bf16.mxu0 0
        %554 = vmatpush1.bf16.msra.mxu0 0
        %555 = vmatprep.subr.bf16.mxu0 0
        %556 = vmatpush1.bf16.msra.mxu0 0
        %557 = vmatprep.subr.bf16.mxu0 0
        %558 = vmatpush1.bf16.msra.mxu0 0
        %559 = vmatprep.subr.bf16.mxu0 0
        %560 = vmatpush1.bf16.msra.mxu0 0
        %561 = vmatprep.subr.bf16.mxu0 0
        %562 = vmatpush1.bf16.msra.mxu0 0
        %563 = vmatprep.subr.bf16.mxu0 0
        %564 = vmatpush1.bf16.msra.mxu0 0
        %565 = vmatprep.subr.bf16.mxu0 0
        %566 = vmatpush1.bf16.msra.mxu0 0
        %567 = vmatprep.subr.bf16.mxu0 0
        %568 = vmatpush1.bf16.msra.mxu0 0
        %569 = vmatprep.mubr.bf16.mxu0 0
        %570 = vmatmul.mubr.bf16.gmra.mrb[0].mxu0 %v319
        %v571 = vpop.f32.mrb[0].mxu0
        %v572 = vadd.f32 %v360, %v571
        %v573 = vpop.f32.mrb[0].mxu0
        %v574 = vadd.f32 %v364, %v573
        %v575 = vpop.f32.mrb[0].mxu0
        %v576 = vadd.f32 %v360, %v575
        %v577 = vpop.f32.mrb[0].mxu0
        %v578 = vadd.f32 %v364, %v577
        %579 = vmatprep.mubr.bf16.mxu0 0
        %580 = vmatmul.mubr.bf16.gmra.mrb[0].mxu0 %v320
        %v581 = vpop.f32.mrb[0].mxu0
        %v582 = vadd.f32 %v360, %v581
        %v583 = vpop.f32.mrb[0].mxu0
        %v584 = vadd.f32 %v364, %v583
        %v585 = vpop.f32.mrb[0].mxu0
        %v586 = vadd.f32 %v360, %v585
        %v587 = vpop.f32.mrb[0].mxu0
        %v588 = vadd.f32 %v364, %v587
        %589 = vmatprep.mubr.bf16.mxu0 0
        %590 = vmatmul.mubr.bf16.gmra.mrb[0].mxu0 %v321
        %v591 = vpop.f32.mrb[0].mxu0
        %v592 = vadd.f32 %v360, %v591
        %v593 = vpop.f32.mrb[0].mxu0
        %v594 = vadd.f32 %v364, %v593
        %v595 = vpop.f32.mrb[0].mxu0
        %v596 = vadd.f32 %v360, %v595
        %v597 = vpop.f32.mrb[0].mxu0
        %v598 = vadd.f32 %v364, %v597
        %599 = vmatprep.mubr.bf16.mxu0 0
        %600 = vmatmul.mubr.bf16.gmra.mrb[0].mxu0 %v322
        %v601 = vpop.f32.mrb[0].mxu0
        %v602 = vadd.f32 %v360, %v601
        %v603 = vpop.f32.mrb[0].mxu0
        %v604 = vadd.f32 %v364, %v603
        %v605 = vpop.f32.mrb[0].mxu0
        %v606 = vadd.f32 %v360, %v605
        %v607 = vpop.f32.mrb[0].mxu0
        %v608 = vadd.f32 %v364, %v607
        %609 = vdwg.mxu0
        %610 = vmatprep.subr.bf16.mxu0 %v476
        %611 = vmatpush1.bf16.msra.mxu0 %v475
        %612 = vmatprep.subr.bf16.mxu0 %v480
        %613 = vmatpush1.bf16.msra.mxu0 %v479
        %614 = vmatprep.subr.bf16.mxu0 %v484
        %615 = vmatpush1.bf16.msra.mxu0 %v483
        %616 = vmatprep.subr.bf16.mxu0 %v488
        %617 = vmatpush1.bf16.msra.mxu0 %v487
        %618 = vmatprep.subr.bf16.mxu0 %v492
        %619 = vmatpush1.bf16.msra.mxu0 %v491
        %620 = vmatprep.subr.bf16.mxu0 %v496
        %621 = vmatpush1.bf16.msra.mxu0 %v495
        %622 = vmatprep.subr.bf16.mxu0 %v500
        %623 = vmatpush1.bf16.msra.mxu0 %v499
        %624 = vmatprep.subr.bf16.mxu0 %v504
        %625 = vmatpush1.bf16.msra.mxu0 %v503
        %626 = vmatprep.subr.bf16.mxu0 0
        %627 = vmatpush1.bf16.msra.mxu0 0
        %628 = vmatprep.subr.bf16.mxu0 0
        %629 = vmatpush1.bf16.msra.mxu0 0
        %630 = vmatprep.subr.bf16.mxu0 0
        %631 = vmatpush1.bf16.msra.mxu0 0
        %632 = vmatprep.subr.bf16.mxu0 0
        %633 = vmatpush1.bf16.msra.mxu0 0
        %634 = vmatprep.subr.bf16.mxu0 0
        %635 = vmatpush1.bf16.msra.mxu0 0
        %636 = vmatprep.subr.bf16.mxu0 0
        %637 = vmatpush1.bf16.msra.mxu0 0
        %638 = vmatprep.subr.bf16.mxu0 0
        %639 = vmatpush1.bf16.msra.mxu0 0
        %640 = vmatprep.subr.bf16.mxu0 0
        %641 = vmatpush1.bf16.msra.mxu0 0
        %642 = vmatprep.mubr.bf16.mxu0 0
        %643 = vmatmul.mubr.bf16.gmra.mrb[0].mxu0 %v319
        %v644 = vpop.f32.mrb[0].mxu0
        %v645 = vadd.f32 %v368, %v644
        %v646 = vpop.f32.mrb[0].mxu0
        %v647 = vadd.f32 %v372, %v646
        %v648 = vpop.f32.mrb[0].mxu0
        %v649 = vadd.f32 %v368, %v648
        %v650 = vpop.f32.mrb[0].mxu0
        %v651 = vadd.f32 %v372, %v650
        %652 = vmatprep.mubr.bf16.mxu0 0
        %653 = vmatmul.mubr.bf16.gmra.mrb[0].mxu0 %v320
        %v654 = vpop.f32.mrb[0].mxu0
        %v655 = vadd.f32 %v368, %v654
        %v656 = vpop.f32.mrb[0].mxu0
        %v657 = vadd.f32 %v372, %v656
        %v658 = vpop.f32.mrb[0].mxu0
        %v659 = vadd.f32 %v368, %v658
        %v660 = vpop.f32.mrb[0].mxu0
        %v661 = vadd.f32 %v372, %v660
        %662 = vmatprep.mubr.bf16.mxu0 0
        %663 = vmatmul.mubr.bf16.gmra.mrb[0].mxu0 %v321
        %v664 = vpop.f32.mrb[0].mxu0
        %v665 = vadd.f32 %v368, %v664
        %v666 = vpop.f32.mrb[0].mxu0
        %v667 = vadd.f32 %v372, %v666
        %v668 = vpop.f32.mrb[0].mxu0
        %v669 = vadd.f32 %v368, %v668
        %v670 = vpop.f32.mrb[0].mxu0
        %v671 = vadd.f32 %v372, %v670
        %672 = vmatprep.mubr.bf16.mxu0 0
        %673 = vmatmul.mubr.bf16.gmra.mrb[0].mxu0 %v322
        %v674 = vpop.f32.mrb[0].mxu0
        %v675 = vadd.f32 %v368, %v674
        %v676 = vpop.f32.mrb[0].mxu0
        %v677 = vadd.f32 %v372, %v676
        %v678 = vpop.f32.mrb[0].mxu0
        %v679 = vadd.f32 %v368, %v678
        %v680 = vpop.f32.mrb[0].mxu0
        %v681 = vadd.f32 %v372, %v680
        %682 = vdwg.mxu0
        %v683 = vld [vmem:[%s3] ss:$2 sm:$0xf]
        %v685 = vlaneseq
        %v686 = vshrl.u32 %v685, 7
        %v687 = vsub.s32 0, %v686
        %v688 = vrot.slane %v683, %v687
        %v689 = vlaneseq
        %v690 = vshrl.u32 %v689, 7
        %v691 = vsub.s32 1, %v690
        %v692 = vrot.slane %v683, %v691
        %v693 = vlaneseq
        %v694 = vshrl.u32 %v693, 7
        %v695 = vsub.s32 2, %v694
        %v696 = vrot.slane %v683, %v695
        %v697 = vlaneseq
        %v698 = vshrl.u32 %v697, 7
        %v699 = vsub.s32 3, %v698
        %v700 = vrot.slane %v683, %v699
        %v705 = vmul.f32 %v572, %v688
        %v706 = vmul.f32 %v574, %v692
        %v707 = vmul.f32 %v645, %v696
        %v708 = vmul.f32 %v647, %v700
        %v709 = vmul.f32 %v576, %v688
        %v710 = vmul.f32 %v578, %v692
        %v711 = vmul.f32 %v649, %v696
        %v712 = vmul.f32 %v651, %v700
        %v713 = vmul.f32 %v582, %v688
        %v714 = vmul.f32 %v584, %v692
        %v715 = vmul.f32 %v655, %v696
        %v716 = vmul.f32 %v657, %v700
        %v717 = vmul.f32 %v586, %v688
        %v718 = vmul.f32 %v588, %v692
        %v719 = vmul.f32 %v659, %v696
        %v720 = vmul.f32 %v661, %v700
        %v721 = vmul.f32 %v592, %v688
        %v722 = vmul.f32 %v594, %v692
        %v723 = vmul.f32 %v665, %v696
        %v724 = vmul.f32 %v667, %v700
        %v725 = vmul.f32 %v596, %v688
        %v726 = vmul.f32 %v598, %v692
        %v727 = vmul.f32 %v669, %v696
        %v728 = vmul.f32 %v671, %v700
        %v729 = vmul.f32 %v602, %v688
        %v730 = vmul.f32 %v604, %v692
        %v731 = vmul.f32 %v675, %v696
        %v732 = vmul.f32 %v677, %v700
        %v733 = vmul.f32 %v606, %v688
        %v734 = vmul.f32 %v608, %v692
        %v735 = vmul.f32 %v679, %v696
        %v736 = vmul.f32 %v681, %v700
        %s737 = scalar_lea.vmem %s3, 1
        %v738 = vld [vmem:[%s737] ss:$2 sm:$0xf]
        %v740 = vlaneseq
        %v741 = vshrl.u32 %v740, 7
        %v742 = vsub.s32 0, %v741
        %v743 = vrot.slane %v738, %v742
        %v744 = vlaneseq
        %v745 = vshrl.u32 %v744, 7
        %v746 = vsub.s32 1, %v745
        %v747 = vrot.slane %v738, %v746
        %v748 = vlaneseq
        %v749 = vshrl.u32 %v748, 7
        %v750 = vsub.s32 2, %v749
        %v751 = vrot.slane %v738, %v750
        %v752 = vlaneseq
        %v753 = vshrl.u32 %v752, 7
        %v754 = vsub.s32 3, %v753
        %v755 = vrot.slane %v738, %v754
        %v760 = vadd.f32 %v705, %v743
        %v761 = vadd.f32 %v706, %v747
        %v762 = vadd.f32 %v707, %v751
        %v763 = vadd.f32 %v708, %v755
        %v764 = vadd.f32 %v709, %v743
        %v765 = vadd.f32 %v710, %v747
        %v766 = vadd.f32 %v711, %v751
        %v767 = vadd.f32 %v712, %v755
        %v768 = vadd.f32 %v713, %v743
        %v769 = vadd.f32 %v714, %v747
        %v770 = vadd.f32 %v715, %v751
        %v771 = vadd.f32 %v716, %v755
        %v772 = vadd.f32 %v717, %v743
        %v773 = vadd.f32 %v718, %v747
        %v774 = vadd.f32 %v719, %v751
        %v775 = vadd.f32 %v720, %v755
        %v776 = vadd.f32 %v721, %v743
        %v777 = vadd.f32 %v722, %v747
        %v778 = vadd.f32 %v723, %v751
        %v779 = vadd.f32 %v724, %v755
        %v780 = vadd.f32 %v725, %v743
        %v781 = vadd.f32 %v726, %v747
        %v782 = vadd.f32 %v727, %v751
        %v783 = vadd.f32 %v728, %v755
        %v784 = vadd.f32 %v729, %v743
        %v785 = vadd.f32 %v730, %v747
        %v786 = vadd.f32 %v731, %v751
        %v787 = vadd.f32 %v732, %v755
        %v788 = vadd.f32 %v733, %v743
        %v789 = vadd.f32 %v734, %v747
        %v790 = vadd.f32 %v735, %v751
        %v791 = vadd.f32 %v736, %v755
        %v792 = vmul.f32 %v760, 0.01
        %v793 = vmul.f32 %v761, 0.01
        %v794 = vmul.f32 %v762, 0.01
        %v795 = vmul.f32 %v763, 0.01
        %v796 = vmul.f32 %v764, 0.01
        %v797 = vmul.f32 %v765, 0.01
        %v798 = vmul.f32 %v766, 0.01
        %v799 = vmul.f32 %v767, 0.01
        %v800 = vmul.f32 %v768, 0.01
        %v801 = vmul.f32 %v769, 0.01
        %v802 = vmul.f32 %v770, 0.01
        %v803 = vmul.f32 %v771, 0.01
        %v804 = vmul.f32 %v772, 0.01
        %v805 = vmul.f32 %v773, 0.01
        %v806 = vmul.f32 %v774, 0.01
        %v807 = vmul.f32 %v775, 0.01
        %v808 = vmul.f32 %v776, 0.01
        %v809 = vmul.f32 %v777, 0.01
        %v810 = vmul.f32 %v778, 0.01
        %v811 = vmul.f32 %v779, 0.01
        %v812 = vmul.f32 %v780, 0.01
        %v813 = vmul.f32 %v781, 0.01
        %v814 = vmul.f32 %v782, 0.01
        %v815 = vmul.f32 %v783, 0.01
        %v816 = vmul.f32 %v784, 0.01
        %v817 = vmul.f32 %v785, 0.01
        %v818 = vmul.f32 %v786, 0.01
        %v819 = vmul.f32 %v787, 0.01
        %v820 = vmul.f32 %v788, 0.01
        %v821 = vmul.f32 %v789, 0.01
        %v822 = vmul.f32 %v790, 0.01
        %v823 = vmul.f32 %v791, 0.01
        %v824 = vmax.f32 %v760, %v792
        %v825 = vmax.f32 %v761, %v793
        %v826 = vmax.f32 %v762, %v794
        %v827 = vmax.f32 %v763, %v795
        %v828 = vmax.f32 %v764, %v796
        %v829 = vmax.f32 %v765, %v797
        %v830 = vmax.f32 %v766, %v798
        %v831 = vmax.f32 %v767, %v799
        %v832 = vmax.f32 %v768, %v800
        %v833 = vmax.f32 %v769, %v801
        %v834 = vmax.f32 %v770, %v802
        %v835 = vmax.f32 %v771, %v803
        %v836 = vmax.f32 %v772, %v804
        %v837 = vmax.f32 %v773, %v805
        %v838 = vmax.f32 %v774, %v806
        %v839 = vmax.f32 %v775, %v807
        %v840 = vmax.f32 %v776, %v808
        %v841 = vmax.f32 %v777, %v809
        %v842 = vmax.f32 %v778, %v810
        %v843 = vmax.f32 %v779, %v811
        %v844 = vmax.f32 %v780, %v812
        %v845 = vmax.f32 %v781, %v813
        %v846 = vmax.f32 %v782, %v814
        %v847 = vmax.f32 %v783, %v815
        %v848 = vmax.f32 %v784, %v816
        %v849 = vmax.f32 %v785, %v817
        %v850 = vmax.f32 %v786, %v818
        %v851 = vmax.f32 %v787, %v819
        %v852 = vmax.f32 %v788, %v820
        %v853 = vmax.f32 %v789, %v821
        %v854 = vmax.f32 %v790, %v822
        %v855 = vmax.f32 %v791, %v823
        %v856 = vpack.c.bf16 %v828, %v824
        %v857 = vpack.c.bf16 %v829, %v825
        %v858 = vpack.c.bf16 %v830, %v826
        %v859 = vpack.c.bf16 %v831, %v827
        %v860 = vpack.c.bf16 %v836, %v832
        %v861 = vpack.c.bf16 %v837, %v833
        %v862 = vpack.c.bf16 %v838, %v834
        %v863 = vpack.c.bf16 %v839, %v835
        %v864 = vpack.c.bf16 %v844, %v840
        %v865 = vpack.c.bf16 %v845, %v841
        %v866 = vpack.c.bf16 %v846, %v842
        %v867 = vpack.c.bf16 %v847, %v843
        %v868 = vpack.c.bf16 %v852, %v848
        %v869 = vpack.c.bf16 %v853, %v849
        %v870 = vpack.c.bf16 %v854, %v850
        %v871 = vpack.c.bf16 %v855, %v851
        %v872 = vld [vmem:[#allocation4] sm:$0xff]
        %v873 = vld [vmem:[#allocation4 + $0x8] sm:$0xff]
        %v874 = vld [vmem:[#allocation4 + $0x10] sm:$0xff]
        %v875 = vld [vmem:[#allocation4 + $0x18] sm:$0xff]
        %v876 = vld [vmem:[#allocation4 + $0x20] sm:$0xff]
        %v877 = vld [vmem:[#allocation4 + $0x28] sm:$0xff]
        %v878 = vld [vmem:[#allocation4 + $0x30] sm:$0xff]
        %v879 = vld [vmem:[#allocation4 + $0x38] sm:$0xff]
        %v880 = vld [vmem:[#allocation4 + $0x40] sm:$0xff]
        %v881 = vld [vmem:[#allocation4 + $0x48] sm:$0xff]
        %v882 = vld [vmem:[#allocation4 + $0x50] sm:$0xff]
        %v883 = vld [vmem:[#allocation4 + $0x58] sm:$0xff]
        %v884 = vld [vmem:[#allocation4 + $0x60] sm:$0xff]
        %v885 = vld [vmem:[#allocation4 + $0x68] sm:$0xff]
        %v886 = vld [vmem:[#allocation4 + $0x70] sm:$0xff]
        %v887 = vld [vmem:[#allocation4 + $0x78] sm:$0xff]
        %v888 = vld [vmem:[#allocation4 + $0x80] sm:$0xff]
        %v889 = vld [vmem:[#allocation4 + $0x88] sm:$0xff]
        %v890 = vld [vmem:[#allocation4 + $0x90] sm:$0xff]
        %v891 = vld [vmem:[#allocation4 + $0x98] sm:$0xff]
        %v892 = vld [vmem:[#allocation4 + $0xa0] sm:$0xff]
        %v893 = vld [vmem:[#allocation4 + $0xa8] sm:$0xff]
        %v894 = vld [vmem:[#allocation4 + $0xb0] sm:$0xff]
        %v895 = vld [vmem:[#allocation4 + $0xb8] sm:$0xff]
        %v896 = vld [vmem:[#allocation4 + $0xc0] sm:$0xff]
        %v897 = vld [vmem:[#allocation4 + $0xc8] sm:$0xff]
        %v898 = vld [vmem:[#allocation4 + $0xd0] sm:$0xff]
        %v899 = vld [vmem:[#allocation4 + $0xd8] sm:$0xff]
        %v900 = vld [vmem:[#allocation4 + $0xe0] sm:$0xff]
        %v901 = vld [vmem:[#allocation4 + $0xe8] sm:$0xff]
        %v902 = vld [vmem:[#allocation4 + $0xf0] sm:$0xff]
        %v903 = vld [vmem:[#allocation4 + $0xf8] sm:$0xff]
        %v904 = vld [vmem:[#allocation4 + $0x100] sm:$0xff]
        %v905 = vld [vmem:[#allocation4 + $0x108] sm:$0xff]
        %v906 = vld [vmem:[#allocation4 + $0x110] sm:$0xff]
        %v907 = vld [vmem:[#allocation4 + $0x118] sm:$0xff]
        %v908 = vld [vmem:[#allocation4 + $0x120] sm:$0xff]
        %v909 = vld [vmem:[#allocation4 + $0x128] sm:$0xff]
        %v910 = vld [vmem:[#allocation4 + $0x130] sm:$0xff]
        %v911 = vld [vmem:[#allocation4 + $0x138] sm:$0xff]
        %v912 = vld [vmem:[#allocation4 + $0x140] sm:$0xff]
        %v913 = vld [vmem:[#allocation4 + $0x148] sm:$0xff]
        %v914 = vld [vmem:[#allocation4 + $0x150] sm:$0xff]
        %v915 = vld [vmem:[#allocation4 + $0x158] sm:$0xff]
        %v916 = vld [vmem:[#allocation4 + $0x160] sm:$0xff]
        %v917 = vld [vmem:[#allocation4 + $0x168] sm:$0xff]
        %v918 = vld [vmem:[#allocation4 + $0x170] sm:$0xff]
        %v919 = vld [vmem:[#allocation4 + $0x178] sm:$0xff]
        %v920 = vld [vmem:[#allocation4 + $0x180] sm:$0xff]
        %v921 = vld [vmem:[#allocation4 + $0x188] sm:$0xff]
        %v922 = vld [vmem:[#allocation4 + $0x190] sm:$0xff]
        %v923 = vld [vmem:[#allocation4 + $0x198] sm:$0xff]
        %v924 = vld [vmem:[#allocation4 + $0x1a0] sm:$0xff]
        %v925 = vld [vmem:[#allocation4 + $0x1a8] sm:$0xff]
        %v926 = vld [vmem:[#allocation4 + $0x1b0] sm:$0xff]
        %v927 = vld [vmem:[#allocation4 + $0x1b8] sm:$0xff]
        %v928 = vld [vmem:[#allocation4 + $0x1c0] sm:$0xff]
        %v929 = vld [vmem:[#allocation4 + $0x1c8] sm:$0xff]
        %v930 = vld [vmem:[#allocation4 + $0x1d0] sm:$0xff]
        %v931 = vld [vmem:[#allocation4 + $0x1d8] sm:$0xff]
        %v932 = vld [vmem:[#allocation4 + $0x1e0] sm:$0xff]
        %v933 = vld [vmem:[#allocation4 + $0x1e8] sm:$0xff]
        %v934 = vld [vmem:[#allocation4 + $0x1f0] sm:$0xff]
        %v935 = vld [vmem:[#allocation4 + $0x1f8] sm:$0xff]
        %v936 = vld [vmem:[#allocation4 + $0x200] sm:$0xff]
        %v937 = vld [vmem:[#allocation4 + $0x208] sm:$0xff]
        %v938 = vld [vmem:[#allocation4 + $0x210] sm:$0xff]
        %v939 = vld [vmem:[#allocation4 + $0x218] sm:$0xff]
        %v940 = vld [vmem:[#allocation4 + $0x220] sm:$0xff]
        %v941 = vld [vmem:[#allocation4 + $0x228] sm:$0xff]
        %v942 = vld [vmem:[#allocation4 + $0x230] sm:$0xff]
        %v943 = vld [vmem:[#allocation4 + $0x238] sm:$0xff]
        %v944 = vld [vmem:[#allocation4 + $0x240] sm:$0xff]
        %v945 = vld [vmem:[#allocation4 + $0x248] sm:$0xff]
        %v946 = vld [vmem:[#allocation4 + $0x250] sm:$0xff]
        %v947 = vld [vmem:[#allocation4 + $0x258] sm:$0xff]
        %v948 = vld [vmem:[#allocation4 + $0x260] sm:$0xff]
        %v949 = vld [vmem:[#allocation4 + $0x268] sm:$0xff]
        %v950 = vld [vmem:[#allocation4 + $0x270] sm:$0xff]
        %v951 = vld [vmem:[#allocation4 + $0x278] sm:$0xff]
        %v952 = vld [vmem:[#allocation4 + $0x280] sm:$0xff]
        %v953 = vld [vmem:[#allocation4 + $0x288] sm:$0xff]
        %v954 = vld [vmem:[#allocation4 + $0x290] sm:$0xff]
        %v955 = vld [vmem:[#allocation4 + $0x298] sm:$0xff]
        %v956 = vld [vmem:[#allocation4 + $0x2a0] sm:$0xff]
        %v957 = vld [vmem:[#allocation4 + $0x2a8] sm:$0xff]
        %v958 = vld [vmem:[#allocation4 + $0x2b0] sm:$0xff]
        %v959 = vld [vmem:[#allocation4 + $0x2b8] sm:$0xff]
        %v960 = vld [vmem:[#allocation4 + $0x2c0] sm:$0xff]
        %v961 = vld [vmem:[#allocation4 + $0x2c8] sm:$0xff]
        %v962 = vld [vmem:[#allocation4 + $0x2d0] sm:$0xff]
        %v963 = vld [vmem:[#allocation4 + $0x2d8] sm:$0xff]
        %v964 = vld [vmem:[#allocation4 + $0x2e0] sm:$0xff]
        %v965 = vld [vmem:[#allocation4 + $0x2e8] sm:$0xff]
        %v966 = vld [vmem:[#allocation4 + $0x2f0] sm:$0xff]
        %v967 = vld [vmem:[#allocation4 + $0x2f8] sm:$0xff]
        %v968 = vld [vmem:[#allocation4 + $0x300] sm:$0xff]
        %v969 = vld [vmem:[#allocation4 + $0x308] sm:$0xff]
        %v970 = vld [vmem:[#allocation4 + $0x310] sm:$0xff]
        %v971 = vld [vmem:[#allocation4 + $0x318] sm:$0xff]
        %v972 = vld [vmem:[#allocation4 + $0x320] sm:$0xff]
        %v973 = vld [vmem:[#allocation4 + $0x328] sm:$0xff]
        %v974 = vld [vmem:[#allocation4 + $0x330] sm:$0xff]
        %v975 = vld [vmem:[#allocation4 + $0x338] sm:$0xff]
        %v976 = vld [vmem:[#allocation4 + $0x340] sm:$0xff]
        %v977 = vld [vmem:[#allocation4 + $0x348] sm:$0xff]
        %v978 = vld [vmem:[#allocation4 + $0x350] sm:$0xff]
        %v979 = vld [vmem:[#allocation4 + $0x358] sm:$0xff]
        %v980 = vld [vmem:[#allocation4 + $0x360] sm:$0xff]
        %v981 = vld [vmem:[#allocation4 + $0x368] sm:$0xff]
        %v982 = vld [vmem:[#allocation4 + $0x370] sm:$0xff]
        %v983 = vld [vmem:[#allocation4 + $0x378] sm:$0xff]
        %v984 = vld [vmem:[#allocation4 + $0x380] sm:$0xff]
        %v985 = vld [vmem:[#allocation4 + $0x388] sm:$0xff]
        %v986 = vld [vmem:[#allocation4 + $0x390] sm:$0xff]
        %v987 = vld [vmem:[#allocation4 + $0x398] sm:$0xff]
        %v988 = vld [vmem:[#allocation4 + $0x3a0] sm:$0xff]
        %v989 = vld [vmem:[#allocation4 + $0x3a8] sm:$0xff]
        %v990 = vld [vmem:[#allocation4 + $0x3b0] sm:$0xff]
        %v991 = vld [vmem:[#allocation4 + $0x3b8] sm:$0xff]
        %v992 = vld [vmem:[#allocation4 + $0x3c0] sm:$0xff]
        %v993 = vld [vmem:[#allocation4 + $0x3c8] sm:$0xff]
        %v994 = vld [vmem:[#allocation4 + $0x3d0] sm:$0xff]
        %v995 = vld [vmem:[#allocation4 + $0x3d8] sm:$0xff]
        %v996 = vld [vmem:[#allocation4 + $0x3e0] sm:$0xff]
        %v997 = vld [vmem:[#allocation4 + $0x3e8] sm:$0xff]
        %v998 = vld [vmem:[#allocation4 + $0x3f0] sm:$0xff]
        %v999 = vld [vmem:[#allocation4 + $0x3f8] sm:$0xff]
        %v1000 = vld [vmem:[#allocation4 + $0x400] sm:$0xff]
        %v1001 = vld [vmem:[#allocation4 + $0x408] sm:$0xff]
        %v1002 = vld [vmem:[#allocation4 + $0x410] sm:$0xff]
        %v1003 = vld [vmem:[#allocation4 + $0x418] sm:$0xff]
        %v1004 = vld [vmem:[#allocation4 + $0x420] sm:$0xff]
        %v1005 = vld [vmem:[#allocation4 + $0x428] sm:$0xff]
        %v1006 = vld [vmem:[#allocation4 + $0x430] sm:$0xff]
        %v1007 = vld [vmem:[#allocation4 + $0x438] sm:$0xff]
        %v1008 = vld [vmem:[#allocation4 + $0x440] sm:$0xff]
        %v1009 = vld [vmem:[#allocation4 + $0x448] sm:$0xff]
        %v1010 = vld [vmem:[#allocation4 + $0x450] sm:$0xff]
        %v1011 = vld [vmem:[#allocation4 + $0x458] sm:$0xff]
        %v1012 = vld [vmem:[#allocation4 + $0x460] sm:$0xff]
        %v1013 = vld [vmem:[#allocation4 + $0x468] sm:$0xff]
        %v1014 = vld [vmem:[#allocation4 + $0x470] sm:$0xff]
        %v1015 = vld [vmem:[#allocation4 + $0x478] sm:$0xff]
        %v1016 = vld [vmem:[#allocation4 + $0x480] sm:$0xff]
        %v1017 = vld [vmem:[#allocation4 + $0x488] sm:$0xff]
        %v1018 = vld [vmem:[#allocation4 + $0x490] sm:$0xff]
        %v1019 = vld [vmem:[#allocation4 + $0x498] sm:$0xff]
        %v1020 = vld [vmem:[#allocation4 + $0x4a0] sm:$0xff]
        %v1021 = vld [vmem:[#allocation4 + $0x4a8] sm:$0xff]
        %v1022 = vld [vmem:[#allocation4 + $0x4b0] sm:$0xff]
        %v1023 = vld [vmem:[#allocation4 + $0x4b8] sm:$0xff]
        %v1024 = vld [vmem:[#allocation4 + $0x4c0] sm:$0xff]
        %v1025 = vld [vmem:[#allocation4 + $0x4c8] sm:$0xff]
        %v1026 = vld [vmem:[#allocation4 + $0x4d0] sm:$0xff]
        %v1027 = vld [vmem:[#allocation4 + $0x4d8] sm:$0xff]
        %v1028 = vld [vmem:[#allocation4 + $0x4e0] sm:$0xff]
        %v1029 = vld [vmem:[#allocation4 + $0x4e8] sm:$0xff]
        %v1030 = vld [vmem:[#allocation4 + $0x4f0] sm:$0xff]
        %v1031 = vld [vmem:[#allocation4 + $0x4f8] sm:$0xff]
        %v1032 = vld [vmem:[#allocation4 + $0x500] sm:$0xff]
        %v1033 = vld [vmem:[#allocation4 + $0x508] sm:$0xff]
        %v1034 = vld [vmem:[#allocation4 + $0x510] sm:$0xff]
        %v1035 = vld [vmem:[#allocation4 + $0x518] sm:$0xff]
        %v1036 = vld [vmem:[#allocation4 + $0x520] sm:$0xff]
        %v1037 = vld [vmem:[#allocation4 + $0x528] sm:$0xff]
        %v1038 = vld [vmem:[#allocation4 + $0x530] sm:$0xff]
        %v1039 = vld [vmem:[#allocation4 + $0x538] sm:$0xff]
        %v1040 = vld [vmem:[#allocation4 + $0x540] sm:$0xff]
        %v1041 = vld [vmem:[#allocation4 + $0x548] sm:$0xff]
        %v1042 = vld [vmem:[#allocation4 + $0x550] sm:$0xff]
        %v1043 = vld [vmem:[#allocation4 + $0x558] sm:$0xff]
        %v1044 = vld [vmem:[#allocation4 + $0x560] sm:$0xff]
        %v1045 = vld [vmem:[#allocation4 + $0x568] sm:$0xff]
        %v1046 = vld [vmem:[#allocation4 + $0x570] sm:$0xff]
        %v1047 = vld [vmem:[#allocation4 + $0x578] sm:$0xff]
        %v1048 = vld [vmem:[#allocation4 + $0x580] sm:$0xff]
        %v1049 = vld [vmem:[#allocation4 + $0x588] sm:$0xff]
        %v1050 = vld [vmem:[#allocation4 + $0x590] sm:$0xff]
        %v1051 = vld [vmem:[#allocation4 + $0x598] sm:$0xff]
        %v1052 = vld [vmem:[#allocation4 + $0x5a0] sm:$0xff]
        %v1053 = vld [vmem:[#allocation4 + $0x5a8] sm:$0xff]
        %v1054 = vld [vmem:[#allocation4 + $0x5b0] sm:$0xff]
        %v1055 = vld [vmem:[#allocation4 + $0x5b8] sm:$0xff]
        %v1056 = vld [vmem:[#allocation4 + $0x5c0] sm:$0xff]
        %v1057 = vld [vmem:[#allocation4 + $0x5c8] sm:$0xff]
        %v1058 = vld [vmem:[#allocation4 + $0x5d0] sm:$0xff]
        %v1059 = vld [vmem:[#allocation4 + $0x5d8] sm:$0xff]
        %v1060 = vld [vmem:[#allocation4 + $0x5e0] sm:$0xff]
        %v1061 = vld [vmem:[#allocation4 + $0x5e8] sm:$0xff]
        %v1062 = vld [vmem:[#allocation4 + $0x5f0] sm:$0xff]
        %v1063 = vld [vmem:[#allocation4 + $0x5f8] sm:$0xff]
        %v1064 = vld [vmem:[#allocation4 + $0x600] sm:$0xff]
        %v1065 = vld [vmem:[#allocation4 + $0x608] sm:$0xff]
        %v1066 = vld [vmem:[#allocation4 + $0x610] sm:$0xff]
        %v1067 = vld [vmem:[#allocation4 + $0x618] sm:$0xff]
        %v1068 = vld [vmem:[#allocation4 + $0x620] sm:$0xff]
        %v1069 = vld [vmem:[#allocation4 + $0x628] sm:$0xff]
        %v1070 = vld [vmem:[#allocation4 + $0x630] sm:$0xff]
        %v1071 = vld [vmem:[#allocation4 + $0x638] sm:$0xff]
        %v1072 = vld [vmem:[#allocation4 + $0x640] sm:$0xff]
        %v1073 = vld [vmem:[#allocation4 + $0x648] sm:$0xff]
        %v1074 = vld [vmem:[#allocation4 + $0x650] sm:$0xff]
        %v1075 = vld [vmem:[#allocation4 + $0x658] sm:$0xff]
        %v1076 = vld [vmem:[#allocation4 + $0x660] sm:$0xff]
        %v1077 = vld [vmem:[#allocation4 + $0x668] sm:$0xff]
        %v1078 = vld [vmem:[#allocation4 + $0x670] sm:$0xff]
        %v1079 = vld [vmem:[#allocation4 + $0x678] sm:$0xff]
        %v1080 = vld [vmem:[#allocation4 + $0x680] sm:$0xff]
        %v1081 = vld [vmem:[#allocation4 + $0x688] sm:$0xff]
        %v1082 = vld [vmem:[#allocation4 + $0x690] sm:$0xff]
        %v1083 = vld [vmem:[#allocation4 + $0x698] sm:$0xff]
        %v1084 = vld [vmem:[#allocation4 + $0x6a0] sm:$0xff]
        %v1085 = vld [vmem:[#allocation4 + $0x6a8] sm:$0xff]
        %v1086 = vld [vmem:[#allocation4 + $0x6b0] sm:$0xff]
        %v1087 = vld [vmem:[#allocation4 + $0x6b8] sm:$0xff]
        %v1088 = vld [vmem:[#allocation4 + $0x6c0] sm:$0xff]
        %v1089 = vld [vmem:[#allocation4 + $0x6c8] sm:$0xff]
        %v1090 = vld [vmem:[#allocation4 + $0x6d0] sm:$0xff]
        %v1091 = vld [vmem:[#allocation4 + $0x6d8] sm:$0xff]
        %v1092 = vld [vmem:[#allocation4 + $0x6e0] sm:$0xff]
        %v1093 = vld [vmem:[#allocation4 + $0x6e8] sm:$0xff]
        %v1094 = vld [vmem:[#allocation4 + $0x6f0] sm:$0xff]
        %v1095 = vld [vmem:[#allocation4 + $0x6f8] sm:$0xff]
        %v1096 = vld [vmem:[#allocation4 + $0x700] sm:$0xff]
        %v1097 = vld [vmem:[#allocation4 + $0x708] sm:$0xff]
        %v1098 = vld [vmem:[#allocation4 + $0x710] sm:$0xff]
        %v1099 = vld [vmem:[#allocation4 + $0x718] sm:$0xff]
        %v1100 = vld [vmem:[#allocation4 + $0x720] sm:$0xff]
        %v1101 = vld [vmem:[#allocation4 + $0x728] sm:$0xff]
        %v1102 = vld [vmem:[#allocation4 + $0x730] sm:$0xff]
        %v1103 = vld [vmem:[#allocation4 + $0x738] sm:$0xff]
        %v1104 = vld [vmem:[#allocation4 + $0x740] sm:$0xff]
        %v1105 = vld [vmem:[#allocation4 + $0x748] sm:$0xff]
        %v1106 = vld [vmem:[#allocation4 + $0x750] sm:$0xff]
        %v1107 = vld [vmem:[#allocation4 + $0x758] sm:$0xff]
        %v1108 = vld [vmem:[#allocation4 + $0x760] sm:$0xff]
        %v1109 = vld [vmem:[#allocation4 + $0x768] sm:$0xff]
        %v1110 = vld [vmem:[#allocation4 + $0x770] sm:$0xff]
        %v1111 = vld [vmem:[#allocation4 + $0x778] sm:$0xff]
        %v1112 = vld [vmem:[#allocation4 + $0x780] sm:$0xff]
        %v1113 = vld [vmem:[#allocation4 + $0x788] sm:$0xff]
        %v1114 = vld [vmem:[#allocation4 + $0x790] sm:$0xff]
        %v1115 = vld [vmem:[#allocation4 + $0x798] sm:$0xff]
        %v1116 = vld [vmem:[#allocation4 + $0x7a0] sm:$0xff]
        %v1117 = vld [vmem:[#allocation4 + $0x7a8] sm:$0xff]
        %v1118 = vld [vmem:[#allocation4 + $0x7b0] sm:$0xff]
        %v1119 = vld [vmem:[#allocation4 + $0x7b8] sm:$0xff]
        %v1120 = vld [vmem:[#allocation4 + $0x7c0] sm:$0xff]
        %v1121 = vld [vmem:[#allocation4 + $0x7c8] sm:$0xff]
        %v1122 = vld [vmem:[#allocation4 + $0x7d0] sm:$0xff]
        %v1123 = vld [vmem:[#allocation4 + $0x7d8] sm:$0xff]
        %v1124 = vld [vmem:[#allocation4 + $0x7e0] sm:$0xff]
        %v1125 = vld [vmem:[#allocation4 + $0x7e8] sm:$0xff]
        %v1126 = vld [vmem:[#allocation4 + $0x7f0] sm:$0xff]
        %v1127 = vld [vmem:[#allocation4 + $0x7f8] sm:$0xff]
        %v1128 = vld [vmem:[#allocation6] sm:$0xff]
        %v1130 = vlaneseq
        %v1131 = vshrl.u32 %v1130, 7
        %v1132 = vsub.s32 0, %v1131
        %v1133 = vrot.slane %v1128, %v1132
        %v1134 = vlaneseq
        %v1135 = vshrl.u32 %v1134, 7
        %v1136 = vsub.s32 1, %v1135
        %v1137 = vrot.slane %v1128, %v1136
        %v1138 = vlaneseq
        %v1139 = vshrl.u32 %v1138, 7
        %v1140 = vsub.s32 2, %v1139
        %v1141 = vrot.slane %v1128, %v1140
        %v1142 = vlaneseq
        %v1143 = vshrl.u32 %v1142, 7
        %v1144 = vsub.s32 3, %v1143
        %v1145 = vrot.slane %v1128, %v1144
        %v1146 = vlaneseq
        %v1147 = vshrl.u32 %v1146, 7
        %v1148 = vsub.s32 4, %v1147
        %v1149 = vrot.slane %v1128, %v1148
        %v1150 = vlaneseq
        %v1151 = vshrl.u32 %v1150, 7
        %v1152 = vsub.s32 5, %v1151
        %v1153 = vrot.slane %v1128, %v1152
        %v1154 = vlaneseq
        %v1155 = vshrl.u32 %v1154, 7
        %v1156 = vsub.s32 6, %v1155
        %v1157 = vrot.slane %v1128, %v1156
        %v1158 = vlaneseq
        %v1159 = vshrl.u32 %v1158, 7
        %v1160 = vsub.s32 7, %v1159
        %v1161 = vrot.slane %v1128, %v1160
        %v1426 = vunpack.c.l.b16 %v872
        %v1427 = vunpack.c.h.b16 %v872
        %v1428 = vunpack.c.l.b16 %v873
        %v1429 = vunpack.c.h.b16 %v873
        %v1430 = vunpack.c.l.b16 %v874
        %v1431 = vunpack.c.h.b16 %v874
        %v1432 = vunpack.c.l.b16 %v875
        %v1433 = vunpack.c.h.b16 %v875
        %v1434 = vunpack.c.l.b16 %v876
        %v1435 = vunpack.c.h.b16 %v876
        %v1436 = vunpack.c.l.b16 %v877
        %v1437 = vunpack.c.h.b16 %v877
        %v1438 = vunpack.c.l.b16 %v878
        %v1439 = vunpack.c.h.b16 %v878
        %v1440 = vunpack.c.l.b16 %v879
        %v1441 = vunpack.c.h.b16 %v879
        %v1442 = vunpack.c.l.b16 %v880
        %v1443 = vunpack.c.h.b16 %v880
        %v1444 = vunpack.c.l.b16 %v881
        %v1445 = vunpack.c.h.b16 %v881
        %v1446 = vunpack.c.l.b16 %v882
        %v1447 = vunpack.c.h.b16 %v882
        %v1448 = vunpack.c.l.b16 %v883
        %v1449 = vunpack.c.h.b16 %v883
        %v1450 = vunpack.c.l.b16 %v884
        %v1451 = vunpack.c.h.b16 %v884
        %v1452 = vunpack.c.l.b16 %v885
        %v1453 = vunpack.c.h.b16 %v885
        %v1454 = vunpack.c.l.b16 %v886
        %v1455 = vunpack.c.h.b16 %v886
        %v1456 = vunpack.c.l.b16 %v887
        %v1457 = vunpack.c.h.b16 %v887
        %v1458 = vunpack.c.l.b16 %v888
        %v1459 = vunpack.c.h.b16 %v888
        %v1460 = vunpack.c.l.b16 %v889
        %v1461 = vunpack.c.h.b16 %v889
        %v1462 = vunpack.c.l.b16 %v890
        %v1463 = vunpack.c.h.b16 %v890
        %v1464 = vunpack.c.l.b16 %v891
        %v1465 = vunpack.c.h.b16 %v891
        %v1466 = vunpack.c.l.b16 %v892
        %v1467 = vunpack.c.h.b16 %v892
        %v1468 = vunpack.c.l.b16 %v893
        %v1469 = vunpack.c.h.b16 %v893
        %v1470 = vunpack.c.l.b16 %v894
        %v1471 = vunpack.c.h.b16 %v894
        %v1472 = vunpack.c.l.b16 %v895
        %v1473 = vunpack.c.h.b16 %v895
        %v1474 = vunpack.c.l.b16 %v896
        %v1475 = vunpack.c.h.b16 %v896
        %v1476 = vunpack.c.l.b16 %v897
        %v1477 = vunpack.c.h.b16 %v897
        %v1478 = vunpack.c.l.b16 %v898
        %v1479 = vunpack.c.h.b16 %v898
        %v1480 = vunpack.c.l.b16 %v899
        %v1481 = vunpack.c.h.b16 %v899
        %v1482 = vunpack.c.l.b16 %v900
        %v1483 = vunpack.c.h.b16 %v900
        %v1484 = vunpack.c.l.b16 %v901
        %v1485 = vunpack.c.h.b16 %v901
        %v1486 = vunpack.c.l.b16 %v902
        %v1487 = vunpack.c.h.b16 %v902
        %v1488 = vunpack.c.l.b16 %v903
        %v1489 = vunpack.c.h.b16 %v903
        %v1490 = vunpack.c.l.b16 %v904
        %v1491 = vunpack.c.h.b16 %v904
        %v1492 = vunpack.c.l.b16 %v905
        %v1493 = vunpack.c.h.b16 %v905
        %v1494 = vunpack.c.l.b16 %v906
        %v1495 = vunpack.c.h.b16 %v906
        %v1496 = vunpack.c.l.b16 %v907
        %v1497 = vunpack.c.h.b16 %v907
        %v1498 = vunpack.c.l.b16 %v908
        %v1499 = vunpack.c.h.b16 %v908
        %v1500 = vunpack.c.l.b16 %v909
        %v1501 = vunpack.c.h.b16 %v909
        %v1502 = vunpack.c.l.b16 %v910
        %v1503 = vunpack.c.h.b16 %v910
        %v1504 = vunpack.c.l.b16 %v911
        %v1505 = vunpack.c.h.b16 %v911
        %v1506 = vunpack.c.l.b16 %v912
        %v1507 = vunpack.c.h.b16 %v912
        %v1508 = vunpack.c.l.b16 %v913
        %v1509 = vunpack.c.h.b16 %v913
        %v1510 = vunpack.c.l.b16 %v914
        %v1511 = vunpack.c.h.b16 %v914
        %v1512 = vunpack.c.l.b16 %v915
        %v1513 = vunpack.c.h.b16 %v915
        %v1514 = vunpack.c.l.b16 %v916
        %v1515 = vunpack.c.h.b16 %v916
        %v1516 = vunpack.c.l.b16 %v917
        %v1517 = vunpack.c.h.b16 %v917
        %v1518 = vunpack.c.l.b16 %v918
        %v1519 = vunpack.c.h.b16 %v918
        %v1520 = vunpack.c.l.b16 %v919
        %v1521 = vunpack.c.h.b16 %v919
        %v1522 = vunpack.c.l.b16 %v920
        %v1523 = vunpack.c.h.b16 %v920
        %v1524 = vunpack.c.l.b16 %v921
        %v1525 = vunpack.c.h.b16 %v921
        %v1526 = vunpack.c.l.b16 %v922
        %v1527 = vunpack.c.h.b16 %v922
        %v1528 = vunpack.c.l.b16 %v923
        %v1529 = vunpack.c.h.b16 %v923
        %v1530 = vunpack.c.l.b16 %v924
        %v1531 = vunpack.c.h.b16 %v924
        %v1532 = vunpack.c.l.b16 %v925
        %v1533 = vunpack.c.h.b16 %v925
        %v1534 = vunpack.c.l.b16 %v926
        %v1535 = vunpack.c.h.b16 %v926
        %v1536 = vunpack.c.l.b16 %v927
        %v1537 = vunpack.c.h.b16 %v927
        %v1538 = vunpack.c.l.b16 %v928
        %v1539 = vunpack.c.h.b16 %v928
        %v1540 = vunpack.c.l.b16 %v929
        %v1541 = vunpack.c.h.b16 %v929
        %v1542 = vunpack.c.l.b16 %v930
        %v1543 = vunpack.c.h.b16 %v930
        %v1544 = vunpack.c.l.b16 %v931
        %v1545 = vunpack.c.h.b16 %v931
        %v1546 = vunpack.c.l.b16 %v932
        %v1547 = vunpack.c.h.b16 %v932
        %v1548 = vunpack.c.l.b16 %v933
        %v1549 = vunpack.c.h.b16 %v933
        %v1550 = vunpack.c.l.b16 %v934
        %v1551 = vunpack.c.h.b16 %v934
        %v1552 = vunpack.c.l.b16 %v935
        %v1553 = vunpack.c.h.b16 %v935
        %v1554 = vunpack.c.l.b16 %v936
        %v1555 = vunpack.c.h.b16 %v936
        %v1556 = vunpack.c.l.b16 %v937
        %v1557 = vunpack.c.h.b16 %v937
        %v1558 = vunpack.c.l.b16 %v938
        %v1559 = vunpack.c.h.b16 %v938
        %v1560 = vunpack.c.l.b16 %v939
        %v1561 = vunpack.c.h.b16 %v939
        %v1562 = vunpack.c.l.b16 %v940
        %v1563 = vunpack.c.h.b16 %v940
        %v1564 = vunpack.c.l.b16 %v941
        %v1565 = vunpack.c.h.b16 %v941
        %v1566 = vunpack.c.l.b16 %v942
        %v1567 = vunpack.c.h.b16 %v942
        %v1568 = vunpack.c.l.b16 %v943
        %v1569 = vunpack.c.h.b16 %v943
        %v1570 = vunpack.c.l.b16 %v944
        %v1571 = vunpack.c.h.b16 %v944
        %v1572 = vunpack.c.l.b16 %v945
        %v1573 = vunpack.c.h.b16 %v945
        %v1574 = vunpack.c.l.b16 %v946
        %v1575 = vunpack.c.h.b16 %v946
        %v1576 = vunpack.c.l.b16 %v947
        %v1577 = vunpack.c.h.b16 %v947
        %v1578 = vunpack.c.l.b16 %v948
        %v1579 = vunpack.c.h.b16 %v948
        %v1580 = vunpack.c.l.b16 %v949
        %v1581 = vunpack.c.h.b16 %v949
        %v1582 = vunpack.c.l.b16 %v950
        %v1583 = vunpack.c.h.b16 %v950
        %v1584 = vunpack.c.l.b16 %v951
        %v1585 = vunpack.c.h.b16 %v951
        %v1586 = vunpack.c.l.b16 %v952
        %v1587 = vunpack.c.h.b16 %v952
        %v1588 = vunpack.c.l.b16 %v953
        %v1589 = vunpack.c.h.b16 %v953
        %v1590 = vunpack.c.l.b16 %v954
        %v1591 = vunpack.c.h.b16 %v954
        %v1592 = vunpack.c.l.b16 %v955
        %v1593 = vunpack.c.h.b16 %v955
        %v1594 = vunpack.c.l.b16 %v956
        %v1595 = vunpack.c.h.b16 %v956
        %v1596 = vunpack.c.l.b16 %v957
        %v1597 = vunpack.c.h.b16 %v957
        %v1598 = vunpack.c.l.b16 %v958
        %v1599 = vunpack.c.h.b16 %v958
        %v1600 = vunpack.c.l.b16 %v959
        %v1601 = vunpack.c.h.b16 %v959
        %v1602 = vunpack.c.l.b16 %v960
        %v1603 = vunpack.c.h.b16 %v960
        %v1604 = vunpack.c.l.b16 %v961
        %v1605 = vunpack.c.h.b16 %v961
        %v1606 = vunpack.c.l.b16 %v962
        %v1607 = vunpack.c.h.b16 %v962
        %v1608 = vunpack.c.l.b16 %v963
        %v1609 = vunpack.c.h.b16 %v963
        %v1610 = vunpack.c.l.b16 %v964
        %v1611 = vunpack.c.h.b16 %v964
        %v1612 = vunpack.c.l.b16 %v965
        %v1613 = vunpack.c.h.b16 %v965
        %v1614 = vunpack.c.l.b16 %v966
        %v1615 = vunpack.c.h.b16 %v966
        %v1616 = vunpack.c.l.b16 %v967
        %v1617 = vunpack.c.h.b16 %v967
        %v1618 = vunpack.c.l.b16 %v968
        %v1619 = vunpack.c.h.b16 %v968
        %v1620 = vunpack.c.l.b16 %v969
        %v1621 = vunpack.c.h.b16 %v969
        %v1622 = vunpack.c.l.b16 %v970
        %v1623 = vunpack.c.h.b16 %v970
        %v1624 = vunpack.c.l.b16 %v971
        %v1625 = vunpack.c.h.b16 %v971
        %v1626 = vunpack.c.l.b16 %v972
        %v1627 = vunpack.c.h.b16 %v972
        %v1628 = vunpack.c.l.b16 %v973
        %v1629 = vunpack.c.h.b16 %v973
        %v1630 = vunpack.c.l.b16 %v974
        %v1631 = vunpack.c.h.b16 %v974
        %v1632 = vunpack.c.l.b16 %v975
        %v1633 = vunpack.c.h.b16 %v975
        %v1634 = vunpack.c.l.b16 %v976
        %v1635 = vunpack.c.h.b16 %v976
        %v1636 = vunpack.c.l.b16 %v977
        %v1637 = vunpack.c.h.b16 %v977
        %v1638 = vunpack.c.l.b16 %v978
        %v1639 = vunpack.c.h.b16 %v978
        %v1640 = vunpack.c.l.b16 %v979
        %v1641 = vunpack.c.h.b16 %v979
        %v1642 = vunpack.c.l.b16 %v980
        %v1643 = vunpack.c.h.b16 %v980
        %v1644 = vunpack.c.l.b16 %v981
        %v1645 = vunpack.c.h.b16 %v981
        %v1646 = vunpack.c.l.b16 %v982
        %v1647 = vunpack.c.h.b16 %v982
        %v1648 = vunpack.c.l.b16 %v983
        %v1649 = vunpack.c.h.b16 %v983
        %v1650 = vunpack.c.l.b16 %v984
        %v1651 = vunpack.c.h.b16 %v984
        %v1652 = vunpack.c.l.b16 %v985
        %v1653 = vunpack.c.h.b16 %v985
        %v1654 = vunpack.c.l.b16 %v986
        %v1655 = vunpack.c.h.b16 %v986
        %v1656 = vunpack.c.l.b16 %v987
        %v1657 = vunpack.c.h.b16 %v987
        %v1658 = vunpack.c.l.b16 %v988
        %v1659 = vunpack.c.h.b16 %v988
        %v1660 = vunpack.c.l.b16 %v989
        %v1661 = vunpack.c.h.b16 %v989
        %v1662 = vunpack.c.l.b16 %v990
        %v1663 = vunpack.c.h.b16 %v990
        %v1664 = vunpack.c.l.b16 %v991
        %v1665 = vunpack.c.h.b16 %v991
        %v1666 = vunpack.c.l.b16 %v992
        %v1667 = vunpack.c.h.b16 %v992
        %v1668 = vunpack.c.l.b16 %v993
        %v1669 = vunpack.c.h.b16 %v993
        %v1670 = vunpack.c.l.b16 %v994
        %v1671 = vunpack.c.h.b16 %v994
        %v1672 = vunpack.c.l.b16 %v995
        %v1673 = vunpack.c.h.b16 %v995
        %v1674 = vunpack.c.l.b16 %v996
        %v1675 = vunpack.c.h.b16 %v996
        %v1676 = vunpack.c.l.b16 %v997
        %v1677 = vunpack.c.h.b16 %v997
        %v1678 = vunpack.c.l.b16 %v998
        %v1679 = vunpack.c.h.b16 %v998
        %v1680 = vunpack.c.l.b16 %v999
        %v1681 = vunpack.c.h.b16 %v999
        %v1682 = vunpack.c.l.b16 %v1000
        %v1683 = vunpack.c.h.b16 %v1000
        %v1684 = vunpack.c.l.b16 %v1001
        %v1685 = vunpack.c.h.b16 %v1001
        %v1686 = vunpack.c.l.b16 %v1002
        %v1687 = vunpack.c.h.b16 %v1002
        %v1688 = vunpack.c.l.b16 %v1003
        %v1689 = vunpack.c.h.b16 %v1003
        %v1690 = vunpack.c.l.b16 %v1004
        %v1691 = vunpack.c.h.b16 %v1004
        %v1692 = vunpack.c.l.b16 %v1005
        %v1693 = vunpack.c.h.b16 %v1005
        %v1694 = vunpack.c.l.b16 %v1006
        %v1695 = vunpack.c.h.b16 %v1006
        %v1696 = vunpack.c.l.b16 %v1007
        %v1697 = vunpack.c.h.b16 %v1007
        %v1698 = vunpack.c.l.b16 %v1008
        %v1699 = vunpack.c.h.b16 %v1008
        %v1700 = vunpack.c.l.b16 %v1009
        %v1701 = vunpack.c.h.b16 %v1009
        %v1702 = vunpack.c.l.b16 %v1010
        %v1703 = vunpack.c.h.b16 %v1010
        %v1704 = vunpack.c.l.b16 %v1011
        %v1705 = vunpack.c.h.b16 %v1011
        %v1706 = vunpack.c.l.b16 %v1012
        %v1707 = vunpack.c.h.b16 %v1012
        %v1708 = vunpack.c.l.b16 %v1013
        %v1709 = vunpack.c.h.b16 %v1013
        %v1710 = vunpack.c.l.b16 %v1014
        %v1711 = vunpack.c.h.b16 %v1014
        %v1712 = vunpack.c.l.b16 %v1015
        %v1713 = vunpack.c.h.b16 %v1015
        %v1714 = vunpack.c.l.b16 %v1016
        %v1715 = vunpack.c.h.b16 %v1016
        %v1716 = vunpack.c.l.b16 %v1017
        %v1717 = vunpack.c.h.b16 %v1017
        %v1718 = vunpack.c.l.b16 %v1018
        %v1719 = vunpack.c.h.b16 %v1018
        %v1720 = vunpack.c.l.b16 %v1019
        %v1721 = vunpack.c.h.b16 %v1019
        %v1722 = vunpack.c.l.b16 %v1020
        %v1723 = vunpack.c.h.b16 %v1020
        %v1724 = vunpack.c.l.b16 %v1021
        %v1725 = vunpack.c.h.b16 %v1021
        %v1726 = vunpack.c.l.b16 %v1022
        %v1727 = vunpack.c.h.b16 %v1022
        %v1728 = vunpack.c.l.b16 %v1023
        %v1729 = vunpack.c.h.b16 %v1023
        %v1730 = vunpack.c.l.b16 %v1024
        %v1731 = vunpack.c.h.b16 %v1024
        %v1732 = vunpack.c.l.b16 %v1025
        %v1733 = vunpack.c.h.b16 %v1025
        %v1734 = vunpack.c.l.b16 %v1026
        %v1735 = vunpack.c.h.b16 %v1026
        %v1736 = vunpack.c.l.b16 %v1027
        %v1737 = vunpack.c.h.b16 %v1027
        %v1738 = vunpack.c.l.b16 %v1028
        %v1739 = vunpack.c.h.b16 %v1028
        %v1740 = vunpack.c.l.b16 %v1029
        %v1741 = vunpack.c.h.b16 %v1029
        %v1742 = vunpack.c.l.b16 %v1030
        %v1743 = vunpack.c.h.b16 %v1030
        %v1744 = vunpack.c.l.b16 %v1031
        %v1745 = vunpack.c.h.b16 %v1031
        %v1746 = vunpack.c.l.b16 %v1032
        %v1747 = vunpack.c.h.b16 %v1032
        %v1748 = vunpack.c.l.b16 %v1033
        %v1749 = vunpack.c.h.b16 %v1033
        %v1750 = vunpack.c.l.b16 %v1034
        %v1751 = vunpack.c.h.b16 %v1034
        %v1752 = vunpack.c.l.b16 %v1035
        %v1753 = vunpack.c.h.b16 %v1035
        %v1754 = vunpack.c.l.b16 %v1036
        %v1755 = vunpack.c.h.b16 %v1036
        %v1756 = vunpack.c.l.b16 %v1037
        %v1757 = vunpack.c.h.b16 %v1037
        %v1758 = vunpack.c.l.b16 %v1038
        %v1759 = vunpack.c.h.b16 %v1038
        %v1760 = vunpack.c.l.b16 %v1039
        %v1761 = vunpack.c.h.b16 %v1039
        %v1762 = vunpack.c.l.b16 %v1040
        %v1763 = vunpack.c.h.b16 %v1040
        %v1764 = vunpack.c.l.b16 %v1041
        %v1765 = vunpack.c.h.b16 %v1041
        %v1766 = vunpack.c.l.b16 %v1042
        %v1767 = vunpack.c.h.b16 %v1042
        %v1768 = vunpack.c.l.b16 %v1043
        %v1769 = vunpack.c.h.b16 %v1043
        %v1770 = vunpack.c.l.b16 %v1044
        %v1771 = vunpack.c.h.b16 %v1044
        %v1772 = vunpack.c.l.b16 %v1045
        %v1773 = vunpack.c.h.b16 %v1045
        %v1774 = vunpack.c.l.b16 %v1046
        %v1775 = vunpack.c.h.b16 %v1046
        %v1776 = vunpack.c.l.b16 %v1047
        %v1777 = vunpack.c.h.b16 %v1047
        %v1778 = vunpack.c.l.b16 %v1048
        %v1779 = vunpack.c.h.b16 %v1048
        %v1780 = vunpack.c.l.b16 %v1049
        %v1781 = vunpack.c.h.b16 %v1049
        %v1782 = vunpack.c.l.b16 %v1050
        %v1783 = vunpack.c.h.b16 %v1050
        %v1784 = vunpack.c.l.b16 %v1051
        %v1785 = vunpack.c.h.b16 %v1051
        %v1786 = vunpack.c.l.b16 %v1052
        %v1787 = vunpack.c.h.b16 %v1052
        %v1788 = vunpack.c.l.b16 %v1053
        %v1789 = vunpack.c.h.b16 %v1053
        %v1790 = vunpack.c.l.b16 %v1054
        %v1791 = vunpack.c.h.b16 %v1054
        %v1792 = vunpack.c.l.b16 %v1055
        %v1793 = vunpack.c.h.b16 %v1055
        %v1794 = vunpack.c.l.b16 %v1056
        %v1795 = vunpack.c.h.b16 %v1056
        %v1796 = vunpack.c.l.b16 %v1057
        %v1797 = vunpack.c.h.b16 %v1057
        %v1798 = vunpack.c.l.b16 %v1058
        %v1799 = vunpack.c.h.b16 %v1058
        %v1800 = vunpack.c.l.b16 %v1059
        %v1801 = vunpack.c.h.b16 %v1059
        %v1802 = vunpack.c.l.b16 %v1060
        %v1803 = vunpack.c.h.b16 %v1060
        %v1804 = vunpack.c.l.b16 %v1061
        %v1805 = vunpack.c.h.b16 %v1061
        %v1806 = vunpack.c.l.b16 %v1062
        %v1807 = vunpack.c.h.b16 %v1062
        %v1808 = vunpack.c.l.b16 %v1063
        %v1809 = vunpack.c.h.b16 %v1063
        %v1810 = vunpack.c.l.b16 %v1064
        %v1811 = vunpack.c.h.b16 %v1064
        %v1812 = vunpack.c.l.b16 %v1065
        %v1813 = vunpack.c.h.b16 %v1065
        %v1814 = vunpack.c.l.b16 %v1066
        %v1815 = vunpack.c.h.b16 %v1066
        %v1816 = vunpack.c.l.b16 %v1067
        %v1817 = vunpack.c.h.b16 %v1067
        %v1818 = vunpack.c.l.b16 %v1068
        %v1819 = vunpack.c.h.b16 %v1068
        %v1820 = vunpack.c.l.b16 %v1069
        %v1821 = vunpack.c.h.b16 %v1069
        %v1822 = vunpack.c.l.b16 %v1070
        %v1823 = vunpack.c.h.b16 %v1070
        %v1824 = vunpack.c.l.b16 %v1071
        %v1825 = vunpack.c.h.b16 %v1071
        %v1826 = vunpack.c.l.b16 %v1072
        %v1827 = vunpack.c.h.b16 %v1072
        %v1828 = vunpack.c.l.b16 %v1073
        %v1829 = vunpack.c.h.b16 %v1073
        %v1830 = vunpack.c.l.b16 %v1074
        %v1831 = vunpack.c.h.b16 %v1074
        %v1832 = vunpack.c.l.b16 %v1075
        %v1833 = vunpack.c.h.b16 %v1075
        %v1834 = vunpack.c.l.b16 %v1076
        %v1835 = vunpack.c.h.b16 %v1076
        %v1836 = vunpack.c.l.b16 %v1077
        %v1837 = vunpack.c.h.b16 %v1077
        %v1838 = vunpack.c.l.b16 %v1078
        %v1839 = vunpack.c.h.b16 %v1078
        %v1840 = vunpack.c.l.b16 %v1079
        %v1841 = vunpack.c.h.b16 %v1079
        %v1842 = vunpack.c.l.b16 %v1080
        %v1843 = vunpack.c.h.b16 %v1080
        %v1844 = vunpack.c.l.b16 %v1081
        %v1845 = vunpack.c.h.b16 %v1081
        %v1846 = vunpack.c.l.b16 %v1082
        %v1847 = vunpack.c.h.b16 %v1082
        %v1848 = vunpack.c.l.b16 %v1083
        %v1849 = vunpack.c.h.b16 %v1083
        %v1850 = vunpack.c.l.b16 %v1084
        %v1851 = vunpack.c.h.b16 %v1084
        %v1852 = vunpack.c.l.b16 %v1085
        %v1853 = vunpack.c.h.b16 %v1085
        %v1854 = vunpack.c.l.b16 %v1086
        %v1855 = vunpack.c.h.b16 %v1086
        %v1856 = vunpack.c.l.b16 %v1087
        %v1857 = vunpack.c.h.b16 %v1087
        %v1858 = vunpack.c.l.b16 %v1088
        %v1859 = vunpack.c.h.b16 %v1088
        %v1860 = vunpack.c.l.b16 %v1089
        %v1861 = vunpack.c.h.b16 %v1089
        %v1862 = vunpack.c.l.b16 %v1090
        %v1863 = vunpack.c.h.b16 %v1090
        %v1864 = vunpack.c.l.b16 %v1091
        %v1865 = vunpack.c.h.b16 %v1091
        %v1866 = vunpack.c.l.b16 %v1092
        %v1867 = vunpack.c.h.b16 %v1092
        %v1868 = vunpack.c.l.b16 %v1093
        %v1869 = vunpack.c.h.b16 %v1093
        %v1870 = vunpack.c.l.b16 %v1094
        %v1871 = vunpack.c.h.b16 %v1094
        %v1872 = vunpack.c.l.b16 %v1095
        %v1873 = vunpack.c.h.b16 %v1095
        %v1874 = vunpack.c.l.b16 %v1096
        %v1875 = vunpack.c.h.b16 %v1096
        %v1876 = vunpack.c.l.b16 %v1097
        %v1877 = vunpack.c.h.b16 %v1097
        %v1878 = vunpack.c.l.b16 %v1098
        %v1879 = vunpack.c.h.b16 %v1098
        %v1880 = vunpack.c.l.b16 %v1099
        %v1881 = vunpack.c.h.b16 %v1099
        %v1882 = vunpack.c.l.b16 %v1100
        %v1883 = vunpack.c.h.b16 %v1100
        %v1884 = vunpack.c.l.b16 %v1101
        %v1885 = vunpack.c.h.b16 %v1101
        %v1886 = vunpack.c.l.b16 %v1102
        %v1887 = vunpack.c.h.b16 %v1102
        %v1888 = vunpack.c.l.b16 %v1103
        %v1889 = vunpack.c.h.b16 %v1103
        %v1890 = vunpack.c.l.b16 %v1104
        %v1891 = vunpack.c.h.b16 %v1104
        %v1892 = vunpack.c.l.b16 %v1105
        %v1893 = vunpack.c.h.b16 %v1105
        %v1894 = vunpack.c.l.b16 %v1106
        %v1895 = vunpack.c.h.b16 %v1106
        %v1896 = vunpack.c.l.b16 %v1107
        %v1897 = vunpack.c.h.b16 %v1107
        %v1898 = vunpack.c.l.b16 %v1108
        %v1899 = vunpack.c.h.b16 %v1108
        %v1900 = vunpack.c.l.b16 %v1109
        %v1901 = vunpack.c.h.b16 %v1109
        %v1902 = vunpack.c.l.b16 %v1110
        %v1903 = vunpack.c.h.b16 %v1110
        %v1904 = vunpack.c.l.b16 %v1111
        %v1905 = vunpack.c.h.b16 %v1111
        %v1906 = vunpack.c.l.b16 %v1112
        %v1907 = vunpack.c.h.b16 %v1112
        %v1908 = vunpack.c.l.b16 %v1113
        %v1909 = vunpack.c.h.b16 %v1113
        %v1910 = vunpack.c.l.b16 %v1114
        %v1911 = vunpack.c.h.b16 %v1114
        %v1912 = vunpack.c.l.b16 %v1115
        %v1913 = vunpack.c.h.b16 %v1115
        %v1914 = vunpack.c.l.b16 %v1116
        %v1915 = vunpack.c.h.b16 %v1116
        %v1916 = vunpack.c.l.b16 %v1117
        %v1917 = vunpack.c.h.b16 %v1117
        %v1918 = vunpack.c.l.b16 %v1118
        %v1919 = vunpack.c.h.b16 %v1118
        %v1920 = vunpack.c.l.b16 %v1119
        %v1921 = vunpack.c.h.b16 %v1119
        %v1922 = vunpack.c.l.b16 %v1120
        %v1923 = vunpack.c.h.b16 %v1120
        %v1924 = vunpack.c.l.b16 %v1121
        %v1925 = vunpack.c.h.b16 %v1121
        %v1926 = vunpack.c.l.b16 %v1122
        %v1927 = vunpack.c.h.b16 %v1122
        %v1928 = vunpack.c.l.b16 %v1123
        %v1929 = vunpack.c.h.b16 %v1123
        %v1930 = vunpack.c.l.b16 %v1124
        %v1931 = vunpack.c.h.b16 %v1124
        %v1932 = vunpack.c.l.b16 %v1125
        %v1933 = vunpack.c.h.b16 %v1125
        %v1934 = vunpack.c.l.b16 %v1126
        %v1935 = vunpack.c.h.b16 %v1126
        %v1936 = vunpack.c.l.b16 %v1127
        %v1937 = vunpack.c.h.b16 %v1127
        %v1938 = vpack.c.b16 %v1434, %v1426
        %v1939 = vpack.c.b16 %v1435, %v1427
        %v1940 = vpack.c.b16 %v1436, %v1428
        %v1941 = vpack.c.b16 %v1437, %v1429
        %v1942 = vpack.c.b16 %v1438, %v1430
        %v1943 = vpack.c.b16 %v1439, %v1431
        %v1944 = vpack.c.b16 %v1440, %v1432
        %v1945 = vpack.c.b16 %v1441, %v1433
        %v1946 = vpack.c.b16 %v1450, %v1442
        %v1947 = vpack.c.b16 %v1451, %v1443
        %v1948 = vpack.c.b16 %v1452, %v1444
        %v1949 = vpack.c.b16 %v1453, %v1445
        %v1950 = vpack.c.b16 %v1454, %v1446
        %v1951 = vpack.c.b16 %v1455, %v1447
        %v1952 = vpack.c.b16 %v1456, %v1448
        %v1953 = vpack.c.b16 %v1457, %v1449
        %v1954 = vpack.c.b16 %v1466, %v1458
        %v1955 = vpack.c.b16 %v1467, %v1459
        %v1956 = vpack.c.b16 %v1468, %v1460
        %v1957 = vpack.c.b16 %v1469, %v1461
        %v1958 = vpack.c.b16 %v1470, %v1462
        %v1959 = vpack.c.b16 %v1471, %v1463
        %v1960 = vpack.c.b16 %v1472, %v1464
        %v1961 = vpack.c.b16 %v1473, %v1465
        %v1962 = vpack.c.b16 %v1482, %v1474
        %v1963 = vpack.c.b16 %v1483, %v1475
        %v1964 = vpack.c.b16 %v1484, %v1476
        %v1965 = vpack.c.b16 %v1485, %v1477
        %v1966 = vpack.c.b16 %v1486, %v1478
        %v1967 = vpack.c.b16 %v1487, %v1479
        %v1968 = vpack.c.b16 %v1488, %v1480
        %v1969 = vpack.c.b16 %v1489, %v1481
        %v1970 = vpack.c.b16 %v1498, %v1490
        %v1971 = vpack.c.b16 %v1499, %v1491
        %v1972 = vpack.c.b16 %v1500, %v1492
        %v1973 = vpack.c.b16 %v1501, %v1493
        %v1974 = vpack.c.b16 %v1502, %v1494
        %v1975 = vpack.c.b16 %v1503, %v1495
        %v1976 = vpack.c.b16 %v1504, %v1496
        %v1977 = vpack.c.b16 %v1505, %v1497
        %v1978 = vpack.c.b16 %v1514, %v1506
        %v1979 = vpack.c.b16 %v1515, %v1507
        %v1980 = vpack.c.b16 %v1516, %v1508
        %v1981 = vpack.c.b16 %v1517, %v1509
        %v1982 = vpack.c.b16 %v1518, %v1510
        %v1983 = vpack.c.b16 %v1519, %v1511
        %v1984 = vpack.c.b16 %v1520, %v1512
        %v1985 = vpack.c.b16 %v1521, %v1513
        %v1986 = vpack.c.b16 %v1530, %v1522
        %v1987 = vpack.c.b16 %v1531, %v1523
        %v1988 = vpack.c.b16 %v1532, %v1524
        %v1989 = vpack.c.b16 %v1533, %v1525
        %v1990 = vpack.c.b16 %v1534, %v1526
        %v1991 = vpack.c.b16 %v1535, %v1527
        %v1992 = vpack.c.b16 %v1536, %v1528
        %v1993 = vpack.c.b16 %v1537, %v1529
        %v1994 = vpack.c.b16 %v1546, %v1538
        %v1995 = vpack.c.b16 %v1547, %v1539
        %v1996 = vpack.c.b16 %v1548, %v1540
        %v1997 = vpack.c.b16 %v1549, %v1541
        %v1998 = vpack.c.b16 %v1550, %v1542
        %v1999 = vpack.c.b16 %v1551, %v1543
        %v2000 = vpack.c.b16 %v1552, %v1544
        %v2001 = vpack.c.b16 %v1553, %v1545
        %v2002 = vpack.c.b16 %v1562, %v1554
        %v2003 = vpack.c.b16 %v1563, %v1555
        %v2004 = vpack.c.b16 %v1564, %v1556
        %v2005 = vpack.c.b16 %v1565, %v1557
        %v2006 = vpack.c.b16 %v1566, %v1558
        %v2007 = vpack.c.b16 %v1567, %v1559
        %v2008 = vpack.c.b16 %v1568, %v1560
        %v2009 = vpack.c.b16 %v1569, %v1561
        %v2010 = vpack.c.b16 %v1578, %v1570
        %v2011 = vpack.c.b16 %v1579, %v1571
        %v2012 = vpack.c.b16 %v1580, %v1572
        %v2013 = vpack.c.b16 %v1581, %v1573
        %v2014 = vpack.c.b16 %v1582, %v1574
        %v2015 = vpack.c.b16 %v1583, %v1575
        %v2016 = vpack.c.b16 %v1584, %v1576
        %v2017 = vpack.c.b16 %v1585, %v1577
        %v2018 = vpack.c.b16 %v1594, %v1586
        %v2019 = vpack.c.b16 %v1595, %v1587
        %v2020 = vpack.c.b16 %v1596, %v1588
        %v2021 = vpack.c.b16 %v1597, %v1589
        %v2022 = vpack.c.b16 %v1598, %v1590
        %v2023 = vpack.c.b16 %v1599, %v1591
        %v2024 = vpack.c.b16 %v1600, %v1592
        %v2025 = vpack.c.b16 %v1601, %v1593
        %v2026 = vpack.c.b16 %v1610, %v1602
        %v2027 = vpack.c.b16 %v1611, %v1603
        %v2028 = vpack.c.b16 %v1612, %v1604
        %v2029 = vpack.c.b16 %v1613, %v1605
        %v2030 = vpack.c.b16 %v1614, %v1606
        %v2031 = vpack.c.b16 %v1615, %v1607
        %v2032 = vpack.c.b16 %v1616, %v1608
        %v2033 = vpack.c.b16 %v1617, %v1609
        %v2034 = vpack.c.b16 %v1626, %v1618
        %v2035 = vpack.c.b16 %v1627, %v1619
        %v2036 = vpack.c.b16 %v1628, %v1620
        %v2037 = vpack.c.b16 %v1629, %v1621
        %v2038 = vpack.c.b16 %v1630, %v1622
        %v2039 = vpack.c.b16 %v1631, %v1623
        %v2040 = vpack.c.b16 %v1632, %v1624
        %v2041 = vpack.c.b16 %v1633, %v1625
        %v2042 = vpack.c.b16 %v1642, %v1634
        %v2043 = vpack.c.b16 %v1643, %v1635
        %v2044 = vpack.c.b16 %v1644, %v1636
        %v2045 = vpack.c.b16 %v1645, %v1637
        %v2046 = vpack.c.b16 %v1646, %v1638
        %v2047 = vpack.c.b16 %v1647, %v1639
        %v2048 = vpack.c.b16 %v1648, %v1640
        %v2049 = vpack.c.b16 %v1649, %v1641
        %v2050 = vpack.c.b16 %v1658, %v1650
        %v2051 = vpack.c.b16 %v1659, %v1651
        %v2052 = vpack.c.b16 %v1660, %v1652
        %v2053 = vpack.c.b16 %v1661, %v1653
        %v2054 = vpack.c.b16 %v1662, %v1654
        %v2055 = vpack.c.b16 %v1663, %v1655
        %v2056 = vpack.c.b16 %v1664, %v1656
        %v2057 = vpack.c.b16 %v1665, %v1657
        %v2058 = vpack.c.b16 %v1674, %v1666
        %v2059 = vpack.c.b16 %v1675, %v1667
        %v2060 = vpack.c.b16 %v1676, %v1668
        %v2061 = vpack.c.b16 %v1677, %v1669
        %v2062 = vpack.c.b16 %v1678, %v1670
        %v2063 = vpack.c.b16 %v1679, %v1671
        %v2064 = vpack.c.b16 %v1680, %v1672
        %v2065 = vpack.c.b16 %v1681, %v1673
        %v2066 = vpack.c.b16 %v1690, %v1682
        %v2067 = vpack.c.b16 %v1691, %v1683
        %v2068 = vpack.c.b16 %v1692, %v1684
        %v2069 = vpack.c.b16 %v1693, %v1685
        %v2070 = vpack.c.b16 %v1694, %v1686
        %v2071 = vpack.c.b16 %v1695, %v1687
        %v2072 = vpack.c.b16 %v1696, %v1688
        %v2073 = vpack.c.b16 %v1697, %v1689
        %v2074 = vpack.c.b16 %v1706, %v1698
        %v2075 = vpack.c.b16 %v1707, %v1699
        %v2076 = vpack.c.b16 %v1708, %v1700
        %v2077 = vpack.c.b16 %v1709, %v1701
        %v2078 = vpack.c.b16 %v1710, %v1702
        %v2079 = vpack.c.b16 %v1711, %v1703
        %v2080 = vpack.c.b16 %v1712, %v1704
        %v2081 = vpack.c.b16 %v1713, %v1705
        %v2082 = vpack.c.b16 %v1722, %v1714
        %v2083 = vpack.c.b16 %v1723, %v1715
        %v2084 = vpack.c.b16 %v1724, %v1716
        %v2085 = vpack.c.b16 %v1725, %v1717
        %v2086 = vpack.c.b16 %v1726, %v1718
        %v2087 = vpack.c.b16 %v1727, %v1719
        %v2088 = vpack.c.b16 %v1728, %v1720
        %v2089 = vpack.c.b16 %v1729, %v1721
        %v2090 = vpack.c.b16 %v1738, %v1730
        %v2091 = vpack.c.b16 %v1739, %v1731
        %v2092 = vpack.c.b16 %v1740, %v1732
        %v2093 = vpack.c.b16 %v1741, %v1733
        %v2094 = vpack.c.b16 %v1742, %v1734
        %v2095 = vpack.c.b16 %v1743, %v1735
        %v2096 = vpack.c.b16 %v1744, %v1736
        %v2097 = vpack.c.b16 %v1745, %v1737
        %v2098 = vpack.c.b16 %v1754, %v1746
        %v2099 = vpack.c.b16 %v1755, %v1747
        %v2100 = vpack.c.b16 %v1756, %v1748
        %v2101 = vpack.c.b16 %v1757, %v1749
        %v2102 = vpack.c.b16 %v1758, %v1750
        %v2103 = vpack.c.b16 %v1759, %v1751
        %v2104 = vpack.c.b16 %v1760, %v1752
        %v2105 = vpack.c.b16 %v1761, %v1753
        %v2106 = vpack.c.b16 %v1770, %v1762
        %v2107 = vpack.c.b16 %v1771, %v1763
        %v2108 = vpack.c.b16 %v1772, %v1764
        %v2109 = vpack.c.b16 %v1773, %v1765
        %v2110 = vpack.c.b16 %v1774, %v1766
        %v2111 = vpack.c.b16 %v1775, %v1767
        %v2112 = vpack.c.b16 %v1776, %v1768
        %v2113 = vpack.c.b16 %v1777, %v1769
        %v2114 = vpack.c.b16 %v1786, %v1778
        %v2115 = vpack.c.b16 %v1787, %v1779
        %v2116 = vpack.c.b16 %v1788, %v1780
        %v2117 = vpack.c.b16 %v1789, %v1781
        %v2118 = vpack.c.b16 %v1790, %v1782
        %v2119 = vpack.c.b16 %v1791, %v1783
        %v2120 = vpack.c.b16 %v1792, %v1784
        %v2121 = vpack.c.b16 %v1793, %v1785
        %v2122 = vpack.c.b16 %v1802, %v1794
        %v2123 = vpack.c.b16 %v1803, %v1795
        %v2124 = vpack.c.b16 %v1804, %v1796
        %v2125 = vpack.c.b16 %v1805, %v1797
        %v2126 = vpack.c.b16 %v1806, %v1798
        %v2127 = vpack.c.b16 %v1807, %v1799
        %v2128 = vpack.c.b16 %v1808, %v1800
        %v2129 = vpack.c.b16 %v1809, %v1801
        %v2130 = vpack.c.b16 %v1818, %v1810
        %v2131 = vpack.c.b16 %v1819, %v1811
        %v2132 = vpack.c.b16 %v1820, %v1812
        %v2133 = vpack.c.b16 %v1821, %v1813
        %v2134 = vpack.c.b16 %v1822, %v1814
        %v2135 = vpack.c.b16 %v1823, %v1815
        %v2136 = vpack.c.b16 %v1824, %v1816
        %v2137 = vpack.c.b16 %v1825, %v1817
        %v2138 = vpack.c.b16 %v1834, %v1826
        %v2139 = vpack.c.b16 %v1835, %v1827
        %v2140 = vpack.c.b16 %v1836, %v1828
        %v2141 = vpack.c.b16 %v1837, %v1829
        %v2142 = vpack.c.b16 %v1838, %v1830
        %v2143 = vpack.c.b16 %v1839, %v1831
        %v2144 = vpack.c.b16 %v1840, %v1832
        %v2145 = vpack.c.b16 %v1841, %v1833
        %v2146 = vpack.c.b16 %v1850, %v1842
        %v2147 = vpack.c.b16 %v1851, %v1843
        %v2148 = vpack.c.b16 %v1852, %v1844
        %v2149 = vpack.c.b16 %v1853, %v1845
        %v2150 = vpack.c.b16 %v1854, %v1846
        %v2151 = vpack.c.b16 %v1855, %v1847
        %v2152 = vpack.c.b16 %v1856, %v1848
        %v2153 = vpack.c.b16 %v1857, %v1849
        %v2154 = vpack.c.b16 %v1866, %v1858
        %v2155 = vpack.c.b16 %v1867, %v1859
        %v2156 = vpack.c.b16 %v1868, %v1860
        %v2157 = vpack.c.b16 %v1869, %v1861
        %v2158 = vpack.c.b16 %v1870, %v1862
        %v2159 = vpack.c.b16 %v1871, %v1863
        %v2160 = vpack.c.b16 %v1872, %v1864
        %v2161 = vpack.c.b16 %v1873, %v1865
        %v2162 = vpack.c.b16 %v1882, %v1874
        %v2163 = vpack.c.b16 %v1883, %v1875
        %v2164 = vpack.c.b16 %v1884, %v1876
        %v2165 = vpack.c.b16 %v1885, %v1877
        %v2166 = vpack.c.b16 %v1886, %v1878
        %v2167 = vpack.c.b16 %v1887, %v1879
        %v2168 = vpack.c.b16 %v1888, %v1880
        %v2169 = vpack.c.b16 %v1889, %v1881
        %v2170 = vpack.c.b16 %v1898, %v1890
        %v2171 = vpack.c.b16 %v1899, %v1891
        %v2172 = vpack.c.b16 %v1900, %v1892
        %v2173 = vpack.c.b16 %v1901, %v1893
        %v2174 = vpack.c.b16 %v1902, %v1894
        %v2175 = vpack.c.b16 %v1903, %v1895
        %v2176 = vpack.c.b16 %v1904, %v1896
        %v2177 = vpack.c.b16 %v1905, %v1897
        %v2178 = vpack.c.b16 %v1914, %v1906
        %v2179 = vpack.c.b16 %v1915, %v1907
        %v2180 = vpack.c.b16 %v1916, %v1908
        %v2181 = vpack.c.b16 %v1917, %v1909
        %v2182 = vpack.c.b16 %v1918, %v1910
        %v2183 = vpack.c.b16 %v1919, %v1911
        %v2184 = vpack.c.b16 %v1920, %v1912
        %v2185 = vpack.c.b16 %v1921, %v1913
        %v2186 = vpack.c.b16 %v1930, %v1922
        %v2187 = vpack.c.b16 %v1931, %v1923
        %v2188 = vpack.c.b16 %v1932, %v1924
        %v2189 = vpack.c.b16 %v1933, %v1925
        %v2190 = vpack.c.b16 %v1934, %v1926
        %v2191 = vpack.c.b16 %v1935, %v1927
        %v2192 = vpack.c.b16 %v1936, %v1928
        %v2193 = vpack.c.b16 %v1937, %v1929
        %2450 = vmatprep.subr.bf16.mxu0 %v1939
        %2451 = vmatpush1.bf16.msra.mxu0 %v1938
        %2452 = vmatprep.subr.bf16.mxu0 %v1947
        %2453 = vmatpush1.bf16.msra.mxu0 %v1946
        %2454 = vmatprep.subr.bf16.mxu0 %v1955
        %2455 = vmatpush1.bf16.msra.mxu0 %v1954
        %2456 = vmatprep.subr.bf16.mxu0 %v1963
        %2457 = vmatpush1.bf16.msra.mxu0 %v1962
        %2458 = vmatprep.subr.bf16.mxu0 %v1971
        %2459 = vmatpush1.bf16.msra.mxu0 %v1970
        %2460 = vmatprep.subr.bf16.mxu0 %v1979
        %2461 = vmatpush1.bf16.msra.mxu0 %v1978
        %2462 = vmatprep.subr.bf16.mxu0 %v1987
        %2463 = vmatpush1.bf16.msra.mxu0 %v1986
        %2464 = vmatprep.subr.bf16.mxu0 %v1995
        %2465 = vmatpush1.bf16.msra.mxu0 %v1994
        %2466 = vmatprep.subr.bf16.mxu0 %v2003
        %2467 = vmatpush1.bf16.msra.mxu0 %v2002
        %2468 = vmatprep.subr.bf16.mxu0 %v2011
        %2469 = vmatpush1.bf16.msra.mxu0 %v2010
        %2470 = vmatprep.subr.bf16.mxu0 %v2019
        %2471 = vmatpush1.bf16.msra.mxu0 %v2018
        %2472 = vmatprep.subr.bf16.mxu0 %v2027
        %2473 = vmatpush1.bf16.msra.mxu0 %v2026
        %2474 = vmatprep.subr.bf16.mxu0 %v2035
        %2475 = vmatpush1.bf16.msra.mxu0 %v2034
        %2476 = vmatprep.subr.bf16.mxu0 %v2043
        %2477 = vmatpush1.bf16.msra.mxu0 %v2042
        %2478 = vmatprep.subr.bf16.mxu0 %v2051
        %2479 = vmatpush1.bf16.msra.mxu0 %v2050
        %2480 = vmatprep.subr.bf16.mxu0 %v2059
        %2481 = vmatpush1.bf16.msra.mxu0 %v2058
        %2482 = vmatprep.mubr.bf16.mxu0 %v857
        %2483 = vmatmul.mubr.bf16.gmra.mrb[0].mxu0 %v856
        %v2484 = vpop.f32.mrb[0].mxu0
        %v2485 = vadd.f32 %v1133, %v2484
        %v2486 = vpop.f32.mrb[0].mxu0
        %v2487 = vadd.f32 %v1137, %v2486
        %v2488 = vpop.f32.mrb[0].mxu0
        %v2489 = vadd.f32 %v1133, %v2488
        %v2490 = vpop.f32.mrb[0].mxu0
        %v2491 = vadd.f32 %v1137, %v2490
        %2492 = vmatprep.mubr.bf16.mxu0 %v861
        %2493 = vmatmul.mubr.bf16.gmra.mrb[0].mxu0 %v860
        %v2494 = vpop.f32.mrb[0].mxu0
        %v2495 = vadd.f32 %v1133, %v2494
        %v2496 = vpop.f32.mrb[0].mxu0
        %v2497 = vadd.f32 %v1137, %v2496
        %v2498 = vpop.f32.mrb[0].mxu0
        %v2499 = vadd.f32 %v1133, %v2498
        %v2500 = vpop.f32.mrb[0].mxu0
        %v2501 = vadd.f32 %v1137, %v2500
        %2502 = vmatprep.mubr.bf16.mxu0 %v865
        %2503 = vmatmul.mubr.bf16.gmra.mrb[0].mxu0 %v864
        %v2504 = vpop.f32.mrb[0].mxu0
        %v2505 = vadd.f32 %v1133, %v2504
        %v2506 = vpop.f32.mrb[0].mxu0
        %v2507 = vadd.f32 %v1137, %v2506
        %v2508 = vpop.f32.mrb[0].mxu0
        %v2509 = vadd.f32 %v1133, %v2508
        %v2510 = vpop.f32.mrb[0].mxu0
        %v2511 = vadd.f32 %v1137, %v2510
        %2512 = vmatprep.mubr.bf16.mxu0 %v869
        %2513 = vmatmul.mubr.bf16.gmra.mrb[0].mxu0 %v868
        %v2514 = vpop.f32.mrb[0].mxu0
        %v2515 = vadd.f32 %v1133, %v2514
        %v2516 = vpop.f32.mrb[0].mxu0
        %v2517 = vadd.f32 %v1137, %v2516
        %v2518 = vpop.f32.mrb[0].mxu0
        %v2519 = vadd.f32 %v1133, %v2518
        %v2520 = vpop.f32.mrb[0].mxu0
        %v2521 = vadd.f32 %v1137, %v2520
        %2522 = vdwg.mxu0
        %2523 = vmatprep.subr.bf16.mxu0 %v2067
        %2524 = vmatpush1.bf16.msra.mxu0 %v2066
        %2525 = vmatprep.subr.bf16.mxu0 %v2075
        %2526 = vmatpush1.bf16.msra.mxu0 %v2074
        %2527 = vmatprep.subr.bf16.mxu0 %v2083
        %2528 = vmatpush1.bf16.msra.mxu0 %v2082
        %2529 = vmatprep.subr.bf16.mxu0 %v2091
        %2530 = vmatpush1.bf16.msra.mxu0 %v2090
        %2531 = vmatprep.subr.bf16.mxu0 %v2099
        %2532 = vmatpush1.bf16.msra.mxu0 %v2098
        %2533 = vmatprep.subr.bf16.mxu0 %v2107
        %2534 = vmatpush1.bf16.msra.mxu0 %v2106
        %2535 = vmatprep.subr.bf16.mxu0 %v2115
        %2536 = vmatpush1.bf16.msra.mxu0 %v2114
        %2537 = vmatprep.subr.bf16.mxu0 %v2123
        %2538 = vmatpush1.bf16.msra.mxu0 %v2122
        %2539 = vmatprep.subr.bf16.mxu0 %v2131
        %2540 = vmatpush1.bf16.msra.mxu0 %v2130
        %2541 = vmatprep.subr.bf16.mxu0 %v2139
        %2542 = vmatpush1.bf16.msra.mxu0 %v2138
        %2543 = vmatprep.subr.bf16.mxu0 %v2147
        %2544 = vmatpush1.bf16.msra.mxu0 %v2146
        %2545 = vmatprep.subr.bf16.mxu0 %v2155
        %2546 = vmatpush1.bf16.msra.mxu0 %v2154
        %2547 = vmatprep.subr.bf16.mxu0 %v2163
        %2548 = vmatpush1.bf16.msra.mxu0 %v2162
        %2549 = vmatprep.subr.bf16.mxu0 %v2171
        %2550 = vmatpush1.bf16.msra.mxu0 %v2170
        %2551 = vmatprep.subr.bf16.mxu0 %v2179
        %2552 = vmatpush1.bf16.msra.mxu0 %v2178
        %2553 = vmatprep.subr.bf16.mxu0 %v2187
        %2554 = vmatpush1.bf16.msra.mxu0 %v2186
        %2555 = vmatprep.mubr.bf16.mxu0 %v859
        %2556 = vmatmul.mubr.bf16.gmra.mrb[0].mxu0 %v858
        %v2557 = vpop.f32.mrb[0].mxu0
        %v2558 = vadd.f32 %v2485, %v2557
        %v2559 = vpop.f32.mrb[0].mxu0
        %v2560 = vadd.f32 %v2487, %v2559
        %v2561 = vpop.f32.mrb[0].mxu0
        %v2562 = vadd.f32 %v2489, %v2561
        %v2563 = vpop.f32.mrb[0].mxu0
        %v2564 = vadd.f32 %v2491, %v2563
        %2565 = vmatprep.mubr.bf16.mxu0 %v863
        %2566 = vmatmul.mubr.bf16.gmra.mrb[0].mxu0 %v862
        %v2567 = vpop.f32.mrb[0].mxu0
        %v2568 = vadd.f32 %v2495, %v2567
        %v2569 = vpop.f32.mrb[0].mxu0
        %v2570 = vadd.f32 %v2497, %v2569
        %v2571 = vpop.f32.mrb[0].mxu0
        %v2572 = vadd.f32 %v2499, %v2571
        %v2573 = vpop.f32.mrb[0].mxu0
        %v2574 = vadd.f32 %v2501, %v2573
        %2575 = vmatprep.mubr.bf16.mxu0 %v867
        %2576 = vmatmul.mubr.bf16.gmra.mrb[0].mxu0 %v866
        %v2577 = vpop.f32.mrb[0].mxu0
        %v2578 = vadd.f32 %v2505, %v2577
        %v2579 = vpop.f32.mrb[0].mxu0
        %v2580 = vadd.f32 %v2507, %v2579
        %v2581 = vpop.f32.mrb[0].mxu0
        %v2582 = vadd.f32 %v2509, %v2581
        %v2583 = vpop.f32.mrb[0].mxu0
        %v2584 = vadd.f32 %v2511, %v2583
        %2585 = vmatprep.mubr.bf16.mxu0 %v871
        %2586 = vmatmul.mubr.bf16.gmra.mrb[0].mxu0 %v870
        %v2587 = vpop.f32.mrb[0].mxu0
        %v2588 = vadd.f32 %v2515, %v2587
        %v2589 = vpop.f32.mrb[0].mxu0
        %v2590 = vadd.f32 %v2517, %v2589
        %v2591 = vpop.f32.mrb[0].mxu0
        %v2592 = vadd.f32 %v2519, %v2591
        %v2593 = vpop.f32.mrb[0].mxu0
        %v2594 = vadd.f32 %v2521, %v2593
        %2595 = vdwg.mxu0
        %2596 = vmatprep.subr.bf16.mxu0 %v1941
        %2597 = vmatpush1.bf16.msra.mxu0 %v1940
        %2598 = vmatprep.subr.bf16.mxu0 %v1949
        %2599 = vmatpush1.bf16.msra.mxu0 %v1948
        %2600 = vmatprep.subr.bf16.mxu0 %v1957
        %2601 = vmatpush1.bf16.msra.mxu0 %v1956
        %2602 = vmatprep.subr.bf16.mxu0 %v1965
        %2603 = vmatpush1.bf16.msra.mxu0 %v1964
        %2604 = vmatprep.subr.bf16.mxu0 %v1973
        %2605 = vmatpush1.bf16.msra.mxu0 %v1972
        %2606 = vmatprep.subr.bf16.mxu0 %v1981
        %2607 = vmatpush1.bf16.msra.mxu0 %v1980
        %2608 = vmatprep.subr.bf16.mxu0 %v1989
        %2609 = vmatpush1.bf16.msra.mxu0 %v1988
        %2610 = vmatprep.subr.bf16.mxu0 %v1997
        %2611 = vmatpush1.bf16.msra.mxu0 %v1996
        %2612 = vmatprep.subr.bf16.mxu0 %v2005
        %2613 = vmatpush1.bf16.msra.mxu0 %v2004
        %2614 = vmatprep.subr.bf16.mxu0 %v2013
        %2615 = vmatpush1.bf16.msra.mxu0 %v2012
        %2616 = vmatprep.subr.bf16.mxu0 %v2021
        %2617 = vmatpush1.bf16.msra.mxu0 %v2020
        %2618 = vmatprep.subr.bf16.mxu0 %v2029
        %2619 = vmatpush1.bf16.msra.mxu0 %v2028
        %2620 = vmatprep.subr.bf16.mxu0 %v2037
        %2621 = vmatpush1.bf16.msra.mxu0 %v2036
        %2622 = vmatprep.subr.bf16.mxu0 %v2045
        %2623 = vmatpush1.bf16.msra.mxu0 %v2044
        %2624 = vmatprep.subr.bf16.mxu0 %v2053
        %2625 = vmatpush1.bf16.msra.mxu0 %v2052
        %2626 = vmatprep.subr.bf16.mxu0 %v2061
        %2627 = vmatpush1.bf16.msra.mxu0 %v2060
        %2628 = vmatprep.mubr.bf16.mxu0 %v857
        %2629 = vmatmul.mubr.bf16.gmra.mrb[0].mxu0 %v856
        %v2630 = vpop.f32.mrb[0].mxu0
        %v2631 = vadd.f32 %v1141, %v2630
        %v2632 = vpop.f32.mrb[0].mxu0
        %v2633 = vadd.f32 %v1145, %v2632
        %v2634 = vpop.f32.mrb[0].mxu0
        %v2635 = vadd.f32 %v1141, %v2634
        %v2636 = vpop.f32.mrb[0].mxu0
        %v2637 = vadd.f32 %v1145, %v2636
        %2638 = vmatprep.mubr.bf16.mxu0 %v861
        %2639 = vmatmul.mubr.bf16.gmra.mrb[0].mxu0 %v860
        %v2640 = vpop.f32.mrb[0].mxu0
        %v2641 = vadd.f32 %v1141, %v2640
        %v2642 = vpop.f32.mrb[0].mxu0
        %v2643 = vadd.f32 %v1145, %v2642
        %v2644 = vpop.f32.mrb[0].mxu0
        %v2645 = vadd.f32 %v1141, %v2644
        %v2646 = vpop.f32.mrb[0].mxu0
        %v2647 = vadd.f32 %v1145, %v2646
        %2648 = vmatprep.mubr.bf16.mxu0 %v865
        %2649 = vmatmul.mubr.bf16.gmra.mrb[0].mxu0 %v864
        %v2650 = vpop.f32.mrb[0].mxu0
        %v2651 = vadd.f32 %v1141, %v2650
        %v2652 = vpop.f32.mrb[0].mxu0
        %v2653 = vadd.f32 %v1145, %v2652
        %v2654 = vpop.f32.mrb[0].mxu0
        %v2655 = vadd.f32 %v1141, %v2654
        %v2656 = vpop.f32.mrb[0].mxu0
        %v2657 = vadd.f32 %v1145, %v2656
        %2658 = vmatprep.mubr.bf16.mxu0 %v869
        %2659 = vmatmul.mubr.bf16.gmra.mrb[0].mxu0 %v868
        %v2660 = vpop.f32.mrb[0].mxu0
        %v2661 = vadd.f32 %v1141, %v2660
        %v2662 = vpop.f32.mrb[0].mxu0
        %v2663 = vadd.f32 %v1145, %v2662
        %v2664 = vpop.f32.mrb[0].mxu0
        %v2665 = vadd.f32 %v1141, %v2664
        %v2666 = vpop.f32.mrb[0].mxu0
        %v2667 = vadd.f32 %v1145, %v2666
        %2668 = vdwg.mxu0
        %2669 = vmatprep.subr.bf16.mxu0 %v2069
        %2670 = vmatpush1.bf16.msra.mxu0 %v2068
        %2671 = vmatprep.subr.bf16.mxu0 %v2077
        %2672 = vmatpush1.bf16.msra.mxu0 %v2076
        %2673 = vmatprep.subr.bf16.mxu0 %v2085
        %2674 = vmatpush1.bf16.msra.mxu0 %v2084
        %2675 = vmatprep.subr.bf16.mxu0 %v2093
        %2676 = vmatpush1.bf16.msra.mxu0 %v2092
        %2677 = vmatprep.subr.bf16.mxu0 %v2101
        %2678 = vmatpush1.bf16.msra.mxu0 %v2100
        %2679 = vmatprep.subr.bf16.mxu0 %v2109
        %2680 = vmatpush1.bf16.msra.mxu0 %v2108
        %2681 = vmatprep.subr.bf16.mxu0 %v2117
        %2682 = vmatpush1.bf16.msra.mxu0 %v2116
        %2683 = vmatprep.subr.bf16.mxu0 %v2125
        %2684 = vmatpush1.bf16.msra.mxu0 %v2124
        %2685 = vmatprep.subr.bf16.mxu0 %v2133
        %2686 = vmatpush1.bf16.msra.mxu0 %v2132
        %2687 = vmatprep.subr.bf16.mxu0 %v2141
        %2688 = vmatpush1.bf16.msra.mxu0 %v2140
        %2689 = vmatprep.subr.bf16.mxu0 %v2149
        %2690 = vmatpush1.bf16.msra.mxu0 %v2148
        %2691 = vmatprep.subr.bf16.mxu0 %v2157
        %2692 = vmatpush1.bf16.msra.mxu0 %v2156
        %2693 = vmatprep.subr.bf16.mxu0 %v2165
        %2694 = vmatpush1.bf16.msra.mxu0 %v2164
        %2695 = vmatprep.subr.bf16.mxu0 %v2173
        %2696 = vmatpush1.bf16.msra.mxu0 %v2172
        %2697 = vmatprep.subr.bf16.mxu0 %v2181
        %2698 = vmatpush1.bf16.msra.mxu0 %v2180
        %2699 = vmatprep.subr.bf16.mxu0 %v2189
        %2700 = vmatpush1.bf16.msra.mxu0 %v2188
        %2701 = vmatprep.mubr.bf16.mxu0 %v859
        %2702 = vmatmul.mubr.bf16.gmra.mrb[0].mxu0 %v858
        %v2703 = vpop.f32.mrb[0].mxu0
        %v2704 = vadd.f32 %v2631, %v2703
        %v2705 = vpop.f32.mrb[0].mxu0
        %v2706 = vadd.f32 %v2633, %v2705
        %v2707 = vpop.f32.mrb[0].mxu0
        %v2708 = vadd.f32 %v2635, %v2707
        %v2709 = vpop.f32.mrb[0].mxu0
        %v2710 = vadd.f32 %v2637, %v2709
        %2711 = vmatprep.mubr.bf16.mxu0 %v863
        %2712 = vmatmul.mubr.bf16.gmra.mrb[0].mxu0 %v862
        %v2713 = vpop.f32.mrb[0].mxu0
        %v2714 = vadd.f32 %v2641, %v2713
        %v2715 = vpop.f32.mrb[0].mxu0
        %v2716 = vadd.f32 %v2643, %v2715
        %v2717 = vpop.f32.mrb[0].mxu0
        %v2718 = vadd.f32 %v2645, %v2717
        %v2719 = vpop.f32.mrb[0].mxu0
        %v2720 = vadd.f32 %v2647, %v2719
        %2721 = vmatprep.mubr.bf16.mxu0 %v867
        %2722 = vmatmul.mubr.bf16.gmra.mrb[0].mxu0 %v866
        %v2723 = vpop.f32.mrb[0].mxu0
        %v2724 = vadd.f32 %v2651, %v2723
        %v2725 = vpop.f32.mrb[0].mxu0
        %v2726 = vadd.f32 %v2653, %v2725
        %v2727 = vpop.f32.mrb[0].mxu0
        %v2728 = vadd.f32 %v2655, %v2727
        %v2729 = vpop.f32.mrb[0].mxu0
        %v2730 = vadd.f32 %v2657, %v2729
        %2731 = vmatprep.mubr.bf16.mxu0 %v871
        %2732 = vmatmul.mubr.bf16.gmra.mrb[0].mxu0 %v870
        %v2733 = vpop.f32.mrb[0].mxu0
        %v2734 = vadd.f32 %v2661, %v2733
        %v2735 = vpop.f32.mrb[0].mxu0
        %v2736 = vadd.f32 %v2663, %v2735
        %v2737 = vpop.f32.mrb[0].mxu0
        %v2738 = vadd.f32 %v2665, %v2737
        %v2739 = vpop.f32.mrb[0].mxu0
        %v2740 = vadd.f32 %v2667, %v2739
        %2741 = vdwg.mxu0
        %2742 = vmatprep.subr.bf16.mxu0 %v1943
        %2743 = vmatpush1.bf16.msra.mxu0 %v1942
        %2744 = vmatprep.subr.bf16.mxu0 %v1951
        %2745 = vmatpush1.bf16.msra.mxu0 %v1950
        %2746 = vmatprep.subr.bf16.mxu0 %v1959
        %2747 = vmatpush1.bf16.msra.mxu0 %v1958
        %2748 = vmatprep.subr.bf16.mxu0 %v1967
        %2749 = vmatpush1.bf16.msra.mxu0 %v1966
        %2750 = vmatprep.subr.bf16.mxu0 %v1975
        %2751 = vmatpush1.bf16.msra.mxu0 %v1974
        %2752 = vmatprep.subr.bf16.mxu0 %v1983
        %2753 = vmatpush1.bf16.msra.mxu0 %v1982
        %2754 = vmatprep.subr.bf16.mxu0 %v1991
        %2755 = vmatpush1.bf16.msra.mxu0 %v1990
        %2756 = vmatprep.subr.bf16.mxu0 %v1999
        %2757 = vmatpush1.bf16.msra.mxu0 %v1998
        %2758 = vmatprep.subr.bf16.mxu0 %v2007
        %2759 = vmatpush1.bf16.msra.mxu0 %v2006
        %2760 = vmatprep.subr.bf16.mxu0 %v2015
        %2761 = vmatpush1.bf16.msra.mxu0 %v2014
        %2762 = vmatprep.subr.bf16.mxu0 %v2023
        %2763 = vmatpush1.bf16.msra.mxu0 %v2022
        %2764 = vmatprep.subr.bf16.mxu0 %v2031
        %2765 = vmatpush1.bf16.msra.mxu0 %v2030
        %2766 = vmatprep.subr.bf16.mxu0 %v2039
        %2767 = vmatpush1.bf16.msra.mxu0 %v2038
        %2768 = vmatprep.subr.bf16.mxu0 %v2047
        %2769 = vmatpush1.bf16.msra.mxu0 %v2046
        %2770 = vmatprep.subr.bf16.mxu0 %v2055
        %2771 = vmatpush1.bf16.msra.mxu0 %v2054
        %2772 = vmatprep.subr.bf16.mxu0 %v2063
        %2773 = vmatpush1.bf16.msra.mxu0 %v2062
        %2774 = vmatprep.mubr.bf16.mxu0 %v857
        %2775 = vmatmul.mubr.bf16.gmra.mrb[0].mxu0 %v856
        %v2776 = vpop.f32.mrb[0].mxu0
        %v2777 = vadd.f32 %v1149, %v2776
        %v2778 = vpop.f32.mrb[0].mxu0
        %v2779 = vadd.f32 %v1153, %v2778
        %v2780 = vpop.f32.mrb[0].mxu0
        %v2781 = vadd.f32 %v1149, %v2780
        %v2782 = vpop.f32.mrb[0].mxu0
        %v2783 = vadd.f32 %v1153, %v2782
        %2784 = vmatprep.mubr.bf16.mxu0 %v861
        %2785 = vmatmul.mubr.bf16.gmra.mrb[0].mxu0 %v860
        %v2786 = vpop.f32.mrb[0].mxu0
        %v2787 = vadd.f32 %v1149, %v2786
        %v2788 = vpop.f32.mrb[0].mxu0
        %v2789 = vadd.f32 %v1153, %v2788
        %v2790 = vpop.f32.mrb[0].mxu0
        %v2791 = vadd.f32 %v1149, %v2790
        %v2792 = vpop.f32.mrb[0].mxu0
        %v2793 = vadd.f32 %v1153, %v2792
        %2794 = vmatprep.mubr.bf16.mxu0 %v865
        %2795 = vmatmul.mubr.bf16.gmra.mrb[0].mxu0 %v864
        %v2796 = vpop.f32.mrb[0].mxu0
        %v2797 = vadd.f32 %v1149, %v2796
        %v2798 = vpop.f32.mrb[0].mxu0
        %v2799 = vadd.f32 %v1153, %v2798
        %v2800 = vpop.f32.mrb[0].mxu0
        %v2801 = vadd.f32 %v1149, %v2800
        %v2802 = vpop.f32.mrb[0].mxu0
        %v2803 = vadd.f32 %v1153, %v2802
        %2804 = vmatprep.mubr.bf16.mxu0 %v869
        %2805 = vmatmul.mubr.bf16.gmra.mrb[0].mxu0 %v868
        %v2806 = vpop.f32.mrb[0].mxu0
        %v2807 = vadd.f32 %v1149, %v2806
        %v2808 = vpop.f32.mrb[0].mxu0
        %v2809 = vadd.f32 %v1153, %v2808
        %v2810 = vpop.f32.mrb[0].mxu0
        %v2811 = vadd.f32 %v1149, %v2810
        %v2812 = vpop.f32.mrb[0].mxu0
        %v2813 = vadd.f32 %v1153, %v2812
        %2814 = vdwg.mxu0
        %2815 = vmatprep.subr.bf16.mxu0 %v2071
        %2816 = vmatpush1.bf16.msra.mxu0 %v2070
        %2817 = vmatprep.subr.bf16.mxu0 %v2079
        %2818 = vmatpush1.bf16.msra.mxu0 %v2078
        %2819 = vmatprep.subr.bf16.mxu0 %v2087
        %2820 = vmatpush1.bf16.msra.mxu0 %v2086
        %2821 = vmatprep.subr.bf16.mxu0 %v2095
        %2822 = vmatpush1.bf16.msra.mxu0 %v2094
        %2823 = vmatprep.subr.bf16.mxu0 %v2103
        %2824 = vmatpush1.bf16.msra.mxu0 %v2102
        %2825 = vmatprep.subr.bf16.mxu0 %v2111
        %2826 = vmatpush1.bf16.msra.mxu0 %v2110
        %2827 = vmatprep.subr.bf16.mxu0 %v2119
        %2828 = vmatpush1.bf16.msra.mxu0 %v2118
        %2829 = vmatprep.subr.bf16.mxu0 %v2127
        %2830 = vmatpush1.bf16.msra.mxu0 %v2126
        %2831 = vmatprep.subr.bf16.mxu0 %v2135
        %2832 = vmatpush1.bf16.msra.mxu0 %v2134
        %2833 = vmatprep.subr.bf16.mxu0 %v2143
        %2834 = vmatpush1.bf16.msra.mxu0 %v2142
        %2835 = vmatprep.subr.bf16.mxu0 %v2151
        %2836 = vmatpush1.bf16.msra.mxu0 %v2150
        %2837 = vmatprep.subr.bf16.mxu0 %v2159
        %2838 = vmatpush1.bf16.msra.mxu0 %v2158
        %2839 = vmatprep.subr.bf16.mxu0 %v2167
        %2840 = vmatpush1.bf16.msra.mxu0 %v2166
        %2841 = vmatprep.subr.bf16.mxu0 %v2175
        %2842 = vmatpush1.bf16.msra.mxu0 %v2174
        %2843 = vmatprep.subr.bf16.mxu0 %v2183
        %2844 = vmatpush1.bf16.msra.mxu0 %v2182
        %2845 = vmatprep.subr.bf16.mxu0 %v2191
        %2846 = vmatpush1.bf16.msra.mxu0 %v2190
        %2847 = vmatprep.mubr.bf16.mxu0 %v859
        %2848 = vmatmul.mubr.bf16.gmra.mrb[0].mxu0 %v858
        %v2849 = vpop.f32.mrb[0].mxu0
        %v2850 = vadd.f32 %v2777, %v2849
        %v2851 = vpop.f32.mrb[0].mxu0
        %v2852 = vadd.f32 %v2779, %v2851
        %v2853 = vpop.f32.mrb[0].mxu0
        %v2854 = vadd.f32 %v2781, %v2853
        %v2855 = vpop.f32.mrb[0].mxu0
        %v2856 = vadd.f32 %v2783, %v2855
        %2857 = vmatprep.mubr.bf16.mxu0 %v863
        %2858 = vmatmul.mubr.bf16.gmra.mrb[0].mxu0 %v862
        %v2859 = vpop.f32.mrb[0].mxu0
        %v2860 = vadd.f32 %v2787, %v2859
        %v2861 = vpop.f32.mrb[0].mxu0
        %v2862 = vadd.f32 %v2789, %v2861
        %v2863 = vpop.f32.mrb[0].mxu0
        %v2864 = vadd.f32 %v2791, %v2863
        %v2865 = vpop.f32.mrb[0].mxu0
        %v2866 = vadd.f32 %v2793, %v2865
        %2867 = vmatprep.mubr.bf16.mxu0 %v867
        %2868 = vmatmul.mubr.bf16.gmra.mrb[0].mxu0 %v866
        %v2869 = vpop.f32.mrb[0].mxu0
        %v2870 = vadd.f32 %v2797, %v2869
        %v2871 = vpop.f32.mrb[0].mxu0
        %v2872 = vadd.f32 %v2799, %v2871
        %v2873 = vpop.f32.mrb[0].mxu0
        %v2874 = vadd.f32 %v2801, %v2873
        %v2875 = vpop.f32.mrb[0].mxu0
        %v2876 = vadd.f32 %v2803, %v2875
        %2877 = vmatprep.mubr.bf16.mxu0 %v871
        %2878 = vmatmul.mubr.bf16.gmra.mrb[0].mxu0 %v870
        %v2879 = vpop.f32.mrb[0].mxu0
        %v2880 = vadd.f32 %v2807, %v2879
        %v2881 = vpop.f32.mrb[0].mxu0
        %v2882 = vadd.f32 %v2809, %v2881
        %v2883 = vpop.f32.mrb[0].mxu0
        %v2884 = vadd.f32 %v2811, %v2883
        %v2885 = vpop.f32.mrb[0].mxu0
        %v2886 = vadd.f32 %v2813, %v2885
        %2887 = vdwg.mxu0
        %2888 = vmatprep.subr.bf16.mxu0 %v1945
        %2889 = vmatpush1.bf16.msra.mxu0 %v1944
        %2890 = vmatprep.subr.bf16.mxu0 %v1953
        %2891 = vmatpush1.bf16.msra.mxu0 %v1952
        %2892 = vmatprep.subr.bf16.mxu0 %v1961
        %2893 = vmatpush1.bf16.msra.mxu0 %v1960
        %2894 = vmatprep.subr.bf16.mxu0 %v1969
        %2895 = vmatpush1.bf16.msra.mxu0 %v1968
        %2896 = vmatprep.subr.bf16.mxu0 %v1977
        %2897 = vmatpush1.bf16.msra.mxu0 %v1976
        %2898 = vmatprep.subr.bf16.mxu0 %v1985
        %2899 = vmatpush1.bf16.msra.mxu0 %v1984
        %2900 = vmatprep.subr.bf16.mxu0 %v1993
        %2901 = vmatpush1.bf16.msra.mxu0 %v1992
        %2902 = vmatprep.subr.bf16.mxu0 %v2001
        %2903 = vmatpush1.bf16.msra.mxu0 %v2000
        %2904 = vmatprep.subr.bf16.mxu0 %v2009
        %2905 = vmatpush1.bf16.msra.mxu0 %v2008
        %2906 = vmatprep.subr.bf16.mxu0 %v2017
        %2907 = vmatpush1.bf16.msra.mxu0 %v2016
        %2908 = vmatprep.subr.bf16.mxu0 %v2025
        %2909 = vmatpush1.bf16.msra.mxu0 %v2024
        %2910 = vmatprep.subr.bf16.mxu0 %v2033
        %2911 = vmatpush1.bf16.msra.mxu0 %v2032
        %2912 = vmatprep.subr.bf16.mxu0 %v2041
        %2913 = vmatpush1.bf16.msra.mxu0 %v2040
        %2914 = vmatprep.subr.bf16.mxu0 %v2049
        %2915 = vmatpush1.bf16.msra.mxu0 %v2048
        %2916 = vmatprep.subr.bf16.mxu0 %v2057
        %2917 = vmatpush1.bf16.msra.mxu0 %v2056
        %2918 = vmatprep.subr.bf16.mxu0 %v2065
        %2919 = vmatpush1.bf16.msra.mxu0 %v2064
        %2920 = vmatprep.mubr.bf16.mxu0 %v857
        %2921 = vmatmul.mubr.bf16.gmra.mrb[0].mxu0 %v856
        %v2922 = vpop.f32.mrb[0].mxu0
        %v2923 = vadd.f32 %v1157, %v2922
        %v2924 = vpop.f32.mrb[0].mxu0
        %v2925 = vadd.f32 %v1161, %v2924
        %v2926 = vpop.f32.mrb[0].mxu0
        %v2927 = vadd.f32 %v1157, %v2926
        %v2928 = vpop.f32.mrb[0].mxu0
        %v2929 = vadd.f32 %v1161, %v2928
        %2930 = vmatprep.mubr.bf16.mxu0 %v861
        %2931 = vmatmul.mubr.bf16.gmra.mrb[0].mxu0 %v860
        %v2932 = vpop.f32.mrb[0].mxu0
        %v2933 = vadd.f32 %v1157, %v2932
        %v2934 = vpop.f32.mrb[0].mxu0
        %v2935 = vadd.f32 %v1161, %v2934
        %v2936 = vpop.f32.mrb[0].mxu0
        %v2937 = vadd.f32 %v1157, %v2936
        %v2938 = vpop.f32.mrb[0].mxu0
        %v2939 = vadd.f32 %v1161, %v2938
        %2940 = vmatprep.mubr.bf16.mxu0 %v865
        %2941 = vmatmul.mubr.bf16.gmra.mrb[0].mxu0 %v864
        %v2942 = vpop.f32.mrb[0].mxu0
        %v2943 = vadd.f32 %v1157, %v2942
        %v2944 = vpop.f32.mrb[0].mxu0
        %v2945 = vadd.f32 %v1161, %v2944
        %v2946 = vpop.f32.mrb[0].mxu0
        %v2947 = vadd.f32 %v1157, %v2946
        %v2948 = vpop.f32.mrb[0].mxu0
        %v2949 = vadd.f32 %v1161, %v2948
        %2950 = vmatprep.mubr.bf16.mxu0 %v869
        %2951 = vmatmul.mubr.bf16.gmra.mrb[0].mxu0 %v868
        %v2952 = vpop.f32.mrb[0].mxu0
        %v2953 = vadd.f32 %v1157, %v2952
        %v2954 = vpop.f32.mrb[0].mxu0
        %v2955 = vadd.f32 %v1161, %v2954
        %v2956 = vpop.f32.mrb[0].mxu0
        %v2957 = vadd.f32 %v1157, %v2956
        %v2958 = vpop.f32.mrb[0].mxu0
        %v2959 = vadd.f32 %v1161, %v2958
        %2960 = vdwg.mxu0
        %2961 = vmatprep.subr.bf16.mxu0 %v2073
        %2962 = vmatpush1.bf16.msra.mxu0 %v2072
        %2963 = vmatprep.subr.bf16.mxu0 %v2081
        %2964 = vmatpush1.bf16.msra.mxu0 %v2080
        %2965 = vmatprep.subr.bf16.mxu0 %v2089
        %2966 = vmatpush1.bf16.msra.mxu0 %v2088
        %2967 = vmatprep.subr.bf16.mxu0 %v2097
        %2968 = vmatpush1.bf16.msra.mxu0 %v2096
        %2969 = vmatprep.subr.bf16.mxu0 %v2105
        %2970 = vmatpush1.bf16.msra.mxu0 %v2104
        %2971 = vmatprep.subr.bf16.mxu0 %v2113
        %2972 = vmatpush1.bf16.msra.mxu0 %v2112
        %2973 = vmatprep.subr.bf16.mxu0 %v2121
        %2974 = vmatpush1.bf16.msra.mxu0 %v2120
        %2975 = vmatprep.subr.bf16.mxu0 %v2129
        %2976 = vmatpush1.bf16.msra.mxu0 %v2128
        %2977 = vmatprep.subr.bf16.mxu0 %v2137
        %2978 = vmatpush1.bf16.msra.mxu0 %v2136
        %2979 = vmatprep.subr.bf16.mxu0 %v2145
        %2980 = vmatpush1.bf16.msra.mxu0 %v2144
        %2981 = vmatprep.subr.bf16.mxu0 %v2153
        %2982 = vmatpush1.bf16.msra.mxu0 %v2152
        %2983 = vmatprep.subr.bf16.mxu0 %v2161
        %2984 = vmatpush1.bf16.msra.mxu0 %v2160
        %2985 = vmatprep.subr.bf16.mxu0 %v2169
        %2986 = vmatpush1.bf16.msra.mxu0 %v2168
        %2987 = vmatprep.subr.bf16.mxu0 %v2177
        %2988 = vmatpush1.bf16.msra.mxu0 %v2176
        %2989 = vmatprep.subr.bf16.mxu0 %v2185
        %2990 = vmatpush1.bf16.msra.mxu0 %v2184
        %2991 = vmatprep.subr.bf16.mxu0 %v2193
        %2992 = vmatpush1.bf16.msra.mxu0 %v2192
        %2993 = vmatprep.mubr.bf16.mxu0 %v859
        %2994 = vmatmul.mubr.bf16.gmra.mrb[0].mxu0 %v858
        %v2995 = vpop.f32.mrb[0].mxu0
        %v2996 = vadd.f32 %v2923, %v2995
        %v2997 = vpop.f32.mrb[0].mxu0
        %v2998 = vadd.f32 %v2925, %v2997
        %v2999 = vpop.f32.mrb[0].mxu0
        %v3000 = vadd.f32 %v2927, %v2999
        %v3001 = vpop.f32.mrb[0].mxu0
        %v3002 = vadd.f32 %v2929, %v3001
        %3003 = vmatprep.mubr.bf16.mxu0 %v863
        %3004 = vmatmul.mubr.bf16.gmra.mrb[0].mxu0 %v862
        %v3005 = vpop.f32.mrb[0].mxu0
        %v3006 = vadd.f32 %v2933, %v3005
        %v3007 = vpop.f32.mrb[0].mxu0
        %v3008 = vadd.f32 %v2935, %v3007
        %v3009 = vpop.f32.mrb[0].mxu0
        %v3010 = vadd.f32 %v2937, %v3009
        %v3011 = vpop.f32.mrb[0].mxu0
        %v3012 = vadd.f32 %v2939, %v3011
        %3013 = vmatprep.mubr.bf16.mxu0 %v867
        %3014 = vmatmul.mubr.bf16.gmra.mrb[0].mxu0 %v866
        %v3015 = vpop.f32.mrb[0].mxu0
        %v3016 = vadd.f32 %v2943, %v3015
        %v3017 = vpop.f32.mrb[0].mxu0
        %v3018 = vadd.f32 %v2945, %v3017
        %v3019 = vpop.f32.mrb[0].mxu0
        %v3020 = vadd.f32 %v2947, %v3019
        %v3021 = vpop.f32.mrb[0].mxu0
        %v3022 = vadd.f32 %v2949, %v3021
        %3023 = vmatprep.mubr.bf16.mxu0 %v871
        %3024 = vmatmul.mubr.bf16.gmra.mrb[0].mxu0 %v870
        %v3025 = vpop.f32.mrb[0].mxu0
        %v3026 = vadd.f32 %v2953, %v3025
        %v3027 = vpop.f32.mrb[0].mxu0
        %v3028 = vadd.f32 %v2955, %v3027
        %v3029 = vpop.f32.mrb[0].mxu0
        %v3030 = vadd.f32 %v2957, %v3029
        %v3031 = vpop.f32.mrb[0].mxu0
        %v3032 = vadd.f32 %v2959, %v3031
        %3033 = vdwg.mxu0
        %s3034 = smul.u32 %s21, 64
        %v3035 = vlaneseq
        %v3036 = vshrl.u32 %v3035, 7
        %v3037 = vadd.s32 %v3036, 8
        %v3038 = vadd.s32 %v3036, 16
        %v3039 = vadd.s32 %v3036, 24
        %v3040 = vadd.s32 %v3036, 32
        %v3041 = vadd.s32 %v3036, 40
        %v3042 = vadd.s32 %v3036, 48
        %v3043 = vadd.s32 %v3036, 56
        %v3044 = vstv %s3034
        %v3045 = vadd.s32 %v3044, %v3036
        %v3046 = vadd.s32 %v3044, %v3037
        %v3047 = vadd.s32 %v3044, %v3038
        %v3048 = vadd.s32 %v3044, %v3039
        %v3049 = vadd.s32 %v3044, %v3040
        %v3050 = vadd.s32 %v3044, %v3041
        %v3051 = vadd.s32 %v3044, %v3042
        %v3052 = vadd.s32 %v3044, %v3043
        %vm3053 = vcmp.lt.s32.totalorder %v3045, 200
        %vm3054 = vcmp.lt.s32.totalorder %v3046, 200
        %vm3055 = vcmp.lt.s32.totalorder %v3047, 200
        %vm3056 = vcmp.lt.s32.totalorder %v3048, 200
        %vm3057 = vcmp.lt.s32.totalorder %v3049, 200
        %vm3058 = vcmp.lt.s32.totalorder %v3050, 200
        %vm3059 = vcmp.lt.s32.totalorder %v3051, 200
        %vm3060 = vcmp.lt.s32.totalorder %v3052, 200
        %v3061 = vsel %vm3053, 1, 0
        %v3062 = vsel %vm3054, 1, 0
        %v3063 = vsel %vm3055, 1, 0
        %v3064 = vsel %vm3056, 1, 0
        %v3065 = vsel %vm3057, 1, 0
        %v3066 = vsel %vm3058, 1, 0
        %v3067 = vsel %vm3059, 1, 0
        %v3068 = vsel %vm3060, 1, 0
        %vm3069 = vcmp.eq.s32.totalorder %v3061, 1
        %vm3070 = vcmp.eq.s32.totalorder %v3062, 1
        %vm3071 = vcmp.eq.s32.totalorder %v3063, 1
        %vm3072 = vcmp.eq.s32.totalorder %v3064, 1
        %vm3073 = vcmp.eq.s32.totalorder %v3065, 1
        %vm3074 = vcmp.eq.s32.totalorder %v3066, 1
        %vm3075 = vcmp.eq.s32.totalorder %v3067, 1
        %vm3076 = vcmp.eq.s32.totalorder %v3068, 1
        %v3077 = vsel %vm3069, %v2558, 0.0
        %v3078 = vsel %vm3069, %v2560, 0.0
        %v3079 = vsel %vm3069, %v2704, 0.0
        %v3080 = vsel %vm3069, %v2706, 0.0
        %v3081 = vsel %vm3069, %v2850, 0.0
        %v3082 = vsel %vm3069, %v2852, 0.0
        %v3083 = vsel %vm3069, %v2996, 0.0
        %v3084 = vsel %vm3069, %v2998, 0.0
        %v3085 = vsel %vm3070, %v2562, 0.0
        %v3086 = vsel %vm3070, %v2564, 0.0
        %v3087 = vsel %vm3070, %v2708, 0.0
        %v3088 = vsel %vm3070, %v2710, 0.0
        %v3089 = vsel %vm3070, %v2854, 0.0
        %v3090 = vsel %vm3070, %v2856, 0.0
        %v3091 = vsel %vm3070, %v3000, 0.0
        %v3092 = vsel %vm3070, %v3002, 0.0
        %v3093 = vsel %vm3071, %v2568, 0.0
        %v3094 = vsel %vm3071, %v2570, 0.0
        %v3095 = vsel %vm3071, %v2714, 0.0
        %v3096 = vsel %vm3071, %v2716, 0.0
        %v3097 = vsel %vm3071, %v2860, 0.0
        %v3098 = vsel %vm3071, %v2862, 0.0
        %v3099 = vsel %vm3071, %v3006, 0.0
        %v3100 = vsel %vm3071, %v3008, 0.0
        %v3101 = vsel %vm3072, %v2572, 0.0
        %v3102 = vsel %vm3072, %v2574, 0.0
        %v3103 = vsel %vm3072, %v2718, 0.0
        %v3104 = vsel %vm3072, %v2720, 0.0
        %v3105 = vsel %vm3072, %v2864, 0.0
        %v3106 = vsel %vm3072, %v2866, 0.0
        %v3107 = vsel %vm3072, %v3010, 0.0
        %v3108 = vsel %vm3072, %v3012, 0.0
        %v3109 = vsel %vm3073, %v2578, 0.0
        %v3110 = vsel %vm3073, %v2580, 0.0
        %v3111 = vsel %vm3073, %v2724, 0.0
        %v3112 = vsel %vm3073, %v2726, 0.0
        %v3113 = vsel %vm3073, %v2870, 0.0
        %v3114 = vsel %vm3073, %v2872, 0.0
        %v3115 = vsel %vm3073, %v3016, 0.0
        %v3116 = vsel %vm3073, %v3018, 0.0
        %v3117 = vsel %vm3074, %v2582, 0.0
        %v3118 = vsel %vm3074, %v2584, 0.0
        %v3119 = vsel %vm3074, %v2728, 0.0
        %v3120 = vsel %vm3074, %v2730, 0.0
        %v3121 = vsel %vm3074, %v2874, 0.0
        %v3122 = vsel %vm3074, %v2876, 0.0
        %v3123 = vsel %vm3074, %v3020, 0.0
        %v3124 = vsel %vm3074, %v3022, 0.0
        %v3125 = vsel %vm3075, %v2588, 0.0
        %v3126 = vsel %vm3075, %v2590, 0.0
        %v3127 = vsel %vm3075, %v2734, 0.0
        %v3128 = vsel %vm3075, %v2736, 0.0
        %v3129 = vsel %vm3075, %v2880, 0.0
        %v3130 = vsel %vm3075, %v2882, 0.0
        %v3131 = vsel %vm3075, %v3026, 0.0
        %v3132 = vsel %vm3075, %v3028, 0.0
        %v3133 = vsel %vm3076, %v2592, 0.0
        %v3134 = vsel %vm3076, %v2594, 0.0
        %v3135 = vsel %vm3076, %v2738, 0.0
        %v3136 = vsel %vm3076, %v2740, 0.0
        %v3137 = vsel %vm3076, %v2884, 0.0
        %v3138 = vsel %vm3076, %v2886, 0.0
        %v3139 = vsel %vm3076, %v3030, 0.0
        %v3140 = vsel %vm3076, %v3032, 0.0
        %v3141 = vadd.f32 %v3077, %v3085
        %v3142 = vadd.f32 %v3141, %v3093
        %v3143 = vadd.f32 %v3142, %v3101
        %v3144 = vadd.f32 %v3143, %v3109
        %v3145 = vadd.f32 %v3144, %v3117
        %v3146 = vadd.f32 %v3145, %v3125
        %v3147 = vadd.f32 %v3146, %v3133
        %v3148 = vrot.slane %v3147, 4
        %v3149 = vadd.f32 %v3147, %v3148
        %v3150 = vrot.slane %v3149, 2
        %v3151 = vadd.f32 %v3149, %v3150
        %v3152 = vrot.slane %v3151, 1
        %v3153 = vadd.f32 %v3151, %v3152
        %v3154 = vadd.f32 %v3078, %v3086
        %v3155 = vadd.f32 %v3154, %v3094
        %v3156 = vadd.f32 %v3155, %v3102
        %v3157 = vadd.f32 %v3156, %v3110
        %v3158 = vadd.f32 %v3157, %v3118
        %v3159 = vadd.f32 %v3158, %v3126
        %v3160 = vadd.f32 %v3159, %v3134
        %v3161 = vrot.slane %v3160, 4
        %v3162 = vadd.f32 %v3160, %v3161
        %v3163 = vrot.slane %v3162, 2
        %v3164 = vadd.f32 %v3162, %v3163
        %v3165 = vrot.slane %v3164, 1
        %v3166 = vadd.f32 %v3164, %v3165
        %v3167 = vadd.f32 %v3079, %v3087
        %v3168 = vadd.f32 %v3167, %v3095
        %v3169 = vadd.f32 %v3168, %v3103
        %v3170 = vadd.f32 %v3169, %v3111
        %v3171 = vadd.f32 %v3170, %v3119
        %v3172 = vadd.f32 %v3171, %v3127
        %v3173 = vadd.f32 %v3172, %v3135
        %v3174 = vrot.slane %v3173, 4
        %v3175 = vadd.f32 %v3173, %v3174
        %v3176 = vrot.slane %v3175, 2
        %v3177 = vadd.f32 %v3175, %v3176
        %v3178 = vrot.slane %v3177, 1
        %v3179 = vadd.f32 %v3177, %v3178
        %v3180 = vadd.f32 %v3080, %v3088
        %v3181 = vadd.f32 %v3180, %v3096
        %v3182 = vadd.f32 %v3181, %v3104
        %v3183 = vadd.f32 %v3182, %v3112
        %v3184 = vadd.f32 %v3183, %v3120
        %v3185 = vadd.f32 %v3184, %v3128
        %v3186 = vadd.f32 %v3185, %v3136
        %v3187 = vrot.slane %v3186, 4
        %v3188 = vadd.f32 %v3186, %v3187
        %v3189 = vrot.slane %v3188, 2
        %v3190 = vadd.f32 %v3188, %v3189
        %v3191 = vrot.slane %v3190, 1
        %v3192 = vadd.f32 %v3190, %v3191
        %v3193 = vadd.f32 %v3081, %v3089
        %v3194 = vadd.f32 %v3193, %v3097
        %v3195 = vadd.f32 %v3194, %v3105
        %v3196 = vadd.f32 %v3195, %v3113
        %v3197 = vadd.f32 %v3196, %v3121
        %v3198 = vadd.f32 %v3197, %v3129
        %v3199 = vadd.f32 %v3198, %v3137
        %v3200 = vrot.slane %v3199, 4
        %v3201 = vadd.f32 %v3199, %v3200
        %v3202 = vrot.slane %v3201, 2
        %v3203 = vadd.f32 %v3201, %v3202
        %v3204 = vrot.slane %v3203, 1
        %v3205 = vadd.f32 %v3203, %v3204
        %v3206 = vadd.f32 %v3082, %v3090
        %v3207 = vadd.f32 %v3206, %v3098
        %v3208 = vadd.f32 %v3207, %v3106
        %v3209 = vadd.f32 %v3208, %v3114
        %v3210 = vadd.f32 %v3209, %v3122
        %v3211 = vadd.f32 %v3210, %v3130
        %v3212 = vadd.f32 %v3211, %v3138
        %v3213 = vrot.slane %v3212, 4
        %v3214 = vadd.f32 %v3212, %v3213
        %v3215 = vrot.slane %v3214, 2
        %v3216 = vadd.f32 %v3214, %v3215
        %v3217 = vrot.slane %v3216, 1
        %v3218 = vadd.f32 %v3216, %v3217
        %v3219 = vadd.f32 %v3083, %v3091
        %v3220 = vadd.f32 %v3219, %v3099
        %v3221 = vadd.f32 %v3220, %v3107
        %v3222 = vadd.f32 %v3221, %v3115
        %v3223 = vadd.f32 %v3222, %v3123
        %v3224 = vadd.f32 %v3223, %v3131
        %v3225 = vadd.f32 %v3224, %v3139
        %v3226 = vrot.slane %v3225, 4
        %v3227 = vadd.f32 %v3225, %v3226
        %v3228 = vrot.slane %v3227, 2
        %v3229 = vadd.f32 %v3227, %v3228
        %v3230 = vrot.slane %v3229, 1
        %v3231 = vadd.f32 %v3229, %v3230
        %v3232 = vadd.f32 %v3084, %v3092
        %v3233 = vadd.f32 %v3232, %v3100
        %v3234 = vadd.f32 %v3233, %v3108
        %v3235 = vadd.f32 %v3234, %v3116
        %v3236 = vadd.f32 %v3235, %v3124
        %v3237 = vadd.f32 %v3236, %v3132
        %v3238 = vadd.f32 %v3237, %v3140
        %v3239 = vrot.slane %v3238, 4
        %v3240 = vadd.f32 %v3238, %v3239
        %v3241 = vrot.slane %v3240, 2
        %v3242 = vadd.f32 %v3240, %v3241
        %v3243 = vrot.slane %v3242, 1
        %v3244 = vadd.f32 %v3242, %v3243
        %v3245 = vmul.f32 %v3077, %v3077
        %v3246 = vmul.f32 %v3078, %v3078
        %v3247 = vmul.f32 %v3079, %v3079
        %v3248 = vmul.f32 %v3080, %v3080
        %v3249 = vmul.f32 %v3081, %v3081
        %v3250 = vmul.f32 %v3082, %v3082
        %v3251 = vmul.f32 %v3083, %v3083
        %v3252 = vmul.f32 %v3084, %v3084
        %v3253 = vmul.f32 %v3085, %v3085
        %v3254 = vmul.f32 %v3086, %v3086
        %v3255 = vmul.f32 %v3087, %v3087
        %v3256 = vmul.f32 %v3088, %v3088
        %v3257 = vmul.f32 %v3089, %v3089
        %v3258 = vmul.f32 %v3090, %v3090
        %v3259 = vmul.f32 %v3091, %v3091
        %v3260 = vmul.f32 %v3092, %v3092
        %v3261 = vmul.f32 %v3093, %v3093
        %v3262 = vmul.f32 %v3094, %v3094
        %v3263 = vmul.f32 %v3095, %v3095
        %v3264 = vmul.f32 %v3096, %v3096
        %v3265 = vmul.f32 %v3097, %v3097
        %v3266 = vmul.f32 %v3098, %v3098
        %v3267 = vmul.f32 %v3099, %v3099
        %v3268 = vmul.f32 %v3100, %v3100
        %v3269 = vmul.f32 %v3101, %v3101
        %v3270 = vmul.f32 %v3102, %v3102
        %v3271 = vmul.f32 %v3103, %v3103
        %v3272 = vmul.f32 %v3104, %v3104
        %v3273 = vmul.f32 %v3105, %v3105
        %v3274 = vmul.f32 %v3106, %v3106
        %v3275 = vmul.f32 %v3107, %v3107
        %v3276 = vmul.f32 %v3108, %v3108
        %v3277 = vmul.f32 %v3109, %v3109
        %v3278 = vmul.f32 %v3110, %v3110
        %v3279 = vmul.f32 %v3111, %v3111
        %v3280 = vmul.f32 %v3112, %v3112
        %v3281 = vmul.f32 %v3113, %v3113
        %v3282 = vmul.f32 %v3114, %v3114
        %v3283 = vmul.f32 %v3115, %v3115
        %v3284 = vmul.f32 %v3116, %v3116
        %v3285 = vmul.f32 %v3117, %v3117
        %v3286 = vmul.f32 %v3118, %v3118
        %v3287 = vmul.f32 %v3119, %v3119
        %v3288 = vmul.f32 %v3120, %v3120
        %v3289 = vmul.f32 %v3121, %v3121
        %v3290 = vmul.f32 %v3122, %v3122
        %v3291 = vmul.f32 %v3123, %v3123
        %v3292 = vmul.f32 %v3124, %v3124
        %v3293 = vmul.f32 %v3125, %v3125
        %v3294 = vmul.f32 %v3126, %v3126
        %v3295 = vmul.f32 %v3127, %v3127
        %v3296 = vmul.f32 %v3128, %v3128
        %v3297 = vmul.f32 %v3129, %v3129
        %v3298 = vmul.f32 %v3130, %v3130
        %v3299 = vmul.f32 %v3131, %v3131
        %v3300 = vmul.f32 %v3132, %v3132
        %v3301 = vmul.f32 %v3133, %v3133
        %v3302 = vmul.f32 %v3134, %v3134
        %v3303 = vmul.f32 %v3135, %v3135
        %v3304 = vmul.f32 %v3136, %v3136
        %v3305 = vmul.f32 %v3137, %v3137
        %v3306 = vmul.f32 %v3138, %v3138
        %v3307 = vmul.f32 %v3139, %v3139
        %v3308 = vmul.f32 %v3140, %v3140
        %v3309 = vadd.f32 %v3245, %v3253
        %v3310 = vadd.f32 %v3309, %v3261
        %v3311 = vadd.f32 %v3310, %v3269
        %v3312 = vadd.f32 %v3311, %v3277
        %v3313 = vadd.f32 %v3312, %v3285
        %v3314 = vadd.f32 %v3313, %v3293
        %v3315 = vadd.f32 %v3314, %v3301
        %v3316 = vrot.slane %v3315, 4
        %v3317 = vadd.f32 %v3315, %v3316
        %v3318 = vrot.slane %v3317, 2
        %v3319 = vadd.f32 %v3317, %v3318
        %v3320 = vrot.slane %v3319, 1
        %v3321 = vadd.f32 %v3319, %v3320
        %v3322 = vadd.f32 %v3246, %v3254
        %v3323 = vadd.f32 %v3322, %v3262
        %v3324 = vadd.f32 %v3323, %v3270
        %v3325 = vadd.f32 %v3324, %v3278
        %v3326 = vadd.f32 %v3325, %v3286
        %v3327 = vadd.f32 %v3326, %v3294
        %v3328 = vadd.f32 %v3327, %v3302
        %v3329 = vrot.slane %v3328, 4
        %v3330 = vadd.f32 %v3328, %v3329
        %v3331 = vrot.slane %v3330, 2
        %v3332 = vadd.f32 %v3330, %v3331
        %v3333 = vrot.slane %v3332, 1
        %v3334 = vadd.f32 %v3332, %v3333
        %v3335 = vadd.f32 %v3247, %v3255
        %v3336 = vadd.f32 %v3335, %v3263
        %v3337 = vadd.f32 %v3336, %v3271
        %v3338 = vadd.f32 %v3337, %v3279
        %v3339 = vadd.f32 %v3338, %v3287
        %v3340 = vadd.f32 %v3339, %v3295
        %v3341 = vadd.f32 %v3340, %v3303
        %v3342 = vrot.slane %v3341, 4
        %v3343 = vadd.f32 %v3341, %v3342
        %v3344 = vrot.slane %v3343, 2
        %v3345 = vadd.f32 %v3343, %v3344
        %v3346 = vrot.slane %v3345, 1
        %v3347 = vadd.f32 %v3345, %v3346
        %v3348 = vadd.f32 %v3248, %v3256
        %v3349 = vadd.f32 %v3348, %v3264
        %v3350 = vadd.f32 %v3349, %v3272
        %v3351 = vadd.f32 %v3350, %v3280
        %v3352 = vadd.f32 %v3351, %v3288
        %v3353 = vadd.f32 %v3352, %v3296
        %v3354 = vadd.f32 %v3353, %v3304
        %v3355 = vrot.slane %v3354, 4
        %v3356 = vadd.f32 %v3354, %v3355
        %v3357 = vrot.slane %v3356, 2
        %v3358 = vadd.f32 %v3356, %v3357
        %v3359 = vrot.slane %v3358, 1
        %v3360 = vadd.f32 %v3358, %v3359
        %v3361 = vadd.f32 %v3249, %v3257
        %v3362 = vadd.f32 %v3361, %v3265
        %v3363 = vadd.f32 %v3362, %v3273
        %v3364 = vadd.f32 %v3363, %v3281
        %v3365 = vadd.f32 %v3364, %v3289
        %v3366 = vadd.f32 %v3365, %v3297
        %v3367 = vadd.f32 %v3366, %v3305
        %v3368 = vrot.slane %v3367, 4
        %v3369 = vadd.f32 %v3367, %v3368
        %v3370 = vrot.slane %v3369, 2
        %v3371 = vadd.f32 %v3369, %v3370
        %v3372 = vrot.slane %v3371, 1
        %v3373 = vadd.f32 %v3371, %v3372
        %v3374 = vadd.f32 %v3250, %v3258
        %v3375 = vadd.f32 %v3374, %v3266
        %v3376 = vadd.f32 %v3375, %v3274
        %v3377 = vadd.f32 %v3376, %v3282
        %v3378 = vadd.f32 %v3377, %v3290
        %v3379 = vadd.f32 %v3378, %v3298
        %v3380 = vadd.f32 %v3379, %v3306
        %v3381 = vrot.slane %v3380, 4
        %v3382 = vadd.f32 %v3380, %v3381
        %v3383 = vrot.slane %v3382, 2
        %v3384 = vadd.f32 %v3382, %v3383
        %v3385 = vrot.slane %v3384, 1
        %v3386 = vadd.f32 %v3384, %v3385
        %v3387 = vadd.f32 %v3251, %v3259
        %v3388 = vadd.f32 %v3387, %v3267
        %v3389 = vadd.f32 %v3388, %v3275
        %v3390 = vadd.f32 %v3389, %v3283
        %v3391 = vadd.f32 %v3390, %v3291
        %v3392 = vadd.f32 %v3391, %v3299
        %v3393 = vadd.f32 %v3392, %v3307
        %v3394 = vrot.slane %v3393, 4
        %v3395 = vadd.f32 %v3393, %v3394
        %v3396 = vrot.slane %v3395, 2
        %v3397 = vadd.f32 %v3395, %v3396
        %v3398 = vrot.slane %v3397, 1
        %v3399 = vadd.f32 %v3397, %v3398
        %v3400 = vadd.f32 %v3252, %v3260
        %v3401 = vadd.f32 %v3400, %v3268
        %v3402 = vadd.f32 %v3401, %v3276
        %v3403 = vadd.f32 %v3402, %v3284
        %v3404 = vadd.f32 %v3403, %v3292
        %v3405 = vadd.f32 %v3404, %v3300
        %v3406 = vadd.f32 %v3405, %v3308
        %v3407 = vrot.slane %v3406, 4
        %v3408 = vadd.f32 %v3406, %v3407
        %v3409 = vrot.slane %v3408, 2
        %v3410 = vadd.f32 %v3408, %v3409
        %v3411 = vrot.slane %v3410, 1
        %v3412 = vadd.f32 %v3410, %v3411
        %v3421 = vcombine.low %v3153, %v3166
        %v3422 = vcombine.low %v3179, %v3192
        %v3423 = vcombine.low %v3205, %v3218
        %v3424 = vcombine.low %v3231, %v3244
        %v3426 = vunpack.c.l.s4 1966171168
        %v3427 = vunpack.c.0.s8 %v3426
        %v3428 = vlaneseq
        %v3429 = vshrl.u32 %v3428, 7
        %v3430 = vsub.s32 %v3427, %v3429
        %v3431 = vrot.slane %v3421, %v3430
        %v3433 = vunpack.c.l.s4 1966171168
        %v3434 = vunpack.c.0.s8 %v3433
        %v3435 = vlaneseq
        %v3436 = vshrl.u32 %v3435, 7
        %v3437 = vsub.s32 %v3434, %v3436
        %v3438 = vrot.slane %v3422, %v3437
        %v3440 = vunpack.c.l.s4 1966171168
        %v3441 = vunpack.c.0.s8 %v3440
        %v3442 = vlaneseq
        %v3443 = vshrl.u32 %v3442, 7
        %v3444 = vsub.s32 %v3441, %v3443
        %v3445 = vrot.slane %v3423, %v3444
        %v3447 = vunpack.c.l.s4 1966171168
        %v3448 = vunpack.c.0.s8 %v3447
        %v3449 = vlaneseq
        %v3450 = vshrl.u32 %v3449, 7
        %v3451 = vsub.s32 %v3448, %v3450
        %v3452 = vrot.slane %v3424, %v3451
        %v3453 = vcombine.low %v3431, %v3438
        %v3454 = vcombine.low %v3445, %v3452
        %v3456 = vunpack.c.l.s4 1966171168
        %v3457 = vunpack.c.0.s8 %v3456
        %v3458 = vlaneseq
        %v3459 = vshrl.u32 %v3458, 7
        %v3460 = vsub.s32 %v3457, %v3459
        %v3461 = vrot.slane %v3453, %v3460
        %v3463 = vunpack.c.l.s4 1966171168
        %v3464 = vunpack.c.0.s8 %v3463
        %v3465 = vlaneseq
        %v3466 = vshrl.u32 %v3465, 7
        %v3467 = vsub.s32 %v3464, %v3466
        %v3468 = vrot.slane %v3454, %v3467
        %v3469 = vcombine.low %v3461, %v3468
        %3471 = vst [vmem:[%s309] ss:$2 sm:$0xff] %v3469
        %v3480 = vcombine.low %v3321, %v3334
        %v3481 = vcombine.low %v3347, %v3360
        %v3482 = vcombine.low %v3373, %v3386
        %v3483 = vcombine.low %v3399, %v3412
        %v3485 = vunpack.c.l.s4 1966171168
        %v3486 = vunpack.c.0.s8 %v3485
        %v3487 = vlaneseq
        %v3488 = vshrl.u32 %v3487, 7
        %v3489 = vsub.s32 %v3486, %v3488
        %v3490 = vrot.slane %v3480, %v3489
        %v3492 = vunpack.c.l.s4 1966171168
        %v3493 = vunpack.c.0.s8 %v3492
        %v3494 = vlaneseq
        %v3495 = vshrl.u32 %v3494, 7
        %v3496 = vsub.s32 %v3493, %v3495
        %v3497 = vrot.slane %v3481, %v3496
        %v3499 = vunpack.c.l.s4 1966171168
        %v3500 = vunpack.c.0.s8 %v3499
        %v3501 = vlaneseq
        %v3502 = vshrl.u32 %v3501, 7
        %v3503 = vsub.s32 %v3500, %v3502
        %v3504 = vrot.slane %v3482, %v3503
        %v3506 = vunpack.c.l.s4 1966171168
        %v3507 = vunpack.c.0.s8 %v3506
        %v3508 = vlaneseq
        %v3509 = vshrl.u32 %v3508, 7
        %v3510 = vsub.s32 %v3507, %v3509
        %v3511 = vrot.slane %v3483, %v3510
        %v3512 = vcombine.low %v3490, %v3497
        %v3513 = vcombine.low %v3504, %v3511
        %v3515 = vunpack.c.l.s4 1966171168
        %v3516 = vunpack.c.0.s8 %v3515
        %v3517 = vlaneseq
        %v3518 = vshrl.u32 %v3517, 7
        %v3519 = vsub.s32 %v3516, %v3518
        %v3520 = vrot.slane %v3512, %v3519
        %v3522 = vunpack.c.l.s4 1966171168
        %v3523 = vunpack.c.0.s8 %v3522
        %v3524 = vlaneseq
        %v3525 = vshrl.u32 %v3524, 7
        %v3526 = vsub.s32 %v3523, %v3525
        %v3527 = vrot.slane %v3513, %v3526
        %v3528 = vcombine.low %v3520, %v3527
        %s3530 = scalar_lea.vmem %s309, 1
        %3531 = vst [vmem:[%s3530] ss:$2 sm:$0xff] %v3528
        %p3532 = scmp.lt.s32.totalorder %s21, 3
        %s3533 = scalar_select %p3532, %s21, 3
        %s3534 = smul.addr %s3533, 8
        %s3535 = smul.addr %s3534, 2
        %s3536 = scalar_lea.vmem %s6, %s3535
        // Predicated region
        $region57: #{adda_discriminator_forward.4} parent=43 // pred_check
          %p3537 = pneg %p170
        $region58: #{adda_discriminator_forward.4} parent=43 // pred_check_branch
          %3539 = sbr.rel (%p3537) target = $region60
        $region59: #{adda_discriminator_forward.4} parent=43 // pred_region
          _
        $region60: #{adda_discriminator_forward.4} parent=43 // pred_fallthru
          _
      $region44: #{adda_discriminator_forward.4} parent=5 // pred_fallthru
        _
      %p3540 = scmp.le.s32.totalorder 2, %s16
      // Predicated region
      $region61: #{adda_discriminator_forward.4} parent=5 // pred_check
        %p3541 = pneg %p3540
      $region62: #{adda_discriminator_forward.4} parent=5 // pred_check_branch
        %3543 = sbr.rel (%p3541) target = $region64
      $region63: #{adda_discriminator_forward.4} parent=5 // pred_region
        %s3544 = ssub.s32 %s16, 2
        // Predicated region
        $region65: #{adda_discriminator_forward.4} parent=63 // pred_check
          %p3545 = pneg %p176
        $region66: #{adda_discriminator_forward.4} parent=63 // pred_check_branch
          %3547 = sbr.rel (%p3545) target = $region68
        $region67: #{adda_discriminator_forward.4} parent=63 // pred_region
          %p3548 = scmp.lt.s32.totalorder %s22, 3
          %s3549 = scalar_select %p3548, %s22, 3
          %s3550 = smul.addr %s3549, 8
          %s3551 = smul.addr %s3550, 2
          %s3552 = scalar_lea.vmem %s6, %s3551
        $region68: #{adda_discriminator_forward.4} parent=63 // pred_fallthru
          _
      $region64: #{adda_discriminator_forward.4} parent=5 // pred_fallthru
        _
    $region6: #{adda_discriminator_forward.4} parent=1 // loop_footer
      %s20 = sadd.s32 1, %s16
    $region7: #{adda_discriminator_forward.4} parent=1 // loop_footer_branch
      %15 = sbr.rel target = $region3
    $region8: #{adda_discriminator_forward.4} parent=1 // loop_exit
      _
    %3553 = vsyncpa [#allocation3], 1
    %s3554 = scalar_lea.sflag [#allocation3], 1
    %3555 = vsyncpa %s3554, 1
    %3556 = vsyncpa [#allocation5], 1

</llo_original>
